<compile_context>
chip_gen: v5e
topology: v5e:2x2
jax: 0.10.0
libtpu: 0.0.40
codegen_flags: <defaults>
</compile_context>

<pallas_src>
import functools

import numpy as np
import jax
import jax.numpy as jnp
from jax.experimental import pallas as pl
from jax.experimental.pallas import tpu as pltpu

LANE = 128      # vreg lane width
SUBLANE = 8     # vreg sublane count


def _round_up(x, m):
    return ((x + m - 1) // m) * m


# ----------------------------------------------------------------------------
# Tiled matmul+bias kernel (used for the hoisted layer-0 input projection)
# ----------------------------------------------------------------------------
def _linear_kernel(x_ref, w_ref, b_ref, o_ref):
    x = x_ref[...].astype(w_ref.dtype)          # bf16 operands, f32 accumulate
    o_ref[...] = (jnp.dot(x, w_ref[...], preferred_element_type=jnp.float32)
                  + b_ref[...]).astype(o_ref.dtype)


def linear_pallas(x, w_t, b, tm=128):
    """x: [N, K] f32, w_t: [K, M] bf16, b: [1, M] f32 -> [N, M] f32."""
    N, K = x.shape
    M = w_t.shape[1]
    tm = min(tm, _round_up(N, SUBLANE))
    n_pad = _round_up(N, tm)
    if n_pad != N:
        x = jnp.pad(x, ((0, n_pad - N), (0, 0)))
    out = pl.pallas_call(
        _linear_kernel,
        out_shape=jax.ShapeDtypeStruct((n_pad, M), jnp.float32),
        grid_spec=pltpu.PrefetchScalarGridSpec(
            num_scalar_prefetch=0,
            grid=(n_pad // tm,),
            in_specs=[
                pl.BlockSpec((tm, K), lambda i: (i, 0)),
                # loop-invariant weight / bias: single-buffered
                pl.BlockSpec((K, M), lambda i: (0, 0),
                             pipeline_mode=pl.Buffered(1)),
                pl.BlockSpec((1, M), lambda i: (0, 0),
                             pipeline_mode=pl.Buffered(1)),
            ],
            out_specs=pl.BlockSpec((tm, M), lambda i: (i, 0)),
        ),
        compiler_params=pltpu.CompilerParams(
            dimension_semantics=("parallel",)),
    )(x, w_t, b)
    return out[:N]


# ----------------------------------------------------------------------------
# Fused multi-layer LSTM + output projection kernel
# ----------------------------------------------------------------------------
def _fused_lstm_kernel(xg0_ref, whh0_ref, wcat_ref, bcat_ref, wout_ref,
                       bout_ref, emis_ref, h_scr, c_scr,
                       *, num_layers, steps, h_pad):
    @pl.when(pl.program_id(0) == 0)
    def _():
        h_scr[...] = jnp.zeros_like(h_scr)
        c_scr[...] = jnp.zeros_like(c_scr)

    def cell(gates, c_prev):
        # PyTorch gate order i, f, g, o; each slice is a 128-lane-aligned band.
        i_g = jax.nn.sigmoid(gates[:, 0 * h_pad:1 * h_pad])
        f_g = jax.nn.sigmoid(gates[:, 1 * h_pad:2 * h_pad])
        g_g = jnp.tanh(gates[:, 2 * h_pad:3 * h_pad])
        o_g = jax.nn.sigmoid(gates[:, 3 * h_pad:4 * h_pad])
        c_new = f_g * c_prev + i_g * g_g
        h_new = o_g * jnp.tanh(c_new)
        return h_new, c_new

    def step(k, carry):
        # ---- layer 0: x @ W_ih + b was hoisted; only h @ W_hh remains ----
        gates = xg0_ref[k] + jnp.dot(
            h_scr[0].astype(whh0_ref.dtype), whh0_ref[...],
            preferred_element_type=jnp.float32)
        h_new, c_new = cell(gates, c_scr[0])
        h_scr[0] = h_new
        c_scr[0] = c_new
        x_in = h_new
        # ---- layers 1..L-1: one fused [x_t, h_{t-1}] @ [W_ih; W_hh] pass ----
        for l in range(1, num_layers):
            xh = jnp.concatenate([x_in, h_scr[l]], axis=-1)
            gates = (jnp.dot(xh.astype(wcat_ref.dtype), wcat_ref[l - 1],
                             preferred_element_type=jnp.float32)
                     + bcat_ref[l - 1])
            h_new, c_new = cell(gates, c_scr[l])
            h_scr[l] = h_new
            c_scr[l] = c_new
            x_in = h_new
        # ---- fused output projection; lane-dense (last dim multiple of 128) --
        emis_ref[k] = (jnp.dot(x_in.astype(wout_ref.dtype), wout_ref[...],
                               preferred_element_type=jnp.float32)
                       + bout_ref[...]).astype(emis_ref.dtype)
        return carry

    jax.lax.fori_loop(0, steps, step, 0, unroll=True)


def fused_lstm(xg0, whh0_t, wcat, bcat, wout_t, bout, *, num_layers, k_steps):
    """xg0: [T_pad, B_pad, 4*H_pad] precomputed layer-0 gate pre-activations."""
    t_pad, b_pad, g = xg0.shape
    h_pad = g // 4
    nt_pad = wout_t.shape[1]
    lm1 = wcat.shape[0]

    kernel = functools.partial(_fused_lstm_kernel, num_layers=num_layers,
                               steps=k_steps, h_pad=h_pad)
    single = dict(pipeline_mode=pl.Buffered(1))   # loop-invariant operands

    return pl.pallas_call(
        kernel,
        out_shape=jax.ShapeDtypeStruct((t_pad, b_pad, nt_pad), jnp.float32),
        grid_spec=pltpu.PrefetchScalarGridSpec(
            num_scalar_prefetch=0,
            grid=(t_pad // k_steps,),
            in_specs=[
                pl.BlockSpec((k_steps, b_pad, g), lambda i: (i, 0, 0)),
                pl.BlockSpec((h_pad, g), lambda i: (0, 0), **single),
                pl.BlockSpec((lm1, 2 * h_pad, g), lambda i: (0, 0, 0), **single),
                pl.BlockSpec((lm1, 1, g), lambda i: (0, 0, 0), **single),
                pl.BlockSpec((h_pad, nt_pad), lambda i: (0, 0), **single),
                pl.BlockSpec((1, nt_pad), lambda i: (0, 0), **single),
            ],
            out_specs=pl.BlockSpec((k_steps, b_pad, nt_pad),
                                   lambda i: (i, 0, 0)),
            scratch_shapes=[
                pltpu.VMEM((num_layers, b_pad, h_pad), jnp.float32),  # h state
                pltpu.VMEM((num_layers, b_pad, h_pad), jnp.float32),  # c state
            ],
        ),
        # The recurrence carries state across grid steps -> sequential grid.
        # TODO(synk): on v7x, add a leading "parallel" batch-tile grid axis (2
        # TensorCores) and gate dead rows via prefetched batch_sizes once B is
        # large enough to split into >=8-row tiles.
        compiler_params=pltpu.CompilerParams(
            dimension_semantics=("arbitrary",)),
    )(xg0, whh0_t, wcat, bcat, wout_t, bout)


# ----------------------------------------------------------------------------
# PackedSequence helpers (host-side glue, static indices)
# ----------------------------------------------------------------------------
def packing_indices(lengths):
    """lengths sorted descending. Returns (batch_sizes, t_idx, b_idx) such that
    packed[k] == padded[t_idx[k], b_idx[k]] (PyTorch packing order)."""
    lengths = np.asarray(lengths)
    T = int(lengths.max())
    batch_sizes = np.array([int((lengths > t).sum()) for t in range(T)],
                           dtype=np.int64)
    t_idx, b_idx = [], []
    for t in range(T):
        for b in range(batch_sizes[t]):
            t_idx.append(t)
            b_idx.append(b)
    return batch_sizes, np.array(t_idx), np.array(b_idx)


# ----------------------------------------------------------------------------
# Model: parameters + forward
# ----------------------------------------------------------------------------
def init_params(key, num_vocabs, embed_dim, hidden_dim, num_tags, num_layers):
    h, e = hidden_dim, embed_dim
    h_pad = _round_up(h, LANE)
    nt_pad = _round_up(num_tags, LANE)

    keys = jax.random.split(key, 2 + 4 * num_layers)
    glove = jax.random.normal(keys[0], (num_vocabs, e), jnp.float32) * 0.1
    glove = glove.at[0].set(0.0)          # padding_idx = 0

    s = 1.0 / np.sqrt(h)

    def uni(k, shape):
        return jax.random.uniform(k, shape, jnp.float32, -s, s)

    def pad_gate_rows(w):
        # [4h, d] -> [4*h_pad, d]; each gate band zero-padded to h_pad rows.
        out = jnp.zeros((4 * h_pad, w.shape[1]), w.dtype)
        for g4 in range(4):
            out = out.at[g4 * h_pad:g4 * h_pad + h].set(w[g4 * h:(g4 + 1) * h])
        return out

    def pad_gate_vec(b):
        out = jnp.zeros((4 * h_pad,), b.dtype)
        for g4 in range(4):
            out = out.at[g4 * h_pad:g4 * h_pad + h].set(b[g4 * h:(g4 + 1) * h])
        return out

    def pad_cols(w):
        return jnp.pad(w, ((0, 0), (0, h_pad - w.shape[1])))

    ki = 1
    wih0_t = whh0_t = b0 = None
    wcat_list, bcat_list = [], []
    for layer in range(num_layers):
        in_dim = e if layer == 0 else h
        w_ih = uni(keys[ki], (4 * h, in_dim)); ki += 1
        w_hh = uni(keys[ki], (4 * h, h)); ki += 1
        b_ih = uni(keys[ki], (4 * h,)); ki += 1
        b_hh = uni(keys[ki], (4 * h,)); ki += 1
        bias = pad_gate_vec(b_ih + b_hh)[None, :]                   # [1, 4h_pad]
        if layer == 0:
            wih0_t = pad_gate_rows(w_ih).T.astype(jnp.bfloat16)     # [e, 4h_pad]
            whh0_t = pad_cols(pad_gate_rows(w_hh)).T.astype(jnp.bfloat16)
            b0 = bias
        else:
            wih_t = pad_cols(pad_gate_rows(w_ih)).T                 # [h_pad, 4h_pad]
            whh_t = pad_cols(pad_gate_rows(w_hh)).T
            wcat_list.append(jnp.concatenate([wih_t, whh_t], axis=0))
            bcat_list.append(bias)

    if wcat_list:
        wcat = jnp.stack(wcat_list).astype(jnp.bfloat16)   # [L-1, 2h_pad, 4h_pad]
        bcat = jnp.stack(bcat_list)                        # [L-1, 1, 4h_pad]
    else:  # num_layers == 1: dummy operands (never read inside the kernel)
        wcat = jnp.zeros((1, 2 * h_pad, 4 * h_pad), jnp.bfloat16)
        bcat = jnp.zeros((1, 1, 4 * h_pad), jnp.float32)

    w_out = uni(keys[-1], (num_tags, h))
    wout_t = jnp.zeros((h_pad, nt_pad), jnp.float32).at[:h, :num_tags].set(w_out.T)
    bout = jnp.zeros((1, nt_pad), jnp.float32)

    return dict(glove=glove, wih0_t=wih0_t, b0=b0, whh0_t=whh0_t,
                wcat=wcat, bcat=bcat,
                wout_t=wout_t.astype(jnp.bfloat16), bout=bout)


def make_forward(t_idx, b_idx, T, B, *, num_layers, hidden_dim, num_tags,
                 k_steps=8):
    """Builds forward(params, packed_ids) -> packed emission [N, num_tags]."""
    h_pad = _round_up(hidden_dim, LANE)
    b_pad = _round_up(B, SUBLANE)
    t_pad = _round_up(T, k_steps)
    t_idx_j = jnp.asarray(np.asarray(t_idx), jnp.int32)
    b_idx_j = jnp.asarray(np.asarray(b_idx), jnp.int32)

    @jax.jit
    def forward(params, packed_ids):
        # embedding lookup + unpack to padded time-major [T_pad, B_pad, E] (glue)
        emb = jnp.take(params["glove"], packed_ids, axis=0)          # [N, E]
        e = emb.shape[-1]
        x_seq = jnp.zeros((t_pad, b_pad, e), jnp.float32)
        x_seq = x_seq.at[t_idx_j, b_idx_j].set(emb)
        # hoisted layer-0 input projection: ONE big matmul over the sequence
        xg0 = linear_pallas(x_seq.reshape(t_pad * b_pad, e),
                            params["wih0_t"], params["b0"])
        xg0 = xg0.reshape(t_pad, b_pad, 4 * h_pad)
        # fused multi-layer LSTM + output projection (single pallas_call)
        emis = fused_lstm(xg0, params["whh0_t"], params["wcat"],
                          params["bcat"], params["wout_t"], params["bout"],
                          num_layers=num_layers, k_steps=k_steps)
        # re-pack hidden positions and strip lane padding (glue)
        return emis[t_idx_j, b_idx_j][:, :num_tags]

    return forward


# ----------------------------------------------------------------------------
if __name__ == "__main__":
    # small config consistent with the module's forward
    num_vocabs, embed_dim, hidden_dim, num_tags, num_layers = 20, 32, 32, 8, 2
    lengths = [8, 6, 5, 3]          # sorted descending (packed-sequence order)
    B, T = len(lengths), max(lengths)

    batch_sizes, t_idx, b_idx = packing_indices(lengths)
    N = int(batch_sizes.sum())      # total tokens in the packed sequence

    key = jax.random.PRNGKey(0)
    k_param, k_ids = jax.random.split(key)
    params = init_params(k_param, num_vocabs, embed_dim, hidden_dim,
                         num_tags, num_layers)

    # deterministic packed token ids (1..num_vocabs-1; 0 reserved for padding)
    packed_ids = jax.random.randint(k_ids, (N,), 1, num_vocabs, dtype=jnp.int32)

    forward = make_forward(t_idx, b_idx, T, B, num_layers=num_layers,
                           hidden_dim=hidden_dim, num_tags=num_tags)
    emission = forward(params, packed_ids)     # packed emission [N, num_tags]
    emission = jax.block_until_ready(emission)

    assert emission.shape == (N, num_tags)
    assert bool(jnp.all(jnp.isfinite(emission)))
    print("KERNEL_OK")
</pallas_src>

<mosaic_0001>
module attributes {stable_mosaic.version = 11 : i64} {
  func.func @_linear_kernel(%arg0: i32, %arg1: memref<64x32xf32, #tpu.memory_space<vmem>>, %arg2: memref<32x512xbf16, #tpu.memory_space<vmem>>, %arg3: memref<1x512xf32, #tpu.memory_space<vmem>>, %arg4: memref<64x512xf32, #tpu.memory_space<vmem>>) attributes {dimension_semantics = [#tpu.dimension_semantics<parallel>], iteration_bounds = array<i64: 1>, scalar_prefetch = 0 : i64, scratch_operands = 0 : i64, tpu.core_type = #tpu.core_type<tc>, window_params = [{transform_indices = @transform_0, window_bounds = array<i64: 64, 32>}, {pipeline_mode = #tpu.pipeline_mode<synchronous>, transform_indices = @transform_1, window_bounds = array<i64: 32, 512>}, {pipeline_mode = #tpu.pipeline_mode<synchronous>, transform_indices = @transform_2, window_bounds = array<i64: 1, 512>}, {transform_indices = @transform_3, window_bounds = array<i64: 64, 512>}]} {
    %c0 = arith.constant 0 : index
    %c0_0 = arith.constant 0 : index
    %0 = vector.load %arg1[%c0, %c0_0] : memref<64x32xf32, #tpu.memory_space<vmem>>, vector<64x32xf32>
    %1 = arith.truncf %0 : vector<64x32xf32> to vector<64x32xbf16>
    %c0_1 = arith.constant 0 : index
    %c0_2 = arith.constant 0 : index
    %2 = vector.load %arg2[%c0_1, %c0_2] : memref<32x512xbf16, #tpu.memory_space<vmem>>, vector<32x512xbf16>
    %cst = arith.constant dense<0.000000e+00> : vector<64x512xf32>
    %3 = tpu.matmul %1, %2, %cst {dimension_numbers = #tpu.dot_dimension_numbers<[1], [0], [0], [1], [0, 0, 1, 1], [], []>} : vector<64x32xbf16>, vector<32x512xbf16>, vector<64x512xf32> -> vector<64x512xf32>
    %c0_3 = arith.constant 0 : index
    %c0_4 = arith.constant 0 : index
    %4 = vector.load %arg3[%c0_3, %c0_4] : memref<1x512xf32, #tpu.memory_space<vmem>>, vector<1x512xf32>
    %5 = vector.broadcast %4 : vector<1x512xf32> to vector<64x512xf32>
    %6 = arith.addf %3, %5 : vector<64x512xf32>
    %c0_5 = arith.constant 0 : index
    %c0_6 = arith.constant 0 : index
    %7 = vector.load %arg4[%c0_5, %c0_6] : memref<64x512xf32, #tpu.memory_space<vmem>>, vector<64x512xf32>
    tpu.vector_store %arg4[%c0_5, %c0_6], %6 {strides = array<i32>} : memref<64x512xf32, #tpu.memory_space<vmem>>, vector<64x512xf32>,
    return
  }
  func.func @transform_0(%arg0: i32) -> (i32, i32) {
    %c0_i32 = arith.constant 0 : i32
    %c0_i32_0 = arith.constant 0 : i32
    return %arg0, %c0_i32 : i32, i32
  }
  func.func @transform_1(%arg0: i32) -> (i32, i32) {
    %c0_i32 = arith.constant 0 : i32
    %c0_i32_0 = arith.constant 0 : i32
    %c0_i32_1 = arith.constant 0 : i32
    return %c0_i32, %c0_i32_0 : i32, i32
  }
  func.func @transform_2(%arg0: i32) -> (i32, i32) {
    %c0_i32 = arith.constant 0 : i32
    %c0_i32_0 = arith.constant 0 : i32
    %c0_i32_1 = arith.constant 0 : i32
    return %c0_i32, %c0_i32_0 : i32, i32
  }
  func.func @transform_3(%arg0: i32) -> (i32, i32) {
    %c0_i32 = arith.constant 0 : i32
    %c0_i32_0 = arith.constant 0 : i32
    return %arg0, %c0_i32 : i32, i32
  }
}

module attributes {stable_mosaic.version = 11 : i64} {
  func.func @_fused_lstm_kernel(%arg0: i32, %arg1: memref<8x8x512xf32, #tpu.memory_space<vmem>>, %arg2: memref<128x512xbf16, #tpu.memory_space<vmem>>, %arg3: memref<1x256x512xbf16, #tpu.memory_space<vmem>>, %arg4: memref<1x1x512xf32, #tpu.memory_space<vmem>>, %arg5: memref<128x128xbf16, #tpu.memory_space<vmem>>, %arg6: memref<1x128xf32, #tpu.memory_space<vmem>>, %arg7: memref<8x8x128xf32, #tpu.memory_space<vmem>>, %arg8: memref<2x8x128xf32, #tpu.memory_space<vmem>>, %arg9: memref<2x8x128xf32, #tpu.memory_space<vmem>>) attributes {dimension_semantics = [#tpu.dimension_semantics<arbitrary>], iteration_bounds = array<i64: 1>, scalar_prefetch = 0 : i64, scratch_operands = 2 : i64, tpu.core_type = #tpu.core_type<tc>, window_params = [{transform_indices = @transform_0, window_bounds = array<i64: 8, 8, 512>}, {pipeline_mode = #tpu.pipeline_mode<synchronous>, transform_indices = @transform_1, window_bounds = array<i64: 128, 512>}, {pipeline_mode = #tpu.pipeline_mode<synchronous>, transform_indices = @transform_2, window_bounds = array<i64: 1, 256, 512>}, {pipeline_mode = #tpu.pipeline_mode<synchronous>, transform_indices = @transform_3, window_bounds = array<i64: 1, 1, 512>}, {pipeline_mode = #tpu.pipeline_mode<synchronous>, transform_indices = @transform_4, window_bounds = array<i64: 128, 128>}, {pipeline_mode = #tpu.pipeline_mode<synchronous>, transform_indices = @transform_5, window_bounds = array<i64: 1, 128>}, {transform_indices = @transform_6, window_bounds = array<i64: 8, 8, 128>}]} {
    %c0_i32 = arith.constant 0 : i32
    %0 = arith.cmpi eq, %arg0, %c0_i32 : i32
    %1 = arith.extui %0 : i1 to i32
    %c0_i32_0 = arith.constant 0 : i32
    %2 = arith.cmpi ne, %1, %c0_i32_0 : i32
    scf.if %2 {
      %cst_391 = arith.constant 0.000000e+00 : f32
      %771 = vector.broadcast %cst_391 : f32 to vector<2x8x128xf32>
      %c0_392 = arith.constant 0 : index
      %c0_393 = arith.constant 0 : index
      %c0_394 = arith.constant 0 : index
      %772 = vector.load %arg8[%c0_392, %c0_393, %c0_394] : memref<2x8x128xf32, #tpu.memory_space<vmem>>, vector<2x8x128xf32>
      tpu.vector_store %arg8[%c0_392, %c0_393, %c0_394], %771 {strides = array<i32>} : memref<2x8x128xf32, #tpu.memory_space<vmem>>, vector<2x8x128xf32>,
      %cst_395 = arith.constant 0.000000e+00 : f32
      %773 = vector.broadcast %cst_395 : f32 to vector<2x8x128xf32>
      %c0_396 = arith.constant 0 : index
      %c0_397 = arith.constant 0 : index
      %c0_398 = arith.constant 0 : index
      %774 = vector.load %arg9[%c0_396, %c0_397, %c0_398] : memref<2x8x128xf32, #tpu.memory_space<vmem>>, vector<2x8x128xf32>
      tpu.vector_store %arg9[%c0_396, %c0_397, %c0_398], %773 {strides = array<i32>} : memref<2x8x128xf32, #tpu.memory_space<vmem>>, vector<2x8x128xf32>,
    } else {
    }
    %c0_i32_1 = arith.constant 0 : i32
    %3 = arith.index_cast %c0_i32_1 : i32 to index
    %c0 = arith.constant 0 : index
    %c0_2 = arith.constant 0 : index
    %4 = vector.load %arg1[%3, %c0, %c0_2] : memref<8x8x512xf32, #tpu.memory_space<vmem>>, vector<1x8x512xf32>
    %5 = vector.shape_cast %4 : vector<1x8x512xf32> to vector<8x512xf32>
    %c0_3 = arith.constant 0 : index
    %c0_4 = arith.constant 0 : index
    %c0_5 = arith.constant 0 : index
    %6 = vector.load %arg8[%c0_3, %c0_4, %c0_5] : memref<2x8x128xf32, #tpu.memory_space<vmem>>, vector<1x8x128xf32>
    %7 = vector.shape_cast %6 : vector<1x8x128xf32> to vector<8x128xf32>
    %8 = arith.truncf %7 : vector<8x128xf32> to vector<8x128xbf16>
    %c0_6 = arith.constant 0 : index
    %c0_7 = arith.constant 0 : index
    %9 = vector.load %arg2[%c0_6, %c0_7] : memref<128x512xbf16, #tpu.memory_space<vmem>>, vector<128x512xbf16>
    %cst = arith.constant dense<0.000000e+00> : vector<8x512xf32>
    %10 = tpu.matmul %8, %9, %cst {dimension_numbers = #tpu.dot_dimension_numbers<[1], [0], [0], [1], [0, 0, 1, 1], [], []>} : vector<8x128xbf16>, vector<128x512xbf16>, vector<8x512xf32> -> vector<8x512xf32>
    %11 = arith.addf %5, %10 : vector<8x512xf32>
    %c0_8 = arith.constant 0 : index
    %c0_9 = arith.constant 0 : index
    %c0_10 = arith.constant 0 : index
    %12 = vector.load %arg9[%c0_8, %c0_9, %c0_10] : memref<2x8x128xf32, #tpu.memory_space<vmem>>, vector<1x8x128xf32>
    %13 = vector.shape_cast %12 : vector<1x8x128xf32> to vector<8x128xf32>
    %14 = vector.extract_strided_slice %11 {offsets = [0, 0], sizes = [8, 128], strides = [1, 1]} : vector<8x512xf32> to vector<8x128xf32>
    %15 = arith.negf %14 : vector<8x128xf32>
    %16 = math.exp %15 : vector<8x128xf32>
    %cst_11 = arith.constant 1.000000e+00 : f32
    %17 = vector.broadcast %cst_11 : f32 to vector<8x128xf32>
    %18 = arith.addf %17, %16 : vector<8x128xf32>
    %19 = arith.divf %17, %18 : vector<8x128xf32>
    %20 = vector.extract_strided_slice %11 {offsets = [0, 128], sizes = [8, 128], strides = [1, 1]} : vector<8x512xf32> to vector<8x128xf32>
    %21 = arith.negf %20 : vector<8x128xf32>
    %22 = math.exp %21 : vector<8x128xf32>
    %cst_12 = arith.constant 1.000000e+00 : f32
    %23 = vector.broadcast %cst_12 : f32 to vector<8x128xf32>
    %24 = arith.addf %23, %22 : vector<8x128xf32>
    %25 = arith.divf %23, %24 : vector<8x128xf32>
    %26 = vector.extract_strided_slice %11 {offsets = [0, 256], sizes = [8, 128], strides = [1, 1]} : vector<8x512xf32> to vector<8x128xf32>
    %27 = math.tanh %26 : vector<8x128xf32>
    %28 = vector.extract_strided_slice %11 {offsets = [0, 384], sizes = [8, 128], strides = [1, 1]} : vector<8x512xf32> to vector<8x128xf32>
    %29 = arith.negf %28 : vector<8x128xf32>
    %30 = math.exp %29 : vector<8x128xf32>
    %cst_13 = arith.constant 1.000000e+00 : f32
    %31 = vector.broadcast %cst_13 : f32 to vector<8x128xf32>
    %32 = arith.addf %31, %30 : vector<8x128xf32>
    %33 = arith.divf %31, %32 : vector<8x128xf32>
    %34 = arith.mulf %25, %13 : vector<8x128xf32>
    %35 = arith.mulf %19, %27 : vector<8x128xf32>
    %36 = arith.addf %34, %35 : vector<8x128xf32>
    %37 = math.tanh %36 : vector<8x128xf32>
    %38 = arith.mulf %33, %37 : vector<8x128xf32>
    %c0_14 = arith.constant 0 : index
    %c0_15 = arith.constant 0 : index
    %c0_16 = arith.constant 0 : index
    %39 = vector.load %arg8[%c0_14, %c0_15, %c0_16] : memref<2x8x128xf32, #tpu.memory_space<vmem>>, vector<1x8x128xf32>
    %40 = vector.shape_cast %39 : vector<1x8x128xf32> to vector<8x128xf32>
    %41 = vector.shape_cast %38 : vector<8x128xf32> to vector<1x8x128xf32>
    tpu.vector_store %arg8[%c0_14, %c0_15, %c0_16], %41 {strides = array<i32>} : memref<2x8x128xf32, #tpu.memory_space<vmem>>, vector<1x8x128xf32>,
    %c0_17 = arith.constant 0 : index
    %c0_18 = arith.constant 0 : index
    %c0_19 = arith.constant 0 : index
    %42 = vector.load %arg9[%c0_17, %c0_18, %c0_19] : memref<2x8x128xf32, #tpu.memory_space<vmem>>, vector<1x8x128xf32>
    %43 = vector.shape_cast %42 : vector<1x8x128xf32> to vector<8x128xf32>
    %44 = vector.shape_cast %36 : vector<8x128xf32> to vector<1x8x128xf32>
    tpu.vector_store %arg9[%c0_17, %c0_18, %c0_19], %44 {strides = array<i32>} : memref<2x8x128xf32, #tpu.memory_space<vmem>>, vector<1x8x128xf32>,
    %c1 = arith.constant 1 : index
    %c0_20 = arith.constant 0 : index
    %c0_21 = arith.constant 0 : index
    %45 = vector.load %arg8[%c1, %c0_20, %c0_21] : memref<2x8x128xf32, #tpu.memory_space<vmem>>, vector<1x8x128xf32>
    %46 = vector.shape_cast %45 : vector<1x8x128xf32> to vector<8x128xf32>
    %47 = tpu.concatenate %38, %46 in 1 : vector<8x128xf32>, vector<8x128xf32> -> vector<8x256xf32>
    %48 = arith.truncf %47 : vector<8x256xf32> to vector<8x256xbf16>
    %c0_22 = arith.constant 0 : index
    %c0_23 = arith.constant 0 : index
    %c0_24 = arith.constant 0 : index
    %49 = vector.load %arg3[%c0_22, %c0_23, %c0_24] : memref<1x256x512xbf16, #tpu.memory_space<vmem>>, vector<1x256x512xbf16>
    %50 = vector.shape_cast %49 : vector<1x256x512xbf16> to vector<256x512xbf16>
    %cst_25 = arith.constant dense<0.000000e+00> : vector<8x512xf32>
    %51 = tpu.matmul %48, %50, %cst_25 {dimension_numbers = #tpu.dot_dimension_numbers<[1], [0], [0], [1], [0, 0, 1, 1], [], []>} : vector<8x256xbf16>, vector<256x512xbf16>, vector<8x512xf32> -> vector<8x512xf32>
    %c0_26 = arith.constant 0 : index
    %c0_27 = arith.constant 0 : index
    %c0_28 = arith.constant 0 : index
    %52 = vector.load %arg4[%c0_26, %c0_27, %c0_28] : memref<1x1x512xf32, #tpu.memory_space<vmem>>, vector<1x1x512xf32>
    %53 = vector.shape_cast %52 : vector<1x1x512xf32> to vector<1x512xf32>
    %54 = vector.broadcast %53 : vector<1x512xf32> to vector<8x512xf32>
    %55 = arith.addf %51, %54 : vector<8x512xf32>
    %c1_29 = arith.constant 1 : index
    %c0_30 = arith.constant 0 : index
    %c0_31 = arith.constant 0 : index
    %56 = vector.load %arg9[%c1_29, %c0_30, %c0_31] : memref<2x8x128xf32, #tpu.memory_space<vmem>>, vector<1x8x128xf32>
    %57 = vector.shape_cast %56 : vector<1x8x128xf32> to vector<8x128xf32>
    %58 = vector.extract_strided_slice %55 {offsets = [0, 0], sizes = [8, 128], strides = [1, 1]} : vector<8x512xf32> to vector<8x128xf32>
    %59 = arith.negf %58 : vector<8x128xf32>
    %60 = math.exp %59 : vector<8x128xf32>
    %cst_32 = arith.constant 1.000000e+00 : f32
    %61 = vector.broadcast %cst_32 : f32 to vector<8x128xf32>
    %62 = arith.addf %61, %60 : vector<8x128xf32>
    %63 = arith.divf %61, %62 : vector<8x128xf32>
    %64 = vector.extract_strided_slice %55 {offsets = [0, 128], sizes = [8, 128], strides = [1, 1]} : vector<8x512xf32> to vector<8x128xf32>
    %65 = arith.negf %64 : vector<8x128xf32>
    %66 = math.exp %65 : vector<8x128xf32>
    %cst_33 = arith.constant 1.000000e+00 : f32
    %67 = vector.broadcast %cst_33 : f32 to vector<8x128xf32>
    %68 = arith.addf %67, %66 : vector<8x128xf32>
    %69 = arith.divf %67, %68 : vector<8x128xf32>
    %70 = vector.extract_strided_slice %55 {offsets = [0, 256], sizes = [8, 128], strides = [1, 1]} : vector<8x512xf32> to vector<8x128xf32>
    %71 = math.tanh %70 : vector<8x128xf32>
    %72 = vector.extract_strided_slice %55 {offsets = [0, 384], sizes = [8, 128], strides = [1, 1]} : vector<8x512xf32> to vector<8x128xf32>
    %73 = arith.negf %72 : vector<8x128xf32>
    %74 = math.exp %73 : vector<8x128xf32>
    %cst_34 = arith.constant 1.000000e+00 : f32
    %75 = vector.broadcast %cst_34 : f32 to vector<8x128xf32>
    %76 = arith.addf %75, %74 : vector<8x128xf32>
    %77 = arith.divf %75, %76 : vector<8x128xf32>
    %78 = arith.mulf %69, %57 : vector<8x128xf32>
    %79 = arith.mulf %63, %71 : vector<8x128xf32>
    %80 = arith.addf %78, %79 : vector<8x128xf32>
    %81 = math.tanh %80 : vector<8x128xf32>
    %82 = arith.mulf %77, %81 : vector<8x128xf32>
    %c1_35 = arith.constant 1 : index
    %c0_36 = arith.constant 0 : index
    %c0_37 = arith.constant 0 : index
    %83 = vector.load %arg8[%c1_35, %c0_36, %c0_37] : memref<2x8x128xf32, #tpu.memory_space<vmem>>, vector<1x8x128xf32>
    %84 = vector.shape_cast %83 : vector<1x8x128xf32> to vector<8x128xf32>
    %85 = vector.shape_cast %82 : vector<8x128xf32> to vector<1x8x128xf32>
    tpu.vector_store %arg8[%c1_35, %c0_36, %c0_37], %85 {strides = array<i32>} : memref<2x8x128xf32, #tpu.memory_space<vmem>>, vector<1x8x128xf32>,
    %c1_38 = arith.constant 1 : index
    %c0_39 = arith.constant 0 : index
    %c0_40 = arith.constant 0 : index
    %86 = vector.load %arg9[%c1_38, %c0_39, %c0_40] : memref<2x8x128xf32, #tpu.memory_space<vmem>>, vector<1x8x128xf32>
    %87 = vector.shape_cast %86 : vector<1x8x128xf32> to vector<8x128xf32>
    %88 = vector.shape_cast %80 : vector<8x128xf32> to vector<1x8x128xf32>
    tpu.vector_store %arg9[%c1_38, %c0_39, %c0_40], %88 {strides = array<i32>} : memref<2x8x128xf32, #tpu.memory_space<vmem>>, vector<1x8x128xf32>,
    %89 = arith.truncf %82 : vector<8x128xf32> to vector<8x128xbf16>
    %c0_41 = arith.constant 0 : index
    %c0_42 = arith.constant 0 : index
    %90 = vector.load %arg5[%c0_41, %c0_42] : memref<128x128xbf16, #tpu.memory_space<vmem>>, vector<128x128xbf16>
    %cst_43 = arith.constant dense<0.000000e+00> : vector<8x128xf32>
    %91 = tpu.matmul %89, %90, %cst_43 {dimension_numbers = #tpu.dot_dimension_numbers<[1], [0], [0], [1], [0, 0, 1, 1], [], []>} : vector<8x128xbf16>, vector<128x128xbf16>, vector<8x128xf32> -> vector<8x128xf32>
    %c0_44 = arith.constant 0 : index
    %c0_45 = arith.constant 0 : index
    %92 = vector.load %arg6[%c0_44, %c0_45] : memref<1x128xf32, #tpu.memory_space<vmem>>, vector<1x128xf32>
    %93 = vector.broadcast %92 : vector<1x128xf32> to vector<8x128xf32>
    %94 = arith.addf %91, %93 : vector<8x128xf32>
    %95 = arith.index_cast %c0_i32_1 : i32 to index
    %c0_46 = arith.constant 0 : index
    %c0_47 = arith.constant 0 : index
    %96 = vector.load %arg7[%95, %c0_46, %c0_47] : memref<8x8x128xf32, #tpu.memory_space<vmem>>, vector<1x8x128xf32>
    %97 = vector.shape_cast %96 : vector<1x8x128xf32> to vector<8x128xf32>
    %98 = vector.shape_cast %94 : vector<8x128xf32> to vector<1x8x128xf32>
    tpu.vector_store %arg7[%95, %c0_46, %c0_47], %98 {strides = array<i32>} : memref<8x8x128xf32, #tpu.memory_space<vmem>>, vector<1x8x128xf32>,
    %c1_i32 = arith.constant 1 : i32
    %99 = arith.index_cast %c1_i32 : i32 to index
    %c0_48 = arith.constant 0 : index
    %c0_49 = arith.constant 0 : index
    %100 = vector.load %arg1[%99, %c0_48, %c0_49] : memref<8x8x512xf32, #tpu.memory_space<vmem>>, vector<1x8x512xf32>
    %101 = vector.shape_cast %100 : vector<1x8x512xf32> to vector<8x512xf32>
    %c0_50 = arith.constant 0 : index
    %c0_51 = arith.constant 0 : index
    %c0_52 = arith.constant 0 : index
    %102 = vector.load %arg8[%c0_50, %c0_51, %c0_52] : memref<2x8x128xf32, #tpu.memory_space<vmem>>, vector<1x8x128xf32>
    %103 = vector.shape_cast %102 : vector<1x8x128xf32> to vector<8x128xf32>
    %104 = arith.truncf %103 : vector<8x128xf32> to vector<8x128xbf16>
    %c0_53 = arith.constant 0 : index
    %c0_54 = arith.constant 0 : index
    %105 = vector.load %arg2[%c0_53, %c0_54] : memref<128x512xbf16, #tpu.memory_space<vmem>>, vector<128x512xbf16>
    %cst_55 = arith.constant dense<0.000000e+00> : vector<8x512xf32>
    %106 = tpu.matmul %104, %105, %cst_55 {dimension_numbers = #tpu.dot_dimension_numbers<[1], [0], [0], [1], [0, 0, 1, 1], [], []>} : vector<8x128xbf16>, vector<128x512xbf16>, vector<8x512xf32> -> vector<8x512xf32>
    %107 = arith.addf %101, %106 : vector<8x512xf32>
    %c0_56 = arith.constant 0 : index
    %c0_57 = arith.constant 0 : index
    %c0_58 = arith.constant 0 : index
    %108 = vector.load %arg9[%c0_56, %c0_57, %c0_58] : memref<2x8x128xf32, #tpu.memory_space<vmem>>, vector<1x8x128xf32>
    %109 = vector.shape_cast %108 : vector<1x8x128xf32> to vector<8x128xf32>
    %110 = vector.extract_strided_slice %107 {offsets = [0, 0], sizes = [8, 128], strides = [1, 1]} : vector<8x512xf32> to vector<8x128xf32>
    %111 = arith.negf %110 : vector<8x128xf32>
    %112 = math.exp %111 : vector<8x128xf32>
    %cst_59 = arith.constant 1.000000e+00 : f32
    %113 = vector.broadcast %cst_59 : f32 to vector<8x128xf32>
    %114 = arith.addf %113, %112 : vector<8x128xf32>
    %115 = arith.divf %113, %114 : vector<8x128xf32>
    %116 = vector.extract_strided_slice %107 {offsets = [0, 128], sizes = [8, 128], strides = [1, 1]} : vector<8x512xf32> to vector<8x128xf32>
    %117 = arith.negf %116 : vector<8x128xf32>
    %118 = math.exp %117 : vector<8x128xf32>
    %cst_60 = arith.constant 1.000000e+00 : f32
    %119 = vector.broadcast %cst_60 : f32 to vector<8x128xf32>
    %120 = arith.addf %119, %118 : vector<8x128xf32>
    %121 = arith.divf %119, %120 : vector<8x128xf32>
    %122 = vector.extract_strided_slice %107 {offsets = [0, 256], sizes = [8, 128], strides = [1, 1]} : vector<8x512xf32> to vector<8x128xf32>
    %123 = math.tanh %122 : vector<8x128xf32>
    %124 = vector.extract_strided_slice %107 {offsets = [0, 384], sizes = [8, 128], strides = [1, 1]} : vector<8x512xf32> to vector<8x128xf32>
    %125 = arith.negf %124 : vector<8x128xf32>
    %126 = math.exp %125 : vector<8x128xf32>
    %cst_61 = arith.constant 1.000000e+00 : f32
    %127 = vector.broadcast %cst_61 : f32 to vector<8x128xf32>
    %128 = arith.addf %127, %126 : vector<8x128xf32>
    %129 = arith.divf %127, %128 : vector<8x128xf32>
    %130 = arith.mulf %121, %109 : vector<8x128xf32>
    %131 = arith.mulf %115, %123 : vector<8x128xf32>
    %132 = arith.addf %130, %131 : vector<8x128xf32>
    %133 = math.tanh %132 : vector<8x128xf32>
    %134 = arith.mulf %129, %133 : vector<8x128xf32>
    %c0_62 = arith.constant 0 : index
    %c0_63 = arith.constant 0 : index
    %c0_64 = arith.constant 0 : index
    %135 = vector.load %arg8[%c0_62, %c0_63, %c0_64] : memref<2x8x128xf32, #tpu.memory_space<vmem>>, vector<1x8x128xf32>
    %136 = vector.shape_cast %135 : vector<1x8x128xf32> to vector<8x128xf32>
    %137 = vector.shape_cast %134 : vector<8x128xf32> to vector<1x8x128xf32>
    tpu.vector_store %arg8[%c0_62, %c0_63, %c0_64], %137 {strides = array<i32>} : memref<2x8x128xf32, #tpu.memory_space<vmem>>, vector<1x8x128xf32>,
    %c0_65 = arith.constant 0 : index
    %c0_66 = arith.constant 0 : index
    %c0_67 = arith.constant 0 : index
    %138 = vector.load %arg9[%c0_65, %c0_66, %c0_67] : memref<2x8x128xf32, #tpu.memory_space<vmem>>, vector<1x8x128xf32>
    %139 = vector.shape_cast %138 : vector<1x8x128xf32> to vector<8x128xf32>
    %140 = vector.shape_cast %132 : vector<8x128xf32> to vector<1x8x128xf32>
    tpu.vector_store %arg9[%c0_65, %c0_66, %c0_67], %140 {strides = array<i32>} : memref<2x8x128xf32, #tpu.memory_space<vmem>>, vector<1x8x128xf32>,
    %c1_68 = arith.constant 1 : index
    %c0_69 = arith.constant 0 : index
    %c0_70 = arith.constant 0 : index
    %141 = vector.load %arg8[%c1_68, %c0_69, %c0_70] : memref<2x8x128xf32, #tpu.memory_space<vmem>>, vector<1x8x128xf32>
    %142 = vector.shape_cast %141 : vector<1x8x128xf32> to vector<8x128xf32>
    %143 = tpu.concatenate %134, %142 in 1 : vector<8x128xf32>, vector<8x128xf32> -> vector<8x256xf32>
    %144 = arith.truncf %143 : vector<8x256xf32> to vector<8x256xbf16>
    %c0_71 = arith.constant 0 : index
    %c0_72 = arith.constant 0 : index
    %c0_73 = arith.constant 0 : index
    %145 = vector.load %arg3[%c0_71, %c0_72, %c0_73] : memref<1x256x512xbf16, #tpu.memory_space<vmem>>, vector<1x256x512xbf16>
    %146 = vector.shape_cast %145 : vector<1x256x512xbf16> to vector<256x512xbf16>
    %cst_74 = arith.constant dense<0.000000e+00> : vector<8x512xf32>
    %147 = tpu.matmul %144, %146, %cst_74 {dimension_numbers = #tpu.dot_dimension_numbers<[1], [0], [0], [1], [0, 0, 1, 1], [], []>} : vector<8x256xbf16>, vector<256x512xbf16>, vector<8x512xf32> -> vector<8x512xf32>
    %c0_75 = arith.constant 0 : index
    %c0_76 = arith.constant 0 : index
    %c0_77 = arith.constant 0 : index
    %148 = vector.load %arg4[%c0_75, %c0_76, %c0_77] : memref<1x1x512xf32, #tpu.memory_space<vmem>>, vector<1x1x512xf32>
    %149 = vector.shape_cast %148 : vector<1x1x512xf32> to vector<1x512xf32>
    %150 = vector.broadcast %149 : vector<1x512xf32> to vector<8x512xf32>
    %151 = arith.addf %147, %150 : vector<8x512xf32>
    %c1_78 = arith.constant 1 : index
    %c0_79 = arith.constant 0 : index
    %c0_80 = arith.constant 0 : index
    %152 = vector.load %arg9[%c1_78, %c0_79, %c0_80] : memref<2x8x128xf32, #tpu.memory_space<vmem>>, vector<1x8x128xf32>
    %153 = vector.shape_cast %152 : vector<1x8x128xf32> to vector<8x128xf32>
    %154 = vector.extract_strided_slice %151 {offsets = [0, 0], sizes = [8, 128], strides = [1, 1]} : vector<8x512xf32> to vector<8x128xf32>
    %155 = arith.negf %154 : vector<8x128xf32>
    %156 = math.exp %155 : vector<8x128xf32>
    %cst_81 = arith.constant 1.000000e+00 : f32
    %157 = vector.broadcast %cst_81 : f32 to vector<8x128xf32>
    %158 = arith.addf %157, %156 : vector<8x128xf32>
    %159 = arith.divf %157, %158 : vector<8x128xf32>
    %160 = vector.extract_strided_slice %151 {offsets = [0, 128], sizes = [8, 128], strides = [1, 1]} : vector<8x512xf32> to vector<8x128xf32>
    %161 = arith.negf %160 : vector<8x128xf32>
    %162 = math.exp %161 : vector<8x128xf32>
    %cst_82 = arith.constant 1.000000e+00 : f32
    %163 = vector.broadcast %cst_82 : f32 to vector<8x128xf32>
    %164 = arith.addf %163, %162 : vector<8x128xf32>
    %165 = arith.divf %163, %164 : vector<8x128xf32>
    %166 = vector.extract_strided_slice %151 {offsets = [0, 256], sizes = [8, 128], strides = [1, 1]} : vector<8x512xf32> to vector<8x128xf32>
    %167 = math.tanh %166 : vector<8x128xf32>
    %168 = vector.extract_strided_slice %151 {offsets = [0, 384], sizes = [8, 128], strides = [1, 1]} : vector<8x512xf32> to vector<8x128xf32>
    %169 = arith.negf %168 : vector<8x128xf32>
    %170 = math.exp %169 : vector<8x128xf32>
    %cst_83 = arith.constant 1.000000e+00 : f32
    %171 = vector.broadcast %cst_83 : f32 to vector<8x128xf32>
    %172 = arith.addf %171, %170 : vector<8x128xf32>
    %173 = arith.divf %171, %172 : vector<8x128xf32>
    %174 = arith.mulf %165, %153 : vector<8x128xf32>
    %175 = arith.mulf %159, %167 : vector<8x128xf32>
    %176 = arith.addf %174, %175 : vector<8x128xf32>
    %177 = math.tanh %176 : vector<8x128xf32>
    %178 = arith.mulf %173, %177 : vector<8x128xf32>
    %c1_84 = arith.constant 1 : index
    %c0_85 = arith.constant 0 : index
    %c0_86 = arith.constant 0 : index
    %179 = vector.load %arg8[%c1_84, %c0_85, %c0_86] : memref<2x8x128xf32, #tpu.memory_space<vmem>>, vector<1x8x128xf32>
    %180 = vector.shape_cast %179 : vector<1x8x128xf32> to vector<8x128xf32>
    %181 = vector.shape_cast %178 : vector<8x128xf32> to vector<1x8x128xf32>
    tpu.vector_store %arg8[%c1_84, %c0_85, %c0_86], %181 {strides = array<i32>} : memref<2x8x128xf32, #tpu.memory_space<vmem>>, vector<1x8x128xf32>,
    %c1_87 = arith.constant 1 : index
    %c0_88 = arith.constant 0 : index
    %c0_89 = arith.constant 0 : index
    %182 = vector.load %arg9[%c1_87, %c0_88, %c0_89] : memref<2x8x128xf32, #tpu.memory_space<vmem>>, vector<1x8x128xf32>
    %183 = vector.shape_cast %182 : vector<1x8x128xf32> to vector<8x128xf32>
    %184 = vector.shape_cast %176 : vector<8x128xf32> to vector<1x8x128xf32>
    tpu.vector_store %arg9[%c1_87, %c0_88, %c0_89], %184 {strides = array<i32>} : memref<2x8x128xf32, #tpu.memory_space<vmem>>, vector<1x8x128xf32>,
    %185 = arith.truncf %178 : vector<8x128xf32> to vector<8x128xbf16>
    %c0_90 = arith.constant 0 : index
    %c0_91 = arith.constant 0 : index
    %186 = vector.load %arg5[%c0_90, %c0_91] : memref<128x128xbf16, #tpu.memory_space<vmem>>, vector<128x128xbf16>
    %cst_92 = arith.constant dense<0.000000e+00> : vector<8x128xf32>
    %187 = tpu.matmul %185, %186, %cst_92 {dimension_numbers = #tpu.dot_dimension_numbers<[1], [0], [0], [1], [0, 0, 1, 1], [], []>} : vector<8x128xbf16>, vector<128x128xbf16>, vector<8x128xf32> -> vector<8x128xf32>
    %c0_93 = arith.constant 0 : index
    %c0_94 = arith.constant 0 : index
    %188 = vector.load %arg6[%c0_93, %c0_94] : memref<1x128xf32, #tpu.memory_space<vmem>>, vector<1x128xf32>
    %189 = vector.broadcast %188 : vector<1x128xf32> to vector<8x128xf32>
    %190 = arith.addf %187, %189 : vector<8x128xf32>
    %191 = arith.index_cast %c1_i32 : i32 to index
    %c0_95 = arith.constant 0 : index
    %c0_96 = arith.constant 0 : index
    %192 = vector.load %arg7[%191, %c0_95, %c0_96] : memref<8x8x128xf32, #tpu.memory_space<vmem>>, vector<1x8x128xf32>
    %193 = vector.shape_cast %192 : vector<1x8x128xf32> to vector<8x128xf32>
    %194 = vector.shape_cast %190 : vector<8x128xf32> to vector<1x8x128xf32>
    tpu.vector_store %arg7[%191, %c0_95, %c0_96], %194 {strides = array<i32>} : memref<8x8x128xf32, #tpu.memory_space<vmem>>, vector<1x8x128xf32>,
    %c2_i32 = arith.constant 2 : i32
    %195 = arith.index_cast %c2_i32 : i32 to index
    %c0_97 = arith.constant 0 : index
    %c0_98 = arith.constant 0 : index
    %196 = vector.load %arg1[%195, %c0_97, %c0_98] : memref<8x8x512xf32, #tpu.memory_space<vmem>>, vector<1x8x512xf32>
    %197 = vector.shape_cast %196 : vector<1x8x512xf32> to vector<8x512xf32>
    %c0_99 = arith.constant 0 : index
    %c0_100 = arith.constant 0 : index
    %c0_101 = arith.constant 0 : index
    %198 = vector.load %arg8[%c0_99, %c0_100, %c0_101] : memref<2x8x128xf32, #tpu.memory_space<vmem>>, vector<1x8x128xf32>
    %199 = vector.shape_cast %198 : vector<1x8x128xf32> to vector<8x128xf32>
    %200 = arith.truncf %199 : vector<8x128xf32> to vector<8x128xbf16>
    %c0_102 = arith.constant 0 : index
    %c0_103 = arith.constant 0 : index
    %201 = vector.load %arg2[%c0_102, %c0_103] : memref<128x512xbf16, #tpu.memory_space<vmem>>, vector<128x512xbf16>
    %cst_104 = arith.constant dense<0.000000e+00> : vector<8x512xf32>
    %202 = tpu.matmul %200, %201, %cst_104 {dimension_numbers = #tpu.dot_dimension_numbers<[1], [0], [0], [1], [0, 0, 1, 1], [], []>} : vector<8x128xbf16>, vector<128x512xbf16>, vector<8x512xf32> -> vector<8x512xf32>
    %203 = arith.addf %197, %202 : vector<8x512xf32>
    %c0_105 = arith.constant 0 : index
    %c0_106 = arith.constant 0 : index
    %c0_107 = arith.constant 0 : index
    %204 = vector.load %arg9[%c0_105, %c0_106, %c0_107] : memref<2x8x128xf32, #tpu.memory_space<vmem>>, vector<1x8x128xf32>
    %205 = vector.shape_cast %204 : vector<1x8x128xf32> to vector<8x128xf32>
    %206 = vector.extract_strided_slice %203 {offsets = [0, 0], sizes = [8, 128], strides = [1, 1]} : vector<8x512xf32> to vector<8x128xf32>
    %207 = arith.negf %206 : vector<8x128xf32>
    %208 = math.exp %207 : vector<8x128xf32>
    %cst_108 = arith.constant 1.000000e+00 : f32
    %209 = vector.broadcast %cst_108 : f32 to vector<8x128xf32>
    %210 = arith.addf %209, %208 : vector<8x128xf32>
    %211 = arith.divf %209, %210 : vector<8x128xf32>
    %212 = vector.extract_strided_slice %203 {offsets = [0, 128], sizes = [8, 128], strides = [1, 1]} : vector<8x512xf32> to vector<8x128xf32>
    %213 = arith.negf %212 : vector<8x128xf32>
    %214 = math.exp %213 : vector<8x128xf32>
    %cst_109 = arith.constant 1.000000e+00 : f32
    %215 = vector.broadcast %cst_109 : f32 to vector<8x128xf32>
    %216 = arith.addf %215, %214 : vector<8x128xf32>
    %217 = arith.divf %215, %216 : vector<8x128xf32>
    %218 = vector.extract_strided_slice %203 {offsets = [0, 256], sizes = [8, 128], strides = [1, 1]} : vector<8x512xf32> to vector<8x128xf32>
    %219 = math.tanh %218 : vector<8x128xf32>
    %220 = vector.extract_strided_slice %203 {offsets = [0, 384], sizes = [8, 128], strides = [1, 1]} : vector<8x512xf32> to vector<8x128xf32>
    %221 = arith.negf %220 : vector<8x128xf32>
    %222 = math.exp %221 : vector<8x128xf32>
    %cst_110 = arith.constant 1.000000e+00 : f32
    %223 = vector.broadcast %cst_110 : f32 to vector<8x128xf32>
    %224 = arith.addf %223, %222 : vector<8x128xf32>
    %225 = arith.divf %223, %224 : vector<8x128xf32>
    %226 = arith.mulf %217, %205 : vector<8x128xf32>
    %227 = arith.mulf %211, %219 : vector<8x128xf32>
    %228 = arith.addf %226, %227 : vector<8x128xf32>
    %229 = math.tanh %228 : vector<8x128xf32>
    %230 = arith.mulf %225, %229 : vector<8x128xf32>
    %c0_111 = arith.constant 0 : index
    %c0_112 = arith.constant 0 : index
    %c0_113 = arith.constant 0 : index
    %231 = vector.load %arg8[%c0_111, %c0_112, %c0_113] : memref<2x8x128xf32, #tpu.memory_space<vmem>>, vector<1x8x128xf32>
    %232 = vector.shape_cast %231 : vector<1x8x128xf32> to vector<8x128xf32>
    %233 = vector.shape_cast %230 : vector<8x128xf32> to vector<1x8x128xf32>
    tpu.vector_store %arg8[%c0_111, %c0_112, %c0_113], %233 {strides = array<i32>} : memref<2x8x128xf32, #tpu.memory_space<vmem>>, vector<1x8x128xf32>,
    %c0_114 = arith.constant 0 : index
    %c0_115 = arith.constant 0 : index
    %c0_116 = arith.constant 0 : index
    %234 = vector.load %arg9[%c0_114, %c0_115, %c0_116] : memref<2x8x128xf32, #tpu.memory_space<vmem>>, vector<1x8x128xf32>
    %235 = vector.shape_cast %234 : vector<1x8x128xf32> to vector<8x128xf32>
    %236 = vector.shape_cast %228 : vector<8x128xf32> to vector<1x8x128xf32>
    tpu.vector_store %arg9[%c0_114, %c0_115, %c0_116], %236 {strides = array<i32>} : memref<2x8x128xf32, #tpu.memory_space<vmem>>, vector<1x8x128xf32>,
    %c1_117 = arith.constant 1 : index
    %c0_118 = arith.constant 0 : index
    %c0_119 = arith.constant 0 : index
    %237 = vector.load %arg8[%c1_117, %c0_118, %c0_119] : memref<2x8x128xf32, #tpu.memory_space<vmem>>, vector<1x8x128xf32>
    %238 = vector.shape_cast %237 : vector<1x8x128xf32> to vector<8x128xf32>
    %239 = tpu.concatenate %230, %238 in 1 : vector<8x128xf32>, vector<8x128xf32> -> vector<8x256xf32>
    %240 = arith.truncf %239 : vector<8x256xf32> to vector<8x256xbf16>
    %c0_120 = arith.constant 0 : index
    %c0_121 = arith.constant 0 : index
    %c0_122 = arith.constant 0 : index
    %241 = vector.load %arg3[%c0_120, %c0_121, %c0_122] : memref<1x256x512xbf16, #tpu.memory_space<vmem>>, vector<1x256x512xbf16>
    %242 = vector.shape_cast %241 : vector<1x256x512xbf16> to vector<256x512xbf16>
    %cst_123 = arith.constant dense<0.000000e+00> : vector<8x512xf32>
    %243 = tpu.matmul %240, %242, %cst_123 {dimension_numbers = #tpu.dot_dimension_numbers<[1], [0], [0], [1], [0, 0, 1, 1], [], []>} : vector<8x256xbf16>, vector<256x512xbf16>, vector<8x512xf32> -> vector<8x512xf32>
    %c0_124 = arith.constant 0 : index
    %c0_125 = arith.constant 0 : index
    %c0_126 = arith.constant 0 : index
    %244 = vector.load %arg4[%c0_124, %c0_125, %c0_126] : memref<1x1x512xf32, #tpu.memory_space<vmem>>, vector<1x1x512xf32>
    %245 = vector.shape_cast %244 : vector<1x1x512xf32> to vector<1x512xf32>
    %246 = vector.broadcast %245 : vector<1x512xf32> to vector<8x512xf32>
    %247 = arith.addf %243, %246 : vector<8x512xf32>
    %c1_127 = arith.constant 1 : index
    %c0_128 = arith.constant 0 : index
    %c0_129 = arith.constant 0 : index
    %248 = vector.load %arg9[%c1_127, %c0_128, %c0_129] : memref<2x8x128xf32, #tpu.memory_space<vmem>>, vector<1x8x128xf32>
    %249 = vector.shape_cast %248 : vector<1x8x128xf32> to vector<8x128xf32>
    %250 = vector.extract_strided_slice %247 {offsets = [0, 0], sizes = [8, 128], strides = [1, 1]} : vector<8x512xf32> to vector<8x128xf32>
    %251 = arith.negf %250 : vector<8x128xf32>
    %252 = math.exp %251 : vector<8x128xf32>
    %cst_130 = arith.constant 1.000000e+00 : f32
    %253 = vector.broadcast %cst_130 : f32 to vector<8x128xf32>
    %254 = arith.addf %253, %252 : vector<8x128xf32>
    %255 = arith.divf %253, %254 : vector<8x128xf32>
    %256 = vector.extract_strided_slice %247 {offsets = [0, 128], sizes = [8, 128], strides = [1, 1]} : vector<8x512xf32> to vector<8x128xf32>
    %257 = arith.negf %256 : vector<8x128xf32>
    %258 = math.exp %257 : vector<8x128xf32>
    %cst_131 = arith.constant 1.000000e+00 : f32
    %259 = vector.broadcast %cst_131 : f32 to vector<8x128xf32>
    %260 = arith.addf %259, %258 : vector<8x128xf32>
    %261 = arith.divf %259, %260 : vector<8x128xf32>
    %262 = vector.extract_strided_slice %247 {offsets = [0, 256], sizes = [8, 128], strides = [1, 1]} : vector<8x512xf32> to vector<8x128xf32>
    %263 = math.tanh %262 : vector<8x128xf32>
    %264 = vector.extract_strided_slice %247 {offsets = [0, 384], sizes = [8, 128], strides = [1, 1]} : vector<8x512xf32> to vector<8x128xf32>
    %265 = arith.negf %264 : vector<8x128xf32>
    %266 = math.exp %265 : vector<8x128xf32>
    %cst_132 = arith.constant 1.000000e+00 : f32
    %267 = vector.broadcast %cst_132 : f32 to vector<8x128xf32>
    %268 = arith.addf %267, %266 : vector<8x128xf32>
    %269 = arith.divf %267, %268 : vector<8x128xf32>
    %270 = arith.mulf %261, %249 : vector<8x128xf32>
    %271 = arith.mulf %255, %263 : vector<8x128xf32>
    %272 = arith.addf %270, %271 : vector<8x128xf32>
    %273 = math.tanh %272 : vector<8x128xf32>
    %274 = arith.mulf %269, %273 : vector<8x128xf32>
    %c1_133 = arith.constant 1 : index
    %c0_134 = arith.constant 0 : index
    %c0_135 = arith.constant 0 : index
    %275 = vector.load %arg8[%c1_133, %c0_134, %c0_135] : memref<2x8x128xf32, #tpu.memory_space<vmem>>, vector<1x8x128xf32>
    %276 = vector.shape_cast %275 : vector<1x8x128xf32> to vector<8x128xf32>
    %277 = vector.shape_cast %274 : vector<8x128xf32> to vector<1x8x128xf32>
    tpu.vector_store %arg8[%c1_133, %c0_134, %c0_135], %277 {strides = array<i32>} : memref<2x8x128xf32, #tpu.memory_space<vmem>>, vector<1x8x128xf32>,
    %c1_136 = arith.constant 1 : index
    %c0_137 = arith.constant 0 : index
    %c0_138 = arith.constant 0 : index
    %278 = vector.load %arg9[%c1_136, %c0_137, %c0_138] : memref<2x8x128xf32, #tpu.memory_space<vmem>>, vector<1x8x128xf32>
    %279 = vector.shape_cast %278 : vector<1x8x128xf32> to vector<8x128xf32>
    %280 = vector.shape_cast %272 : vector<8x128xf32> to vector<1x8x128xf32>
    tpu.vector_store %arg9[%c1_136, %c0_137, %c0_138], %280 {strides = array<i32>} : memref<2x8x128xf32, #tpu.memory_space<vmem>>, vector<1x8x128xf32>,
    %281 = arith.truncf %274 : vector<8x128xf32> to vector<8x128xbf16>
    %c0_139 = arith.constant 0 : index
    %c0_140 = arith.constant 0 : index
    %282 = vector.load %arg5[%c0_139, %c0_140] : memref<128x128xbf16, #tpu.memory_space<vmem>>, vector<128x128xbf16>
    %cst_141 = arith.constant dense<0.000000e+00> : vector<8x128xf32>
    %283 = tpu.matmul %281, %282, %cst_141 {dimension_numbers = #tpu.dot_dimension_numbers<[1], [0], [0], [1], [0, 0, 1, 1], [], []>} : vector<8x128xbf16>, vector<128x128xbf16>, vector<8x128xf32> -> vector<8x128xf32>
    %c0_142 = arith.constant 0 : index
    %c0_143 = arith.constant 0 : index
    %284 = vector.load %arg6[%c0_142, %c0_143] : memref<1x128xf32, #tpu.memory_space<vmem>>, vector<1x128xf32>
    %285 = vector.broadcast %284 : vector<1x128xf32> to vector<8x128xf32>
    %286 = arith.addf %283, %285 : vector<8x128xf32>
    %287 = arith.index_cast %c2_i32 : i32 to index
    %c0_144 = arith.constant 0 : index
    %c0_145 = arith.constant 0 : index
    %288 = vector.load %arg7[%287, %c0_144, %c0_145] : memref<8x8x128xf32, #tpu.memory_space<vmem>>, vector<1x8x128xf32>
    %289 = vector.shape_cast %288 : vector<1x8x128xf32> to vector<8x128xf32>
    %290 = vector.shape_cast %286 : vector<8x128xf32> to vector<1x8x128xf32>
    tpu.vector_store %arg7[%287, %c0_144, %c0_145], %290 {strides = array<i32>} : memref<8x8x128xf32, #tpu.memory_space<vmem>>, vector<1x8x128xf32>,
    %c3_i32 = arith.constant 3 : i32
    %291 = arith.index_cast %c3_i32 : i32 to index
    %c0_146 = arith.constant 0 : index
    %c0_147 = arith.constant 0 : index
    %292 = vector.load %arg1[%291, %c0_146, %c0_147] : memref<8x8x512xf32, #tpu.memory_space<vmem>>, vector<1x8x512xf32>
    %293 = vector.shape_cast %292 : vector<1x8x512xf32> to vector<8x512xf32>
    %c0_148 = arith.constant 0 : index
    %c0_149 = arith.constant 0 : index
    %c0_150 = arith.constant 0 : index
    %294 = vector.load %arg8[%c0_148, %c0_149, %c0_150] : memref<2x8x128xf32, #tpu.memory_space<vmem>>, vector<1x8x128xf32>
    %295 = vector.shape_cast %294 : vector<1x8x128xf32> to vector<8x128xf32>
    %296 = arith.truncf %295 : vector<8x128xf32> to vector<8x128xbf16>
    %c0_151 = arith.constant 0 : index
    %c0_152 = arith.constant 0 : index
    %297 = vector.load %arg2[%c0_151, %c0_152] : memref<128x512xbf16, #tpu.memory_space<vmem>>, vector<128x512xbf16>
    %cst_153 = arith.constant dense<0.000000e+00> : vector<8x512xf32>
    %298 = tpu.matmul %296, %297, %cst_153 {dimension_numbers = #tpu.dot_dimension_numbers<[1], [0], [0], [1], [0, 0, 1, 1], [], []>} : vector<8x128xbf16>, vector<128x512xbf16>, vector<8x512xf32> -> vector<8x512xf32>
    %299 = arith.addf %293, %298 : vector<8x512xf32>
    %c0_154 = arith.constant 0 : index
    %c0_155 = arith.constant 0 : index
    %c0_156 = arith.constant 0 : index
    %300 = vector.load %arg9[%c0_154, %c0_155, %c0_156] : memref<2x8x128xf32, #tpu.memory_space<vmem>>, vector<1x8x128xf32>
    %301 = vector.shape_cast %300 : vector<1x8x128xf32> to vector<8x128xf32>
    %302 = vector.extract_strided_slice %299 {offsets = [0, 0], sizes = [8, 128], strides = [1, 1]} : vector<8x512xf32> to vector<8x128xf32>
    %303 = arith.negf %302 : vector<8x128xf32>
    %304 = math.exp %303 : vector<8x128xf32>
    %cst_157 = arith.constant 1.000000e+00 : f32
    %305 = vector.broadcast %cst_157 : f32 to vector<8x128xf32>
    %306 = arith.addf %305, %304 : vector<8x128xf32>
    %307 = arith.divf %305, %306 : vector<8x128xf32>
    %308 = vector.extract_strided_slice %299 {offsets = [0, 128], sizes = [8, 128], strides = [1, 1]} : vector<8x512xf32> to vector<8x128xf32>
    %309 = arith.negf %308 : vector<8x128xf32>
    %310 = math.exp %309 : vector<8x128xf32>
    %cst_158 = arith.constant 1.000000e+00 : f32
    %311 = vector.broadcast %cst_158 : f32 to vector<8x128xf32>
    %312 = arith.addf %311, %310 : vector<8x128xf32>
    %313 = arith.divf %311, %312 : vector<8x128xf32>
    %314 = vector.extract_strided_slice %299 {offsets = [0, 256], sizes = [8, 128], strides = [1, 1]} : vector<8x512xf32> to vector<8x128xf32>
    %315 = math.tanh %314 : vector<8x128xf32>
    %316 = vector.extract_strided_slice %299 {offsets = [0, 384], sizes = [8, 128], strides = [1, 1]} : vector<8x512xf32> to vector<8x128xf32>
    %317 = arith.negf %316 : vector<8x128xf32>
    %318 = math.exp %317 : vector<8x128xf32>
    %cst_159 = arith.constant 1.000000e+00 : f32
    %319 = vector.broadcast %cst_159 : f32 to vector<8x128xf32>
    %320 = arith.addf %319, %318 : vector<8x128xf32>
    %321 = arith.divf %319, %320 : vector<8x128xf32>
    %322 = arith.mulf %313, %301 : vector<8x128xf32>
    %323 = arith.mulf %307, %315 : vector<8x128xf32>
    %324 = arith.addf %322, %323 : vector<8x128xf32>
    %325 = math.tanh %324 : vector<8x128xf32>
    %326 = arith.mulf %321, %325 : vector<8x128xf32>
    %c0_160 = arith.constant 0 : index
    %c0_161 = arith.constant 0 : index
    %c0_162 = arith.constant 0 : index
    %327 = vector.load %arg8[%c0_160, %c0_161, %c0_162] : memref<2x8x128xf32, #tpu.memory_space<vmem>>, vector<1x8x128xf32>
    %328 = vector.shape_cast %327 : vector<1x8x128xf32> to vector<8x128xf32>
    %329 = vector.shape_cast %326 : vector<8x128xf32> to vector<1x8x128xf32>
    tpu.vector_store %arg8[%c0_160, %c0_161, %c0_162], %329 {strides = array<i32>} : memref<2x8x128xf32, #tpu.memory_space<vmem>>, vector<1x8x128xf32>,
    %c0_163 = arith.constant 0 : index
    %c0_164 = arith.constant 0 : index
    %c0_165 = arith.constant 0 : index
    %330 = vector.load %arg9[%c0_163, %c0_164, %c0_165] : memref<2x8x128xf32, #tpu.memory_space<vmem>>, vector<1x8x128xf32>
    %331 = vector.shape_cast %330 : vector<1x8x128xf32> to vector<8x128xf32>
    %332 = vector.shape_cast %324 : vector<8x128xf32> to vector<1x8x128xf32>
    tpu.vector_store %arg9[%c0_163, %c0_164, %c0_165], %332 {strides = array<i32>} : memref<2x8x128xf32, #tpu.memory_space<vmem>>, vector<1x8x128xf32>,
    %c1_166 = arith.constant 1 : index
    %c0_167 = arith.constant 0 : index
    %c0_168 = arith.constant 0 : index
    %333 = vector.load %arg8[%c1_166, %c0_167, %c0_168] : memref<2x8x128xf32, #tpu.memory_space<vmem>>, vector<1x8x128xf32>
    %334 = vector.shape_cast %333 : vector<1x8x128xf32> to vector<8x128xf32>
    %335 = tpu.concatenate %326, %334 in 1 : vector<8x128xf32>, vector<8x128xf32> -> vector<8x256xf32>
    %336 = arith.truncf %335 : vector<8x256xf32> to vector<8x256xbf16>
    %c0_169 = arith.constant 0 : index
    %c0_170 = arith.constant 0 : index
    %c0_171 = arith.constant 0 : index
    %337 = vector.load %arg3[%c0_169, %c0_170, %c0_171] : memref<1x256x512xbf16, #tpu.memory_space<vmem>>, vector<1x256x512xbf16>
    %338 = vector.shape_cast %337 : vector<1x256x512xbf16> to vector<256x512xbf16>
    %cst_172 = arith.constant dense<0.000000e+00> : vector<8x512xf32>
    %339 = tpu.matmul %336, %338, %cst_172 {dimension_numbers = #tpu.dot_dimension_numbers<[1], [0], [0], [1], [0, 0, 1, 1], [], []>} : vector<8x256xbf16>, vector<256x512xbf16>, vector<8x512xf32> -> vector<8x512xf32>
    %c0_173 = arith.constant 0 : index
    %c0_174 = arith.constant 0 : index
    %c0_175 = arith.constant 0 : index
    %340 = vector.load %arg4[%c0_173, %c0_174, %c0_175] : memref<1x1x512xf32, #tpu.memory_space<vmem>>, vector<1x1x512xf32>
    %341 = vector.shape_cast %340 : vector<1x1x512xf32> to vector<1x512xf32>
    %342 = vector.broadcast %341 : vector<1x512xf32> to vector<8x512xf32>
    %343 = arith.addf %339, %342 : vector<8x512xf32>
    %c1_176 = arith.constant 1 : index
    %c0_177 = arith.constant 0 : index
    %c0_178 = arith.constant 0 : index
    %344 = vector.load %arg9[%c1_176, %c0_177, %c0_178] : memref<2x8x128xf32, #tpu.memory_space<vmem>>, vector<1x8x128xf32>
    %345 = vector.shape_cast %344 : vector<1x8x128xf32> to vector<8x128xf32>
    %346 = vector.extract_strided_slice %343 {offsets = [0, 0], sizes = [8, 128], strides = [1, 1]} : vector<8x512xf32> to vector<8x128xf32>
    %347 = arith.negf %346 : vector<8x128xf32>
    %348 = math.exp %347 : vector<8x128xf32>
    %cst_179 = arith.constant 1.000000e+00 : f32
    %349 = vector.broadcast %cst_179 : f32 to vector<8x128xf32>
    %350 = arith.addf %349, %348 : vector<8x128xf32>
    %351 = arith.divf %349, %350 : vector<8x128xf32>
    %352 = vector.extract_strided_slice %343 {offsets = [0, 128], sizes = [8, 128], strides = [1, 1]} : vector<8x512xf32> to vector<8x128xf32>
    %353 = arith.negf %352 : vector<8x128xf32>
    %354 = math.exp %353 : vector<8x128xf32>
    %cst_180 = arith.constant 1.000000e+00 : f32
    %355 = vector.broadcast %cst_180 : f32 to vector<8x128xf32>
    %356 = arith.addf %355, %354 : vector<8x128xf32>
    %357 = arith.divf %355, %356 : vector<8x128xf32>
    %358 = vector.extract_strided_slice %343 {offsets = [0, 256], sizes = [8, 128], strides = [1, 1]} : vector<8x512xf32> to vector<8x128xf32>
    %359 = math.tanh %358 : vector<8x128xf32>
    %360 = vector.extract_strided_slice %343 {offsets = [0, 384], sizes = [8, 128], strides = [1, 1]} : vector<8x512xf32> to vector<8x128xf32>
    %361 = arith.negf %360 : vector<8x128xf32>
    %362 = math.exp %361 : vector<8x128xf32>
    %cst_181 = arith.constant 1.000000e+00 : f32
    %363 = vector.broadcast %cst_181 : f32 to vector<8x128xf32>
    %364 = arith.addf %363, %362 : vector<8x128xf32>
    %365 = arith.divf %363, %364 : vector<8x128xf32>
    %366 = arith.mulf %357, %345 : vector<8x128xf32>
    %367 = arith.mulf %351, %359 : vector<8x128xf32>
    %368 = arith.addf %366, %367 : vector<8x128xf32>
    %369 = math.tanh %368 : vector<8x128xf32>
    %370 = arith.mulf %365, %369 : vector<8x128xf32>
    %c1_182 = arith.constant 1 : index
    %c0_183 = arith.constant 0 : index
    %c0_184 = arith.constant 0 : index
    %371 = vector.load %arg8[%c1_182, %c0_183, %c0_184] : memref<2x8x128xf32, #tpu.memory_space<vmem>>, vector<1x8x128xf32>
    %372 = vector.shape_cast %371 : vector<1x8x128xf32> to vector<8x128xf32>
    %373 = vector.shape_cast %370 : vector<8x128xf32> to vector<1x8x128xf32>
    tpu.vector_store %arg8[%c1_182, %c0_183, %c0_184], %373 {strides = array<i32>} : memref<2x8x128xf32, #tpu.memory_space<vmem>>, vector<1x8x128xf32>,
    %c1_185 = arith.constant 1 : index
    %c0_186 = arith.constant 0 : index
    %c0_187 = arith.constant 0 : index
    %374 = vector.load %arg9[%c1_185, %c0_186, %c0_187] : memref<2x8x128xf32, #tpu.memory_space<vmem>>, vector<1x8x128xf32>
    %375 = vector.shape_cast %374 : vector<1x8x128xf32> to vector<8x128xf32>
    %376 = vector.shape_cast %368 : vector<8x128xf32> to vector<1x8x128xf32>
    tpu.vector_store %arg9[%c1_185, %c0_186, %c0_187], %376 {strides = array<i32>} : memref<2x8x128xf32, #tpu.memory_space<vmem>>, vector<1x8x128xf32>,
    %377 = arith.truncf %370 : vector<8x128xf32> to vector<8x128xbf16>
    %c0_188 = arith.constant 0 : index
    %c0_189 = arith.constant 0 : index
    %378 = vector.load %arg5[%c0_188, %c0_189] : memref<128x128xbf16, #tpu.memory_space<vmem>>, vector<128x128xbf16>
    %cst_190 = arith.constant dense<0.000000e+00> : vector<8x128xf32>
    %379 = tpu.matmul %377, %378, %cst_190 {dimension_numbers = #tpu.dot_dimension_numbers<[1], [0], [0], [1], [0, 0, 1, 1], [], []>} : vector<8x128xbf16>, vector<128x128xbf16>, vector<8x128xf32> -> vector<8x128xf32>
    %c0_191 = arith.constant 0 : index
    %c0_192 = arith.constant 0 : index
    %380 = vector.load %arg6[%c0_191, %c0_192] : memref<1x128xf32, #tpu.memory_space<vmem>>, vector<1x128xf32>
    %381 = vector.broadcast %380 : vector<1x128xf32> to vector<8x128xf32>
    %382 = arith.addf %379, %381 : vector<8x128xf32>
    %383 = arith.index_cast %c3_i32 : i32 to index
    %c0_193 = arith.constant 0 : index
    %c0_194 = arith.constant 0 : index
    %384 = vector.load %arg7[%383, %c0_193, %c0_194] : memref<8x8x128xf32, #tpu.memory_space<vmem>>, vector<1x8x128xf32>
    %385 = vector.shape_cast %384 : vector<1x8x128xf32> to vector<8x128xf32>
    %386 = vector.shape_cast %382 : vector<8x128xf32> to vector<1x8x128xf32>
    tpu.vector_store %arg7[%383, %c0_193, %c0_194], %386 {strides = array<i32>} : memref<8x8x128xf32, #tpu.memory_space<vmem>>, vector<1x8x128xf32>,
    %c4_i32 = arith.constant 4 : i32
    %387 = arith.index_cast %c4_i32 : i32 to index
    %c0_195 = arith.constant 0 : index
    %c0_196 = arith.constant 0 : index
    %388 = vector.load %arg1[%387, %c0_195, %c0_196] : memref<8x8x512xf32, #tpu.memory_space<vmem>>, vector<1x8x512xf32>
    %389 = vector.shape_cast %388 : vector<1x8x512xf32> to vector<8x512xf32>
    %c0_197 = arith.constant 0 : index
    %c0_198 = arith.constant 0 : index
    %c0_199 = arith.constant 0 : index
    %390 = vector.load %arg8[%c0_197, %c0_198, %c0_199] : memref<2x8x128xf32, #tpu.memory_space<vmem>>, vector<1x8x128xf32>
    %391 = vector.shape_cast %390 : vector<1x8x128xf32> to vector<8x128xf32>
    %392 = arith.truncf %391 : vector<8x128xf32> to vector<8x128xbf16>
    %c0_200 = arith.constant 0 : index
    %c0_201 = arith.constant 0 : index
    %393 = vector.load %arg2[%c0_200, %c0_201] : memref<128x512xbf16, #tpu.memory_space<vmem>>, vector<128x512xbf16>
    %cst_202 = arith.constant dense<0.000000e+00> : vector<8x512xf32>
    %394 = tpu.matmul %392, %393, %cst_202 {dimension_numbers = #tpu.dot_dimension_numbers<[1], [0], [0], [1], [0, 0, 1, 1], [], []>} : vector<8x128xbf16>, vector<128x512xbf16>, vector<8x512xf32> -> vector<8x512xf32>
    %395 = arith.addf %389, %394 : vector<8x512xf32>
    %c0_203 = arith.constant 0 : index
    %c0_204 = arith.constant 0 : index
    %c0_205 = arith.constant 0 : index
    %396 = vector.load %arg9[%c0_203, %c0_204, %c0_205] : memref<2x8x128xf32, #tpu.memory_space<vmem>>, vector<1x8x128xf32>
    %397 = vector.shape_cast %396 : vector<1x8x128xf32> to vector<8x128xf32>
    %398 = vector.extract_strided_slice %395 {offsets = [0, 0], sizes = [8, 128], strides = [1, 1]} : vector<8x512xf32> to vector<8x128xf32>
    %399 = arith.negf %398 : vector<8x128xf32>
    %400 = math.exp %399 : vector<8x128xf32>
    %cst_206 = arith.constant 1.000000e+00 : f32
    %401 = vector.broadcast %cst_206 : f32 to vector<8x128xf32>
    %402 = arith.addf %401, %400 : vector<8x128xf32>
    %403 = arith.divf %401, %402 : vector<8x128xf32>
    %404 = vector.extract_strided_slice %395 {offsets = [0, 128], sizes = [8, 128], strides = [1, 1]} : vector<8x512xf32> to vector<8x128xf32>
    %405 = arith.negf %404 : vector<8x128xf32>
    %406 = math.exp %405 : vector<8x128xf32>
    %cst_207 = arith.constant 1.000000e+00 : f32
    %407 = vector.broadcast %cst_207 : f32 to vector<8x128xf32>
    %408 = arith.addf %407, %406 : vector<8x128xf32>
    %409 = arith.divf %407, %408 : vector<8x128xf32>
    %410 = vector.extract_strided_slice %395 {offsets = [0, 256], sizes = [8, 128], strides = [1, 1]} : vector<8x512xf32> to vector<8x128xf32>
    %411 = math.tanh %410 : vector<8x128xf32>
    %412 = vector.extract_strided_slice %395 {offsets = [0, 384], sizes = [8, 128], strides = [1, 1]} : vector<8x512xf32> to vector<8x128xf32>
    %413 = arith.negf %412 : vector<8x128xf32>
    %414 = math.exp %413 : vector<8x128xf32>
    %cst_208 = arith.constant 1.000000e+00 : f32
    %415 = vector.broadcast %cst_208 : f32 to vector<8x128xf32>
    %416 = arith.addf %415, %414 : vector<8x128xf32>
    %417 = arith.divf %415, %416 : vector<8x128xf32>
    %418 = arith.mulf %409, %397 : vector<8x128xf32>
    %419 = arith.mulf %403, %411 : vector<8x128xf32>
    %420 = arith.addf %418, %419 : vector<8x128xf32>
    %421 = math.tanh %420 : vector<8x128xf32>
    %422 = arith.mulf %417, %421 : vector<8x128xf32>
    %c0_209 = arith.constant 0 : index
    %c0_210 = arith.constant 0 : index
    %c0_211 = arith.constant 0 : index
    %423 = vector.load %arg8[%c0_209, %c0_210, %c0_211] : memref<2x8x128xf32, #tpu.memory_space<vmem>>, vector<1x8x128xf32>
    %424 = vector.shape_cast %423 : vector<1x8x128xf32> to vector<8x128xf32>
    %425 = vector.shape_cast %422 : vector<8x128xf32> to vector<1x8x128xf32>
    tpu.vector_store %arg8[%c0_209, %c0_210, %c0_211], %425 {strides = array<i32>} : memref<2x8x128xf32, #tpu.memory_space<vmem>>, vector<1x8x128xf32>,
    %c0_212 = arith.constant 0 : index
    %c0_213 = arith.constant 0 : index
    %c0_214 = arith.constant 0 : index
    %426 = vector.load %arg9[%c0_212, %c0_213, %c0_214] : memref<2x8x128xf32, #tpu.memory_space<vmem>>, vector<1x8x128xf32>
    %427 = vector.shape_cast %426 : vector<1x8x128xf32> to vector<8x128xf32>
    %428 = vector.shape_cast %420 : vector<8x128xf32> to vector<1x8x128xf32>
    tpu.vector_store %arg9[%c0_212, %c0_213, %c0_214], %428 {strides = array<i32>} : memref<2x8x128xf32, #tpu.memory_space<vmem>>, vector<1x8x128xf32>,
    %c1_215 = arith.constant 1 : index
    %c0_216 = arith.constant 0 : index
    %c0_217 = arith.constant 0 : index
    %429 = vector.load %arg8[%c1_215, %c0_216, %c0_217] : memref<2x8x128xf32, #tpu.memory_space<vmem>>, vector<1x8x128xf32>
    %430 = vector.shape_cast %429 : vector<1x8x128xf32> to vector<8x128xf32>
    %431 = tpu.concatenate %422, %430 in 1 : vector<8x128xf32>, vector<8x128xf32> -> vector<8x256xf32>
    %432 = arith.truncf %431 : vector<8x256xf32> to vector<8x256xbf16>
    %c0_218 = arith.constant 0 : index
    %c0_219 = arith.constant 0 : index
    %c0_220 = arith.constant 0 : index
    %433 = vector.load %arg3[%c0_218, %c0_219, %c0_220] : memref<1x256x512xbf16, #tpu.memory_space<vmem>>, vector<1x256x512xbf16>
    %434 = vector.shape_cast %433 : vector<1x256x512xbf16> to vector<256x512xbf16>
    %cst_221 = arith.constant dense<0.000000e+00> : vector<8x512xf32>
    %435 = tpu.matmul %432, %434, %cst_221 {dimension_numbers = #tpu.dot_dimension_numbers<[1], [0], [0], [1], [0, 0, 1, 1], [], []>} : vector<8x256xbf16>, vector<256x512xbf16>, vector<8x512xf32> -> vector<8x512xf32>
    %c0_222 = arith.constant 0 : index
    %c0_223 = arith.constant 0 : index
    %c0_224 = arith.constant 0 : index
    %436 = vector.load %arg4[%c0_222, %c0_223, %c0_224] : memref<1x1x512xf32, #tpu.memory_space<vmem>>, vector<1x1x512xf32>
    %437 = vector.shape_cast %436 : vector<1x1x512xf32> to vector<1x512xf32>
    %438 = vector.broadcast %437 : vector<1x512xf32> to vector<8x512xf32>
    %439 = arith.addf %435, %438 : vector<8x512xf32>
    %c1_225 = arith.constant 1 : index
    %c0_226 = arith.constant 0 : index
    %c0_227 = arith.constant 0 : index
    %440 = vector.load %arg9[%c1_225, %c0_226, %c0_227] : memref<2x8x128xf32, #tpu.memory_space<vmem>>, vector<1x8x128xf32>
    %441 = vector.shape_cast %440 : vector<1x8x128xf32> to vector<8x128xf32>
    %442 = vector.extract_strided_slice %439 {offsets = [0, 0], sizes = [8, 128], strides = [1, 1]} : vector<8x512xf32> to vector<8x128xf32>
    %443 = arith.negf %442 : vector<8x128xf32>
    %444 = math.exp %443 : vector<8x128xf32>
    %cst_228 = arith.constant 1.000000e+00 : f32
    %445 = vector.broadcast %cst_228 : f32 to vector<8x128xf32>
    %446 = arith.addf %445, %444 : vector<8x128xf32>
    %447 = arith.divf %445, %446 : vector<8x128xf32>
    %448 = vector.extract_strided_slice %439 {offsets = [0, 128], sizes = [8, 128], strides = [1, 1]} : vector<8x512xf32> to vector<8x128xf32>
    %449 = arith.negf %448 : vector<8x128xf32>
    %450 = math.exp %449 : vector<8x128xf32>
    %cst_229 = arith.constant 1.000000e+00 : f32
    %451 = vector.broadcast %cst_229 : f32 to vector<8x128xf32>
    %452 = arith.addf %451, %450 : vector<8x128xf32>
    %453 = arith.divf %451, %452 : vector<8x128xf32>
    %454 = vector.extract_strided_slice %439 {offsets = [0, 256], sizes = [8, 128], strides = [1, 1]} : vector<8x512xf32> to vector<8x128xf32>
    %455 = math.tanh %454 : vector<8x128xf32>
    %456 = vector.extract_strided_slice %439 {offsets = [0, 384], sizes = [8, 128], strides = [1, 1]} : vector<8x512xf32> to vector<8x128xf32>
    %457 = arith.negf %456 : vector<8x128xf32>
    %458 = math.exp %457 : vector<8x128xf32>
    %cst_230 = arith.constant 1.000000e+00 : f32
    %459 = vector.broadcast %cst_230 : f32 to vector<8x128xf32>
    %460 = arith.addf %459, %458 : vector<8x128xf32>
    %461 = arith.divf %459, %460 : vector<8x128xf32>
    %462 = arith.mulf %453, %441 : vector<8x128xf32>
    %463 = arith.mulf %447, %455 : vector<8x128xf32>
    %464 = arith.addf %462, %463 : vector<8x128xf32>
    %465 = math.tanh %464 : vector<8x128xf32>
    %466 = arith.mulf %461, %465 : vector<8x128xf32>
    %c1_231 = arith.constant 1 : index
    %c0_232 = arith.constant 0 : index
    %c0_233 = arith.constant 0 : index
    %467 = vector.load %arg8[%c1_231, %c0_232, %c0_233] : memref<2x8x128xf32, #tpu.memory_space<vmem>>, vector<1x8x128xf32>
    %468 = vector.shape_cast %467 : vector<1x8x128xf32> to vector<8x128xf32>
    %469 = vector.shape_cast %466 : vector<8x128xf32> to vector<1x8x128xf32>
    tpu.vector_store %arg8[%c1_231, %c0_232, %c0_233], %469 {strides = array<i32>} : memref<2x8x128xf32, #tpu.memory_space<vmem>>, vector<1x8x128xf32>,
    %c1_234 = arith.constant 1 : index
    %c0_235 = arith.constant 0 : index
    %c0_236 = arith.constant 0 : index
    %470 = vector.load %arg9[%c1_234, %c0_235, %c0_236] : memref<2x8x128xf32, #tpu.memory_space<vmem>>, vector<1x8x128xf32>
    %471 = vector.shape_cast %470 : vector<1x8x128xf32> to vector<8x128xf32>
    %472 = vector.shape_cast %464 : vector<8x128xf32> to vector<1x8x128xf32>
    tpu.vector_store %arg9[%c1_234, %c0_235, %c0_236], %472 {strides = array<i32>} : memref<2x8x128xf32, #tpu.memory_space<vmem>>, vector<1x8x128xf32>,
    %473 = arith.truncf %466 : vector<8x128xf32> to vector<8x128xbf16>
    %c0_237 = arith.constant 0 : index
    %c0_238 = arith.constant 0 : index
    %474 = vector.load %arg5[%c0_237, %c0_238] : memref<128x128xbf16, #tpu.memory_space<vmem>>, vector<128x128xbf16>
    %cst_239 = arith.constant dense<0.000000e+00> : vector<8x128xf32>
    %475 = tpu.matmul %473, %474, %cst_239 {dimension_numbers = #tpu.dot_dimension_numbers<[1], [0], [0], [1], [0, 0, 1, 1], [], []>} : vector<8x128xbf16>, vector<128x128xbf16>, vector<8x128xf32> -> vector<8x128xf32>
    %c0_240 = arith.constant 0 : index
    %c0_241 = arith.constant 0 : index
    %476 = vector.load %arg6[%c0_240, %c0_241] : memref<1x128xf32, #tpu.memory_space<vmem>>, vector<1x128xf32>
    %477 = vector.broadcast %476 : vector<1x128xf32> to vector<8x128xf32>
    %478 = arith.addf %475, %477 : vector<8x128xf32>
    %479 = arith.index_cast %c4_i32 : i32 to index
    %c0_242 = arith.constant 0 : index
    %c0_243 = arith.constant 0 : index
    %480 = vector.load %arg7[%479, %c0_242, %c0_243] : memref<8x8x128xf32, #tpu.memory_space<vmem>>, vector<1x8x128xf32>
    %481 = vector.shape_cast %480 : vector<1x8x128xf32> to vector<8x128xf32>
    %482 = vector.shape_cast %478 : vector<8x128xf32> to vector<1x8x128xf32>
    tpu.vector_store %arg7[%479, %c0_242, %c0_243], %482 {strides = array<i32>} : memref<8x8x128xf32, #tpu.memory_space<vmem>>, vector<1x8x128xf32>,
    %c5_i32 = arith.constant 5 : i32
    %483 = arith.index_cast %c5_i32 : i32 to index
    %c0_244 = arith.constant 0 : index
    %c0_245 = arith.constant 0 : index
    %484 = vector.load %arg1[%483, %c0_244, %c0_245] : memref<8x8x512xf32, #tpu.memory_space<vmem>>, vector<1x8x512xf32>
    %485 = vector.shape_cast %484 : vector<1x8x512xf32> to vector<8x512xf32>
    %c0_246 = arith.constant 0 : index
    %c0_247 = arith.constant 0 : index
    %c0_248 = arith.constant 0 : index
    %486 = vector.load %arg8[%c0_246, %c0_247, %c0_248] : memref<2x8x128xf32, #tpu.memory_space<vmem>>, vector<1x8x128xf32>
    %487 = vector.shape_cast %486 : vector<1x8x128xf32> to vector<8x128xf32>
    %488 = arith.truncf %487 : vector<8x128xf32> to vector<8x128xbf16>
    %c0_249 = arith.constant 0 : index
    %c0_250 = arith.constant 0 : index
    %489 = vector.load %arg2[%c0_249, %c0_250] : memref<128x512xbf16, #tpu.memory_space<vmem>>, vector<128x512xbf16>
    %cst_251 = arith.constant dense<0.000000e+00> : vector<8x512xf32>
    %490 = tpu.matmul %488, %489, %cst_251 {dimension_numbers = #tpu.dot_dimension_numbers<[1], [0], [0], [1], [0, 0, 1, 1], [], []>} : vector<8x128xbf16>, vector<128x512xbf16>, vector<8x512xf32> -> vector<8x512xf32>
    %491 = arith.addf %485, %490 : vector<8x512xf32>
    %c0_252 = arith.constant 0 : index
    %c0_253 = arith.constant 0 : index
    %c0_254 = arith.constant 0 : index
    %492 = vector.load %arg9[%c0_252, %c0_253, %c0_254] : memref<2x8x128xf32, #tpu.memory_space<vmem>>, vector<1x8x128xf32>
    %493 = vector.shape_cast %492 : vector<1x8x128xf32> to vector<8x128xf32>
    %494 = vector.extract_strided_slice %491 {offsets = [0, 0], sizes = [8, 128], strides = [1, 1]} : vector<8x512xf32> to vector<8x128xf32>
    %495 = arith.negf %494 : vector<8x128xf32>
    %496 = math.exp %495 : vector<8x128xf32>
    %cst_255 = arith.constant 1.000000e+00 : f32
    %497 = vector.broadcast %cst_255 : f32 to vector<8x128xf32>
    %498 = arith.addf %497, %496 : vector<8x128xf32>
    %499 = arith.divf %497, %498 : vector<8x128xf32>
    %500 = vector.extract_strided_slice %491 {offsets = [0, 128], sizes = [8, 128], strides = [1, 1]} : vector<8x512xf32> to vector<8x128xf32>
    %501 = arith.negf %500 : vector<8x128xf32>
    %502 = math.exp %501 : vector<8x128xf32>
    %cst_256 = arith.constant 1.000000e+00 : f32
    %503 = vector.broadcast %cst_256 : f32 to vector<8x128xf32>
    %504 = arith.addf %503, %502 : vector<8x128xf32>
    %505 = arith.divf %503, %504 : vector<8x128xf32>
    %506 = vector.extract_strided_slice %491 {offsets = [0, 256], sizes = [8, 128], strides = [1, 1]} : vector<8x512xf32> to vector<8x128xf32>
    %507 = math.tanh %506 : vector<8x128xf32>
    %508 = vector.extract_strided_slice %491 {offsets = [0, 384], sizes = [8, 128], strides = [1, 1]} : vector<8x512xf32> to vector<8x128xf32>
    %509 = arith.negf %508 : vector<8x128xf32>
    %510 = math.exp %509 : vector<8x128xf32>
    %cst_257 = arith.constant 1.000000e+00 : f32
    %511 = vector.broadcast %cst_257 : f32 to vector<8x128xf32>
    %512 = arith.addf %511, %510 : vector<8x128xf32>
    %513 = arith.divf %511, %512 : vector<8x128xf32>
    %514 = arith.mulf %505, %493 : vector<8x128xf32>
    %515 = arith.mulf %499, %507 : vector<8x128xf32>
    %516 = arith.addf %514, %515 : vector<8x128xf32>
    %517 = math.tanh %516 : vector<8x128xf32>
    %518 = arith.mulf %513, %517 : vector<8x128xf32>
    %c0_258 = arith.constant 0 : index
    %c0_259 = arith.constant 0 : index
    %c0_260 = arith.constant 0 : index
    %519 = vector.load %arg8[%c0_258, %c0_259, %c0_260] : memref<2x8x128xf32, #tpu.memory_space<vmem>>, vector<1x8x128xf32>
    %520 = vector.shape_cast %519 : vector<1x8x128xf32> to vector<8x128xf32>
    %521 = vector.shape_cast %518 : vector<8x128xf32> to vector<1x8x128xf32>
    tpu.vector_store %arg8[%c0_258, %c0_259, %c0_260], %521 {strides = array<i32>} : memref<2x8x128xf32, #tpu.memory_space<vmem>>, vector<1x8x128xf32>,
    %c0_261 = arith.constant 0 : index
    %c0_262 = arith.constant 0 : index
    %c0_263 = arith.constant 0 : index
    %522 = vector.load %arg9[%c0_261, %c0_262, %c0_263] : memref<2x8x128xf32, #tpu.memory_space<vmem>>, vector<1x8x128xf32>
    %523 = vector.shape_cast %522 : vector<1x8x128xf32> to vector<8x128xf32>
    %524 = vector.shape_cast %516 : vector<8x128xf32> to vector<1x8x128xf32>
    tpu.vector_store %arg9[%c0_261, %c0_262, %c0_263], %524 {strides = array<i32>} : memref<2x8x128xf32, #tpu.memory_space<vmem>>, vector<1x8x128xf32>,
    %c1_264 = arith.constant 1 : index
    %c0_265 = arith.constant 0 : index
    %c0_266 = arith.constant 0 : index
    %525 = vector.load %arg8[%c1_264, %c0_265, %c0_266] : memref<2x8x128xf32, #tpu.memory_space<vmem>>, vector<1x8x128xf32>
    %526 = vector.shape_cast %525 : vector<1x8x128xf32> to vector<8x128xf32>
    %527 = tpu.concatenate %518, %526 in 1 : vector<8x128xf32>, vector<8x128xf32> -> vector<8x256xf32>
    %528 = arith.truncf %527 : vector<8x256xf32> to vector<8x256xbf16>
    %c0_267 = arith.constant 0 : index
    %c0_268 = arith.constant 0 : index
    %c0_269 = arith.constant 0 : index
    %529 = vector.load %arg3[%c0_267, %c0_268, %c0_269] : memref<1x256x512xbf16, #tpu.memory_space<vmem>>, vector<1x256x512xbf16>
    %530 = vector.shape_cast %529 : vector<1x256x512xbf16> to vector<256x512xbf16>
    %cst_270 = arith.constant dense<0.000000e+00> : vector<8x512xf32>
    %531 = tpu.matmul %528, %530, %cst_270 {dimension_numbers = #tpu.dot_dimension_numbers<[1], [0], [0], [1], [0, 0, 1, 1], [], []>} : vector<8x256xbf16>, vector<256x512xbf16>, vector<8x512xf32> -> vector<8x512xf32>
    %c0_271 = arith.constant 0 : index
    %c0_272 = arith.constant 0 : index
    %c0_273 = arith.constant 0 : index
    %532 = vector.load %arg4[%c0_271, %c0_272, %c0_273] : memref<1x1x512xf32, #tpu.memory_space<vmem>>, vector<1x1x512xf32>
    %533 = vector.shape_cast %532 : vector<1x1x512xf32> to vector<1x512xf32>
    %534 = vector.broadcast %533 : vector<1x512xf32> to vector<8x512xf32>
    %535 = arith.addf %531, %534 : vector<8x512xf32>
    %c1_274 = arith.constant 1 : index
    %c0_275 = arith.constant 0 : index
    %c0_276 = arith.constant 0 : index
    %536 = vector.load %arg9[%c1_274, %c0_275, %c0_276] : memref<2x8x128xf32, #tpu.memory_space<vmem>>, vector<1x8x128xf32>
    %537 = vector.shape_cast %536 : vector<1x8x128xf32> to vector<8x128xf32>
    %538 = vector.extract_strided_slice %535 {offsets = [0, 0], sizes = [8, 128], strides = [1, 1]} : vector<8x512xf32> to vector<8x128xf32>
    %539 = arith.negf %538 : vector<8x128xf32>
    %540 = math.exp %539 : vector<8x128xf32>
    %cst_277 = arith.constant 1.000000e+00 : f32
    %541 = vector.broadcast %cst_277 : f32 to vector<8x128xf32>
    %542 = arith.addf %541, %540 : vector<8x128xf32>
    %543 = arith.divf %541, %542 : vector<8x128xf32>
    %544 = vector.extract_strided_slice %535 {offsets = [0, 128], sizes = [8, 128], strides = [1, 1]} : vector<8x512xf32> to vector<8x128xf32>
    %545 = arith.negf %544 : vector<8x128xf32>
    %546 = math.exp %545 : vector<8x128xf32>
    %cst_278 = arith.constant 1.000000e+00 : f32
    %547 = vector.broadcast %cst_278 : f32 to vector<8x128xf32>
    %548 = arith.addf %547, %546 : vector<8x128xf32>
    %549 = arith.divf %547, %548 : vector<8x128xf32>
    %550 = vector.extract_strided_slice %535 {offsets = [0, 256], sizes = [8, 128], strides = [1, 1]} : vector<8x512xf32> to vector<8x128xf32>
    %551 = math.tanh %550 : vector<8x128xf32>
    %552 = vector.extract_strided_slice %535 {offsets = [0, 384], sizes = [8, 128], strides = [1, 1]} : vector<8x512xf32> to vector<8x128xf32>
    %553 = arith.negf %552 : vector<8x128xf32>
    %554 = math.exp %553 : vector<8x128xf32>
    %cst_279 = arith.constant 1.000000e+00 : f32
    %555 = vector.broadcast %cst_279 : f32 to vector<8x128xf32>
    %556 = arith.addf %555, %554 : vector<8x128xf32>
    %557 = arith.divf %555, %556 : vector<8x128xf32>
    %558 = arith.mulf %549, %537 : vector<8x128xf32>
    %559 = arith.mulf %543, %551 : vector<8x128xf32>
    %560 = arith.addf %558, %559 : vector<8x128xf32>
    %561 = math.tanh %560 : vector<8x128xf32>
    %562 = arith.mulf %557, %561 : vector<8x128xf32>
    %c1_280 = arith.constant 1 : index
    %c0_281 = arith.constant 0 : index
    %c0_282 = arith.constant 0 : index
    %563 = vector.load %arg8[%c1_280, %c0_281, %c0_282] : memref<2x8x128xf32, #tpu.memory_space<vmem>>, vector<1x8x128xf32>
    %564 = vector.shape_cast %563 : vector<1x8x128xf32> to vector<8x128xf32>
    %565 = vector.shape_cast %562 : vector<8x128xf32> to vector<1x8x128xf32>
    tpu.vector_store %arg8[%c1_280, %c0_281, %c0_282], %565 {strides = array<i32>} : memref<2x8x128xf32, #tpu.memory_space<vmem>>, vector<1x8x128xf32>,
    %c1_283 = arith.constant 1 : index
    %c0_284 = arith.constant 0 : index
    %c0_285 = arith.constant 0 : index
    %566 = vector.load %arg9[%c1_283, %c0_284, %c0_285] : memref<2x8x128xf32, #tpu.memory_space<vmem>>, vector<1x8x128xf32>
    %567 = vector.shape_cast %566 : vector<1x8x128xf32> to vector<8x128xf32>
    %568 = vector.shape_cast %560 : vector<8x128xf32> to vector<1x8x128xf32>
    tpu.vector_store %arg9[%c1_283, %c0_284, %c0_285], %568 {strides = array<i32>} : memref<2x8x128xf32, #tpu.memory_space<vmem>>, vector<1x8x128xf32>,
    %569 = arith.truncf %562 : vector<8x128xf32> to vector<8x128xbf16>
    %c0_286 = arith.constant 0 : index
    %c0_287 = arith.constant 0 : index
    %570 = vector.load %arg5[%c0_286, %c0_287] : memref<128x128xbf16, #tpu.memory_space<vmem>>, vector<128x128xbf16>
    %cst_288 = arith.constant dense<0.000000e+00> : vector<8x128xf32>
    %571 = tpu.matmul %569, %570, %cst_288 {dimension_numbers = #tpu.dot_dimension_numbers<[1], [0], [0], [1], [0, 0, 1, 1], [], []>} : vector<8x128xbf16>, vector<128x128xbf16>, vector<8x128xf32> -> vector<8x128xf32>
    %c0_289 = arith.constant 0 : index
    %c0_290 = arith.constant 0 : index
    %572 = vector.load %arg6[%c0_289, %c0_290] : memref<1x128xf32, #tpu.memory_space<vmem>>, vector<1x128xf32>
    %573 = vector.broadcast %572 : vector<1x128xf32> to vector<8x128xf32>
    %574 = arith.addf %571, %573 : vector<8x128xf32>
    %575 = arith.index_cast %c5_i32 : i32 to index
    %c0_291 = arith.constant 0 : index
    %c0_292 = arith.constant 0 : index
    %576 = vector.load %arg7[%575, %c0_291, %c0_292] : memref<8x8x128xf32, #tpu.memory_space<vmem>>, vector<1x8x128xf32>
    %577 = vector.shape_cast %576 : vector<1x8x128xf32> to vector<8x128xf32>
    %578 = vector.shape_cast %574 : vector<8x128xf32> to vector<1x8x128xf32>
    tpu.vector_store %arg7[%575, %c0_291, %c0_292], %578 {strides = array<i32>} : memref<8x8x128xf32, #tpu.memory_space<vmem>>, vector<1x8x128xf32>,
    %c6_i32 = arith.constant 6 : i32
    %579 = arith.index_cast %c6_i32 : i32 to index
    %c0_293 = arith.constant 0 : index
    %c0_294 = arith.constant 0 : index
    %580 = vector.load %arg1[%579, %c0_293, %c0_294] : memref<8x8x512xf32, #tpu.memory_space<vmem>>, vector<1x8x512xf32>
    %581 = vector.shape_cast %580 : vector<1x8x512xf32> to vector<8x512xf32>
    %c0_295 = arith.constant 0 : index
    %c0_296 = arith.constant 0 : index
    %c0_297 = arith.constant 0 : index
    %582 = vector.load %arg8[%c0_295, %c0_296, %c0_297] : memref<2x8x128xf32, #tpu.memory_space<vmem>>, vector<1x8x128xf32>
    %583 = vector.shape_cast %582 : vector<1x8x128xf32> to vector<8x128xf32>
    %584 = arith.truncf %583 : vector<8x128xf32> to vector<8x128xbf16>
    %c0_298 = arith.constant 0 : index
    %c0_299 = arith.constant 0 : index
    %585 = vector.load %arg2[%c0_298, %c0_299] : memref<128x512xbf16, #tpu.memory_space<vmem>>, vector<128x512xbf16>
    %cst_300 = arith.constant dense<0.000000e+00> : vector<8x512xf32>
    %586 = tpu.matmul %584, %585, %cst_300 {dimension_numbers = #tpu.dot_dimension_numbers<[1], [0], [0], [1], [0, 0, 1, 1], [], []>} : vector<8x128xbf16>, vector<128x512xbf16>, vector<8x512xf32> -> vector<8x512xf32>
    %587 = arith.addf %581, %586 : vector<8x512xf32>
    %c0_301 = arith.constant 0 : index
    %c0_302 = arith.constant 0 : index
    %c0_303 = arith.constant 0 : index
    %588 = vector.load %arg9[%c0_301, %c0_302, %c0_303] : memref<2x8x128xf32, #tpu.memory_space<vmem>>, vector<1x8x128xf32>
    %589 = vector.shape_cast %588 : vector<1x8x128xf32> to vector<8x128xf32>
    %590 = vector.extract_strided_slice %587 {offsets = [0, 0], sizes = [8, 128], strides = [1, 1]} : vector<8x512xf32> to vector<8x128xf32>
    %591 = arith.negf %590 : vector<8x128xf32>
    %592 = math.exp %591 : vector<8x128xf32>
    %cst_304 = arith.constant 1.000000e+00 : f32
    %593 = vector.broadcast %cst_304 : f32 to vector<8x128xf32>
    %594 = arith.addf %593, %592 : vector<8x128xf32>
    %595 = arith.divf %593, %594 : vector<8x128xf32>
    %596 = vector.extract_strided_slice %587 {offsets = [0, 128], sizes = [8, 128], strides = [1, 1]} : vector<8x512xf32> to vector<8x128xf32>
    %597 = arith.negf %596 : vector<8x128xf32>
    %598 = math.exp %597 : vector<8x128xf32>
    %cst_305 = arith.constant 1.000000e+00 : f32
    %599 = vector.broadcast %cst_305 : f32 to vector<8x128xf32>
    %600 = arith.addf %599, %598 : vector<8x128xf32>
    %601 = arith.divf %599, %600 : vector<8x128xf32>
    %602 = vector.extract_strided_slice %587 {offsets = [0, 256], sizes = [8, 128], strides = [1, 1]} : vector<8x512xf32> to vector<8x128xf32>
    %603 = math.tanh %602 : vector<8x128xf32>
    %604 = vector.extract_strided_slice %587 {offsets = [0, 384], sizes = [8, 128], strides = [1, 1]} : vector<8x512xf32> to vector<8x128xf32>
    %605 = arith.negf %604 : vector<8x128xf32>
    %606 = math.exp %605 : vector<8x128xf32>
    %cst_306 = arith.constant 1.000000e+00 : f32
    %607 = vector.broadcast %cst_306 : f32 to vector<8x128xf32>
    %608 = arith.addf %607, %606 : vector<8x128xf32>
    %609 = arith.divf %607, %608 : vector<8x128xf32>
    %610 = arith.mulf %601, %589 : vector<8x128xf32>
    %611 = arith.mulf %595, %603 : vector<8x128xf32>
    %612 = arith.addf %610, %611 : vector<8x128xf32>
    %613 = math.tanh %612 : vector<8x128xf32>
    %614 = arith.mulf %609, %613 : vector<8x128xf32>
    %c0_307 = arith.constant 0 : index
    %c0_308 = arith.constant 0 : index
    %c0_309 = arith.constant 0 : index
    %615 = vector.load %arg8[%c0_307, %c0_308, %c0_309] : memref<2x8x128xf32, #tpu.memory_space<vmem>>, vector<1x8x128xf32>
    %616 = vector.shape_cast %615 : vector<1x8x128xf32> to vector<8x128xf32>
    %617 = vector.shape_cast %614 : vector<8x128xf32> to vector<1x8x128xf32>
    tpu.vector_store %arg8[%c0_307, %c0_308, %c0_309], %617 {strides = array<i32>} : memref<2x8x128xf32, #tpu.memory_space<vmem>>, vector<1x8x128xf32>,
    %c0_310 = arith.constant 0 : index
    %c0_311 = arith.constant 0 : index
    %c0_312 = arith.constant 0 : index
    %618 = vector.load %arg9[%c0_310, %c0_311, %c0_312] : memref<2x8x128xf32, #tpu.memory_space<vmem>>, vector<1x8x128xf32>
    %619 = vector.shape_cast %618 : vector<1x8x128xf32> to vector<8x128xf32>
    %620 = vector.shape_cast %612 : vector<8x128xf32> to vector<1x8x128xf32>
    tpu.vector_store %arg9[%c0_310, %c0_311, %c0_312], %620 {strides = array<i32>} : memref<2x8x128xf32, #tpu.memory_space<vmem>>, vector<1x8x128xf32>,
    %c1_313 = arith.constant 1 : index
    %c0_314 = arith.constant 0 : index
    %c0_315 = arith.constant 0 : index
    %621 = vector.load %arg8[%c1_313, %c0_314, %c0_315] : memref<2x8x128xf32, #tpu.memory_space<vmem>>, vector<1x8x128xf32>
    %622 = vector.shape_cast %621 : vector<1x8x128xf32> to vector<8x128xf32>
    %623 = tpu.concatenate %614, %622 in 1 : vector<8x128xf32>, vector<8x128xf32> -> vector<8x256xf32>
    %624 = arith.truncf %623 : vector<8x256xf32> to vector<8x256xbf16>
    %c0_316 = arith.constant 0 : index
    %c0_317 = arith.constant 0 : index
    %c0_318 = arith.constant 0 : index
    %625 = vector.load %arg3[%c0_316, %c0_317, %c0_318] : memref<1x256x512xbf16, #tpu.memory_space<vmem>>, vector<1x256x512xbf16>
    %626 = vector.shape_cast %625 : vector<1x256x512xbf16> to vector<256x512xbf16>
    %cst_319 = arith.constant dense<0.000000e+00> : vector<8x512xf32>
    %627 = tpu.matmul %624, %626, %cst_319 {dimension_numbers = #tpu.dot_dimension_numbers<[1], [0], [0], [1], [0, 0, 1, 1], [], []>} : vector<8x256xbf16>, vector<256x512xbf16>, vector<8x512xf32> -> vector<8x512xf32>
    %c0_320 = arith.constant 0 : index
    %c0_321 = arith.constant 0 : index
    %c0_322 = arith.constant 0 : index
    %628 = vector.load %arg4[%c0_320, %c0_321, %c0_322] : memref<1x1x512xf32, #tpu.memory_space<vmem>>, vector<1x1x512xf32>
    %629 = vector.shape_cast %628 : vector<1x1x512xf32> to vector<1x512xf32>
    %630 = vector.broadcast %629 : vector<1x512xf32> to vector<8x512xf32>
    %631 = arith.addf %627, %630 : vector<8x512xf32>
    %c1_323 = arith.constant 1 : index
    %c0_324 = arith.constant 0 : index
    %c0_325 = arith.constant 0 : index
    %632 = vector.load %arg9[%c1_323, %c0_324, %c0_325] : memref<2x8x128xf32, #tpu.memory_space<vmem>>, vector<1x8x128xf32>
    %633 = vector.shape_cast %632 : vector<1x8x128xf32> to vector<8x128xf32>
    %634 = vector.extract_strided_slice %631 {offsets = [0, 0], sizes = [8, 128], strides = [1, 1]} : vector<8x512xf32> to vector<8x128xf32>
    %635 = arith.negf %634 : vector<8x128xf32>
    %636 = math.exp %635 : vector<8x128xf32>
    %cst_326 = arith.constant 1.000000e+00 : f32
    %637 = vector.broadcast %cst_326 : f32 to vector<8x128xf32>
    %638 = arith.addf %637, %636 : vector<8x128xf32>
    %639 = arith.divf %637, %638 : vector<8x128xf32>
    %640 = vector.extract_strided_slice %631 {offsets = [0, 128], sizes = [8, 128], strides = [1, 1]} : vector<8x512xf32> to vector<8x128xf32>
    %641 = arith.negf %640 : vector<8x128xf32>
    %642 = math.exp %641 : vector<8x128xf32>
    %cst_327 = arith.constant 1.000000e+00 : f32
    %643 = vector.broadcast %cst_327 : f32 to vector<8x128xf32>
    %644 = arith.addf %643, %642 : vector<8x128xf32>
    %645 = arith.divf %643, %644 : vector<8x128xf32>
    %646 = vector.extract_strided_slice %631 {offsets = [0, 256], sizes = [8, 128], strides = [1, 1]} : vector<8x512xf32> to vector<8x128xf32>
    %647 = math.tanh %646 : vector<8x128xf32>
    %648 = vector.extract_strided_slice %631 {offsets = [0, 384], sizes = [8, 128], strides = [1, 1]} : vector<8x512xf32> to vector<8x128xf32>
    %649 = arith.negf %648 : vector<8x128xf32>
    %650 = math.exp %649 : vector<8x128xf32>
    %cst_328 = arith.constant 1.000000e+00 : f32
    %651 = vector.broadcast %cst_328 : f32 to vector<8x128xf32>
    %652 = arith.addf %651, %650 : vector<8x128xf32>
    %653 = arith.divf %651, %652 : vector<8x128xf32>
    %654 = arith.mulf %645, %633 : vector<8x128xf32>
    %655 = arith.mulf %639, %647 : vector<8x128xf32>
    %656 = arith.addf %654, %655 : vector<8x128xf32>
    %657 = math.tanh %656 : vector<8x128xf32>
    %658 = arith.mulf %653, %657 : vector<8x128xf32>
    %c1_329 = arith.constant 1 : index
    %c0_330 = arith.constant 0 : index
    %c0_331 = arith.constant 0 : index
    %659 = vector.load %arg8[%c1_329, %c0_330, %c0_331] : memref<2x8x128xf32, #tpu.memory_space<vmem>>, vector<1x8x128xf32>
    %660 = vector.shape_cast %659 : vector<1x8x128xf32> to vector<8x128xf32>
    %661 = vector.shape_cast %658 : vector<8x128xf32> to vector<1x8x128xf32>
    tpu.vector_store %arg8[%c1_329, %c0_330, %c0_331], %661 {strides = array<i32>} : memref<2x8x128xf32, #tpu.memory_space<vmem>>, vector<1x8x128xf32>,
    %c1_332 = arith.constant 1 : index
    %c0_333 = arith.constant 0 : index
    %c0_334 = arith.constant 0 : index
    %662 = vector.load %arg9[%c1_332, %c0_333, %c0_334] : memref<2x8x128xf32, #tpu.memory_space<vmem>>, vector<1x8x128xf32>
    %663 = vector.shape_cast %662 : vector<1x8x128xf32> to vector<8x128xf32>
    %664 = vector.shape_cast %656 : vector<8x128xf32> to vector<1x8x128xf32>
    tpu.vector_store %arg9[%c1_332, %c0_333, %c0_334], %664 {strides = array<i32>} : memref<2x8x128xf32, #tpu.memory_space<vmem>>, vector<1x8x128xf32>,
    %665 = arith.truncf %658 : vector<8x128xf32> to vector<8x128xbf16>
    %c0_335 = arith.constant 0 : index
    %c0_336 = arith.constant 0 : index
    %666 = vector.load %arg5[%c0_335, %c0_336] : memref<128x128xbf16, #tpu.memory_space<vmem>>, vector<128x128xbf16>
    %cst_337 = arith.constant dense<0.000000e+00> : vector<8x128xf32>
    %667 = tpu.matmul %665, %666, %cst_337 {dimension_numbers = #tpu.dot_dimension_numbers<[1], [0], [0], [1], [0, 0, 1, 1], [], []>} : vector<8x128xbf16>, vector<128x128xbf16>, vector<8x128xf32> -> vector<8x128xf32>
    %c0_338 = arith.constant 0 : index
    %c0_339 = arith.constant 0 : index
    %668 = vector.load %arg6[%c0_338, %c0_339] : memref<1x128xf32, #tpu.memory_space<vmem>>, vector<1x128xf32>
    %669 = vector.broadcast %668 : vector<1x128xf32> to vector<8x128xf32>
    %670 = arith.addf %667, %669 : vector<8x128xf32>
    %671 = arith.index_cast %c6_i32 : i32 to index
    %c0_340 = arith.constant 0 : index
    %c0_341 = arith.constant 0 : index
    %672 = vector.load %arg7[%671, %c0_340, %c0_341] : memref<8x8x128xf32, #tpu.memory_space<vmem>>, vector<1x8x128xf32>
    %673 = vector.shape_cast %672 : vector<1x8x128xf32> to vector<8x128xf32>
    %674 = vector.shape_cast %670 : vector<8x128xf32> to vector<1x8x128xf32>
    tpu.vector_store %arg7[%671, %c0_340, %c0_341], %674 {strides = array<i32>} : memref<8x8x128xf32, #tpu.memory_space<vmem>>, vector<1x8x128xf32>,
    %c7_i32 = arith.constant 7 : i32
    %675 = arith.index_cast %c7_i32 : i32 to index
    %c0_342 = arith.constant 0 : index
    %c0_343 = arith.constant 0 : index
    %676 = vector.load %arg1[%675, %c0_342, %c0_343] : memref<8x8x512xf32, #tpu.memory_space<vmem>>, vector<1x8x512xf32>
    %677 = vector.shape_cast %676 : vector<1x8x512xf32> to vector<8x512xf32>
    %c0_344 = arith.constant 0 : index
    %c0_345 = arith.constant 0 : index
    %c0_346 = arith.constant 0 : index
    %678 = vector.load %arg8[%c0_344, %c0_345, %c0_346] : memref<2x8x128xf32, #tpu.memory_space<vmem>>, vector<1x8x128xf32>
    %679 = vector.shape_cast %678 : vector<1x8x128xf32> to vector<8x128xf32>
    %680 = arith.truncf %679 : vector<8x128xf32> to vector<8x128xbf16>
    %c0_347 = arith.constant 0 : index
    %c0_348 = arith.constant 0 : index
    %681 = vector.load %arg2[%c0_347, %c0_348] : memref<128x512xbf16, #tpu.memory_space<vmem>>, vector<128x512xbf16>
    %cst_349 = arith.constant dense<0.000000e+00> : vector<8x512xf32>
    %682 = tpu.matmul %680, %681, %cst_349 {dimension_numbers = #tpu.dot_dimension_numbers<[1], [0], [0], [1], [0, 0, 1, 1], [], []>} : vector<8x128xbf16>, vector<128x512xbf16>, vector<8x512xf32> -> vector<8x512xf32>
    %683 = arith.addf %677, %682 : vector<8x512xf32>
    %c0_350 = arith.constant 0 : index
    %c0_351 = arith.constant 0 : index
    %c0_352 = arith.constant 0 : index
    %684 = vector.load %arg9[%c0_350, %c0_351, %c0_352] : memref<2x8x128xf32, #tpu.memory_space<vmem>>, vector<1x8x128xf32>
    %685 = vector.shape_cast %684 : vector<1x8x128xf32> to vector<8x128xf32>
    %686 = vector.extract_strided_slice %683 {offsets = [0, 0], sizes = [8, 128], strides = [1, 1]} : vector<8x512xf32> to vector<8x128xf32>
    %687 = arith.negf %686 : vector<8x128xf32>
    %688 = math.exp %687 : vector<8x128xf32>
    %cst_353 = arith.constant 1.000000e+00 : f32
    %689 = vector.broadcast %cst_353 : f32 to vector<8x128xf32>
    %690 = arith.addf %689, %688 : vector<8x128xf32>
    %691 = arith.divf %689, %690 : vector<8x128xf32>
    %692 = vector.extract_strided_slice %683 {offsets = [0, 128], sizes = [8, 128], strides = [1, 1]} : vector<8x512xf32> to vector<8x128xf32>
    %693 = arith.negf %692 : vector<8x128xf32>
    %694 = math.exp %693 : vector<8x128xf32>
    %cst_354 = arith.constant 1.000000e+00 : f32
    %695 = vector.broadcast %cst_354 : f32 to vector<8x128xf32>
    %696 = arith.addf %695, %694 : vector<8x128xf32>
    %697 = arith.divf %695, %696 : vector<8x128xf32>
    %698 = vector.extract_strided_slice %683 {offsets = [0, 256], sizes = [8, 128], strides = [1, 1]} : vector<8x512xf32> to vector<8x128xf32>
    %699 = math.tanh %698 : vector<8x128xf32>
    %700 = vector.extract_strided_slice %683 {offsets = [0, 384], sizes = [8, 128], strides = [1, 1]} : vector<8x512xf32> to vector<8x128xf32>
    %701 = arith.negf %700 : vector<8x128xf32>
    %702 = math.exp %701 : vector<8x128xf32>
    %cst_355 = arith.constant 1.000000e+00 : f32
    %703 = vector.broadcast %cst_355 : f32 to vector<8x128xf32>
    %704 = arith.addf %703, %702 : vector<8x128xf32>
    %705 = arith.divf %703, %704 : vector<8x128xf32>
    %706 = arith.mulf %697, %685 : vector<8x128xf32>
    %707 = arith.mulf %691, %699 : vector<8x128xf32>
    %708 = arith.addf %706, %707 : vector<8x128xf32>
    %709 = math.tanh %708 : vector<8x128xf32>
    %710 = arith.mulf %705, %709 : vector<8x128xf32>
    %c0_356 = arith.constant 0 : index
    %c0_357 = arith.constant 0 : index
    %c0_358 = arith.constant 0 : index
    %711 = vector.load %arg8[%c0_356, %c0_357, %c0_358] : memref<2x8x128xf32, #tpu.memory_space<vmem>>, vector<1x8x128xf32>
    %712 = vector.shape_cast %711 : vector<1x8x128xf32> to vector<8x128xf32>
    %713 = vector.shape_cast %710 : vector<8x128xf32> to vector<1x8x128xf32>
    tpu.vector_store %arg8[%c0_356, %c0_357, %c0_358], %713 {strides = array<i32>} : memref<2x8x128xf32, #tpu.memory_space<vmem>>, vector<1x8x128xf32>,
    %c0_359 = arith.constant 0 : index
    %c0_360 = arith.constant 0 : index
    %c0_361 = arith.constant 0 : index
    %714 = vector.load %arg9[%c0_359, %c0_360, %c0_361] : memref<2x8x128xf32, #tpu.memory_space<vmem>>, vector<1x8x128xf32>
    %715 = vector.shape_cast %714 : vector<1x8x128xf32> to vector<8x128xf32>
    %716 = vector.shape_cast %708 : vector<8x128xf32> to vector<1x8x128xf32>
    tpu.vector_store %arg9[%c0_359, %c0_360, %c0_361], %716 {strides = array<i32>} : memref<2x8x128xf32, #tpu.memory_space<vmem>>, vector<1x8x128xf32>,
    %c1_362 = arith.constant 1 : index
    %c0_363 = arith.constant 0 : index
    %c0_364 = arith.constant 0 : index
    %717 = vector.load %arg8[%c1_362, %c0_363, %c0_364] : memref<2x8x128xf32, #tpu.memory_space<vmem>>, vector<1x8x128xf32>
    %718 = vector.shape_cast %717 : vector<1x8x128xf32> to vector<8x128xf32>
    %719 = tpu.concatenate %710, %718 in 1 : vector<8x128xf32>, vector<8x128xf32> -> vector<8x256xf32>
    %720 = arith.truncf %719 : vector<8x256xf32> to vector<8x256xbf16>
    %c0_365 = arith.constant 0 : index
    %c0_366 = arith.constant 0 : index
    %c0_367 = arith.constant 0 : index
    %721 = vector.load %arg3[%c0_365, %c0_366, %c0_367] : memref<1x256x512xbf16, #tpu.memory_space<vmem>>, vector<1x256x512xbf16>
    %722 = vector.shape_cast %721 : vector<1x256x512xbf16> to vector<256x512xbf16>
    %cst_368 = arith.constant dense<0.000000e+00> : vector<8x512xf32>
    %723 = tpu.matmul %720, %722, %cst_368 {dimension_numbers = #tpu.dot_dimension_numbers<[1], [0], [0], [1], [0, 0, 1, 1], [], []>} : vector<8x256xbf16>, vector<256x512xbf16>, vector<8x512xf32> -> vector<8x512xf32>
    %c0_369 = arith.constant 0 : index
    %c0_370 = arith.constant 0 : index
    %c0_371 = arith.constant 0 : index
    %724 = vector.load %arg4[%c0_369, %c0_370, %c0_371] : memref<1x1x512xf32, #tpu.memory_space<vmem>>, vector<1x1x512xf32>
    %725 = vector.shape_cast %724 : vector<1x1x512xf32> to vector<1x512xf32>
    %726 = vector.broadcast %725 : vector<1x512xf32> to vector<8x512xf32>
    %727 = arith.addf %723, %726 : vector<8x512xf32>
    %c1_372 = arith.constant 1 : index
    %c0_373 = arith.constant 0 : index
    %c0_374 = arith.constant 0 : index
    %728 = vector.load %arg9[%c1_372, %c0_373, %c0_374] : memref<2x8x128xf32, #tpu.memory_space<vmem>>, vector<1x8x128xf32>
    %729 = vector.shape_cast %728 : vector<1x8x128xf32> to vector<8x128xf32>
    %730 = vector.extract_strided_slice %727 {offsets = [0, 0], sizes = [8, 128], strides = [1, 1]} : vector<8x512xf32> to vector<8x128xf32>
    %731 = arith.negf %730 : vector<8x128xf32>
    %732 = math.exp %731 : vector<8x128xf32>
    %cst_375 = arith.constant 1.000000e+00 : f32
    %733 = vector.broadcast %cst_375 : f32 to vector<8x128xf32>
    %734 = arith.addf %733, %732 : vector<8x128xf32>
    %735 = arith.divf %733, %734 : vector<8x128xf32>
    %736 = vector.extract_strided_slice %727 {offsets = [0, 128], sizes = [8, 128], strides = [1, 1]} : vector<8x512xf32> to vector<8x128xf32>
    %737 = arith.negf %736 : vector<8x128xf32>
    %738 = math.exp %737 : vector<8x128xf32>
    %cst_376 = arith.constant 1.000000e+00 : f32
    %739 = vector.broadcast %cst_376 : f32 to vector<8x128xf32>
    %740 = arith.addf %739, %738 : vector<8x128xf32>
    %741 = arith.divf %739, %740 : vector<8x128xf32>
    %742 = vector.extract_strided_slice %727 {offsets = [0, 256], sizes = [8, 128], strides = [1, 1]} : vector<8x512xf32> to vector<8x128xf32>
    %743 = math.tanh %742 : vector<8x128xf32>
    %744 = vector.extract_strided_slice %727 {offsets = [0, 384], sizes = [8, 128], strides = [1, 1]} : vector<8x512xf32> to vector<8x128xf32>
    %745 = arith.negf %744 : vector<8x128xf32>
    %746 = math.exp %745 : vector<8x128xf32>
    %cst_377 = arith.constant 1.000000e+00 : f32
    %747 = vector.broadcast %cst_377 : f32 to vector<8x128xf32>
    %748 = arith.addf %747, %746 : vector<8x128xf32>
    %749 = arith.divf %747, %748 : vector<8x128xf32>
    %750 = arith.mulf %741, %729 : vector<8x128xf32>
    %751 = arith.mulf %735, %743 : vector<8x128xf32>
    %752 = arith.addf %750, %751 : vector<8x128xf32>
    %753 = math.tanh %752 : vector<8x128xf32>
    %754 = arith.mulf %749, %753 : vector<8x128xf32>
    %c1_378 = arith.constant 1 : index
    %c0_379 = arith.constant 0 : index
    %c0_380 = arith.constant 0 : index
    %755 = vector.load %arg8[%c1_378, %c0_379, %c0_380] : memref<2x8x128xf32, #tpu.memory_space<vmem>>, vector<1x8x128xf32>
    %756 = vector.shape_cast %755 : vector<1x8x128xf32> to vector<8x128xf32>
    %757 = vector.shape_cast %754 : vector<8x128xf32> to vector<1x8x128xf32>
    tpu.vector_store %arg8[%c1_378, %c0_379, %c0_380], %757 {strides = array<i32>} : memref<2x8x128xf32, #tpu.memory_space<vmem>>, vector<1x8x128xf32>,
    %c1_381 = arith.constant 1 : index
    %c0_382 = arith.constant 0 : index
    %c0_383 = arith.constant 0 : index
    %758 = vector.load %arg9[%c1_381, %c0_382, %c0_383] : memref<2x8x128xf32, #tpu.memory_space<vmem>>, vector<1x8x128xf32>
    %759 = vector.shape_cast %758 : vector<1x8x128xf32> to vector<8x128xf32>
    %760 = vector.shape_cast %752 : vector<8x128xf32> to vector<1x8x128xf32>
    tpu.vector_store %arg9[%c1_381, %c0_382, %c0_383], %760 {strides = array<i32>} : memref<2x8x128xf32, #tpu.memory_space<vmem>>, vector<1x8x128xf32>,
    %761 = arith.truncf %754 : vector<8x128xf32> to vector<8x128xbf16>
    %c0_384 = arith.constant 0 : index
    %c0_385 = arith.constant 0 : index
    %762 = vector.load %arg5[%c0_384, %c0_385] : memref<128x128xbf16, #tpu.memory_space<vmem>>, vector<128x128xbf16>
    %cst_386 = arith.constant dense<0.000000e+00> : vector<8x128xf32>
    %763 = tpu.matmul %761, %762, %cst_386 {dimension_numbers = #tpu.dot_dimension_numbers<[1], [0], [0], [1], [0, 0, 1, 1], [], []>} : vector<8x128xbf16>, vector<128x128xbf16>, vector<8x128xf32> -> vector<8x128xf32>
    %c0_387 = arith.constant 0 : index
    %c0_388 = arith.constant 0 : index
    %764 = vector.load %arg6[%c0_387, %c0_388] : memref<1x128xf32, #tpu.memory_space<vmem>>, vector<1x128xf32>
    %765 = vector.broadcast %764 : vector<1x128xf32> to vector<8x128xf32>
    %766 = arith.addf %763, %765 : vector<8x128xf32>
    %767 = arith.index_cast %c7_i32 : i32 to index
    %c0_389 = arith.constant 0 : index
    %c0_390 = arith.constant 0 : index
    %768 = vector.load %arg7[%767, %c0_389, %c0_390] : memref<8x8x128xf32, #tpu.memory_space<vmem>>, vector<1x8x128xf32>
    %769 = vector.shape_cast %768 : vector<1x8x128xf32> to vector<8x128xf32>
    %770 = vector.shape_cast %766 : vector<8x128xf32> to vector<1x8x128xf32>
    tpu.vector_store %arg7[%767, %c0_389, %c0_390], %770 {strides = array<i32>} : memref<8x8x128xf32, #tpu.memory_space<vmem>>, vector<1x8x128xf32>,
    %c8_i32 = arith.constant 8 : i32
    return
  }
  func.func @transform_0(%arg0: i32) -> (i32, i32, i32) {
    %c0_i32 = arith.constant 0 : i32
    %c0_i32_0 = arith.constant 0 : i32
    %c0_i32_1 = arith.constant 0 : i32
    return %arg0, %c0_i32, %c0_i32_0 : i32, i32, i32
  }
  func.func @transform_1(%arg0: i32) -> (i32, i32) {
    %c0_i32 = arith.constant 0 : i32
    %c0_i32_0 = arith.constant 0 : i32
    %c0_i32_1 = arith.constant 0 : i32
    return %c0_i32, %c0_i32_0 : i32, i32
  }
  func.func @transform_2(%arg0: i32) -> (i32, i32, i32) {
    %c0_i32 = arith.constant 0 : i32
    %c0_i32_0 = arith.constant 0 : i32
    %c0_i32_1 = arith.constant 0 : i32
    %c0_i32_2 = arith.constant 0 : i32
    return %c0_i32, %c0_i32_0, %c0_i32_1 : i32, i32, i32
  }
  func.func @transform_3(%arg0: i32) -> (i32, i32, i32) {
    %c0_i32 = arith.constant 0 : i32
    %c0_i32_0 = arith.constant 0 : i32
    %c0_i32_1 = arith.constant 0 : i32
    %c0_i32_2 = arith.constant 0 : i32
    return %c0_i32, %c0_i32_0, %c0_i32_1 : i32, i32, i32
  }
  func.func @transform_4(%arg0: i32) -> (i32, i32) {
    %c0_i32 = arith.constant 0 : i32
    %c0_i32_0 = arith.constant 0 : i32
    %c0_i32_1 = arith.constant 0 : i32
    return %c0_i32, %c0_i32_0 : i32, i32
  }
  func.func @transform_5(%arg0: i32) -> (i32, i32) {
    %c0_i32 = arith.constant 0 : i32
    %c0_i32_0 = arith.constant 0 : i32
    %c0_i32_1 = arith.constant 0 : i32
    return %c0_i32, %c0_i32_0 : i32, i32
  }
  func.func @transform_6(%arg0: i32) -> (i32, i32, i32) {
    %c0_i32 = arith.constant 0 : i32
    %c0_i32_0 = arith.constant 0 : i32
    %c0_i32_1 = arith.constant 0 : i32
    return %arg0, %c0_i32, %c0_i32_0 : i32, i32, i32
  }
}

</mosaic_0001>

<llo_original>
// kernel: forward.2
$region0: #{forward.2}
  #allocation0 [shape = 'u32[]', space=smem, size = 0x4, offset = 0x4, fixed_abs, tag = 'smem constant byte address 0x4 - core index']
  #allocation1 [shape = 'u32[72,128]{1,0:T(1,128)}', space=vmem, size = 0x9000, scoped, tag = 'internal scratch']
  %s0 = inlined_call_operand.vmem [shape: f32[64,32], index: 0, kind: input, shape index: {}]
  %s1 = inlined_call_operand.vmem [shape: bf16[32,512], index: 1, kind: input, shape index: {}]
  %s2 = inlined_call_operand.vmem [shape: f32[1,512], index: 2, kind: input, shape index: {}]
  %s3 = inlined_call_operand.vmem [shape: f32[64,512], index: 3, kind: output, shape index: {}]
  %s4 = sld [smem:[#allocation0]]
  $region22: #{forward.2} parent=0
    _
  %s6 = ssub.s32 1, %s4
  %s7 = scalar_select 0, %s6, %s4
  // Predicated region
  $region2: #{forward.2} parent=0 // pred_check
    _
  $region3: #{forward.2} parent=0 // pred_check_branch
    %9 = sbr.rel (0) target = $region5
  $region4: #{forward.2} parent=0 // pred_region
    _
  $region5: #{forward.2} parent=0 // pred_fallthru
    _
  // Predicated region
  $region6: #{forward.2} parent=0 // pred_check
    _
  $region7: #{forward.2} parent=0 // pred_check_branch
    %11 = sbr.rel (0) target = $region9
  $region8: #{forward.2} parent=0 // pred_region
    _
  $region9: #{forward.2} parent=0 // pred_fallthru
    _
  // Predicated region
  $region10: #{forward.2} parent=0 // pred_check
    _
  $region11: #{forward.2} parent=0 // pred_check_branch
    %13 = sbr.rel (0) target = $region13
  $region12: #{forward.2} parent=0 // pred_region
    _
  $region13: #{forward.2} parent=0 // pred_fallthru
    _
  %v15 = vld [vmem:[%s0] sm:$0xff]
  %v16 = vld [vmem:[%s0 + $0x8] sm:$0xff]
  %v17 = vld [vmem:[%s0 + $0x10] sm:$0xff]
  %v18 = vld [vmem:[%s0 + $0x18] sm:$0xff]
  %v19 = vld [vmem:[%s0 + $0x20] sm:$0xff]
  %v20 = vld [vmem:[%s0 + $0x28] sm:$0xff]
  %v21 = vld [vmem:[%s0 + $0x30] sm:$0xff]
  %v22 = vld [vmem:[%s0 + $0x38] sm:$0xff]
  %v23 = vpack.c.bf16 %v16, %v15
  %v24 = vpack.c.bf16 %v18, %v17
  %v25 = vpack.c.bf16 %v20, %v19
  %v26 = vpack.c.bf16 %v22, %v21
  %v27 = vld [vmem:[%s1] sm:$0xff]
  %v28 = vld [vmem:[%s1 + $0x8] sm:$0xff]
  %v29 = vld [vmem:[%s1 + $0x10] sm:$0xff]
  %v30 = vld [vmem:[%s1 + $0x18] sm:$0xff]
  %v31 = vld [vmem:[%s1 + $0x20] sm:$0xff]
  %v32 = vld [vmem:[%s1 + $0x28] sm:$0xff]
  %v33 = vld [vmem:[%s1 + $0x30] sm:$0xff]
  %v34 = vld [vmem:[%s1 + $0x38] sm:$0xff]
  %v35 = vld [vmem:[%s2] sm:$0xf]
  %v37 = vperm.slane %v35, 0
  %v38 = vperm.slane %v35, 1
  %v39 = vperm.slane %v35, 2
  %v40 = vperm.slane %v35, 3
  %v53 = vunpack.c.l.b16 %v27
  %v54 = vunpack.c.h.b16 %v27
  %v55 = vunpack.c.l.b16 %v28
  %v56 = vunpack.c.h.b16 %v28
  %v57 = vunpack.c.l.b16 %v29
  %v58 = vunpack.c.h.b16 %v29
  %v59 = vunpack.c.l.b16 %v30
  %v60 = vunpack.c.h.b16 %v30
  %v61 = vunpack.c.l.b16 %v31
  %v62 = vunpack.c.h.b16 %v31
  %v63 = vunpack.c.l.b16 %v32
  %v64 = vunpack.c.h.b16 %v32
  %v65 = vunpack.c.l.b16 %v33
  %v66 = vunpack.c.h.b16 %v33
  %v67 = vunpack.c.l.b16 %v34
  %v68 = vunpack.c.h.b16 %v34
  %v69 = vpack.c.b16 %v57, %v53
  %v70 = vpack.c.b16 %v58, %v54
  %v71 = vpack.c.b16 %v59, %v55
  %v72 = vpack.c.b16 %v60, %v56
  %v73 = vpack.c.b16 %v65, %v61
  %v74 = vpack.c.b16 %v66, %v62
  %v75 = vpack.c.b16 %v67, %v63
  %v76 = vpack.c.b16 %v68, %v64
  %vm85 = vcmask 261120
  %v87 = vsel %vm85, %v23, 0
  %v90 = vsel %vm85, %v24, 0
  %v93 = vsel %vm85, %v25, 0
  %v96 = vsel %vm85, %v26, 0
  %98 = vmatpush.bf16.msra.mxu0 0
  %99 = vmatpush.bf16.msra.mxu0 0
  %100 = vmatpush.bf16.msra.mxu0 0
  %101 = vmatpush.bf16.msra.mxu0 0
  %102 = vmatpush.bf16.msra.mxu0 0
  %103 = vmatpush.bf16.msra.mxu0 0
  %104 = vmatpush.bf16.msra.mxu0 %v73
  %105 = vmatpush.bf16.msra.mxu0 %v69
  %106 = vmatmul.bf16.gmra.mxu0 %v87
  %v107 = vpop.f32.mrf.mxu0
  %v108 = vadd.f32 %v37, %v107
  %v109 = vpop.f32.mrf.mxu0
  %v110 = vadd.f32 %v37, %v109
  %111 = vmatmul.bf16.gmra.mxu0 %v90
  %v112 = vpop.f32.mrf.mxu0
  %v113 = vadd.f32 %v37, %v112
  %v114 = vpop.f32.mrf.mxu0
  %v115 = vadd.f32 %v37, %v114
  %116 = vmatmul.bf16.gmra.mxu0 %v93
  %v117 = vpop.f32.mrf.mxu0
  %v118 = vadd.f32 %v37, %v117
  %v119 = vpop.f32.mrf.mxu0
  %v120 = vadd.f32 %v37, %v119
  %121 = vmatmul.bf16.gmra.mxu0 %v96
  %v122 = vpop.f32.mrf.mxu0
  %v123 = vadd.f32 %v37, %v122
  %v124 = vpop.f32.mrf.mxu0
  %v125 = vadd.f32 %v37, %v124
  %126 = vdwg.mxu0
  %127 = vmatpush.bf16.msra.mxu0 0
  %128 = vmatpush.bf16.msra.mxu0 0
  %129 = vmatpush.bf16.msra.mxu0 0
  %130 = vmatpush.bf16.msra.mxu0 0
  %131 = vmatpush.bf16.msra.mxu0 0
  %132 = vmatpush.bf16.msra.mxu0 0
  %133 = vmatpush.bf16.msra.mxu0 %v74
  %134 = vmatpush.bf16.msra.mxu0 %v70
  %135 = vmatmul.bf16.gmra.mxu0 %v87
  %v136 = vpop.f32.mrf.mxu0
  %v137 = vadd.f32 %v38, %v136
  %v138 = vpop.f32.mrf.mxu0
  %v139 = vadd.f32 %v38, %v138
  %140 = vmatmul.bf16.gmra.mxu0 %v90
  %v141 = vpop.f32.mrf.mxu0
  %v142 = vadd.f32 %v38, %v141
  %v143 = vpop.f32.mrf.mxu0
  %v144 = vadd.f32 %v38, %v143
  %145 = vmatmul.bf16.gmra.mxu0 %v93
  %v146 = vpop.f32.mrf.mxu0
  %v147 = vadd.f32 %v38, %v146
  %v148 = vpop.f32.mrf.mxu0
  %v149 = vadd.f32 %v38, %v148
  %150 = vmatmul.bf16.gmra.mxu0 %v96
  %v151 = vpop.f32.mrf.mxu0
  %v152 = vadd.f32 %v38, %v151
  %v153 = vpop.f32.mrf.mxu0
  %v154 = vadd.f32 %v38, %v153
  %155 = vdwg.mxu0
  %156 = vmatpush.bf16.msra.mxu0 0
  %157 = vmatpush.bf16.msra.mxu0 0
  %158 = vmatpush.bf16.msra.mxu0 0
  %159 = vmatpush.bf16.msra.mxu0 0
  %160 = vmatpush.bf16.msra.mxu0 0
  %161 = vmatpush.bf16.msra.mxu0 0
  %162 = vmatpush.bf16.msra.mxu0 %v75
  %163 = vmatpush.bf16.msra.mxu0 %v71
  %164 = vmatmul.bf16.gmra.mxu0 %v87
  %v165 = vpop.f32.mrf.mxu0
  %v166 = vadd.f32 %v39, %v165
  %v167 = vpop.f32.mrf.mxu0
  %v168 = vadd.f32 %v39, %v167
  %169 = vmatmul.bf16.gmra.mxu0 %v90
  %v170 = vpop.f32.mrf.mxu0
  %v171 = vadd.f32 %v39, %v170
  %v172 = vpop.f32.mrf.mxu0
  %v173 = vadd.f32 %v39, %v172
  %174 = vmatmul.bf16.gmra.mxu0 %v93
  %v175 = vpop.f32.mrf.mxu0
  %v176 = vadd.f32 %v39, %v175
  %v177 = vpop.f32.mrf.mxu0
  %v178 = vadd.f32 %v39, %v177
  %179 = vmatmul.bf16.gmra.mxu0 %v96
  %v180 = vpop.f32.mrf.mxu0
  %v181 = vadd.f32 %v39, %v180
  %v182 = vpop.f32.mrf.mxu0
  %v183 = vadd.f32 %v39, %v182
  %184 = vdwg.mxu0
  %185 = vmatpush.bf16.msra.mxu0 0
  %186 = vmatpush.bf16.msra.mxu0 0
  %187 = vmatpush.bf16.msra.mxu0 0
  %188 = vmatpush.bf16.msra.mxu0 0
  %189 = vmatpush.bf16.msra.mxu0 0
  %190 = vmatpush.bf16.msra.mxu0 0
  %191 = vmatpush.bf16.msra.mxu0 %v76
  %192 = vmatpush.bf16.msra.mxu0 %v72
  %193 = vmatmul.bf16.gmra.mxu0 %v87
  %v194 = vpop.f32.mrf.mxu0
  %v195 = vadd.f32 %v40, %v194
  %v196 = vpop.f32.mrf.mxu0
  %v197 = vadd.f32 %v40, %v196
  %198 = vmatmul.bf16.gmra.mxu0 %v90
  %v199 = vpop.f32.mrf.mxu0
  %v200 = vadd.f32 %v40, %v199
  %v201 = vpop.f32.mrf.mxu0
  %v202 = vadd.f32 %v40, %v201
  %203 = vmatmul.bf16.gmra.mxu0 %v93
  %v204 = vpop.f32.mrf.mxu0
  %v205 = vadd.f32 %v40, %v204
  %v206 = vpop.f32.mrf.mxu0
  %v207 = vadd.f32 %v40, %v206
  %208 = vmatmul.bf16.gmra.mxu0 %v96
  %v209 = vpop.f32.mrf.mxu0
  %v210 = vadd.f32 %v40, %v209
  %v211 = vpop.f32.mrf.mxu0
  %v212 = vadd.f32 %v40, %v211
  %213 = vdwg.mxu0
  %214 = vst [vmem:[%s3] sm:$0xff] %v108
  %215 = vst [vmem:[%s3 + $0x8] sm:$0xff] %v137
  %216 = vst [vmem:[%s3 + $0x10] sm:$0xff] %v166
  %217 = vst [vmem:[%s3 + $0x18] sm:$0xff] %v195
  %218 = vst [vmem:[%s3 + $0x20] sm:$0xff] %v110
  %219 = vst [vmem:[%s3 + $0x28] sm:$0xff] %v139
  %220 = vst [vmem:[%s3 + $0x30] sm:$0xff] %v168
  %221 = vst [vmem:[%s3 + $0x38] sm:$0xff] %v197
  %222 = vst [vmem:[%s3 + $0x40] sm:$0xff] %v113
  %223 = vst [vmem:[%s3 + $0x48] sm:$0xff] %v142
  %224 = vst [vmem:[%s3 + $0x50] sm:$0xff] %v171
  %225 = vst [vmem:[%s3 + $0x58] sm:$0xff] %v200
  %226 = vst [vmem:[%s3 + $0x60] sm:$0xff] %v115
  %227 = vst [vmem:[%s3 + $0x68] sm:$0xff] %v144
  %228 = vst [vmem:[%s3 + $0x70] sm:$0xff] %v173
  %229 = vst [vmem:[%s3 + $0x78] sm:$0xff] %v202
  %230 = vst [vmem:[%s3 + $0x80] sm:$0xff] %v118
  %231 = vst [vmem:[%s3 + $0x88] sm:$0xff] %v147
  %232 = vst [vmem:[%s3 + $0x90] sm:$0xff] %v176
  %233 = vst [vmem:[%s3 + $0x98] sm:$0xff] %v205
  %234 = vst [vmem:[%s3 + $0xa0] sm:$0xff] %v120
  %235 = vst [vmem:[%s3 + $0xa8] sm:$0xff] %v149
  %236 = vst [vmem:[%s3 + $0xb0] sm:$0xff] %v178
  %237 = vst [vmem:[%s3 + $0xb8] sm:$0xff] %v207
  %238 = vst [vmem:[%s3 + $0xc0] sm:$0xff] %v123
  %239 = vst [vmem:[%s3 + $0xc8] sm:$0xff] %v152
  %240 = vst [vmem:[%s3 + $0xd0] sm:$0xff] %v181
  %241 = vst [vmem:[%s3 + $0xd8] sm:$0xff] %v210
  %242 = vst [vmem:[%s3 + $0xe0] sm:$0xff] %v125
  %243 = vst [vmem:[%s3 + $0xe8] sm:$0xff] %v154
  %244 = vst [vmem:[%s3 + $0xf0] sm:$0xff] %v183
  %245 = vst [vmem:[%s3 + $0xf8] sm:$0xff] %v212
  // Predicated region
  $region14: #{forward.2} parent=0 // pred_check
    _
  $region15: #{forward.2} parent=0 // pred_check_branch
    %247 = sbr.rel (0) target = $region17
  $region16: #{forward.2} parent=0 // pred_region
    _
  $region17: #{forward.2} parent=0 // pred_fallthru
    _
  // Predicated region
  $region18: #{forward.2} parent=0 // pred_check
    _
  $region19: #{forward.2} parent=0 // pred_check_branch
    %249 = sbr.rel (0) target = $region21
  $region20: #{forward.2} parent=0 // pred_region
    _
  $region21: #{forward.2} parent=0 // pred_fallthru
    _

// kernel: forward.3
$region0: #{forward.3}
  #allocation0 [shape = 'u32[]', space=smem, size = 0x4, offset = 0x4, fixed_abs, tag = 'smem constant byte address 0x4 - core index']
  #allocation1 [shape = 'u32[72,128]{1,0:T(1,128)}', space=vmem, size = 0x9000, scoped, tag = 'internal scratch']
  #allocation2 [shape = 'f32[2,8,128]{2,1,0:T(8,128)}', space=vmem, size = 0x2000, scoped, tag = 'scratch operand']
  #allocation3 [shape = 'f32[2,8,128]{2,1,0:T(8,128)}', space=vmem, size = 0x2000, scoped, tag = 'scratch operand']
  %s0 = inlined_call_operand.vmem [shape: f32[8,8,512], index: 0, kind: input, shape index: {}]
  %s1 = inlined_call_operand.vmem [shape: bf16[128,512], index: 1, kind: input, shape index: {}]
  %s2 = inlined_call_operand.hbm [shape: bf16[1,256,512], index: 2, kind: input, shape index: {}]
  %s3 = inlined_call_operand.vmem [shape: f32[1,1,512], index: 3, kind: input, shape index: {}]
  %s4 = inlined_call_operand.vmem [shape: bf16[128,128], index: 4, kind: input, shape index: {}]
  %s5 = inlined_call_operand.vmem [shape: f32[1,128], index: 5, kind: input, shape index: {}]
  %s6 = inlined_call_operand.vmem [shape: f32[8,8,128], index: 6, kind: output, shape index: {}]
  %s7 = sld [smem:[#allocation0]]
  $region42: #{forward.3} parent=0
    _
  %s9 = ssub.s32 1, %s7
  %s10 = scalar_select 0, %s9, %s7
  $region1: #{forward.3} parent=0
    #allocation4 [shape = 'u8[262144]{0}', space=vmem, size = 0x40000, scoped, tag = 'input window, operand 2, single buffered']
    #allocation5 [shape = 's32[1]{0}', space=sflag, size = 0x4, scoped, tag = 'scoped memory for forward.3']
    %11 = vsyncpa [#allocation5], 0
    // Predicated region
    $region2: #{forward.3} parent=1 // pred_check
      _
    $region3: #{forward.3} parent=1 // pred_check_branch
      %13 = sbr.rel (0) target = $region5
    $region4: #{forward.3} parent=1 // pred_region
      _
    $region5: #{forward.3} parent=1 // pred_fallthru
      _
    // Predicated region
    $region6: #{forward.3} parent=1 // pred_check
      _
    $region7: #{forward.3} parent=1 // pred_check_branch
      %15 = sbr.rel (0) target = $region9
    $region8: #{forward.3} parent=1 // pred_region
      _
    $region9: #{forward.3} parent=1 // pred_fallthru
      _
    // Predicated region
    $region10: #{forward.3} parent=1 // pred_check
      _
    $region11: #{forward.3} parent=1 // pred_check_branch
      %17 = sbr.rel (0) target = $region13
    $region12: #{forward.3} parent=1 // pred_region
      %19 = vsyncadd [#allocation5], 0
      %s20 = sshll.u32 %s2, 4
      %s21 = int_to_ptr.hbm [resolvable:$true] %s20
      %s22 = sshll.u32 [#allocation4], 4
      %s23 = int_to_ptr.vmem [resolvable:$true] %s22
      %28 = dma.hbm_to_vmem [thread:$0]  %s21, 8192, %s23, [#allocation5], 256, 256, 16
    $region13: #{forward.3} parent=1 // pred_fallthru
      _
    // Predicated region
    $region14: #{forward.3} parent=1 // pred_check
      _
    $region15: #{forward.3} parent=1 // pred_check_branch
      %30 = sbr.rel (0) target = $region17
    $region16: #{forward.3} parent=1 // pred_region
      _
    $region17: #{forward.3} parent=1 // pred_fallthru
      _
    // Predicated region
    $region18: #{forward.3} parent=1 // pred_check
      _
    $region19: #{forward.3} parent=1 // pred_check_branch
      %32 = sbr.rel (0) target = $region21
    $region20: #{forward.3} parent=1 // pred_region
      _
    $region21: #{forward.3} parent=1 // pred_fallthru
      _
    // Predicated region
    $region22: #{forward.3} parent=1 // pred_check
      _
    $region23: #{forward.3} parent=1 // pred_check_branch
      %34 = sbr.rel (0) target = $region25
    $region24: #{forward.3} parent=1 // pred_region
      _
    $region25: #{forward.3} parent=1 // pred_fallthru
      _
    // Predicated region
    $region26: #{forward.3} parent=1 // pred_check
      _
    $region27: #{forward.3} parent=1 // pred_check_branch
      %36 = sbr.rel (0) target = $region29
    $region28: #{forward.3} parent=1 // pred_region
      %38 = dma.done [#allocation5], 8192
    $region29: #{forward.3} parent=1 // pred_fallthru
      _
    %p39 = scmp.eq.s32.totalorder 0, 0
    // Predicated region
    $region30: #{forward.3} parent=1 // pred_check
      %p40 = pneg %p39
    $region31: #{forward.3} parent=1 // pred_check_branch
      %42 = sbr.rel (%p40) target = $region33
    $region32: #{forward.3} parent=1 // pred_region
      %43 = vst [vmem:[#allocation2] sm:$0xff] 0.0
      %44 = vst [vmem:[#allocation2 + $0x8] sm:$0xff] 0.0
      %45 = vst [vmem:[#allocation3] sm:$0xff] 0.0
      %46 = vst [vmem:[#allocation3 + $0x8] sm:$0xff] 0.0
    $region33: #{forward.3} parent=1 // pred_fallthru
      _
    %v47 = vld [vmem:[%s0] sm:$0xff]
    %v48 = vld [vmem:[%s0 + $0x8] sm:$0xff]
    %v49 = vld [vmem:[%s0 + $0x10] sm:$0xff]
    %v50 = vld [vmem:[%s0 + $0x18] sm:$0xff]
    %v51 = vld [vmem:[#allocation2] sm:$0xff]
    %v52 = vpack.c.bf16 %v51, %v51
    %v53 = vld [vmem:[%s1] sm:$0xff]
    %v54 = vld [vmem:[%s1 + $0x8] sm:$0xff]
    %v55 = vld [vmem:[%s1 + $0x10] sm:$0xff]
    %v56 = vld [vmem:[%s1 + $0x18] sm:$0xff]
    %v57 = vld [vmem:[%s1 + $0x20] sm:$0xff]
    %v58 = vld [vmem:[%s1 + $0x28] sm:$0xff]
    %v59 = vld [vmem:[%s1 + $0x30] sm:$0xff]
    %v60 = vld [vmem:[%s1 + $0x38] sm:$0xff]
    %v61 = vld [vmem:[%s1 + $0x40] sm:$0xff]
    %v62 = vld [vmem:[%s1 + $0x48] sm:$0xff]
    %v63 = vld [vmem:[%s1 + $0x50] sm:$0xff]
    %v64 = vld [vmem:[%s1 + $0x58] sm:$0xff]
    %v65 = vld [vmem:[%s1 + $0x60] sm:$0xff]
    %v66 = vld [vmem:[%s1 + $0x68] sm:$0xff]
    %v67 = vld [vmem:[%s1 + $0x70] sm:$0xff]
    %v68 = vld [vmem:[%s1 + $0x78] sm:$0xff]
    %v69 = vld [vmem:[%s1 + $0x80] sm:$0xff]
    %v70 = vld [vmem:[%s1 + $0x88] sm:$0xff]
    %v71 = vld [vmem:[%s1 + $0x90] sm:$0xff]
    %v72 = vld [vmem:[%s1 + $0x98] sm:$0xff]
    %v73 = vld [vmem:[%s1 + $0xa0] sm:$0xff]
    %v74 = vld [vmem:[%s1 + $0xa8] sm:$0xff]
    %v75 = vld [vmem:[%s1 + $0xb0] sm:$0xff]
    %v76 = vld [vmem:[%s1 + $0xb8] sm:$0xff]
    %v77 = vld [vmem:[%s1 + $0xc0] sm:$0xff]
    %v78 = vld [vmem:[%s1 + $0xc8] sm:$0xff]
    %v79 = vld [vmem:[%s1 + $0xd0] sm:$0xff]
    %v80 = vld [vmem:[%s1 + $0xd8] sm:$0xff]
    %v81 = vld [vmem:[%s1 + $0xe0] sm:$0xff]
    %v82 = vld [vmem:[%s1 + $0xe8] sm:$0xff]
    %v83 = vld [vmem:[%s1 + $0xf0] sm:$0xff]
    %v84 = vld [vmem:[%s1 + $0xf8] sm:$0xff]
    %v117 = vunpack.c.l.b16 %v53
    %v118 = vunpack.c.h.b16 %v53
    %v119 = vunpack.c.l.b16 %v54
    %v120 = vunpack.c.h.b16 %v54
    %v121 = vunpack.c.l.b16 %v55
    %v122 = vunpack.c.h.b16 %v55
    %v123 = vunpack.c.l.b16 %v56
    %v124 = vunpack.c.h.b16 %v56
    %v125 = vunpack.c.l.b16 %v57
    %v126 = vunpack.c.h.b16 %v57
    %v127 = vunpack.c.l.b16 %v58
    %v128 = vunpack.c.h.b16 %v58
    %v129 = vunpack.c.l.b16 %v59
    %v130 = vunpack.c.h.b16 %v59
    %v131 = vunpack.c.l.b16 %v60
    %v132 = vunpack.c.h.b16 %v60
    %v133 = vunpack.c.l.b16 %v61
    %v134 = vunpack.c.h.b16 %v61
    %v135 = vunpack.c.l.b16 %v62
    %v136 = vunpack.c.h.b16 %v62
    %v137 = vunpack.c.l.b16 %v63
    %v138 = vunpack.c.h.b16 %v63
    %v139 = vunpack.c.l.b16 %v64
    %v140 = vunpack.c.h.b16 %v64
    %v141 = vunpack.c.l.b16 %v65
    %v142 = vunpack.c.h.b16 %v65
    %v143 = vunpack.c.l.b16 %v66
    %v144 = vunpack.c.h.b16 %v66
    %v145 = vunpack.c.l.b16 %v67
    %v146 = vunpack.c.h.b16 %v67
    %v147 = vunpack.c.l.b16 %v68
    %v148 = vunpack.c.h.b16 %v68
    %v149 = vunpack.c.l.b16 %v69
    %v150 = vunpack.c.h.b16 %v69
    %v151 = vunpack.c.l.b16 %v70
    %v152 = vunpack.c.h.b16 %v70
    %v153 = vunpack.c.l.b16 %v71
    %v154 = vunpack.c.h.b16 %v71
    %v155 = vunpack.c.l.b16 %v72
    %v156 = vunpack.c.h.b16 %v72
    %v157 = vunpack.c.l.b16 %v73
    %v158 = vunpack.c.h.b16 %v73
    %v159 = vunpack.c.l.b16 %v74
    %v160 = vunpack.c.h.b16 %v74
    %v161 = vunpack.c.l.b16 %v75
    %v162 = vunpack.c.h.b16 %v75
    %v163 = vunpack.c.l.b16 %v76
    %v164 = vunpack.c.h.b16 %v76
    %v165 = vunpack.c.l.b16 %v77
    %v166 = vunpack.c.h.b16 %v77
    %v167 = vunpack.c.l.b16 %v78
    %v168 = vunpack.c.h.b16 %v78
    %v169 = vunpack.c.l.b16 %v79
    %v170 = vunpack.c.h.b16 %v79
    %v171 = vunpack.c.l.b16 %v80
    %v172 = vunpack.c.h.b16 %v80
    %v173 = vunpack.c.l.b16 %v81
    %v174 = vunpack.c.h.b16 %v81
    %v175 = vunpack.c.l.b16 %v82
    %v176 = vunpack.c.h.b16 %v82
    %v177 = vunpack.c.l.b16 %v83
    %v178 = vunpack.c.h.b16 %v83
    %v179 = vunpack.c.l.b16 %v84
    %v180 = vunpack.c.h.b16 %v84
    %v181 = vpack.c.b16 %v121, %v117
    %v182 = vpack.c.b16 %v122, %v118
    %v183 = vpack.c.b16 %v123, %v119
    %v184 = vpack.c.b16 %v124, %v120
    %v185 = vpack.c.b16 %v129, %v125
    %v186 = vpack.c.b16 %v130, %v126
    %v187 = vpack.c.b16 %v131, %v127
    %v188 = vpack.c.b16 %v132, %v128
    %v189 = vpack.c.b16 %v137, %v133
    %v190 = vpack.c.b16 %v138, %v134
    %v191 = vpack.c.b16 %v139, %v135
    %v192 = vpack.c.b16 %v140, %v136
    %v193 = vpack.c.b16 %v145, %v141
    %v194 = vpack.c.b16 %v146, %v142
    %v195 = vpack.c.b16 %v147, %v143
    %v196 = vpack.c.b16 %v148, %v144
    %v197 = vpack.c.b16 %v153, %v149
    %v198 = vpack.c.b16 %v154, %v150
    %v199 = vpack.c.b16 %v155, %v151
    %v200 = vpack.c.b16 %v156, %v152
    %v201 = vpack.c.b16 %v161, %v157
    %v202 = vpack.c.b16 %v162, %v158
    %v203 = vpack.c.b16 %v163, %v159
    %v204 = vpack.c.b16 %v164, %v160
    %v205 = vpack.c.b16 %v169, %v165
    %v206 = vpack.c.b16 %v170, %v166
    %v207 = vpack.c.b16 %v171, %v167
    %v208 = vpack.c.b16 %v172, %v168
    %v209 = vpack.c.b16 %v177, %v173
    %v210 = vpack.c.b16 %v178, %v174
    %v211 = vpack.c.b16 %v179, %v175
    %v212 = vpack.c.b16 %v180, %v176
    %245 = vmatpush.bf16.msra.mxu0 %v209
    %246 = vmatpush.bf16.msra.mxu0 %v205
    %247 = vmatpush.bf16.msra.mxu0 %v201
    %248 = vmatpush.bf16.msra.mxu0 %v197
    %249 = vmatpush.bf16.msra.mxu0 %v193
    %250 = vmatpush.bf16.msra.mxu0 %v189
    %251 = vmatpush.bf16.msra.mxu0 %v185
    %252 = vmatpush.bf16.msra.mxu0 %v181
    %253 = vmatmul.bf16.gmra.mxu0 %v52
    %v254 = vpop.f32.mrf.mxu0
    %v255 = vadd.f32 0.0, %v254
    %v256 = vpop.f32.mrf.mxu0
    %257 = vdwg.mxu0
    %258 = vmatpush.bf16.msra.mxu0 %v210
    %259 = vmatpush.bf16.msra.mxu0 %v206
    %260 = vmatpush.bf16.msra.mxu0 %v202
    %261 = vmatpush.bf16.msra.mxu0 %v198
    %262 = vmatpush.bf16.msra.mxu0 %v194
    %263 = vmatpush.bf16.msra.mxu0 %v190
    %264 = vmatpush.bf16.msra.mxu0 %v186
    %265 = vmatpush.bf16.msra.mxu0 %v182
    %266 = vmatmul.bf16.gmra.mxu0 %v52
    %v267 = vpop.f32.mrf.mxu0
    %v268 = vadd.f32 0.0, %v267
    %v269 = vpop.f32.mrf.mxu0
    %270 = vdwg.mxu0
    %271 = vmatpush.bf16.msra.mxu0 %v211
    %272 = vmatpush.bf16.msra.mxu0 %v207
    %273 = vmatpush.bf16.msra.mxu0 %v203
    %274 = vmatpush.bf16.msra.mxu0 %v199
    %275 = vmatpush.bf16.msra.mxu0 %v195
    %276 = vmatpush.bf16.msra.mxu0 %v191
    %277 = vmatpush.bf16.msra.mxu0 %v187
    %278 = vmatpush.bf16.msra.mxu0 %v183
    %279 = vmatmul.bf16.gmra.mxu0 %v52
    %v280 = vpop.f32.mrf.mxu0
    %v281 = vadd.f32 0.0, %v280
    %v282 = vpop.f32.mrf.mxu0
    %283 = vdwg.mxu0
    %284 = vmatpush.bf16.msra.mxu0 %v212
    %285 = vmatpush.bf16.msra.mxu0 %v208
    %286 = vmatpush.bf16.msra.mxu0 %v204
    %287 = vmatpush.bf16.msra.mxu0 %v200
    %288 = vmatpush.bf16.msra.mxu0 %v196
    %289 = vmatpush.bf16.msra.mxu0 %v192
    %290 = vmatpush.bf16.msra.mxu0 %v188
    %291 = vmatpush.bf16.msra.mxu0 %v184
    %292 = vmatmul.bf16.gmra.mxu0 %v52
    %v293 = vpop.f32.mrf.mxu0
    %v294 = vadd.f32 0.0, %v293
    %v295 = vpop.f32.mrf.mxu0
    %296 = vdwg.mxu0
    %v297 = vadd.f32 %v47, %v255
    %v298 = vadd.f32 %v48, %v268
    %v299 = vadd.f32 %v49, %v281
    %v300 = vadd.f32 %v50, %v294
    %v301 = vld [vmem:[#allocation3] sm:$0xff]
    %v302 = vxor.u32 %v297, 2147483648
    %v303 = vmul.f32 %v302, 1.442695
    %v304 = vpow.pop %v303
    %v305 = vadd.f32 %v304, 1.0
    %v306 = vrcp.pop %v305
    %v307 = vmul.f32 %v305, %v306
    %v308 = vsub.f32 1.0, %v307
    %v309 = vmul.f32 %v306, %v308
    %v310 = vadd.f32 %v306, %v309
    %vm311 = vweird.f32 %v305
    %vm312 = vweird.f32 %v306
    %vm313 = vmor %vm311, %vm312
    %v314 = vsel %vm313, %v306, %v310
    %v315 = vand.u32 2147483647, %v305
    %vm316 = vcmp.eq.f32.partialorder %v315, 8.507059e+37
    %v317 = vand.u32 %v305, 2147483648
    %v318 = vor.u32 1.1754944e-38, %v317
    %v319 = vsel %vm316, %v318, %v314
    %v320 = vmul.f32 1.0, %v319
    %v321 = vxor.u32 %v298, 2147483648
    %v322 = vmul.f32 %v321, 1.442695
    %v323 = vpow.pop %v322
    %v324 = vadd.f32 %v323, 1.0
    %v325 = vrcp.pop %v324
    %v326 = vmul.f32 %v324, %v325
    %v327 = vsub.f32 1.0, %v326
    %v328 = vmul.f32 %v325, %v327
    %v329 = vadd.f32 %v325, %v328
    %vm330 = vweird.f32 %v324
    %vm331 = vweird.f32 %v325
    %vm332 = vmor %vm330, %vm331
    %v333 = vsel %vm332, %v325, %v329
    %v334 = vand.u32 2147483647, %v324
    %vm335 = vcmp.eq.f32.partialorder %v334, 8.507059e+37
    %v336 = vand.u32 %v324, 2147483648
    %v337 = vor.u32 1.1754944e-38, %v336
    %v338 = vsel %vm335, %v337, %v333
    %v339 = vmul.f32 1.0, %v338
    %v340 = vtanh.pop %v299
    %v341 = vxor.u32 %v300, 2147483648
    %v342 = vmul.f32 %v341, 1.442695
    %v343 = vpow.pop %v342
    %v344 = vadd.f32 %v343, 1.0
    %v345 = vrcp.pop %v344
    %v346 = vmul.f32 %v344, %v345
    %v347 = vsub.f32 1.0, %v346
    %v348 = vmul.f32 %v345, %v347
    %v349 = vadd.f32 %v345, %v348
    %vm350 = vweird.f32 %v344
    %vm351 = vweird.f32 %v345
    %vm352 = vmor %vm350, %vm351
    %v353 = vsel %vm352, %v345, %v349
    %v354 = vand.u32 2147483647, %v344
    %vm355 = vcmp.eq.f32.partialorder %v354, 8.507059e+37
    %v356 = vand.u32 %v344, 2147483648
    %v357 = vor.u32 1.1754944e-38, %v356
    %v358 = vsel %vm355, %v357, %v353
    %v359 = vmul.f32 1.0, %v358
    %v360 = vmul.f32 %v339, %v301
    %v361 = vmul.f32 %v320, %v340
    %v362 = vadd.f32 %v360, %v361
    %v363 = vtanh.pop %v362
    %v364 = vmul.f32 %v359, %v363
    %365 = vst [vmem:[#allocation2] sm:$0xff] %v364
    %366 = vst [vmem:[#allocation3] sm:$0xff] %v362
    %s367 = scalar_lea.vmem [#allocation2], 8
    %v368 = vld [vmem:[%s367] sm:$0xff]
    %v369 = vpack.c.bf16 %v364, %v364
    %v370 = vpack.c.bf16 %v368, %v368
    %v371 = vld [vmem:[#allocation4] sm:$0xff]
    %v372 = vld [vmem:[#allocation4 + $0x8] sm:$0xff]
    %v373 = vld [vmem:[#allocation4 + $0x10] sm:$0xff]
    %v374 = vld [vmem:[#allocation4 + $0x18] sm:$0xff]
    %v375 = vld [vmem:[#allocation4 + $0x20] sm:$0xff]
    %v376 = vld [vmem:[#allocation4 + $0x28] sm:$0xff]
    %v377 = vld [vmem:[#allocation4 + $0x30] sm:$0xff]
    %v378 = vld [vmem:[#allocation4 + $0x38] sm:$0xff]
    %v379 = vld [vmem:[#allocation4 + $0x40] sm:$0xff]
    %v380 = vld [vmem:[#allocation4 + $0x48] sm:$0xff]
    %v381 = vld [vmem:[#allocation4 + $0x50] sm:$0xff]
    %v382 = vld [vmem:[#allocation4 + $0x58] sm:$0xff]
    %v383 = vld [vmem:[#allocation4 + $0x60] sm:$0xff]
    %v384 = vld [vmem:[#allocation4 + $0x68] sm:$0xff]
    %v385 = vld [vmem:[#allocation4 + $0x70] sm:$0xff]
    %v386 = vld [vmem:[#allocation4 + $0x78] sm:$0xff]
    %v387 = vld [vmem:[#allocation4 + $0x80] sm:$0xff]
    %v388 = vld [vmem:[#allocation4 + $0x88] sm:$0xff]
    %v389 = vld [vmem:[#allocation4 + $0x90] sm:$0xff]
    %v390 = vld [vmem:[#allocation4 + $0x98] sm:$0xff]
    %v391 = vld [vmem:[#allocation4 + $0xa0] sm:$0xff]
    %v392 = vld [vmem:[#allocation4 + $0xa8] sm:$0xff]
    %v393 = vld [vmem:[#allocation4 + $0xb0] sm:$0xff]
    %v394 = vld [vmem:[#allocation4 + $0xb8] sm:$0xff]
    %v395 = vld [vmem:[#allocation4 + $0xc0] sm:$0xff]
    %v396 = vld [vmem:[#allocation4 + $0xc8] sm:$0xff]
    %v397 = vld [vmem:[#allocation4 + $0xd0] sm:$0xff]
    %v398 = vld [vmem:[#allocation4 + $0xd8] sm:$0xff]
    %v399 = vld [vmem:[#allocation4 + $0xe0] sm:$0xff]
    %v400 = vld [vmem:[#allocation4 + $0xe8] sm:$0xff]
    %v401 = vld [vmem:[#allocation4 + $0xf0] sm:$0xff]
    %v402 = vld [vmem:[#allocation4 + $0xf8] sm:$0xff]
    %v403 = vld [vmem:[#allocation4 + $0x100] sm:$0xff]
    %v404 = vld [vmem:[#allocation4 + $0x108] sm:$0xff]
    %v405 = vld [vmem:[#allocation4 + $0x110] sm:$0xff]
    %v406 = vld [vmem:[#allocation4 + $0x118] sm:$0xff]
    %v407 = vld [vmem:[#allocation4 + $0x120] sm:$0xff]
    %v408 = vld [vmem:[#allocation4 + $0x128] sm:$0xff]
    %v409 = vld [vmem:[#allocation4 + $0x130] sm:$0xff]
    %v410 = vld [vmem:[#allocation4 + $0x138] sm:$0xff]
    %v411 = vld [vmem:[#allocation4 + $0x140] sm:$0xff]
    %v412 = vld [vmem:[#allocation4 + $0x148] sm:$0xff]
    %v413 = vld [vmem:[#allocation4 + $0x150] sm:$0xff]
    %v414 = vld [vmem:[#allocation4 + $0x158] sm:$0xff]
    %v415 = vld [vmem:[#allocation4 + $0x160] sm:$0xff]
    %v416 = vld [vmem:[#allocation4 + $0x168] sm:$0xff]
    %v417 = vld [vmem:[#allocation4 + $0x170] sm:$0xff]
    %v418 = vld [vmem:[#allocation4 + $0x178] sm:$0xff]
    %v419 = vld [vmem:[#allocation4 + $0x180] sm:$0xff]
    %v420 = vld [vmem:[#allocation4 + $0x188] sm:$0xff]
    %v421 = vld [vmem:[#allocation4 + $0x190] sm:$0xff]
    %v422 = vld [vmem:[#allocation4 + $0x198] sm:$0xff]
    %v423 = vld [vmem:[#allocation4 + $0x1a0] sm:$0xff]
    %v424 = vld [vmem:[#allocation4 + $0x1a8] sm:$0xff]
    %v425 = vld [vmem:[#allocation4 + $0x1b0] sm:$0xff]
    %v426 = vld [vmem:[#allocation4 + $0x1b8] sm:$0xff]
    %v427 = vld [vmem:[#allocation4 + $0x1c0] sm:$0xff]
    %v428 = vld [vmem:[#allocation4 + $0x1c8] sm:$0xff]
    %v429 = vld [vmem:[#allocation4 + $0x1d0] sm:$0xff]
    %v430 = vld [vmem:[#allocation4 + $0x1d8] sm:$0xff]
    %v431 = vld [vmem:[#allocation4 + $0x1e0] sm:$0xff]
    %v432 = vld [vmem:[#allocation4 + $0x1e8] sm:$0xff]
    %v433 = vld [vmem:[#allocation4 + $0x1f0] sm:$0xff]
    %v434 = vld [vmem:[#allocation4 + $0x1f8] sm:$0xff]
    %v435 = vld [vmem:[%s3] sm:$0xf]
    %v437 = vperm.slane %v435, 0
    %v438 = vperm.slane %v435, 1
    %v439 = vperm.slane %v435, 2
    %v440 = vperm.slane %v435, 3
    %v509 = vunpack.c.l.b16 %v371
    %v510 = vunpack.c.h.b16 %v371
    %v511 = vunpack.c.l.b16 %v372
    %v512 = vunpack.c.h.b16 %v372
    %v513 = vunpack.c.l.b16 %v373
    %v514 = vunpack.c.h.b16 %v373
    %v515 = vunpack.c.l.b16 %v374
    %v516 = vunpack.c.h.b16 %v374
    %v517 = vunpack.c.l.b16 %v375
    %v518 = vunpack.c.h.b16 %v375
    %v519 = vunpack.c.l.b16 %v376
    %v520 = vunpack.c.h.b16 %v376
    %v521 = vunpack.c.l.b16 %v377
    %v522 = vunpack.c.h.b16 %v377
    %v523 = vunpack.c.l.b16 %v378
    %v524 = vunpack.c.h.b16 %v378
    %v525 = vunpack.c.l.b16 %v379
    %v526 = vunpack.c.h.b16 %v379
    %v527 = vunpack.c.l.b16 %v380
    %v528 = vunpack.c.h.b16 %v380
    %v529 = vunpack.c.l.b16 %v381
    %v530 = vunpack.c.h.b16 %v381
    %v531 = vunpack.c.l.b16 %v382
    %v532 = vunpack.c.h.b16 %v382
    %v533 = vunpack.c.l.b16 %v383
    %v534 = vunpack.c.h.b16 %v383
    %v535 = vunpack.c.l.b16 %v384
    %v536 = vunpack.c.h.b16 %v384
    %v537 = vunpack.c.l.b16 %v385
    %v538 = vunpack.c.h.b16 %v385
    %v539 = vunpack.c.l.b16 %v386
    %v540 = vunpack.c.h.b16 %v386
    %v541 = vunpack.c.l.b16 %v387
    %v542 = vunpack.c.h.b16 %v387
    %v543 = vunpack.c.l.b16 %v388
    %v544 = vunpack.c.h.b16 %v388
    %v545 = vunpack.c.l.b16 %v389
    %v546 = vunpack.c.h.b16 %v389
    %v547 = vunpack.c.l.b16 %v390
    %v548 = vunpack.c.h.b16 %v390
    %v549 = vunpack.c.l.b16 %v391
    %v550 = vunpack.c.h.b16 %v391
    %v551 = vunpack.c.l.b16 %v392
    %v552 = vunpack.c.h.b16 %v392
    %v553 = vunpack.c.l.b16 %v393
    %v554 = vunpack.c.h.b16 %v393
    %v555 = vunpack.c.l.b16 %v394
    %v556 = vunpack.c.h.b16 %v394
    %v557 = vunpack.c.l.b16 %v395
    %v558 = vunpack.c.h.b16 %v395
    %v559 = vunpack.c.l.b16 %v396
    %v560 = vunpack.c.h.b16 %v396
    %v561 = vunpack.c.l.b16 %v397
    %v562 = vunpack.c.h.b16 %v397
    %v563 = vunpack.c.l.b16 %v398
    %v564 = vunpack.c.h.b16 %v398
    %v565 = vunpack.c.l.b16 %v399
    %v566 = vunpack.c.h.b16 %v399
    %v567 = vunpack.c.l.b16 %v400
    %v568 = vunpack.c.h.b16 %v400
    %v569 = vunpack.c.l.b16 %v401
    %v570 = vunpack.c.h.b16 %v401
    %v571 = vunpack.c.l.b16 %v402
    %v572 = vunpack.c.h.b16 %v402
    %v573 = vunpack.c.l.b16 %v403
    %v574 = vunpack.c.h.b16 %v403
    %v575 = vunpack.c.l.b16 %v404
    %v576 = vunpack.c.h.b16 %v404
    %v577 = vunpack.c.l.b16 %v405
    %v578 = vunpack.c.h.b16 %v405
    %v579 = vunpack.c.l.b16 %v406
    %v580 = vunpack.c.h.b16 %v406
    %v581 = vunpack.c.l.b16 %v407
    %v582 = vunpack.c.h.b16 %v407
    %v583 = vunpack.c.l.b16 %v408
    %v584 = vunpack.c.h.b16 %v408
    %v585 = vunpack.c.l.b16 %v409
    %v586 = vunpack.c.h.b16 %v409
    %v587 = vunpack.c.l.b16 %v410
    %v588 = vunpack.c.h.b16 %v410
    %v589 = vunpack.c.l.b16 %v411
    %v590 = vunpack.c.h.b16 %v411
    %v591 = vunpack.c.l.b16 %v412
    %v592 = vunpack.c.h.b16 %v412
    %v593 = vunpack.c.l.b16 %v413
    %v594 = vunpack.c.h.b16 %v413
    %v595 = vunpack.c.l.b16 %v414
    %v596 = vunpack.c.h.b16 %v414
    %v597 = vunpack.c.l.b16 %v415
    %v598 = vunpack.c.h.b16 %v415
    %v599 = vunpack.c.l.b16 %v416
    %v600 = vunpack.c.h.b16 %v416
    %v601 = vunpack.c.l.b16 %v417
    %v602 = vunpack.c.h.b16 %v417
    %v603 = vunpack.c.l.b16 %v418
    %v604 = vunpack.c.h.b16 %v418
    %v605 = vunpack.c.l.b16 %v419
    %v606 = vunpack.c.h.b16 %v419
    %v607 = vunpack.c.l.b16 %v420
    %v608 = vunpack.c.h.b16 %v420
    %v609 = vunpack.c.l.b16 %v421
    %v610 = vunpack.c.h.b16 %v421
    %v611 = vunpack.c.l.b16 %v422
    %v612 = vunpack.c.h.b16 %v422
    %v613 = vunpack.c.l.b16 %v423
    %v614 = vunpack.c.h.b16 %v423
    %v615 = vunpack.c.l.b16 %v424
    %v616 = vunpack.c.h.b16 %v424
    %v617 = vunpack.c.l.b16 %v425
    %v618 = vunpack.c.h.b16 %v425
    %v619 = vunpack.c.l.b16 %v426
    %v620 = vunpack.c.h.b16 %v426
    %v621 = vunpack.c.l.b16 %v427
    %v622 = vunpack.c.h.b16 %v427
    %v623 = vunpack.c.l.b16 %v428
    %v624 = vunpack.c.h.b16 %v428
    %v625 = vunpack.c.l.b16 %v429
    %v626 = vunpack.c.h.b16 %v429
    %v627 = vunpack.c.l.b16 %v430
    %v628 = vunpack.c.h.b16 %v430
    %v629 = vunpack.c.l.b16 %v431
    %v630 = vunpack.c.h.b16 %v431
    %v631 = vunpack.c.l.b16 %v432
    %v632 = vunpack.c.h.b16 %v432
    %v633 = vunpack.c.l.b16 %v433
    %v634 = vunpack.c.h.b16 %v433
    %v635 = vunpack.c.l.b16 %v434
    %v636 = vunpack.c.h.b16 %v434
    %v637 = vpack.c.b16 %v513, %v509
    %v638 = vpack.c.b16 %v514, %v510
    %v639 = vpack.c.b16 %v515, %v511
    %v640 = vpack.c.b16 %v516, %v512
    %v641 = vpack.c.b16 %v521, %v517
    %v642 = vpack.c.b16 %v522, %v518
    %v643 = vpack.c.b16 %v523, %v519
    %v644 = vpack.c.b16 %v524, %v520
    %v645 = vpack.c.b16 %v529, %v525
    %v646 = vpack.c.b16 %v530, %v526
    %v647 = vpack.c.b16 %v531, %v527
    %v648 = vpack.c.b16 %v532, %v528
    %v649 = vpack.c.b16 %v537, %v533
    %v650 = vpack.c.b16 %v538, %v534
    %v651 = vpack.c.b16 %v539, %v535
    %v652 = vpack.c.b16 %v540, %v536
    %v653 = vpack.c.b16 %v545, %v541
    %v654 = vpack.c.b16 %v546, %v542
    %v655 = vpack.c.b16 %v547, %v543
    %v656 = vpack.c.b16 %v548, %v544
    %v657 = vpack.c.b16 %v553, %v549
    %v658 = vpack.c.b16 %v554, %v550
    %v659 = vpack.c.b16 %v555, %v551
    %v660 = vpack.c.b16 %v556, %v552
    %v661 = vpack.c.b16 %v561, %v557
    %v662 = vpack.c.b16 %v562, %v558
    %v663 = vpack.c.b16 %v563, %v559
    %v664 = vpack.c.b16 %v564, %v560
    %v665 = vpack.c.b16 %v569, %v565
    %v666 = vpack.c.b16 %v570, %v566
    %v667 = vpack.c.b16 %v571, %v567
    %v668 = vpack.c.b16 %v572, %v568
    %v669 = vpack.c.b16 %v577, %v573
    %v670 = vpack.c.b16 %v578, %v574
    %v671 = vpack.c.b16 %v579, %v575
    %v672 = vpack.c.b16 %v580, %v576
    %v673 = vpack.c.b16 %v585, %v581
    %v674 = vpack.c.b16 %v586, %v582
    %v675 = vpack.c.b16 %v587, %v583
    %v676 = vpack.c.b16 %v588, %v584
    %v677 = vpack.c.b16 %v593, %v589
    %v678 = vpack.c.b16 %v594, %v590
    %v679 = vpack.c.b16 %v595, %v591
    %v680 = vpack.c.b16 %v596, %v592
    %v681 = vpack.c.b16 %v601, %v597
    %v682 = vpack.c.b16 %v602, %v598
    %v683 = vpack.c.b16 %v603, %v599
    %v684 = vpack.c.b16 %v604, %v600
    %v685 = vpack.c.b16 %v609, %v605
    %v686 = vpack.c.b16 %v610, %v606
    %v687 = vpack.c.b16 %v611, %v607
    %v688 = vpack.c.b16 %v612, %v608
    %v689 = vpack.c.b16 %v617, %v613
    %v690 = vpack.c.b16 %v618, %v614
    %v691 = vpack.c.b16 %v619, %v615
    %v692 = vpack.c.b16 %v620, %v616
    %v693 = vpack.c.b16 %v625, %v621
    %v694 = vpack.c.b16 %v626, %v622
    %v695 = vpack.c.b16 %v627, %v623
    %v696 = vpack.c.b16 %v628, %v624
    %v697 = vpack.c.b16 %v633, %v629
    %v698 = vpack.c.b16 %v634, %v630
    %v699 = vpack.c.b16 %v635, %v631
    %v700 = vpack.c.b16 %v636, %v632
    %765 = vmatpush.bf16.msra.mxu0 %v665
    %766 = vmatpush.bf16.msra.mxu0 %v661
    %767 = vmatpush.bf16.msra.mxu0 %v657
    %768 = vmatpush.bf16.msra.mxu0 %v653
    %769 = vmatpush.bf16.msra.mxu0 %v649
    %770 = vmatpush.bf16.msra.mxu0 %v645
    %771 = vmatpush.bf16.msra.mxu0 %v641
    %772 = vmatpush.bf16.msra.mxu0 %v637
    %773 = vmatmul.bf16.gmra.mxu0 %v369
    %v774 = vpop.f32.mrf.mxu0
    %v775 = vadd.f32 %v437, %v774
    %v776 = vpop.f32.mrf.mxu0
    %777 = vdwg.mxu0
    %778 = vmatpush.bf16.msra.mxu0 %v697
    %779 = vmatpush.bf16.msra.mxu0 %v693
    %780 = vmatpush.bf16.msra.mxu0 %v689
    %781 = vmatpush.bf16.msra.mxu0 %v685
    %782 = vmatpush.bf16.msra.mxu0 %v681
    %783 = vmatpush.bf16.msra.mxu0 %v677
    %784 = vmatpush.bf16.msra.mxu0 %v673
    %785 = vmatpush.bf16.msra.mxu0 %v669
    %786 = vmatmul.bf16.gmra.mxu0 %v370
    %v787 = vpop.f32.mrf.mxu0
    %v788 = vadd.f32 %v775, %v787
    %v789 = vpop.f32.mrf.mxu0
    %790 = vdwg.mxu0
    %791 = vmatpush.bf16.msra.mxu0 %v666
    %792 = vmatpush.bf16.msra.mxu0 %v662
    %793 = vmatpush.bf16.msra.mxu0 %v658
    %794 = vmatpush.bf16.msra.mxu0 %v654
    %795 = vmatpush.bf16.msra.mxu0 %v650
    %796 = vmatpush.bf16.msra.mxu0 %v646
    %797 = vmatpush.bf16.msra.mxu0 %v642
    %798 = vmatpush.bf16.msra.mxu0 %v638
    %799 = vmatmul.bf16.gmra.mxu0 %v369
    %v800 = vpop.f32.mrf.mxu0
    %v801 = vadd.f32 %v438, %v800
    %v802 = vpop.f32.mrf.mxu0
    %803 = vdwg.mxu0
    %804 = vmatpush.bf16.msra.mxu0 %v698
    %805 = vmatpush.bf16.msra.mxu0 %v694
    %806 = vmatpush.bf16.msra.mxu0 %v690
    %807 = vmatpush.bf16.msra.mxu0 %v686
    %808 = vmatpush.bf16.msra.mxu0 %v682
    %809 = vmatpush.bf16.msra.mxu0 %v678
    %810 = vmatpush.bf16.msra.mxu0 %v674
    %811 = vmatpush.bf16.msra.mxu0 %v670
    %812 = vmatmul.bf16.gmra.mxu0 %v370
    %v813 = vpop.f32.mrf.mxu0
    %v814 = vadd.f32 %v801, %v813
    %v815 = vpop.f32.mrf.mxu0
    %816 = vdwg.mxu0
    %817 = vmatpush.bf16.msra.mxu0 %v667
    %818 = vmatpush.bf16.msra.mxu0 %v663
    %819 = vmatpush.bf16.msra.mxu0 %v659
    %820 = vmatpush.bf16.msra.mxu0 %v655
    %821 = vmatpush.bf16.msra.mxu0 %v651
    %822 = vmatpush.bf16.msra.mxu0 %v647
    %823 = vmatpush.bf16.msra.mxu0 %v643
    %824 = vmatpush.bf16.msra.mxu0 %v639
    %825 = vmatmul.bf16.gmra.mxu0 %v369
    %v826 = vpop.f32.mrf.mxu0
    %v827 = vadd.f32 %v439, %v826
    %v828 = vpop.f32.mrf.mxu0
    %829 = vdwg.mxu0
    %830 = vmatpush.bf16.msra.mxu0 %v699
    %831 = vmatpush.bf16.msra.mxu0 %v695
    %832 = vmatpush.bf16.msra.mxu0 %v691
    %833 = vmatpush.bf16.msra.mxu0 %v687
    %834 = vmatpush.bf16.msra.mxu0 %v683
    %835 = vmatpush.bf16.msra.mxu0 %v679
    %836 = vmatpush.bf16.msra.mxu0 %v675
    %837 = vmatpush.bf16.msra.mxu0 %v671
    %838 = vmatmul.bf16.gmra.mxu0 %v370
    %v839 = vpop.f32.mrf.mxu0
    %v840 = vadd.f32 %v827, %v839
    %v841 = vpop.f32.mrf.mxu0
    %842 = vdwg.mxu0
    %843 = vmatpush.bf16.msra.mxu0 %v668
    %844 = vmatpush.bf16.msra.mxu0 %v664
    %845 = vmatpush.bf16.msra.mxu0 %v660
    %846 = vmatpush.bf16.msra.mxu0 %v656
    %847 = vmatpush.bf16.msra.mxu0 %v652
    %848 = vmatpush.bf16.msra.mxu0 %v648
    %849 = vmatpush.bf16.msra.mxu0 %v644
    %850 = vmatpush.bf16.msra.mxu0 %v640
    %851 = vmatmul.bf16.gmra.mxu0 %v369
    %v852 = vpop.f32.mrf.mxu0
    %v853 = vadd.f32 %v440, %v852
    %v854 = vpop.f32.mrf.mxu0
    %855 = vdwg.mxu0
    %856 = vmatpush.bf16.msra.mxu0 %v700
    %857 = vmatpush.bf16.msra.mxu0 %v696
    %858 = vmatpush.bf16.msra.mxu0 %v692
    %859 = vmatpush.bf16.msra.mxu0 %v688
    %860 = vmatpush.bf16.msra.mxu0 %v684
    %861 = vmatpush.bf16.msra.mxu0 %v680
    %862 = vmatpush.bf16.msra.mxu0 %v676
    %863 = vmatpush.bf16.msra.mxu0 %v672
    %864 = vmatmul.bf16.gmra.mxu0 %v370
    %v865 = vpop.f32.mrf.mxu0
    %v866 = vadd.f32 %v853, %v865
    %v867 = vpop.f32.mrf.mxu0
    %868 = vdwg.mxu0
    %s869 = scalar_lea.vmem [#allocation3], 8
    %v870 = vld [vmem:[%s869] sm:$0xff]
    %v871 = vxor.u32 %v788, 2147483648
    %v872 = vmul.f32 %v871, 1.442695
    %v873 = vpow.pop %v872
    %v874 = vadd.f32 %v873, 1.0
    %v875 = vrcp.pop %v874
    %v876 = vmul.f32 %v874, %v875
    %v877 = vsub.f32 1.0, %v876
    %v878 = vmul.f32 %v875, %v877
    %v879 = vadd.f32 %v875, %v878
    %vm880 = vweird.f32 %v874
    %vm881 = vweird.f32 %v875
    %vm882 = vmor %vm880, %vm881
    %v883 = vsel %vm882, %v875, %v879
    %v884 = vand.u32 2147483647, %v874
    %vm885 = vcmp.eq.f32.partialorder %v884, 8.507059e+37
    %v886 = vand.u32 %v874, 2147483648
    %v887 = vor.u32 1.1754944e-38, %v886
    %v888 = vsel %vm885, %v887, %v883
    %v889 = vmul.f32 1.0, %v888
    %v890 = vxor.u32 %v814, 2147483648
    %v891 = vmul.f32 %v890, 1.442695
    %v892 = vpow.pop %v891
    %v893 = vadd.f32 %v892, 1.0
    %v894 = vrcp.pop %v893
    %v895 = vmul.f32 %v893, %v894
    %v896 = vsub.f32 1.0, %v895
    %v897 = vmul.f32 %v894, %v896
    %v898 = vadd.f32 %v894, %v897
    %vm899 = vweird.f32 %v893
    %vm900 = vweird.f32 %v894
    %vm901 = vmor %vm899, %vm900
    %v902 = vsel %vm901, %v894, %v898
    %v903 = vand.u32 2147483647, %v893
    %vm904 = vcmp.eq.f32.partialorder %v903, 8.507059e+37
    %v905 = vand.u32 %v893, 2147483648
    %v906 = vor.u32 1.1754944e-38, %v905
    %v907 = vsel %vm904, %v906, %v902
    %v908 = vmul.f32 1.0, %v907
    %v909 = vtanh.pop %v840
    %v910 = vxor.u32 %v866, 2147483648
    %v911 = vmul.f32 %v910, 1.442695
    %v912 = vpow.pop %v911
    %v913 = vadd.f32 %v912, 1.0
    %v914 = vrcp.pop %v913
    %v915 = vmul.f32 %v913, %v914
    %v916 = vsub.f32 1.0, %v915
    %v917 = vmul.f32 %v914, %v916
    %v918 = vadd.f32 %v914, %v917
    %vm919 = vweird.f32 %v913
    %vm920 = vweird.f32 %v914
    %vm921 = vmor %vm919, %vm920
    %v922 = vsel %vm921, %v914, %v918
    %v923 = vand.u32 2147483647, %v913
    %vm924 = vcmp.eq.f32.partialorder %v923, 8.507059e+37
    %v925 = vand.u32 %v913, 2147483648
    %v926 = vor.u32 1.1754944e-38, %v925
    %v927 = vsel %vm924, %v926, %v922
    %v928 = vmul.f32 1.0, %v927
    %v929 = vmul.f32 %v908, %v870
    %v930 = vmul.f32 %v889, %v909
    %v931 = vadd.f32 %v929, %v930
    %v932 = vtanh.pop %v931
    %v933 = vmul.f32 %v928, %v932
    %934 = vst [vmem:[%s367] sm:$0xff] %v933
    %935 = vst [vmem:[%s869] sm:$0xff] %v931
    %v936 = vpack.c.bf16 %v933, %v933
    %v937 = vld [vmem:[%s4] sm:$0xf]
    %v938 = vld [vmem:[%s4 + $0x4] sm:$0xf]
    %v939 = vld [vmem:[%s4 + $0x8] sm:$0xf]
    %v940 = vld [vmem:[%s4 + $0xc] sm:$0xf]
    %v941 = vld [vmem:[%s4 + $0x10] sm:$0xf]
    %v942 = vld [vmem:[%s4 + $0x14] sm:$0xf]
    %v943 = vld [vmem:[%s4 + $0x18] sm:$0xf]
    %v944 = vld [vmem:[%s4 + $0x1c] sm:$0xf]
    %v945 = vld [vmem:[%s4 + $0x20] sm:$0xf]
    %v946 = vld [vmem:[%s4 + $0x24] sm:$0xf]
    %v947 = vld [vmem:[%s4 + $0x28] sm:$0xf]
    %v948 = vld [vmem:[%s4 + $0x2c] sm:$0xf]
    %v949 = vld [vmem:[%s4 + $0x30] sm:$0xf]
    %v950 = vld [vmem:[%s4 + $0x34] sm:$0xf]
    %v951 = vld [vmem:[%s4 + $0x38] sm:$0xf]
    %v952 = vld [vmem:[%s4 + $0x3c] sm:$0xf]
    %v953 = vld [vmem:[%s5] sm:$0x1]
    %v955 = vperm.slane %v953, 0
    %v973 = vunpack.c.l.b16 %v937
    %v974 = vunpack.c.l.b16 %v938
    %v975 = vunpack.c.l.b16 %v939
    %v976 = vunpack.c.l.b16 %v940
    %v977 = vunpack.c.l.b16 %v941
    %v978 = vunpack.c.l.b16 %v942
    %v979 = vunpack.c.l.b16 %v943
    %v980 = vunpack.c.l.b16 %v944
    %v981 = vunpack.c.l.b16 %v945
    %v982 = vunpack.c.l.b16 %v946
    %v983 = vunpack.c.l.b16 %v947
    %v984 = vunpack.c.l.b16 %v948
    %v985 = vunpack.c.l.b16 %v949
    %v986 = vunpack.c.l.b16 %v950
    %v987 = vunpack.c.l.b16 %v951
    %v988 = vunpack.c.l.b16 %v952
    %v989 = vpack.c.b16 %v974, %v973
    %v990 = vpack.c.b16 %v976, %v975
    %v991 = vpack.c.b16 %v978, %v977
    %v992 = vpack.c.b16 %v980, %v979
    %v993 = vpack.c.b16 %v982, %v981
    %v994 = vpack.c.b16 %v984, %v983
    %v995 = vpack.c.b16 %v986, %v985
    %v996 = vpack.c.b16 %v988, %v987
    %1005 = vmatpush.bf16.msra.mxu0 %v996
    %1006 = vmatpush.bf16.msra.mxu0 %v995
    %1007 = vmatpush.bf16.msra.mxu0 %v994
    %1008 = vmatpush.bf16.msra.mxu0 %v993
    %1009 = vmatpush.bf16.msra.mxu0 %v992
    %1010 = vmatpush.bf16.msra.mxu0 %v991
    %1011 = vmatpush.bf16.msra.mxu0 %v990
    %1012 = vmatpush.bf16.msra.mxu0 %v989
    %1013 = vmatmul.bf16.gmra.mxu0 %v936
    %v1014 = vpop.f32.mrf.mxu0
    %v1015 = vadd.f32 %v955, %v1014
    %v1016 = vpop.f32.mrf.mxu0
    %1017 = vdwg.mxu0
    %1018 = vst [vmem:[%s6] sm:$0xff] %v1015
    %s1019 = scalar_lea.vmem %s0, 32
    %v1020 = vld [vmem:[%s1019] sm:$0xff]
    %v1021 = vld [vmem:[%s1019 + $0x8] sm:$0xff]
    %v1022 = vld [vmem:[%s1019 + $0x10] sm:$0xff]
    %v1023 = vld [vmem:[%s1019 + $0x18] sm:$0xff]
    %v1024 = vld [vmem:[#allocation2] sm:$0xff]
    %v1025 = vpack.c.bf16 %v1024, %v1024
    %v1026 = vld [vmem:[%s1] sm:$0xff]
    %v1027 = vld [vmem:[%s1 + $0x8] sm:$0xff]
    %v1028 = vld [vmem:[%s1 + $0x10] sm:$0xff]
    %v1029 = vld [vmem:[%s1 + $0x18] sm:$0xff]
    %v1030 = vld [vmem:[%s1 + $0x20] sm:$0xff]
    %v1031 = vld [vmem:[%s1 + $0x28] sm:$0xff]
    %v1032 = vld [vmem:[%s1 + $0x30] sm:$0xff]
    %v1033 = vld [vmem:[%s1 + $0x38] sm:$0xff]
    %v1034 = vld [vmem:[%s1 + $0x40] sm:$0xff]
    %v1035 = vld [vmem:[%s1 + $0x48] sm:$0xff]
    %v1036 = vld [vmem:[%s1 + $0x50] sm:$0xff]
    %v1037 = vld [vmem:[%s1 + $0x58] sm:$0xff]
    %v1038 = vld [vmem:[%s1 + $0x60] sm:$0xff]
    %v1039 = vld [vmem:[%s1 + $0x68] sm:$0xff]
    %v1040 = vld [vmem:[%s1 + $0x70] sm:$0xff]
    %v1041 = vld [vmem:[%s1 + $0x78] sm:$0xff]
    %v1042 = vld [vmem:[%s1 + $0x80] sm:$0xff]
    %v1043 = vld [vmem:[%s1 + $0x88] sm:$0xff]
    %v1044 = vld [vmem:[%s1 + $0x90] sm:$0xff]
    %v1045 = vld [vmem:[%s1 + $0x98] sm:$0xff]
    %v1046 = vld [vmem:[%s1 + $0xa0] sm:$0xff]
    %v1047 = vld [vmem:[%s1 + $0xa8] sm:$0xff]
    %v1048 = vld [vmem:[%s1 + $0xb0] sm:$0xff]
    %v1049 = vld [vmem:[%s1 + $0xb8] sm:$0xff]
    %v1050 = vld [vmem:[%s1 + $0xc0] sm:$0xff]
    %v1051 = vld [vmem:[%s1 + $0xc8] sm:$0xff]
    %v1052 = vld [vmem:[%s1 + $0xd0] sm:$0xff]
    %v1053 = vld [vmem:[%s1 + $0xd8] sm:$0xff]
    %v1054 = vld [vmem:[%s1 + $0xe0] sm:$0xff]
    %v1055 = vld [vmem:[%s1 + $0xe8] sm:$0xff]
    %v1056 = vld [vmem:[%s1 + $0xf0] sm:$0xff]
    %v1057 = vld [vmem:[%s1 + $0xf8] sm:$0xff]
    %v1090 = vunpack.c.l.b16 %v1026
    %v1091 = vunpack.c.h.b16 %v1026
    %v1092 = vunpack.c.l.b16 %v1027
    %v1093 = vunpack.c.h.b16 %v1027
    %v1094 = vunpack.c.l.b16 %v1028
    %v1095 = vunpack.c.h.b16 %v1028
    %v1096 = vunpack.c.l.b16 %v1029
    %v1097 = vunpack.c.h.b16 %v1029
    %v1098 = vunpack.c.l.b16 %v1030
    %v1099 = vunpack.c.h.b16 %v1030
    %v1100 = vunpack.c.l.b16 %v1031
    %v1101 = vunpack.c.h.b16 %v1031
    %v1102 = vunpack.c.l.b16 %v1032
    %v1103 = vunpack.c.h.b16 %v1032
    %v1104 = vunpack.c.l.b16 %v1033
    %v1105 = vunpack.c.h.b16 %v1033
    %v1106 = vunpack.c.l.b16 %v1034
    %v1107 = vunpack.c.h.b16 %v1034
    %v1108 = vunpack.c.l.b16 %v1035
    %v1109 = vunpack.c.h.b16 %v1035
    %v1110 = vunpack.c.l.b16 %v1036
    %v1111 = vunpack.c.h.b16 %v1036
    %v1112 = vunpack.c.l.b16 %v1037
    %v1113 = vunpack.c.h.b16 %v1037
    %v1114 = vunpack.c.l.b16 %v1038
    %v1115 = vunpack.c.h.b16 %v1038
    %v1116 = vunpack.c.l.b16 %v1039
    %v1117 = vunpack.c.h.b16 %v1039
    %v1118 = vunpack.c.l.b16 %v1040
    %v1119 = vunpack.c.h.b16 %v1040
    %v1120 = vunpack.c.l.b16 %v1041
    %v1121 = vunpack.c.h.b16 %v1041
    %v1122 = vunpack.c.l.b16 %v1042
    %v1123 = vunpack.c.h.b16 %v1042
    %v1124 = vunpack.c.l.b16 %v1043
    %v1125 = vunpack.c.h.b16 %v1043
    %v1126 = vunpack.c.l.b16 %v1044
    %v1127 = vunpack.c.h.b16 %v1044
    %v1128 = vunpack.c.l.b16 %v1045
    %v1129 = vunpack.c.h.b16 %v1045
    %v1130 = vunpack.c.l.b16 %v1046
    %v1131 = vunpack.c.h.b16 %v1046
    %v1132 = vunpack.c.l.b16 %v1047
    %v1133 = vunpack.c.h.b16 %v1047
    %v1134 = vunpack.c.l.b16 %v1048
    %v1135 = vunpack.c.h.b16 %v1048
    %v1136 = vunpack.c.l.b16 %v1049
    %v1137 = vunpack.c.h.b16 %v1049
    %v1138 = vunpack.c.l.b16 %v1050
    %v1139 = vunpack.c.h.b16 %v1050
    %v1140 = vunpack.c.l.b16 %v1051
    %v1141 = vunpack.c.h.b16 %v1051
    %v1142 = vunpack.c.l.b16 %v1052
    %v1143 = vunpack.c.h.b16 %v1052
    %v1144 = vunpack.c.l.b16 %v1053
    %v1145 = vunpack.c.h.b16 %v1053
    %v1146 = vunpack.c.l.b16 %v1054
    %v1147 = vunpack.c.h.b16 %v1054
    %v1148 = vunpack.c.l.b16 %v1055
    %v1149 = vunpack.c.h.b16 %v1055
    %v1150 = vunpack.c.l.b16 %v1056
    %v1151 = vunpack.c.h.b16 %v1056
    %v1152 = vunpack.c.l.b16 %v1057
    %v1153 = vunpack.c.h.b16 %v1057
    %v1154 = vpack.c.b16 %v1094, %v1090
    %v1155 = vpack.c.b16 %v1095, %v1091
    %v1156 = vpack.c.b16 %v1096, %v1092
    %v1157 = vpack.c.b16 %v1097, %v1093
    %v1158 = vpack.c.b16 %v1102, %v1098
    %v1159 = vpack.c.b16 %v1103, %v1099
    %v1160 = vpack.c.b16 %v1104, %v1100
    %v1161 = vpack.c.b16 %v1105, %v1101
    %v1162 = vpack.c.b16 %v1110, %v1106
    %v1163 = vpack.c.b16 %v1111, %v1107
    %v1164 = vpack.c.b16 %v1112, %v1108
    %v1165 = vpack.c.b16 %v1113, %v1109
    %v1166 = vpack.c.b16 %v1118, %v1114
    %v1167 = vpack.c.b16 %v1119, %v1115
    %v1168 = vpack.c.b16 %v1120, %v1116
    %v1169 = vpack.c.b16 %v1121, %v1117
    %v1170 = vpack.c.b16 %v1126, %v1122
    %v1171 = vpack.c.b16 %v1127, %v1123
    %v1172 = vpack.c.b16 %v1128, %v1124
    %v1173 = vpack.c.b16 %v1129, %v1125
    %v1174 = vpack.c.b16 %v1134, %v1130
    %v1175 = vpack.c.b16 %v1135, %v1131
    %v1176 = vpack.c.b16 %v1136, %v1132
    %v1177 = vpack.c.b16 %v1137, %v1133
    %v1178 = vpack.c.b16 %v1142, %v1138
    %v1179 = vpack.c.b16 %v1143, %v1139
    %v1180 = vpack.c.b16 %v1144, %v1140
    %v1181 = vpack.c.b16 %v1145, %v1141
    %v1182 = vpack.c.b16 %v1150, %v1146
    %v1183 = vpack.c.b16 %v1151, %v1147
    %v1184 = vpack.c.b16 %v1152, %v1148
    %v1185 = vpack.c.b16 %v1153, %v1149
    %1218 = vmatpush.bf16.msra.mxu0 %v1182
    %1219 = vmatpush.bf16.msra.mxu0 %v1178
    %1220 = vmatpush.bf16.msra.mxu0 %v1174
    %1221 = vmatpush.bf16.msra.mxu0 %v1170
    %1222 = vmatpush.bf16.msra.mxu0 %v1166
    %1223 = vmatpush.bf16.msra.mxu0 %v1162
    %1224 = vmatpush.bf16.msra.mxu0 %v1158
    %1225 = vmatpush.bf16.msra.mxu0 %v1154
    %1226 = vmatmul.bf16.gmra.mxu0 %v1025
    %v1227 = vpop.f32.mrf.mxu0
    %v1228 = vadd.f32 0.0, %v1227
    %v1229 = vpop.f32.mrf.mxu0
    %1230 = vdwg.mxu0
    %1231 = vmatpush.bf16.msra.mxu0 %v1183
    %1232 = vmatpush.bf16.msra.mxu0 %v1179
    %1233 = vmatpush.bf16.msra.mxu0 %v1175
    %1234 = vmatpush.bf16.msra.mxu0 %v1171
    %1235 = vmatpush.bf16.msra.mxu0 %v1167
    %1236 = vmatpush.bf16.msra.mxu0 %v1163
    %1237 = vmatpush.bf16.msra.mxu0 %v1159
    %1238 = vmatpush.bf16.msra.mxu0 %v1155
    %1239 = vmatmul.bf16.gmra.mxu0 %v1025
    %v1240 = vpop.f32.mrf.mxu0
    %v1241 = vadd.f32 0.0, %v1240
    %v1242 = vpop.f32.mrf.mxu0
    %1243 = vdwg.mxu0
    %1244 = vmatpush.bf16.msra.mxu0 %v1184
    %1245 = vmatpush.bf16.msra.mxu0 %v1180
    %1246 = vmatpush.bf16.msra.mxu0 %v1176
    %1247 = vmatpush.bf16.msra.mxu0 %v1172
    %1248 = vmatpush.bf16.msra.mxu0 %v1168
    %1249 = vmatpush.bf16.msra.mxu0 %v1164
    %1250 = vmatpush.bf16.msra.mxu0 %v1160
    %1251 = vmatpush.bf16.msra.mxu0 %v1156
    %1252 = vmatmul.bf16.gmra.mxu0 %v1025
    %v1253 = vpop.f32.mrf.mxu0
    %v1254 = vadd.f32 0.0, %v1253
    %v1255 = vpop.f32.mrf.mxu0
    %1256 = vdwg.mxu0
    %1257 = vmatpush.bf16.msra.mxu0 %v1185
    %1258 = vmatpush.bf16.msra.mxu0 %v1181
    %1259 = vmatpush.bf16.msra.mxu0 %v1177
    %1260 = vmatpush.bf16.msra.mxu0 %v1173
    %1261 = vmatpush.bf16.msra.mxu0 %v1169
    %1262 = vmatpush.bf16.msra.mxu0 %v1165
    %1263 = vmatpush.bf16.msra.mxu0 %v1161
    %1264 = vmatpush.bf16.msra.mxu0 %v1157
    %1265 = vmatmul.bf16.gmra.mxu0 %v1025
    %v1266 = vpop.f32.mrf.mxu0
    %v1267 = vadd.f32 0.0, %v1266
    %v1268 = vpop.f32.mrf.mxu0
    %1269 = vdwg.mxu0
    %v1270 = vadd.f32 %v1020, %v1228
    %v1271 = vadd.f32 %v1021, %v1241
    %v1272 = vadd.f32 %v1022, %v1254
    %v1273 = vadd.f32 %v1023, %v1267
    %v1274 = vld [vmem:[#allocation3] sm:$0xff]
    %v1275 = vxor.u32 %v1270, 2147483648
    %v1276 = vmul.f32 %v1275, 1.442695
    %v1277 = vpow.pop %v1276
    %v1278 = vadd.f32 %v1277, 1.0
    %v1279 = vrcp.pop %v1278
    %v1280 = vmul.f32 %v1278, %v1279
    %v1281 = vsub.f32 1.0, %v1280
    %v1282 = vmul.f32 %v1279, %v1281
    %v1283 = vadd.f32 %v1279, %v1282
    %vm1284 = vweird.f32 %v1278
    %vm1285 = vweird.f32 %v1279
    %vm1286 = vmor %vm1284, %vm1285
    %v1287 = vsel %vm1286, %v1279, %v1283
    %v1288 = vand.u32 2147483647, %v1278
    %vm1289 = vcmp.eq.f32.partialorder %v1288, 8.507059e+37
    %v1290 = vand.u32 %v1278, 2147483648
    %v1291 = vor.u32 1.1754944e-38, %v1290
    %v1292 = vsel %vm1289, %v1291, %v1287
    %v1293 = vmul.f32 1.0, %v1292
    %v1294 = vxor.u32 %v1271, 2147483648
    %v1295 = vmul.f32 %v1294, 1.442695
    %v1296 = vpow.pop %v1295
    %v1297 = vadd.f32 %v1296, 1.0
    %v1298 = vrcp.pop %v1297
    %v1299 = vmul.f32 %v1297, %v1298
    %v1300 = vsub.f32 1.0, %v1299
    %v1301 = vmul.f32 %v1298, %v1300
    %v1302 = vadd.f32 %v1298, %v1301
    %vm1303 = vweird.f32 %v1297
    %vm1304 = vweird.f32 %v1298
    %vm1305 = vmor %vm1303, %vm1304
    %v1306 = vsel %vm1305, %v1298, %v1302
    %v1307 = vand.u32 2147483647, %v1297
    %vm1308 = vcmp.eq.f32.partialorder %v1307, 8.507059e+37
    %v1309 = vand.u32 %v1297, 2147483648
    %v1310 = vor.u32 1.1754944e-38, %v1309
    %v1311 = vsel %vm1308, %v1310, %v1306
    %v1312 = vmul.f32 1.0, %v1311
    %v1313 = vtanh.pop %v1272
    %v1314 = vxor.u32 %v1273, 2147483648
    %v1315 = vmul.f32 %v1314, 1.442695
    %v1316 = vpow.pop %v1315
    %v1317 = vadd.f32 %v1316, 1.0
    %v1318 = vrcp.pop %v1317
    %v1319 = vmul.f32 %v1317, %v1318
    %v1320 = vsub.f32 1.0, %v1319
    %v1321 = vmul.f32 %v1318, %v1320
    %v1322 = vadd.f32 %v1318, %v1321
    %vm1323 = vweird.f32 %v1317
    %vm1324 = vweird.f32 %v1318
    %vm1325 = vmor %vm1323, %vm1324
    %v1326 = vsel %vm1325, %v1318, %v1322
    %v1327 = vand.u32 2147483647, %v1317
    %vm1328 = vcmp.eq.f32.partialorder %v1327, 8.507059e+37
    %v1329 = vand.u32 %v1317, 2147483648
    %v1330 = vor.u32 1.1754944e-38, %v1329
    %v1331 = vsel %vm1328, %v1330, %v1326
    %v1332 = vmul.f32 1.0, %v1331
    %v1333 = vmul.f32 %v1312, %v1274
    %v1334 = vmul.f32 %v1293, %v1313
    %v1335 = vadd.f32 %v1333, %v1334
    %v1336 = vtanh.pop %v1335
    %v1337 = vmul.f32 %v1332, %v1336
    %1338 = vst [vmem:[#allocation2] sm:$0xff] %v1337
    %1339 = vst [vmem:[#allocation3] sm:$0xff] %v1335
    %v1340 = vld [vmem:[%s367] sm:$0xff]
    %v1341 = vpack.c.bf16 %v1337, %v1337
    %v1342 = vpack.c.bf16 %v1340, %v1340
    %v1343 = vld [vmem:[#allocation4] sm:$0xff]
    %v1344 = vld [vmem:[#allocation4 + $0x8] sm:$0xff]
    %v1345 = vld [vmem:[#allocation4 + $0x10] sm:$0xff]
    %v1346 = vld [vmem:[#allocation4 + $0x18] sm:$0xff]
    %v1347 = vld [vmem:[#allocation4 + $0x20] sm:$0xff]
    %v1348 = vld [vmem:[#allocation4 + $0x28] sm:$0xff]
    %v1349 = vld [vmem:[#allocation4 + $0x30] sm:$0xff]
    %v1350 = vld [vmem:[#allocation4 + $0x38] sm:$0xff]
    %v1351 = vld [vmem:[#allocation4 + $0x40] sm:$0xff]
    %v1352 = vld [vmem:[#allocation4 + $0x48] sm:$0xff]
    %v1353 = vld [vmem:[#allocation4 + $0x50] sm:$0xff]
    %v1354 = vld [vmem:[#allocation4 + $0x58] sm:$0xff]
    %v1355 = vld [vmem:[#allocation4 + $0x60] sm:$0xff]
    %v1356 = vld [vmem:[#allocation4 + $0x68] sm:$0xff]
    %v1357 = vld [vmem:[#allocation4 + $0x70] sm:$0xff]
    %v1358 = vld [vmem:[#allocation4 + $0x78] sm:$0xff]
    %v1359 = vld [vmem:[#allocation4 + $0x80] sm:$0xff]
    %v1360 = vld [vmem:[#allocation4 + $0x88] sm:$0xff]
    %v1361 = vld [vmem:[#allocation4 + $0x90] sm:$0xff]
    %v1362 = vld [vmem:[#allocation4 + $0x98] sm:$0xff]
    %v1363 = vld [vmem:[#allocation4 + $0xa0] sm:$0xff]
    %v1364 = vld [vmem:[#allocation4 + $0xa8] sm:$0xff]
    %v1365 = vld [vmem:[#allocation4 + $0xb0] sm:$0xff]
    %v1366 = vld [vmem:[#allocation4 + $0xb8] sm:$0xff]
    %v1367 = vld [vmem:[#allocation4 + $0xc0] sm:$0xff]
    %v1368 = vld [vmem:[#allocation4 + $0xc8] sm:$0xff]
    %v1369 = vld [vmem:[#allocation4 + $0xd0] sm:$0xff]
    %v1370 = vld [vmem:[#allocation4 + $0xd8] sm:$0xff]
    %v1371 = vld [vmem:[#allocation4 + $0xe0] sm:$0xff]
    %v1372 = vld [vmem:[#allocation4 + $0xe8] sm:$0xff]
    %v1373 = vld [vmem:[#allocation4 + $0xf0] sm:$0xff]
    %v1374 = vld [vmem:[#allocation4 + $0xf8] sm:$0xff]
    %v1375 = vld [vmem:[#allocation4 + $0x100] sm:$0xff]
    %v1376 = vld [vmem:[#allocation4 + $0x108] sm:$0xff]
    %v1377 = vld [vmem:[#allocation4 + $0x110] sm:$0xff]
    %v1378 = vld [vmem:[#allocation4 + $0x118] sm:$0xff]
    %v1379 = vld [vmem:[#allocation4 + $0x120] sm:$0xff]
    %v1380 = vld [vmem:[#allocation4 + $0x128] sm:$0xff]
    %v1381 = vld [vmem:[#allocation4 + $0x130] sm:$0xff]
    %v1382 = vld [vmem:[#allocation4 + $0x138] sm:$0xff]
    %v1383 = vld [vmem:[#allocation4 + $0x140] sm:$0xff]
    %v1384 = vld [vmem:[#allocation4 + $0x148] sm:$0xff]
    %v1385 = vld [vmem:[#allocation4 + $0x150] sm:$0xff]
    %v1386 = vld [vmem:[#allocation4 + $0x158] sm:$0xff]
    %v1387 = vld [vmem:[#allocation4 + $0x160] sm:$0xff]
    %v1388 = vld [vmem:[#allocation4 + $0x168] sm:$0xff]
    %v1389 = vld [vmem:[#allocation4 + $0x170] sm:$0xff]
    %v1390 = vld [vmem:[#allocation4 + $0x178] sm:$0xff]
    %v1391 = vld [vmem:[#allocation4 + $0x180] sm:$0xff]
    %v1392 = vld [vmem:[#allocation4 + $0x188] sm:$0xff]
    %v1393 = vld [vmem:[#allocation4 + $0x190] sm:$0xff]
    %v1394 = vld [vmem:[#allocation4 + $0x198] sm:$0xff]
    %v1395 = vld [vmem:[#allocation4 + $0x1a0] sm:$0xff]
    %v1396 = vld [vmem:[#allocation4 + $0x1a8] sm:$0xff]
    %v1397 = vld [vmem:[#allocation4 + $0x1b0] sm:$0xff]
    %v1398 = vld [vmem:[#allocation4 + $0x1b8] sm:$0xff]
    %v1399 = vld [vmem:[#allocation4 + $0x1c0] sm:$0xff]
    %v1400 = vld [vmem:[#allocation4 + $0x1c8] sm:$0xff]
    %v1401 = vld [vmem:[#allocation4 + $0x1d0] sm:$0xff]
    %v1402 = vld [vmem:[#allocation4 + $0x1d8] sm:$0xff]
    %v1403 = vld [vmem:[#allocation4 + $0x1e0] sm:$0xff]
    %v1404 = vld [vmem:[#allocation4 + $0x1e8] sm:$0xff]
    %v1405 = vld [vmem:[#allocation4 + $0x1f0] sm:$0xff]
    %v1406 = vld [vmem:[#allocation4 + $0x1f8] sm:$0xff]
    %v1407 = vld [vmem:[%s3] sm:$0xf]
    %v1409 = vperm.slane %v1407, 0
    %v1410 = vperm.slane %v1407, 1
    %v1411 = vperm.slane %v1407, 2
    %v1412 = vperm.slane %v1407, 3
    %v1481 = vunpack.c.l.b16 %v1343
    %v1482 = vunpack.c.h.b16 %v1343
    %v1483 = vunpack.c.l.b16 %v1344
    %v1484 = vunpack.c.h.b16 %v1344
    %v1485 = vunpack.c.l.b16 %v1345
    %v1486 = vunpack.c.h.b16 %v1345
    %v1487 = vunpack.c.l.b16 %v1346
    %v1488 = vunpack.c.h.b16 %v1346
    %v1489 = vunpack.c.l.b16 %v1347
    %v1490 = vunpack.c.h.b16 %v1347
    %v1491 = vunpack.c.l.b16 %v1348
    %v1492 = vunpack.c.h.b16 %v1348
    %v1493 = vunpack.c.l.b16 %v1349
    %v1494 = vunpack.c.h.b16 %v1349
    %v1495 = vunpack.c.l.b16 %v1350
    %v1496 = vunpack.c.h.b16 %v1350
    %v1497 = vunpack.c.l.b16 %v1351
    %v1498 = vunpack.c.h.b16 %v1351
    %v1499 = vunpack.c.l.b16 %v1352
    %v1500 = vunpack.c.h.b16 %v1352
    %v1501 = vunpack.c.l.b16 %v1353
    %v1502 = vunpack.c.h.b16 %v1353
    %v1503 = vunpack.c.l.b16 %v1354
    %v1504 = vunpack.c.h.b16 %v1354
    %v1505 = vunpack.c.l.b16 %v1355
    %v1506 = vunpack.c.h.b16 %v1355
    %v1507 = vunpack.c.l.b16 %v1356
    %v1508 = vunpack.c.h.b16 %v1356
    %v1509 = vunpack.c.l.b16 %v1357
    %v1510 = vunpack.c.h.b16 %v1357
    %v1511 = vunpack.c.l.b16 %v1358
    %v1512 = vunpack.c.h.b16 %v1358
    %v1513 = vunpack.c.l.b16 %v1359
    %v1514 = vunpack.c.h.b16 %v1359
    %v1515 = vunpack.c.l.b16 %v1360
    %v1516 = vunpack.c.h.b16 %v1360
    %v1517 = vunpack.c.l.b16 %v1361
    %v1518 = vunpack.c.h.b16 %v1361
    %v1519 = vunpack.c.l.b16 %v1362
    %v1520 = vunpack.c.h.b16 %v1362
    %v1521 = vunpack.c.l.b16 %v1363
    %v1522 = vunpack.c.h.b16 %v1363
    %v1523 = vunpack.c.l.b16 %v1364
    %v1524 = vunpack.c.h.b16 %v1364
    %v1525 = vunpack.c.l.b16 %v1365
    %v1526 = vunpack.c.h.b16 %v1365
    %v1527 = vunpack.c.l.b16 %v1366
    %v1528 = vunpack.c.h.b16 %v1366
    %v1529 = vunpack.c.l.b16 %v1367
    %v1530 = vunpack.c.h.b16 %v1367
    %v1531 = vunpack.c.l.b16 %v1368
    %v1532 = vunpack.c.h.b16 %v1368
    %v1533 = vunpack.c.l.b16 %v1369
    %v1534 = vunpack.c.h.b16 %v1369
    %v1535 = vunpack.c.l.b16 %v1370
    %v1536 = vunpack.c.h.b16 %v1370
    %v1537 = vunpack.c.l.b16 %v1371
    %v1538 = vunpack.c.h.b16 %v1371
    %v1539 = vunpack.c.l.b16 %v1372
    %v1540 = vunpack.c.h.b16 %v1372
    %v1541 = vunpack.c.l.b16 %v1373
    %v1542 = vunpack.c.h.b16 %v1373
    %v1543 = vunpack.c.l.b16 %v1374
    %v1544 = vunpack.c.h.b16 %v1374
    %v1545 = vunpack.c.l.b16 %v1375
    %v1546 = vunpack.c.h.b16 %v1375
    %v1547 = vunpack.c.l.b16 %v1376
    %v1548 = vunpack.c.h.b16 %v1376
    %v1549 = vunpack.c.l.b16 %v1377
    %v1550 = vunpack.c.h.b16 %v1377
    %v1551 = vunpack.c.l.b16 %v1378
    %v1552 = vunpack.c.h.b16 %v1378
    %v1553 = vunpack.c.l.b16 %v1379
    %v1554 = vunpack.c.h.b16 %v1379
    %v1555 = vunpack.c.l.b16 %v1380
    %v1556 = vunpack.c.h.b16 %v1380
    %v1557 = vunpack.c.l.b16 %v1381
    %v1558 = vunpack.c.h.b16 %v1381
    %v1559 = vunpack.c.l.b16 %v1382
    %v1560 = vunpack.c.h.b16 %v1382
    %v1561 = vunpack.c.l.b16 %v1383
    %v1562 = vunpack.c.h.b16 %v1383
    %v1563 = vunpack.c.l.b16 %v1384
    %v1564 = vunpack.c.h.b16 %v1384
    %v1565 = vunpack.c.l.b16 %v1385
    %v1566 = vunpack.c.h.b16 %v1385
    %v1567 = vunpack.c.l.b16 %v1386
    %v1568 = vunpack.c.h.b16 %v1386
    %v1569 = vunpack.c.l.b16 %v1387
    %v1570 = vunpack.c.h.b16 %v1387
    %v1571 = vunpack.c.l.b16 %v1388
    %v1572 = vunpack.c.h.b16 %v1388
    %v1573 = vunpack.c.l.b16 %v1389
    %v1574 = vunpack.c.h.b16 %v1389
    %v1575 = vunpack.c.l.b16 %v1390
    %v1576 = vunpack.c.h.b16 %v1390
    %v1577 = vunpack.c.l.b16 %v1391
    %v1578 = vunpack.c.h.b16 %v1391
    %v1579 = vunpack.c.l.b16 %v1392
    %v1580 = vunpack.c.h.b16 %v1392
    %v1581 = vunpack.c.l.b16 %v1393
    %v1582 = vunpack.c.h.b16 %v1393
    %v1583 = vunpack.c.l.b16 %v1394
    %v1584 = vunpack.c.h.b16 %v1394
    %v1585 = vunpack.c.l.b16 %v1395
    %v1586 = vunpack.c.h.b16 %v1395
    %v1587 = vunpack.c.l.b16 %v1396
    %v1588 = vunpack.c.h.b16 %v1396
    %v1589 = vunpack.c.l.b16 %v1397
    %v1590 = vunpack.c.h.b16 %v1397
    %v1591 = vunpack.c.l.b16 %v1398
    %v1592 = vunpack.c.h.b16 %v1398
    %v1593 = vunpack.c.l.b16 %v1399
    %v1594 = vunpack.c.h.b16 %v1399
    %v1595 = vunpack.c.l.b16 %v1400
    %v1596 = vunpack.c.h.b16 %v1400
    %v1597 = vunpack.c.l.b16 %v1401
    %v1598 = vunpack.c.h.b16 %v1401
    %v1599 = vunpack.c.l.b16 %v1402
    %v1600 = vunpack.c.h.b16 %v1402
    %v1601 = vunpack.c.l.b16 %v1403
    %v1602 = vunpack.c.h.b16 %v1403
    %v1603 = vunpack.c.l.b16 %v1404
    %v1604 = vunpack.c.h.b16 %v1404
    %v1605 = vunpack.c.l.b16 %v1405
    %v1606 = vunpack.c.h.b16 %v1405
    %v1607 = vunpack.c.l.b16 %v1406
    %v1608 = vunpack.c.h.b16 %v1406
    %v1609 = vpack.c.b16 %v1485, %v1481
    %v1610 = vpack.c.b16 %v1486, %v1482
    %v1611 = vpack.c.b16 %v1487, %v1483
    %v1612 = vpack.c.b16 %v1488, %v1484
    %v1613 = vpack.c.b16 %v1493, %v1489
    %v1614 = vpack.c.b16 %v1494, %v1490
    %v1615 = vpack.c.b16 %v1495, %v1491
    %v1616 = vpack.c.b16 %v1496, %v1492
    %v1617 = vpack.c.b16 %v1501, %v1497
    %v1618 = vpack.c.b16 %v1502, %v1498
    %v1619 = vpack.c.b16 %v1503, %v1499
    %v1620 = vpack.c.b16 %v1504, %v1500
    %v1621 = vpack.c.b16 %v1509, %v1505
    %v1622 = vpack.c.b16 %v1510, %v1506
    %v1623 = vpack.c.b16 %v1511, %v1507
    %v1624 = vpack.c.b16 %v1512, %v1508
    %v1625 = vpack.c.b16 %v1517, %v1513
    %v1626 = vpack.c.b16 %v1518, %v1514
    %v1627 = vpack.c.b16 %v1519, %v1515
    %v1628 = vpack.c.b16 %v1520, %v1516
    %v1629 = vpack.c.b16 %v1525, %v1521
    %v1630 = vpack.c.b16 %v1526, %v1522
    %v1631 = vpack.c.b16 %v1527, %v1523
    %v1632 = vpack.c.b16 %v1528, %v1524
    %v1633 = vpack.c.b16 %v1533, %v1529
    %v1634 = vpack.c.b16 %v1534, %v1530
    %v1635 = vpack.c.b16 %v1535, %v1531
    %v1636 = vpack.c.b16 %v1536, %v1532
    %v1637 = vpack.c.b16 %v1541, %v1537
    %v1638 = vpack.c.b16 %v1542, %v1538
    %v1639 = vpack.c.b16 %v1543, %v1539
    %v1640 = vpack.c.b16 %v1544, %v1540
    %v1641 = vpack.c.b16 %v1549, %v1545
    %v1642 = vpack.c.b16 %v1550, %v1546
    %v1643 = vpack.c.b16 %v1551, %v1547
    %v1644 = vpack.c.b16 %v1552, %v1548
    %v1645 = vpack.c.b16 %v1557, %v1553
    %v1646 = vpack.c.b16 %v1558, %v1554
    %v1647 = vpack.c.b16 %v1559, %v1555
    %v1648 = vpack.c.b16 %v1560, %v1556
    %v1649 = vpack.c.b16 %v1565, %v1561
    %v1650 = vpack.c.b16 %v1566, %v1562
    %v1651 = vpack.c.b16 %v1567, %v1563
    %v1652 = vpack.c.b16 %v1568, %v1564
    %v1653 = vpack.c.b16 %v1573, %v1569
    %v1654 = vpack.c.b16 %v1574, %v1570
    %v1655 = vpack.c.b16 %v1575, %v1571
    %v1656 = vpack.c.b16 %v1576, %v1572
    %v1657 = vpack.c.b16 %v1581, %v1577
    %v1658 = vpack.c.b16 %v1582, %v1578
    %v1659 = vpack.c.b16 %v1583, %v1579
    %v1660 = vpack.c.b16 %v1584, %v1580
    %v1661 = vpack.c.b16 %v1589, %v1585
    %v1662 = vpack.c.b16 %v1590, %v1586
    %v1663 = vpack.c.b16 %v1591, %v1587
    %v1664 = vpack.c.b16 %v1592, %v1588
    %v1665 = vpack.c.b16 %v1597, %v1593
    %v1666 = vpack.c.b16 %v1598, %v1594
    %v1667 = vpack.c.b16 %v1599, %v1595
    %v1668 = vpack.c.b16 %v1600, %v1596
    %v1669 = vpack.c.b16 %v1605, %v1601
    %v1670 = vpack.c.b16 %v1606, %v1602
    %v1671 = vpack.c.b16 %v1607, %v1603
    %v1672 = vpack.c.b16 %v1608, %v1604
    %1737 = vmatpush.bf16.msra.mxu0 %v1637
    %1738 = vmatpush.bf16.msra.mxu0 %v1633
    %1739 = vmatpush.bf16.msra.mxu0 %v1629
    %1740 = vmatpush.bf16.msra.mxu0 %v1625
    %1741 = vmatpush.bf16.msra.mxu0 %v1621
    %1742 = vmatpush.bf16.msra.mxu0 %v1617
    %1743 = vmatpush.bf16.msra.mxu0 %v1613
    %1744 = vmatpush.bf16.msra.mxu0 %v1609
    %1745 = vmatmul.bf16.gmra.mxu0 %v1341
    %v1746 = vpop.f32.mrf.mxu0
    %v1747 = vadd.f32 %v1409, %v1746
    %v1748 = vpop.f32.mrf.mxu0
    %1749 = vdwg.mxu0
    %1750 = vmatpush.bf16.msra.mxu0 %v1669
    %1751 = vmatpush.bf16.msra.mxu0 %v1665
    %1752 = vmatpush.bf16.msra.mxu0 %v1661
    %1753 = vmatpush.bf16.msra.mxu0 %v1657
    %1754 = vmatpush.bf16.msra.mxu0 %v1653
    %1755 = vmatpush.bf16.msra.mxu0 %v1649
    %1756 = vmatpush.bf16.msra.mxu0 %v1645
    %1757 = vmatpush.bf16.msra.mxu0 %v1641
    %1758 = vmatmul.bf16.gmra.mxu0 %v1342
    %v1759 = vpop.f32.mrf.mxu0
    %v1760 = vadd.f32 %v1747, %v1759
    %v1761 = vpop.f32.mrf.mxu0
    %1762 = vdwg.mxu0
    %1763 = vmatpush.bf16.msra.mxu0 %v1638
    %1764 = vmatpush.bf16.msra.mxu0 %v1634
    %1765 = vmatpush.bf16.msra.mxu0 %v1630
    %1766 = vmatpush.bf16.msra.mxu0 %v1626
    %1767 = vmatpush.bf16.msra.mxu0 %v1622
    %1768 = vmatpush.bf16.msra.mxu0 %v1618
    %1769 = vmatpush.bf16.msra.mxu0 %v1614
    %1770 = vmatpush.bf16.msra.mxu0 %v1610
    %1771 = vmatmul.bf16.gmra.mxu0 %v1341
    %v1772 = vpop.f32.mrf.mxu0
    %v1773 = vadd.f32 %v1410, %v1772
    %v1774 = vpop.f32.mrf.mxu0
    %1775 = vdwg.mxu0
    %1776 = vmatpush.bf16.msra.mxu0 %v1670
    %1777 = vmatpush.bf16.msra.mxu0 %v1666
    %1778 = vmatpush.bf16.msra.mxu0 %v1662
    %1779 = vmatpush.bf16.msra.mxu0 %v1658
    %1780 = vmatpush.bf16.msra.mxu0 %v1654
    %1781 = vmatpush.bf16.msra.mxu0 %v1650
    %1782 = vmatpush.bf16.msra.mxu0 %v1646
    %1783 = vmatpush.bf16.msra.mxu0 %v1642
    %1784 = vmatmul.bf16.gmra.mxu0 %v1342
    %v1785 = vpop.f32.mrf.mxu0
    %v1786 = vadd.f32 %v1773, %v1785
    %v1787 = vpop.f32.mrf.mxu0
    %1788 = vdwg.mxu0
    %1789 = vmatpush.bf16.msra.mxu0 %v1639
    %1790 = vmatpush.bf16.msra.mxu0 %v1635
    %1791 = vmatpush.bf16.msra.mxu0 %v1631
    %1792 = vmatpush.bf16.msra.mxu0 %v1627
    %1793 = vmatpush.bf16.msra.mxu0 %v1623
    %1794 = vmatpush.bf16.msra.mxu0 %v1619
    %1795 = vmatpush.bf16.msra.mxu0 %v1615
    %1796 = vmatpush.bf16.msra.mxu0 %v1611
    %1797 = vmatmul.bf16.gmra.mxu0 %v1341
    %v1798 = vpop.f32.mrf.mxu0
    %v1799 = vadd.f32 %v1411, %v1798
    %v1800 = vpop.f32.mrf.mxu0
    %1801 = vdwg.mxu0
    %1802 = vmatpush.bf16.msra.mxu0 %v1671
    %1803 = vmatpush.bf16.msra.mxu0 %v1667
    %1804 = vmatpush.bf16.msra.mxu0 %v1663
    %1805 = vmatpush.bf16.msra.mxu0 %v1659
    %1806 = vmatpush.bf16.msra.mxu0 %v1655
    %1807 = vmatpush.bf16.msra.mxu0 %v1651
    %1808 = vmatpush.bf16.msra.mxu0 %v1647
    %1809 = vmatpush.bf16.msra.mxu0 %v1643
    %1810 = vmatmul.bf16.gmra.mxu0 %v1342
    %v1811 = vpop.f32.mrf.mxu0
    %v1812 = vadd.f32 %v1799, %v1811
    %v1813 = vpop.f32.mrf.mxu0
    %1814 = vdwg.mxu0
    %1815 = vmatpush.bf16.msra.mxu0 %v1640
    %1816 = vmatpush.bf16.msra.mxu0 %v1636
    %1817 = vmatpush.bf16.msra.mxu0 %v1632
    %1818 = vmatpush.bf16.msra.mxu0 %v1628
    %1819 = vmatpush.bf16.msra.mxu0 %v1624
    %1820 = vmatpush.bf16.msra.mxu0 %v1620
    %1821 = vmatpush.bf16.msra.mxu0 %v1616
    %1822 = vmatpush.bf16.msra.mxu0 %v1612
    %1823 = vmatmul.bf16.gmra.mxu0 %v1341
    %v1824 = vpop.f32.mrf.mxu0
    %v1825 = vadd.f32 %v1412, %v1824
    %v1826 = vpop.f32.mrf.mxu0
    %1827 = vdwg.mxu0
    %1828 = vmatpush.bf16.msra.mxu0 %v1672
    %1829 = vmatpush.bf16.msra.mxu0 %v1668
    %1830 = vmatpush.bf16.msra.mxu0 %v1664
    %1831 = vmatpush.bf16.msra.mxu0 %v1660
    %1832 = vmatpush.bf16.msra.mxu0 %v1656
    %1833 = vmatpush.bf16.msra.mxu0 %v1652
    %1834 = vmatpush.bf16.msra.mxu0 %v1648
    %1835 = vmatpush.bf16.msra.mxu0 %v1644
    %1836 = vmatmul.bf16.gmra.mxu0 %v1342
    %v1837 = vpop.f32.mrf.mxu0
    %v1838 = vadd.f32 %v1825, %v1837
    %v1839 = vpop.f32.mrf.mxu0
    %1840 = vdwg.mxu0
    %v1841 = vld [vmem:[%s869] sm:$0xff]
    %v1842 = vxor.u32 %v1760, 2147483648
    %v1843 = vmul.f32 %v1842, 1.442695
    %v1844 = vpow.pop %v1843
    %v1845 = vadd.f32 %v1844, 1.0
    %v1846 = vrcp.pop %v1845
    %v1847 = vmul.f32 %v1845, %v1846
    %v1848 = vsub.f32 1.0, %v1847
    %v1849 = vmul.f32 %v1846, %v1848
    %v1850 = vadd.f32 %v1846, %v1849
    %vm1851 = vweird.f32 %v1845
    %vm1852 = vweird.f32 %v1846
    %vm1853 = vmor %vm1851, %vm1852
    %v1854 = vsel %vm1853, %v1846, %v1850
    %v1855 = vand.u32 2147483647, %v1845
    %vm1856 = vcmp.eq.f32.partialorder %v1855, 8.507059e+37
    %v1857 = vand.u32 %v1845, 2147483648
    %v1858 = vor.u32 1.1754944e-38, %v1857
    %v1859 = vsel %vm1856, %v1858, %v1854
    %v1860 = vmul.f32 1.0, %v1859
    %v1861 = vxor.u32 %v1786, 2147483648
    %v1862 = vmul.f32 %v1861, 1.442695
    %v1863 = vpow.pop %v1862
    %v1864 = vadd.f32 %v1863, 1.0
    %v1865 = vrcp.pop %v1864
    %v1866 = vmul.f32 %v1864, %v1865
    %v1867 = vsub.f32 1.0, %v1866
    %v1868 = vmul.f32 %v1865, %v1867
    %v1869 = vadd.f32 %v1865, %v1868
    %vm1870 = vweird.f32 %v1864
    %vm1871 = vweird.f32 %v1865
    %vm1872 = vmor %vm1870, %vm1871
    %v1873 = vsel %vm1872, %v1865, %v1869
    %v1874 = vand.u32 2147483647, %v1864
    %vm1875 = vcmp.eq.f32.partialorder %v1874, 8.507059e+37
    %v1876 = vand.u32 %v1864, 2147483648
    %v1877 = vor.u32 1.1754944e-38, %v1876
    %v1878 = vsel %vm1875, %v1877, %v1873
    %v1879 = vmul.f32 1.0, %v1878
    %v1880 = vtanh.pop %v1812
    %v1881 = vxor.u32 %v1838, 2147483648
    %v1882 = vmul.f32 %v1881, 1.442695
    %v1883 = vpow.pop %v1882
    %v1884 = vadd.f32 %v1883, 1.0
    %v1885 = vrcp.pop %v1884
    %v1886 = vmul.f32 %v1884, %v1885
    %v1887 = vsub.f32 1.0, %v1886
    %v1888 = vmul.f32 %v1885, %v1887
    %v1889 = vadd.f32 %v1885, %v1888
    %vm1890 = vweird.f32 %v1884
    %vm1891 = vweird.f32 %v1885
    %vm1892 = vmor %vm1890, %vm1891
    %v1893 = vsel %vm1892, %v1885, %v1889
    %v1894 = vand.u32 2147483647, %v1884
    %vm1895 = vcmp.eq.f32.partialorder %v1894, 8.507059e+37
    %v1896 = vand.u32 %v1884, 2147483648
    %v1897 = vor.u32 1.1754944e-38, %v1896
    %v1898 = vsel %vm1895, %v1897, %v1893
    %v1899 = vmul.f32 1.0, %v1898
    %v1900 = vmul.f32 %v1879, %v1841
    %v1901 = vmul.f32 %v1860, %v1880
    %v1902 = vadd.f32 %v1900, %v1901
    %v1903 = vtanh.pop %v1902
    %v1904 = vmul.f32 %v1899, %v1903
    %1905 = vst [vmem:[%s367] sm:$0xff] %v1904
    %1906 = vst [vmem:[%s869] sm:$0xff] %v1902
    %v1907 = vpack.c.bf16 %v1904, %v1904
    %v1908 = vld [vmem:[%s4] sm:$0xf]
    %v1909 = vld [vmem:[%s4 + $0x4] sm:$0xf]
    %v1910 = vld [vmem:[%s4 + $0x8] sm:$0xf]
    %v1911 = vld [vmem:[%s4 + $0xc] sm:$0xf]
    %v1912 = vld [vmem:[%s4 + $0x10] sm:$0xf]
    %v1913 = vld [vmem:[%s4 + $0x14] sm:$0xf]
    %v1914 = vld [vmem:[%s4 + $0x18] sm:$0xf]
    %v1915 = vld [vmem:[%s4 + $0x1c] sm:$0xf]
    %v1916 = vld [vmem:[%s4 + $0x20] sm:$0xf]
    %v1917 = vld [vmem:[%s4 + $0x24] sm:$0xf]
    %v1918 = vld [vmem:[%s4 + $0x28] sm:$0xf]
    %v1919 = vld [vmem:[%s4 + $0x2c] sm:$0xf]
    %v1920 = vld [vmem:[%s4 + $0x30] sm:$0xf]
    %v1921 = vld [vmem:[%s4 + $0x34] sm:$0xf]
    %v1922 = vld [vmem:[%s4 + $0x38] sm:$0xf]
    %v1923 = vld [vmem:[%s4 + $0x3c] sm:$0xf]
    %v1924 = vld [vmem:[%s5] sm:$0x1]
    %v1926 = vperm.slane %v1924, 0
    %v1944 = vunpack.c.l.b16 %v1908
    %v1945 = vunpack.c.l.b16 %v1909
    %v1946 = vunpack.c.l.b16 %v1910
    %v1947 = vunpack.c.l.b16 %v1911
    %v1948 = vunpack.c.l.b16 %v1912
    %v1949 = vunpack.c.l.b16 %v1913
    %v1950 = vunpack.c.l.b16 %v1914
    %v1951 = vunpack.c.l.b16 %v1915
    %v1952 = vunpack.c.l.b16 %v1916
    %v1953 = vunpack.c.l.b16 %v1917
    %v1954 = vunpack.c.l.b16 %v1918
    %v1955 = vunpack.c.l.b16 %v1919
    %v1956 = vunpack.c.l.b16 %v1920
    %v1957 = vunpack.c.l.b16 %v1921
    %v1958 = vunpack.c.l.b16 %v1922
    %v1959 = vunpack.c.l.b16 %v1923
    %v1960 = vpack.c.b16 %v1945, %v1944
    %v1961 = vpack.c.b16 %v1947, %v1946
    %v1962 = vpack.c.b16 %v1949, %v1948
    %v1963 = vpack.c.b16 %v1951, %v1950
    %v1964 = vpack.c.b16 %v1953, %v1952
    %v1965 = vpack.c.b16 %v1955, %v1954
    %v1966 = vpack.c.b16 %v1957, %v1956
    %v1967 = vpack.c.b16 %v1959, %v1958
    %1976 = vmatpush.bf16.msra.mxu0 %v1967
    %1977 = vmatpush.bf16.msra.mxu0 %v1966
    %1978 = vmatpush.bf16.msra.mxu0 %v1965
    %1979 = vmatpush.bf16.msra.mxu0 %v1964
    %1980 = vmatpush.bf16.msra.mxu0 %v1963
    %1981 = vmatpush.bf16.msra.mxu0 %v1962
    %1982 = vmatpush.bf16.msra.mxu0 %v1961
    %1983 = vmatpush.bf16.msra.mxu0 %v1960
    %1984 = vmatmul.bf16.gmra.mxu0 %v1907
    %v1985 = vpop.f32.mrf.mxu0
    %v1986 = vadd.f32 %v1926, %v1985
    %v1987 = vpop.f32.mrf.mxu0
    %1988 = vdwg.mxu0
    %s1989 = scalar_lea.vmem %s6, 8
    %1990 = vst [vmem:[%s1989] sm:$0xff] %v1986
    %s1991 = scalar_lea.vmem %s0, 64
    %v1992 = vld [vmem:[%s1991] sm:$0xff]
    %v1993 = vld [vmem:[%s1991 + $0x8] sm:$0xff]
    %v1994 = vld [vmem:[%s1991 + $0x10] sm:$0xff]
    %v1995 = vld [vmem:[%s1991 + $0x18] sm:$0xff]
    %v1996 = vld [vmem:[#allocation2] sm:$0xff]
    %v1997 = vpack.c.bf16 %v1996, %v1996
    %v1998 = vld [vmem:[%s1] sm:$0xff]
    %v1999 = vld [vmem:[%s1 + $0x8] sm:$0xff]
    %v2000 = vld [vmem:[%s1 + $0x10] sm:$0xff]
    %v2001 = vld [vmem:[%s1 + $0x18] sm:$0xff]
    %v2002 = vld [vmem:[%s1 + $0x20] sm:$0xff]
    %v2003 = vld [vmem:[%s1 + $0x28] sm:$0xff]
    %v2004 = vld [vmem:[%s1 + $0x30] sm:$0xff]
    %v2005 = vld [vmem:[%s1 + $0x38] sm:$0xff]
    %v2006 = vld [vmem:[%s1 + $0x40] sm:$0xff]
    %v2007 = vld [vmem:[%s1 + $0x48] sm:$0xff]
    %v2008 = vld [vmem:[%s1 + $0x50] sm:$0xff]
    %v2009 = vld [vmem:[%s1 + $0x58] sm:$0xff]
    %v2010 = vld [vmem:[%s1 + $0x60] sm:$0xff]
    %v2011 = vld [vmem:[%s1 + $0x68] sm:$0xff]
    %v2012 = vld [vmem:[%s1 + $0x70] sm:$0xff]
    %v2013 = vld [vmem:[%s1 + $0x78] sm:$0xff]
    %v2014 = vld [vmem:[%s1 + $0x80] sm:$0xff]
    %v2015 = vld [vmem:[%s1 + $0x88] sm:$0xff]
    %v2016 = vld [vmem:[%s1 + $0x90] sm:$0xff]
    %v2017 = vld [vmem:[%s1 + $0x98] sm:$0xff]
    %v2018 = vld [vmem:[%s1 + $0xa0] sm:$0xff]
    %v2019 = vld [vmem:[%s1 + $0xa8] sm:$0xff]
    %v2020 = vld [vmem:[%s1 + $0xb0] sm:$0xff]
    %v2021 = vld [vmem:[%s1 + $0xb8] sm:$0xff]
    %v2022 = vld [vmem:[%s1 + $0xc0] sm:$0xff]
    %v2023 = vld [vmem:[%s1 + $0xc8] sm:$0xff]
    %v2024 = vld [vmem:[%s1 + $0xd0] sm:$0xff]
    %v2025 = vld [vmem:[%s1 + $0xd8] sm:$0xff]
    %v2026 = vld [vmem:[%s1 + $0xe0] sm:$0xff]
    %v2027 = vld [vmem:[%s1 + $0xe8] sm:$0xff]
    %v2028 = vld [vmem:[%s1 + $0xf0] sm:$0xff]
    %v2029 = vld [vmem:[%s1 + $0xf8] sm:$0xff]
    %v2062 = vunpack.c.l.b16 %v1998
    %v2063 = vunpack.c.h.b16 %v1998
    %v2064 = vunpack.c.l.b16 %v1999
    %v2065 = vunpack.c.h.b16 %v1999
    %v2066 = vunpack.c.l.b16 %v2000
    %v2067 = vunpack.c.h.b16 %v2000
    %v2068 = vunpack.c.l.b16 %v2001
    %v2069 = vunpack.c.h.b16 %v2001
    %v2070 = vunpack.c.l.b16 %v2002
    %v2071 = vunpack.c.h.b16 %v2002
    %v2072 = vunpack.c.l.b16 %v2003
    %v2073 = vunpack.c.h.b16 %v2003
    %v2074 = vunpack.c.l.b16 %v2004
    %v2075 = vunpack.c.h.b16 %v2004
    %v2076 = vunpack.c.l.b16 %v2005
    %v2077 = vunpack.c.h.b16 %v2005
    %v2078 = vunpack.c.l.b16 %v2006
    %v2079 = vunpack.c.h.b16 %v2006
    %v2080 = vunpack.c.l.b16 %v2007
    %v2081 = vunpack.c.h.b16 %v2007
    %v2082 = vunpack.c.l.b16 %v2008
    %v2083 = vunpack.c.h.b16 %v2008
    %v2084 = vunpack.c.l.b16 %v2009
    %v2085 = vunpack.c.h.b16 %v2009
    %v2086 = vunpack.c.l.b16 %v2010
    %v2087 = vunpack.c.h.b16 %v2010
    %v2088 = vunpack.c.l.b16 %v2011
    %v2089 = vunpack.c.h.b16 %v2011
    %v2090 = vunpack.c.l.b16 %v2012
    %v2091 = vunpack.c.h.b16 %v2012
    %v2092 = vunpack.c.l.b16 %v2013
    %v2093 = vunpack.c.h.b16 %v2013
    %v2094 = vunpack.c.l.b16 %v2014
    %v2095 = vunpack.c.h.b16 %v2014
    %v2096 = vunpack.c.l.b16 %v2015
    %v2097 = vunpack.c.h.b16 %v2015
    %v2098 = vunpack.c.l.b16 %v2016
    %v2099 = vunpack.c.h.b16 %v2016
    %v2100 = vunpack.c.l.b16 %v2017
    %v2101 = vunpack.c.h.b16 %v2017
    %v2102 = vunpack.c.l.b16 %v2018
    %v2103 = vunpack.c.h.b16 %v2018
    %v2104 = vunpack.c.l.b16 %v2019
    %v2105 = vunpack.c.h.b16 %v2019
    %v2106 = vunpack.c.l.b16 %v2020
    %v2107 = vunpack.c.h.b16 %v2020
    %v2108 = vunpack.c.l.b16 %v2021
    %v2109 = vunpack.c.h.b16 %v2021
    %v2110 = vunpack.c.l.b16 %v2022
    %v2111 = vunpack.c.h.b16 %v2022
    %v2112 = vunpack.c.l.b16 %v2023
    %v2113 = vunpack.c.h.b16 %v2023
    %v2114 = vunpack.c.l.b16 %v2024
    %v2115 = vunpack.c.h.b16 %v2024
    %v2116 = vunpack.c.l.b16 %v2025
    %v2117 = vunpack.c.h.b16 %v2025
    %v2118 = vunpack.c.l.b16 %v2026
    %v2119 = vunpack.c.h.b16 %v2026
    %v2120 = vunpack.c.l.b16 %v2027
    %v2121 = vunpack.c.h.b16 %v2027
    %v2122 = vunpack.c.l.b16 %v2028
    %v2123 = vunpack.c.h.b16 %v2028
    %v2124 = vunpack.c.l.b16 %v2029
    %v2125 = vunpack.c.h.b16 %v2029
    %v2126 = vpack.c.b16 %v2066, %v2062
    %v2127 = vpack.c.b16 %v2067, %v2063
    %v2128 = vpack.c.b16 %v2068, %v2064
    %v2129 = vpack.c.b16 %v2069, %v2065
    %v2130 = vpack.c.b16 %v2074, %v2070
    %v2131 = vpack.c.b16 %v2075, %v2071
    %v2132 = vpack.c.b16 %v2076, %v2072
    %v2133 = vpack.c.b16 %v2077, %v2073
    %v2134 = vpack.c.b16 %v2082, %v2078
    %v2135 = vpack.c.b16 %v2083, %v2079
    %v2136 = vpack.c.b16 %v2084, %v2080
    %v2137 = vpack.c.b16 %v2085, %v2081
    %v2138 = vpack.c.b16 %v2090, %v2086
    %v2139 = vpack.c.b16 %v2091, %v2087
    %v2140 = vpack.c.b16 %v2092, %v2088
    %v2141 = vpack.c.b16 %v2093, %v2089
    %v2142 = vpack.c.b16 %v2098, %v2094
    %v2143 = vpack.c.b16 %v2099, %v2095
    %v2144 = vpack.c.b16 %v2100, %v2096
    %v2145 = vpack.c.b16 %v2101, %v2097
    %v2146 = vpack.c.b16 %v2106, %v2102
    %v2147 = vpack.c.b16 %v2107, %v2103
    %v2148 = vpack.c.b16 %v2108, %v2104
    %v2149 = vpack.c.b16 %v2109, %v2105
    %v2150 = vpack.c.b16 %v2114, %v2110
    %v2151 = vpack.c.b16 %v2115, %v2111
    %v2152 = vpack.c.b16 %v2116, %v2112
    %v2153 = vpack.c.b16 %v2117, %v2113
    %v2154 = vpack.c.b16 %v2122, %v2118
    %v2155 = vpack.c.b16 %v2123, %v2119
    %v2156 = vpack.c.b16 %v2124, %v2120
    %v2157 = vpack.c.b16 %v2125, %v2121
    %2190 = vmatpush.bf16.msra.mxu0 %v2154
    %2191 = vmatpush.bf16.msra.mxu0 %v2150
    %2192 = vmatpush.bf16.msra.mxu0 %v2146
    %2193 = vmatpush.bf16.msra.mxu0 %v2142
    %2194 = vmatpush.bf16.msra.mxu0 %v2138
    %2195 = vmatpush.bf16.msra.mxu0 %v2134
    %2196 = vmatpush.bf16.msra.mxu0 %v2130
    %2197 = vmatpush.bf16.msra.mxu0 %v2126
    %2198 = vmatmul.bf16.gmra.mxu0 %v1997
    %v2199 = vpop.f32.mrf.mxu0
    %v2200 = vadd.f32 0.0, %v2199
    %v2201 = vpop.f32.mrf.mxu0
    %2202 = vdwg.mxu0
    %2203 = vmatpush.bf16.msra.mxu0 %v2155
    %2204 = vmatpush.bf16.msra.mxu0 %v2151
    %2205 = vmatpush.bf16.msra.mxu0 %v2147
    %2206 = vmatpush.bf16.msra.mxu0 %v2143
    %2207 = vmatpush.bf16.msra.mxu0 %v2139
    %2208 = vmatpush.bf16.msra.mxu0 %v2135
    %2209 = vmatpush.bf16.msra.mxu0 %v2131
    %2210 = vmatpush.bf16.msra.mxu0 %v2127
    %2211 = vmatmul.bf16.gmra.mxu0 %v1997
    %v2212 = vpop.f32.mrf.mxu0
    %v2213 = vadd.f32 0.0, %v2212
    %v2214 = vpop.f32.mrf.mxu0
    %2215 = vdwg.mxu0
    %2216 = vmatpush.bf16.msra.mxu0 %v2156
    %2217 = vmatpush.bf16.msra.mxu0 %v2152
    %2218 = vmatpush.bf16.msra.mxu0 %v2148
    %2219 = vmatpush.bf16.msra.mxu0 %v2144
    %2220 = vmatpush.bf16.msra.mxu0 %v2140
    %2221 = vmatpush.bf16.msra.mxu0 %v2136
    %2222 = vmatpush.bf16.msra.mxu0 %v2132
    %2223 = vmatpush.bf16.msra.mxu0 %v2128
    %2224 = vmatmul.bf16.gmra.mxu0 %v1997
    %v2225 = vpop.f32.mrf.mxu0
    %v2226 = vadd.f32 0.0, %v2225
    %v2227 = vpop.f32.mrf.mxu0
    %2228 = vdwg.mxu0
    %2229 = vmatpush.bf16.msra.mxu0 %v2157
    %2230 = vmatpush.bf16.msra.mxu0 %v2153
    %2231 = vmatpush.bf16.msra.mxu0 %v2149
    %2232 = vmatpush.bf16.msra.mxu0 %v2145
    %2233 = vmatpush.bf16.msra.mxu0 %v2141
    %2234 = vmatpush.bf16.msra.mxu0 %v2137
    %2235 = vmatpush.bf16.msra.mxu0 %v2133
    %2236 = vmatpush.bf16.msra.mxu0 %v2129
    %2237 = vmatmul.bf16.gmra.mxu0 %v1997
    %v2238 = vpop.f32.mrf.mxu0
    %v2239 = vadd.f32 0.0, %v2238
    %v2240 = vpop.f32.mrf.mxu0
    %2241 = vdwg.mxu0
    %v2242 = vadd.f32 %v1992, %v2200
    %v2243 = vadd.f32 %v1993, %v2213
    %v2244 = vadd.f32 %v1994, %v2226
    %v2245 = vadd.f32 %v1995, %v2239
    %v2246 = vld [vmem:[#allocation3] sm:$0xff]
    %v2247 = vxor.u32 %v2242, 2147483648
    %v2248 = vmul.f32 %v2247, 1.442695
    %v2249 = vpow.pop %v2248
    %v2250 = vadd.f32 %v2249, 1.0
    %v2251 = vrcp.pop %v2250
    %v2252 = vmul.f32 %v2250, %v2251
    %v2253 = vsub.f32 1.0, %v2252
    %v2254 = vmul.f32 %v2251, %v2253
    %v2255 = vadd.f32 %v2251, %v2254
    %vm2256 = vweird.f32 %v2250
    %vm2257 = vweird.f32 %v2251
    %vm2258 = vmor %vm2256, %vm2257
    %v2259 = vsel %vm2258, %v2251, %v2255
    %v2260 = vand.u32 2147483647, %v2250
    %vm2261 = vcmp.eq.f32.partialorder %v2260, 8.507059e+37
    %v2262 = vand.u32 %v2250, 2147483648
    %v2263 = vor.u32 1.1754944e-38, %v2262
    %v2264 = vsel %vm2261, %v2263, %v2259
    %v2265 = vmul.f32 1.0, %v2264
    %v2266 = vxor.u32 %v2243, 2147483648
    %v2267 = vmul.f32 %v2266, 1.442695
    %v2268 = vpow.pop %v2267
    %v2269 = vadd.f32 %v2268, 1.0
    %v2270 = vrcp.pop %v2269
    %v2271 = vmul.f32 %v2269, %v2270
    %v2272 = vsub.f32 1.0, %v2271
    %v2273 = vmul.f32 %v2270, %v2272
    %v2274 = vadd.f32 %v2270, %v2273
    %vm2275 = vweird.f32 %v2269
    %vm2276 = vweird.f32 %v2270
    %vm2277 = vmor %vm2275, %vm2276
    %v2278 = vsel %vm2277, %v2270, %v2274
    %v2279 = vand.u32 2147483647, %v2269
    %vm2280 = vcmp.eq.f32.partialorder %v2279, 8.507059e+37
    %v2281 = vand.u32 %v2269, 2147483648
    %v2282 = vor.u32 1.1754944e-38, %v2281
    %v2283 = vsel %vm2280, %v2282, %v2278
    %v2284 = vmul.f32 1.0, %v2283
    %v2285 = vtanh.pop %v2244
    %v2286 = vxor.u32 %v2245, 2147483648
    %v2287 = vmul.f32 %v2286, 1.442695
    %v2288 = vpow.pop %v2287
    %v2289 = vadd.f32 %v2288, 1.0
    %v2290 = vrcp.pop %v2289
    %v2291 = vmul.f32 %v2289, %v2290
    %v2292 = vsub.f32 1.0, %v2291
    %v2293 = vmul.f32 %v2290, %v2292
    %v2294 = vadd.f32 %v2290, %v2293
    %vm2295 = vweird.f32 %v2289
    %vm2296 = vweird.f32 %v2290
    %vm2297 = vmor %vm2295, %vm2296
    %v2298 = vsel %vm2297, %v2290, %v2294
    %v2299 = vand.u32 2147483647, %v2289
    %vm2300 = vcmp.eq.f32.partialorder %v2299, 8.507059e+37
    %v2301 = vand.u32 %v2289, 2147483648
    %v2302 = vor.u32 1.1754944e-38, %v2301
    %v2303 = vsel %vm2300, %v2302, %v2298
    %v2304 = vmul.f32 1.0, %v2303
    %v2305 = vmul.f32 %v2284, %v2246
    %v2306 = vmul.f32 %v2265, %v2285
    %v2307 = vadd.f32 %v2305, %v2306
    %v2308 = vtanh.pop %v2307
    %v2309 = vmul.f32 %v2304, %v2308
    %2310 = vst [vmem:[#allocation2] sm:$0xff] %v2309
    %2311 = vst [vmem:[#allocation3] sm:$0xff] %v2307
    %v2312 = vld [vmem:[%s367] sm:$0xff]
    %v2313 = vpack.c.bf16 %v2309, %v2309
    %v2314 = vpack.c.bf16 %v2312, %v2312
    %v2315 = vld [vmem:[#allocation4] sm:$0xff]
    %v2316 = vld [vmem:[#allocation4 + $0x8] sm:$0xff]
    %v2317 = vld [vmem:[#allocation4 + $0x10] sm:$0xff]
    %v2318 = vld [vmem:[#allocation4 + $0x18] sm:$0xff]
    %v2319 = vld [vmem:[#allocation4 + $0x20] sm:$0xff]
    %v2320 = vld [vmem:[#allocation4 + $0x28] sm:$0xff]
    %v2321 = vld [vmem:[#allocation4 + $0x30] sm:$0xff]
    %v2322 = vld [vmem:[#allocation4 + $0x38] sm:$0xff]
    %v2323 = vld [vmem:[#allocation4 + $0x40] sm:$0xff]
    %v2324 = vld [vmem:[#allocation4 + $0x48] sm:$0xff]
    %v2325 = vld [vmem:[#allocation4 + $0x50] sm:$0xff]
    %v2326 = vld [vmem:[#allocation4 + $0x58] sm:$0xff]
    %v2327 = vld [vmem:[#allocation4 + $0x60] sm:$0xff]
    %v2328 = vld [vmem:[#allocation4 + $0x68] sm:$0xff]
    %v2329 = vld [vmem:[#allocation4 + $0x70] sm:$0xff]
    %v2330 = vld [vmem:[#allocation4 + $0x78] sm:$0xff]
    %v2331 = vld [vmem:[#allocation4 + $0x80] sm:$0xff]
    %v2332 = vld [vmem:[#allocation4 + $0x88] sm:$0xff]
    %v2333 = vld [vmem:[#allocation4 + $0x90] sm:$0xff]
    %v2334 = vld [vmem:[#allocation4 + $0x98] sm:$0xff]
    %v2335 = vld [vmem:[#allocation4 + $0xa0] sm:$0xff]
    %v2336 = vld [vmem:[#allocation4 + $0xa8] sm:$0xff]
    %v2337 = vld [vmem:[#allocation4 + $0xb0] sm:$0xff]
    %v2338 = vld [vmem:[#allocation4 + $0xb8] sm:$0xff]
    %v2339 = vld [vmem:[#allocation4 + $0xc0] sm:$0xff]
    %v2340 = vld [vmem:[#allocation4 + $0xc8] sm:$0xff]
    %v2341 = vld [vmem:[#allocation4 + $0xd0] sm:$0xff]
    %v2342 = vld [vmem:[#allocation4 + $0xd8] sm:$0xff]
    %v2343 = vld [vmem:[#allocation4 + $0xe0] sm:$0xff]
    %v2344 = vld [vmem:[#allocation4 + $0xe8] sm:$0xff]
    %v2345 = vld [vmem:[#allocation4 + $0xf0] sm:$0xff]
    %v2346 = vld [vmem:[#allocation4 + $0xf8] sm:$0xff]
    %v2347 = vld [vmem:[#allocation4 + $0x100] sm:$0xff]
    %v2348 = vld [vmem:[#allocation4 + $0x108] sm:$0xff]
    %v2349 = vld [vmem:[#allocation4 + $0x110] sm:$0xff]
    %v2350 = vld [vmem:[#allocation4 + $0x118] sm:$0xff]
    %v2351 = vld [vmem:[#allocation4 + $0x120] sm:$0xff]
    %v2352 = vld [vmem:[#allocation4 + $0x128] sm:$0xff]
    %v2353 = vld [vmem:[#allocation4 + $0x130] sm:$0xff]
    %v2354 = vld [vmem:[#allocation4 + $0x138] sm:$0xff]
    %v2355 = vld [vmem:[#allocation4 + $0x140] sm:$0xff]
    %v2356 = vld [vmem:[#allocation4 + $0x148] sm:$0xff]
    %v2357 = vld [vmem:[#allocation4 + $0x150] sm:$0xff]
    %v2358 = vld [vmem:[#allocation4 + $0x158] sm:$0xff]
    %v2359 = vld [vmem:[#allocation4 + $0x160] sm:$0xff]
    %v2360 = vld [vmem:[#allocation4 + $0x168] sm:$0xff]
    %v2361 = vld [vmem:[#allocation4 + $0x170] sm:$0xff]
    %v2362 = vld [vmem:[#allocation4 + $0x178] sm:$0xff]
    %v2363 = vld [vmem:[#allocation4 + $0x180] sm:$0xff]
    %v2364 = vld [vmem:[#allocation4 + $0x188] sm:$0xff]
    %v2365 = vld [vmem:[#allocation4 + $0x190] sm:$0xff]
    %v2366 = vld [vmem:[#allocation4 + $0x198] sm:$0xff]
    %v2367 = vld [vmem:[#allocation4 + $0x1a0] sm:$0xff]
    %v2368 = vld [vmem:[#allocation4 + $0x1a8] sm:$0xff]
    %v2369 = vld [vmem:[#allocation4 + $0x1b0] sm:$0xff]
    %v2370 = vld [vmem:[#allocation4 + $0x1b8] sm:$0xff]
    %v2371 = vld [vmem:[#allocation4 + $0x1c0] sm:$0xff]
    %v2372 = vld [vmem:[#allocation4 + $0x1c8] sm:$0xff]
    %v2373 = vld [vmem:[#allocation4 + $0x1d0] sm:$0xff]
    %v2374 = vld [vmem:[#allocation4 + $0x1d8] sm:$0xff]
    %v2375 = vld [vmem:[#allocation4 + $0x1e0] sm:$0xff]
    %v2376 = vld [vmem:[#allocation4 + $0x1e8] sm:$0xff]
    %v2377 = vld [vmem:[#allocation4 + $0x1f0] sm:$0xff]
    %v2378 = vld [vmem:[#allocation4 + $0x1f8] sm:$0xff]
    %v2379 = vld [vmem:[%s3] sm:$0xf]
    %v2381 = vperm.slane %v2379, 0
    %v2382 = vperm.slane %v2379, 1
    %v2383 = vperm.slane %v2379, 2
    %v2384 = vperm.slane %v2379, 3
    %v2453 = vunpack.c.l.b16 %v2315
    %v2454 = vunpack.c.h.b16 %v2315
    %v2455 = vunpack.c.l.b16 %v2316
    %v2456 = vunpack.c.h.b16 %v2316
    %v2457 = vunpack.c.l.b16 %v2317
    %v2458 = vunpack.c.h.b16 %v2317
    %v2459 = vunpack.c.l.b16 %v2318
    %v2460 = vunpack.c.h.b16 %v2318
    %v2461 = vunpack.c.l.b16 %v2319
    %v2462 = vunpack.c.h.b16 %v2319
    %v2463 = vunpack.c.l.b16 %v2320
    %v2464 = vunpack.c.h.b16 %v2320
    %v2465 = vunpack.c.l.b16 %v2321
    %v2466 = vunpack.c.h.b16 %v2321
    %v2467 = vunpack.c.l.b16 %v2322
    %v2468 = vunpack.c.h.b16 %v2322
    %v2469 = vunpack.c.l.b16 %v2323
    %v2470 = vunpack.c.h.b16 %v2323
    %v2471 = vunpack.c.l.b16 %v2324
    %v2472 = vunpack.c.h.b16 %v2324
    %v2473 = vunpack.c.l.b16 %v2325
    %v2474 = vunpack.c.h.b16 %v2325
    %v2475 = vunpack.c.l.b16 %v2326
    %v2476 = vunpack.c.h.b16 %v2326
    %v2477 = vunpack.c.l.b16 %v2327
    %v2478 = vunpack.c.h.b16 %v2327
    %v2479 = vunpack.c.l.b16 %v2328
    %v2480 = vunpack.c.h.b16 %v2328
    %v2481 = vunpack.c.l.b16 %v2329
    %v2482 = vunpack.c.h.b16 %v2329
    %v2483 = vunpack.c.l.b16 %v2330
    %v2484 = vunpack.c.h.b16 %v2330
    %v2485 = vunpack.c.l.b16 %v2331
    %v2486 = vunpack.c.h.b16 %v2331
    %v2487 = vunpack.c.l.b16 %v2332
    %v2488 = vunpack.c.h.b16 %v2332
    %v2489 = vunpack.c.l.b16 %v2333
    %v2490 = vunpack.c.h.b16 %v2333
    %v2491 = vunpack.c.l.b16 %v2334
    %v2492 = vunpack.c.h.b16 %v2334
    %v2493 = vunpack.c.l.b16 %v2335
    %v2494 = vunpack.c.h.b16 %v2335
    %v2495 = vunpack.c.l.b16 %v2336
    %v2496 = vunpack.c.h.b16 %v2336
    %v2497 = vunpack.c.l.b16 %v2337
    %v2498 = vunpack.c.h.b16 %v2337
    %v2499 = vunpack.c.l.b16 %v2338
    %v2500 = vunpack.c.h.b16 %v2338
    %v2501 = vunpack.c.l.b16 %v2339
    %v2502 = vunpack.c.h.b16 %v2339
    %v2503 = vunpack.c.l.b16 %v2340
    %v2504 = vunpack.c.h.b16 %v2340
    %v2505 = vunpack.c.l.b16 %v2341
    %v2506 = vunpack.c.h.b16 %v2341
    %v2507 = vunpack.c.l.b16 %v2342
    %v2508 = vunpack.c.h.b16 %v2342
    %v2509 = vunpack.c.l.b16 %v2343
    %v2510 = vunpack.c.h.b16 %v2343
    %v2511 = vunpack.c.l.b16 %v2344
    %v2512 = vunpack.c.h.b16 %v2344
    %v2513 = vunpack.c.l.b16 %v2345
    %v2514 = vunpack.c.h.b16 %v2345
    %v2515 = vunpack.c.l.b16 %v2346
    %v2516 = vunpack.c.h.b16 %v2346
    %v2517 = vunpack.c.l.b16 %v2347
    %v2518 = vunpack.c.h.b16 %v2347
    %v2519 = vunpack.c.l.b16 %v2348
    %v2520 = vunpack.c.h.b16 %v2348
    %v2521 = vunpack.c.l.b16 %v2349
    %v2522 = vunpack.c.h.b16 %v2349
    %v2523 = vunpack.c.l.b16 %v2350
    %v2524 = vunpack.c.h.b16 %v2350
    %v2525 = vunpack.c.l.b16 %v2351
    %v2526 = vunpack.c.h.b16 %v2351
    %v2527 = vunpack.c.l.b16 %v2352
    %v2528 = vunpack.c.h.b16 %v2352
    %v2529 = vunpack.c.l.b16 %v2353
    %v2530 = vunpack.c.h.b16 %v2353
    %v2531 = vunpack.c.l.b16 %v2354
    %v2532 = vunpack.c.h.b16 %v2354
    %v2533 = vunpack.c.l.b16 %v2355
    %v2534 = vunpack.c.h.b16 %v2355
    %v2535 = vunpack.c.l.b16 %v2356
    %v2536 = vunpack.c.h.b16 %v2356
    %v2537 = vunpack.c.l.b16 %v2357
    %v2538 = vunpack.c.h.b16 %v2357
    %v2539 = vunpack.c.l.b16 %v2358
    %v2540 = vunpack.c.h.b16 %v2358
    %v2541 = vunpack.c.l.b16 %v2359
    %v2542 = vunpack.c.h.b16 %v2359
    %v2543 = vunpack.c.l.b16 %v2360
    %v2544 = vunpack.c.h.b16 %v2360
    %v2545 = vunpack.c.l.b16 %v2361
    %v2546 = vunpack.c.h.b16 %v2361
    %v2547 = vunpack.c.l.b16 %v2362
    %v2548 = vunpack.c.h.b16 %v2362
    %v2549 = vunpack.c.l.b16 %v2363
    %v2550 = vunpack.c.h.b16 %v2363
    %v2551 = vunpack.c.l.b16 %v2364
    %v2552 = vunpack.c.h.b16 %v2364
    %v2553 = vunpack.c.l.b16 %v2365
    %v2554 = vunpack.c.h.b16 %v2365
    %v2555 = vunpack.c.l.b16 %v2366
    %v2556 = vunpack.c.h.b16 %v2366
    %v2557 = vunpack.c.l.b16 %v2367
    %v2558 = vunpack.c.h.b16 %v2367
    %v2559 = vunpack.c.l.b16 %v2368
    %v2560 = vunpack.c.h.b16 %v2368
    %v2561 = vunpack.c.l.b16 %v2369
    %v2562 = vunpack.c.h.b16 %v2369
    %v2563 = vunpack.c.l.b16 %v2370
    %v2564 = vunpack.c.h.b16 %v2370
    %v2565 = vunpack.c.l.b16 %v2371
    %v2566 = vunpack.c.h.b16 %v2371
    %v2567 = vunpack.c.l.b16 %v2372
    %v2568 = vunpack.c.h.b16 %v2372
    %v2569 = vunpack.c.l.b16 %v2373
    %v2570 = vunpack.c.h.b16 %v2373
    %v2571 = vunpack.c.l.b16 %v2374
    %v2572 = vunpack.c.h.b16 %v2374
    %v2573 = vunpack.c.l.b16 %v2375
    %v2574 = vunpack.c.h.b16 %v2375
    %v2575 = vunpack.c.l.b16 %v2376
    %v2576 = vunpack.c.h.b16 %v2376
    %v2577 = vunpack.c.l.b16 %v2377
    %v2578 = vunpack.c.h.b16 %v2377
    %v2579 = vunpack.c.l.b16 %v2378
    %v2580 = vunpack.c.h.b16 %v2378
    %v2581 = vpack.c.b16 %v2457, %v2453
    %v2582 = vpack.c.b16 %v2458, %v2454
    %v2583 = vpack.c.b16 %v2459, %v2455
    %v2584 = vpack.c.b16 %v2460, %v2456
    %v2585 = vpack.c.b16 %v2465, %v2461
    %v2586 = vpack.c.b16 %v2466, %v2462
    %v2587 = vpack.c.b16 %v2467, %v2463
    %v2588 = vpack.c.b16 %v2468, %v2464
    %v2589 = vpack.c.b16 %v2473, %v2469
    %v2590 = vpack.c.b16 %v2474, %v2470
    %v2591 = vpack.c.b16 %v2475, %v2471
    %v2592 = vpack.c.b16 %v2476, %v2472
    %v2593 = vpack.c.b16 %v2481, %v2477
    %v2594 = vpack.c.b16 %v2482, %v2478
    %v2595 = vpack.c.b16 %v2483, %v2479
    %v2596 = vpack.c.b16 %v2484, %v2480
    %v2597 = vpack.c.b16 %v2489, %v2485
    %v2598 = vpack.c.b16 %v2490, %v2486
    %v2599 = vpack.c.b16 %v2491, %v2487
    %v2600 = vpack.c.b16 %v2492, %v2488
    %v2601 = vpack.c.b16 %v2497, %v2493
    %v2602 = vpack.c.b16 %v2498, %v2494
    %v2603 = vpack.c.b16 %v2499, %v2495
    %v2604 = vpack.c.b16 %v2500, %v2496
    %v2605 = vpack.c.b16 %v2505, %v2501
    %v2606 = vpack.c.b16 %v2506, %v2502
    %v2607 = vpack.c.b16 %v2507, %v2503
    %v2608 = vpack.c.b16 %v2508, %v2504
    %v2609 = vpack.c.b16 %v2513, %v2509
    %v2610 = vpack.c.b16 %v2514, %v2510
    %v2611 = vpack.c.b16 %v2515, %v2511
    %v2612 = vpack.c.b16 %v2516, %v2512
    %v2613 = vpack.c.b16 %v2521, %v2517
    %v2614 = vpack.c.b16 %v2522, %v2518
    %v2615 = vpack.c.b16 %v2523, %v2519
    %v2616 = vpack.c.b16 %v2524, %v2520
    %v2617 = vpack.c.b16 %v2529, %v2525
    %v2618 = vpack.c.b16 %v2530, %v2526
    %v2619 = vpack.c.b16 %v2531, %v2527
    %v2620 = vpack.c.b16 %v2532, %v2528
    %v2621 = vpack.c.b16 %v2537, %v2533
    %v2622 = vpack.c.b16 %v2538, %v2534
    %v2623 = vpack.c.b16 %v2539, %v2535
    %v2624 = vpack.c.b16 %v2540, %v2536
    %v2625 = vpack.c.b16 %v2545, %v2541
    %v2626 = vpack.c.b16 %v2546, %v2542
    %v2627 = vpack.c.b16 %v2547, %v2543
    %v2628 = vpack.c.b16 %v2548, %v2544
    %v2629 = vpack.c.b16 %v2553, %v2549
    %v2630 = vpack.c.b16 %v2554, %v2550
    %v2631 = vpack.c.b16 %v2555, %v2551
    %v2632 = vpack.c.b16 %v2556, %v2552
    %v2633 = vpack.c.b16 %v2561, %v2557
    %v2634 = vpack.c.b16 %v2562, %v2558
    %v2635 = vpack.c.b16 %v2563, %v2559
    %v2636 = vpack.c.b16 %v2564, %v2560
    %v2637 = vpack.c.b16 %v2569, %v2565
    %v2638 = vpack.c.b16 %v2570, %v2566
    %v2639 = vpack.c.b16 %v2571, %v2567
    %v2640 = vpack.c.b16 %v2572, %v2568
    %v2641 = vpack.c.b16 %v2577, %v2573
    %v2642 = vpack.c.b16 %v2578, %v2574
    %v2643 = vpack.c.b16 %v2579, %v2575
    %v2644 = vpack.c.b16 %v2580, %v2576
    %2709 = vmatpush.bf16.msra.mxu0 %v2609
    %2710 = vmatpush.bf16.msra.mxu0 %v2605
    %2711 = vmatpush.bf16.msra.mxu0 %v2601
    %2712 = vmatpush.bf16.msra.mxu0 %v2597
    %2713 = vmatpush.bf16.msra.mxu0 %v2593
    %2714 = vmatpush.bf16.msra.mxu0 %v2589
    %2715 = vmatpush.bf16.msra.mxu0 %v2585
    %2716 = vmatpush.bf16.msra.mxu0 %v2581
    %2717 = vmatmul.bf16.gmra.mxu0 %v2313
    %v2718 = vpop.f32.mrf.mxu0
    %v2719 = vadd.f32 %v2381, %v2718
    %v2720 = vpop.f32.mrf.mxu0
    %2721 = vdwg.mxu0
    %2722 = vmatpush.bf16.msra.mxu0 %v2641
    %2723 = vmatpush.bf16.msra.mxu0 %v2637
    %2724 = vmatpush.bf16.msra.mxu0 %v2633
    %2725 = vmatpush.bf16.msra.mxu0 %v2629
    %2726 = vmatpush.bf16.msra.mxu0 %v2625
    %2727 = vmatpush.bf16.msra.mxu0 %v2621
    %2728 = vmatpush.bf16.msra.mxu0 %v2617
    %2729 = vmatpush.bf16.msra.mxu0 %v2613
    %2730 = vmatmul.bf16.gmra.mxu0 %v2314
    %v2731 = vpop.f32.mrf.mxu0
    %v2732 = vadd.f32 %v2719, %v2731
    %v2733 = vpop.f32.mrf.mxu0
    %2734 = vdwg.mxu0
    %2735 = vmatpush.bf16.msra.mxu0 %v2610
    %2736 = vmatpush.bf16.msra.mxu0 %v2606
    %2737 = vmatpush.bf16.msra.mxu0 %v2602
    %2738 = vmatpush.bf16.msra.mxu0 %v2598
    %2739 = vmatpush.bf16.msra.mxu0 %v2594
    %2740 = vmatpush.bf16.msra.mxu0 %v2590
    %2741 = vmatpush.bf16.msra.mxu0 %v2586
    %2742 = vmatpush.bf16.msra.mxu0 %v2582
    %2743 = vmatmul.bf16.gmra.mxu0 %v2313
    %v2744 = vpop.f32.mrf.mxu0
    %v2745 = vadd.f32 %v2382, %v2744
    %v2746 = vpop.f32.mrf.mxu0
    %2747 = vdwg.mxu0
    %2748 = vmatpush.bf16.msra.mxu0 %v2642
    %2749 = vmatpush.bf16.msra.mxu0 %v2638
    %2750 = vmatpush.bf16.msra.mxu0 %v2634
    %2751 = vmatpush.bf16.msra.mxu0 %v2630
    %2752 = vmatpush.bf16.msra.mxu0 %v2626
    %2753 = vmatpush.bf16.msra.mxu0 %v2622
    %2754 = vmatpush.bf16.msra.mxu0 %v2618
    %2755 = vmatpush.bf16.msra.mxu0 %v2614
    %2756 = vmatmul.bf16.gmra.mxu0 %v2314
    %v2757 = vpop.f32.mrf.mxu0
    %v2758 = vadd.f32 %v2745, %v2757
    %v2759 = vpop.f32.mrf.mxu0
    %2760 = vdwg.mxu0
    %2761 = vmatpush.bf16.msra.mxu0 %v2611
    %2762 = vmatpush.bf16.msra.mxu0 %v2607
    %2763 = vmatpush.bf16.msra.mxu0 %v2603
    %2764 = vmatpush.bf16.msra.mxu0 %v2599
    %2765 = vmatpush.bf16.msra.mxu0 %v2595
    %2766 = vmatpush.bf16.msra.mxu0 %v2591
    %2767 = vmatpush.bf16.msra.mxu0 %v2587
    %2768 = vmatpush.bf16.msra.mxu0 %v2583
    %2769 = vmatmul.bf16.gmra.mxu0 %v2313
    %v2770 = vpop.f32.mrf.mxu0
    %v2771 = vadd.f32 %v2383, %v2770
    %v2772 = vpop.f32.mrf.mxu0
    %2773 = vdwg.mxu0
    %2774 = vmatpush.bf16.msra.mxu0 %v2643
    %2775 = vmatpush.bf16.msra.mxu0 %v2639
    %2776 = vmatpush.bf16.msra.mxu0 %v2635
    %2777 = vmatpush.bf16.msra.mxu0 %v2631
    %2778 = vmatpush.bf16.msra.mxu0 %v2627
    %2779 = vmatpush.bf16.msra.mxu0 %v2623
    %2780 = vmatpush.bf16.msra.mxu0 %v2619
    %2781 = vmatpush.bf16.msra.mxu0 %v2615
    %2782 = vmatmul.bf16.gmra.mxu0 %v2314
    %v2783 = vpop.f32.mrf.mxu0
    %v2784 = vadd.f32 %v2771, %v2783
    %v2785 = vpop.f32.mrf.mxu0
    %2786 = vdwg.mxu0
    %2787 = vmatpush.bf16.msra.mxu0 %v2612
    %2788 = vmatpush.bf16.msra.mxu0 %v2608
    %2789 = vmatpush.bf16.msra.mxu0 %v2604
    %2790 = vmatpush.bf16.msra.mxu0 %v2600
    %2791 = vmatpush.bf16.msra.mxu0 %v2596
    %2792 = vmatpush.bf16.msra.mxu0 %v2592
    %2793 = vmatpush.bf16.msra.mxu0 %v2588
    %2794 = vmatpush.bf16.msra.mxu0 %v2584
    %2795 = vmatmul.bf16.gmra.mxu0 %v2313
    %v2796 = vpop.f32.mrf.mxu0
    %v2797 = vadd.f32 %v2384, %v2796
    %v2798 = vpop.f32.mrf.mxu0
    %2799 = vdwg.mxu0
    %2800 = vmatpush.bf16.msra.mxu0 %v2644
    %2801 = vmatpush.bf16.msra.mxu0 %v2640
    %2802 = vmatpush.bf16.msra.mxu0 %v2636
    %2803 = vmatpush.bf16.msra.mxu0 %v2632
    %2804 = vmatpush.bf16.msra.mxu0 %v2628
    %2805 = vmatpush.bf16.msra.mxu0 %v2624
    %2806 = vmatpush.bf16.msra.mxu0 %v2620
    %2807 = vmatpush.bf16.msra.mxu0 %v2616
    %2808 = vmatmul.bf16.gmra.mxu0 %v2314
    %v2809 = vpop.f32.mrf.mxu0
    %v2810 = vadd.f32 %v2797, %v2809
    %v2811 = vpop.f32.mrf.mxu0
    %2812 = vdwg.mxu0
    %v2813 = vld [vmem:[%s869] sm:$0xff]
    %v2814 = vxor.u32 %v2732, 2147483648
    %v2815 = vmul.f32 %v2814, 1.442695
    %v2816 = vpow.pop %v2815
    %v2817 = vadd.f32 %v2816, 1.0
    %v2818 = vrcp.pop %v2817
    %v2819 = vmul.f32 %v2817, %v2818
    %v2820 = vsub.f32 1.0, %v2819
    %v2821 = vmul.f32 %v2818, %v2820
    %v2822 = vadd.f32 %v2818, %v2821
    %vm2823 = vweird.f32 %v2817
    %vm2824 = vweird.f32 %v2818
    %vm2825 = vmor %vm2823, %vm2824
    %v2826 = vsel %vm2825, %v2818, %v2822
    %v2827 = vand.u32 2147483647, %v2817
    %vm2828 = vcmp.eq.f32.partialorder %v2827, 8.507059e+37
    %v2829 = vand.u32 %v2817, 2147483648
    %v2830 = vor.u32 1.1754944e-38, %v2829
    %v2831 = vsel %vm2828, %v2830, %v2826
    %v2832 = vmul.f32 1.0, %v2831
    %v2833 = vxor.u32 %v2758, 2147483648
    %v2834 = vmul.f32 %v2833, 1.442695
    %v2835 = vpow.pop %v2834
    %v2836 = vadd.f32 %v2835, 1.0
    %v2837 = vrcp.pop %v2836
    %v2838 = vmul.f32 %v2836, %v2837
    %v2839 = vsub.f32 1.0, %v2838
    %v2840 = vmul.f32 %v2837, %v2839
    %v2841 = vadd.f32 %v2837, %v2840
    %vm2842 = vweird.f32 %v2836
    %vm2843 = vweird.f32 %v2837
    %vm2844 = vmor %vm2842, %vm2843
    %v2845 = vsel %vm2844, %v2837, %v2841
    %v2846 = vand.u32 2147483647, %v2836
    %vm2847 = vcmp.eq.f32.partialorder %v2846, 8.507059e+37
    %v2848 = vand.u32 %v2836, 2147483648
    %v2849 = vor.u32 1.1754944e-38, %v2848
    %v2850 = vsel %vm2847, %v2849, %v2845
    %v2851 = vmul.f32 1.0, %v2850
    %v2852 = vtanh.pop %v2784
    %v2853 = vxor.u32 %v2810, 2147483648
    %v2854 = vmul.f32 %v2853, 1.442695
    %v2855 = vpow.pop %v2854
    %v2856 = vadd.f32 %v2855, 1.0
    %v2857 = vrcp.pop %v2856
    %v2858 = vmul.f32 %v2856, %v2857
    %v2859 = vsub.f32 1.0, %v2858
    %v2860 = vmul.f32 %v2857, %v2859
    %v2861 = vadd.f32 %v2857, %v2860
    %vm2862 = vweird.f32 %v2856
    %vm2863 = vweird.f32 %v2857
    %vm2864 = vmor %vm2862, %vm2863
    %v2865 = vsel %vm2864, %v2857, %v2861
    %v2866 = vand.u32 2147483647, %v2856
    %vm2867 = vcmp.eq.f32.partialorder %v2866, 8.507059e+37
    %v2868 = vand.u32 %v2856, 2147483648
    %v2869 = vor.u32 1.1754944e-38, %v2868
    %v2870 = vsel %vm2867, %v2869, %v2865
    %v2871 = vmul.f32 1.0, %v2870
    %v2872 = vmul.f32 %v2851, %v2813
    %v2873 = vmul.f32 %v2832, %v2852
    %v2874 = vadd.f32 %v2872, %v2873
    %v2875 = vtanh.pop %v2874
    %v2876 = vmul.f32 %v2871, %v2875
    %2877 = vst [vmem:[%s367] sm:$0xff] %v2876
    %2878 = vst [vmem:[%s869] sm:$0xff] %v2874
    %v2879 = vpack.c.bf16 %v2876, %v2876
    %v2880 = vld [vmem:[%s4] sm:$0xf]
    %v2881 = vld [vmem:[%s4 + $0x4] sm:$0xf]
    %v2882 = vld [vmem:[%s4 + $0x8] sm:$0xf]
    %v2883 = vld [vmem:[%s4 + $0xc] sm:$0xf]
    %v2884 = vld [vmem:[%s4 + $0x10] sm:$0xf]
    %v2885 = vld [vmem:[%s4 + $0x14] sm:$0xf]
    %v2886 = vld [vmem:[%s4 + $0x18] sm:$0xf]
    %v2887 = vld [vmem:[%s4 + $0x1c] sm:$0xf]
    %v2888 = vld [vmem:[%s4 + $0x20] sm:$0xf]
    %v2889 = vld [vmem:[%s4 + $0x24] sm:$0xf]
    %v2890 = vld [vmem:[%s4 + $0x28] sm:$0xf]
    %v2891 = vld [vmem:[%s4 + $0x2c] sm:$0xf]
    %v2892 = vld [vmem:[%s4 + $0x30] sm:$0xf]
    %v2893 = vld [vmem:[%s4 + $0x34] sm:$0xf]
    %v2894 = vld [vmem:[%s4 + $0x38] sm:$0xf]
    %v2895 = vld [vmem:[%s4 + $0x3c] sm:$0xf]
    %v2896 = vld [vmem:[%s5] sm:$0x1]
    %v2898 = vperm.slane %v2896, 0
    %v2916 = vunpack.c.l.b16 %v2880
    %v2917 = vunpack.c.l.b16 %v2881
    %v2918 = vunpack.c.l.b16 %v2882
    %v2919 = vunpack.c.l.b16 %v2883
    %v2920 = vunpack.c.l.b16 %v2884
    %v2921 = vunpack.c.l.b16 %v2885
    %v2922 = vunpack.c.l.b16 %v2886
    %v2923 = vunpack.c.l.b16 %v2887
    %v2924 = vunpack.c.l.b16 %v2888
    %v2925 = vunpack.c.l.b16 %v2889
    %v2926 = vunpack.c.l.b16 %v2890
    %v2927 = vunpack.c.l.b16 %v2891
    %v2928 = vunpack.c.l.b16 %v2892
    %v2929 = vunpack.c.l.b16 %v2893
    %v2930 = vunpack.c.l.b16 %v2894
    %v2931 = vunpack.c.l.b16 %v2895
    %v2932 = vpack.c.b16 %v2917, %v2916
    %v2933 = vpack.c.b16 %v2919, %v2918
    %v2934 = vpack.c.b16 %v2921, %v2920
    %v2935 = vpack.c.b16 %v2923, %v2922
    %v2936 = vpack.c.b16 %v2925, %v2924
    %v2937 = vpack.c.b16 %v2927, %v2926
    %v2938 = vpack.c.b16 %v2929, %v2928
    %v2939 = vpack.c.b16 %v2931, %v2930
    %2948 = vmatpush.bf16.msra.mxu0 %v2939
    %2949 = vmatpush.bf16.msra.mxu0 %v2938
    %2950 = vmatpush.bf16.msra.mxu0 %v2937
    %2951 = vmatpush.bf16.msra.mxu0 %v2936
    %2952 = vmatpush.bf16.msra.mxu0 %v2935
    %2953 = vmatpush.bf16.msra.mxu0 %v2934
    %2954 = vmatpush.bf16.msra.mxu0 %v2933
    %2955 = vmatpush.bf16.msra.mxu0 %v2932
    %2956 = vmatmul.bf16.gmra.mxu0 %v2879
    %v2957 = vpop.f32.mrf.mxu0
    %v2958 = vadd.f32 %v2898, %v2957
    %v2959 = vpop.f32.mrf.mxu0
    %2960 = vdwg.mxu0
    %s2961 = scalar_lea.vmem %s6, 16
    %2962 = vst [vmem:[%s2961] sm:$0xff] %v2958
    %s2963 = scalar_lea.vmem %s0, 96
    %v2964 = vld [vmem:[%s2963] sm:$0xff]
    %v2965 = vld [vmem:[%s2963 + $0x8] sm:$0xff]
    %v2966 = vld [vmem:[%s2963 + $0x10] sm:$0xff]
    %v2967 = vld [vmem:[%s2963 + $0x18] sm:$0xff]
    %v2968 = vld [vmem:[#allocation2] sm:$0xff]
    %v2969 = vpack.c.bf16 %v2968, %v2968
    %v2970 = vld [vmem:[%s1] sm:$0xff]
    %v2971 = vld [vmem:[%s1 + $0x8] sm:$0xff]
    %v2972 = vld [vmem:[%s1 + $0x10] sm:$0xff]
    %v2973 = vld [vmem:[%s1 + $0x18] sm:$0xff]
    %v2974 = vld [vmem:[%s1 + $0x20] sm:$0xff]
    %v2975 = vld [vmem:[%s1 + $0x28] sm:$0xff]
    %v2976 = vld [vmem:[%s1 + $0x30] sm:$0xff]
    %v2977 = vld [vmem:[%s1 + $0x38] sm:$0xff]
    %v2978 = vld [vmem:[%s1 + $0x40] sm:$0xff]
    %v2979 = vld [vmem:[%s1 + $0x48] sm:$0xff]
    %v2980 = vld [vmem:[%s1 + $0x50] sm:$0xff]
    %v2981 = vld [vmem:[%s1 + $0x58] sm:$0xff]
    %v2982 = vld [vmem:[%s1 + $0x60] sm:$0xff]
    %v2983 = vld [vmem:[%s1 + $0x68] sm:$0xff]
    %v2984 = vld [vmem:[%s1 + $0x70] sm:$0xff]
    %v2985 = vld [vmem:[%s1 + $0x78] sm:$0xff]
    %v2986 = vld [vmem:[%s1 + $0x80] sm:$0xff]
    %v2987 = vld [vmem:[%s1 + $0x88] sm:$0xff]
    %v2988 = vld [vmem:[%s1 + $0x90] sm:$0xff]
    %v2989 = vld [vmem:[%s1 + $0x98] sm:$0xff]
    %v2990 = vld [vmem:[%s1 + $0xa0] sm:$0xff]
    %v2991 = vld [vmem:[%s1 + $0xa8] sm:$0xff]
    %v2992 = vld [vmem:[%s1 + $0xb0] sm:$0xff]
    %v2993 = vld [vmem:[%s1 + $0xb8] sm:$0xff]
    %v2994 = vld [vmem:[%s1 + $0xc0] sm:$0xff]
    %v2995 = vld [vmem:[%s1 + $0xc8] sm:$0xff]
    %v2996 = vld [vmem:[%s1 + $0xd0] sm:$0xff]
    %v2997 = vld [vmem:[%s1 + $0xd8] sm:$0xff]
    %v2998 = vld [vmem:[%s1 + $0xe0] sm:$0xff]
    %v2999 = vld [vmem:[%s1 + $0xe8] sm:$0xff]
    %v3000 = vld [vmem:[%s1 + $0xf0] sm:$0xff]
    %v3001 = vld [vmem:[%s1 + $0xf8] sm:$0xff]
    %v3034 = vunpack.c.l.b16 %v2970
    %v3035 = vunpack.c.h.b16 %v2970
    %v3036 = vunpack.c.l.b16 %v2971
    %v3037 = vunpack.c.h.b16 %v2971
    %v3038 = vunpack.c.l.b16 %v2972
    %v3039 = vunpack.c.h.b16 %v2972
    %v3040 = vunpack.c.l.b16 %v2973
    %v3041 = vunpack.c.h.b16 %v2973
    %v3042 = vunpack.c.l.b16 %v2974
    %v3043 = vunpack.c.h.b16 %v2974
    %v3044 = vunpack.c.l.b16 %v2975
    %v3045 = vunpack.c.h.b16 %v2975
    %v3046 = vunpack.c.l.b16 %v2976
    %v3047 = vunpack.c.h.b16 %v2976
    %v3048 = vunpack.c.l.b16 %v2977
    %v3049 = vunpack.c.h.b16 %v2977
    %v3050 = vunpack.c.l.b16 %v2978
    %v3051 = vunpack.c.h.b16 %v2978
    %v3052 = vunpack.c.l.b16 %v2979
    %v3053 = vunpack.c.h.b16 %v2979
    %v3054 = vunpack.c.l.b16 %v2980
    %v3055 = vunpack.c.h.b16 %v2980
    %v3056 = vunpack.c.l.b16 %v2981
    %v3057 = vunpack.c.h.b16 %v2981
    %v3058 = vunpack.c.l.b16 %v2982
    %v3059 = vunpack.c.h.b16 %v2982
    %v3060 = vunpack.c.l.b16 %v2983
    %v3061 = vunpack.c.h.b16 %v2983
    %v3062 = vunpack.c.l.b16 %v2984
    %v3063 = vunpack.c.h.b16 %v2984
    %v3064 = vunpack.c.l.b16 %v2985
    %v3065 = vunpack.c.h.b16 %v2985
    %v3066 = vunpack.c.l.b16 %v2986
    %v3067 = vunpack.c.h.b16 %v2986
    %v3068 = vunpack.c.l.b16 %v2987
    %v3069 = vunpack.c.h.b16 %v2987
    %v3070 = vunpack.c.l.b16 %v2988
    %v3071 = vunpack.c.h.b16 %v2988
    %v3072 = vunpack.c.l.b16 %v2989
    %v3073 = vunpack.c.h.b16 %v2989
    %v3074 = vunpack.c.l.b16 %v2990
    %v3075 = vunpack.c.h.b16 %v2990
    %v3076 = vunpack.c.l.b16 %v2991
    %v3077 = vunpack.c.h.b16 %v2991
    %v3078 = vunpack.c.l.b16 %v2992
    %v3079 = vunpack.c.h.b16 %v2992
    %v3080 = vunpack.c.l.b16 %v2993
    %v3081 = vunpack.c.h.b16 %v2993
    %v3082 = vunpack.c.l.b16 %v2994
    %v3083 = vunpack.c.h.b16 %v2994
    %v3084 = vunpack.c.l.b16 %v2995
    %v3085 = vunpack.c.h.b16 %v2995
    %v3086 = vunpack.c.l.b16 %v2996
    %v3087 = vunpack.c.h.b16 %v2996
    %v3088 = vunpack.c.l.b16 %v2997
    %v3089 = vunpack.c.h.b16 %v2997
    %v3090 = vunpack.c.l.b16 %v2998
    %v3091 = vunpack.c.h.b16 %v2998
    %v3092 = vunpack.c.l.b16 %v2999
    %v3093 = vunpack.c.h.b16 %v2999
    %v3094 = vunpack.c.l.b16 %v3000
    %v3095 = vunpack.c.h.b16 %v3000
    %v3096 = vunpack.c.l.b16 %v3001
    %v3097 = vunpack.c.h.b16 %v3001
    %v3098 = vpack.c.b16 %v3038, %v3034
    %v3099 = vpack.c.b16 %v3039, %v3035
    %v3100 = vpack.c.b16 %v3040, %v3036
    %v3101 = vpack.c.b16 %v3041, %v3037
    %v3102 = vpack.c.b16 %v3046, %v3042
    %v3103 = vpack.c.b16 %v3047, %v3043
    %v3104 = vpack.c.b16 %v3048, %v3044
    %v3105 = vpack.c.b16 %v3049, %v3045
    %v3106 = vpack.c.b16 %v3054, %v3050
    %v3107 = vpack.c.b16 %v3055, %v3051
    %v3108 = vpack.c.b16 %v3056, %v3052
    %v3109 = vpack.c.b16 %v3057, %v3053
    %v3110 = vpack.c.b16 %v3062, %v3058
    %v3111 = vpack.c.b16 %v3063, %v3059
    %v3112 = vpack.c.b16 %v3064, %v3060
    %v3113 = vpack.c.b16 %v3065, %v3061
    %v3114 = vpack.c.b16 %v3070, %v3066
    %v3115 = vpack.c.b16 %v3071, %v3067
    %v3116 = vpack.c.b16 %v3072, %v3068
    %v3117 = vpack.c.b16 %v3073, %v3069
    %v3118 = vpack.c.b16 %v3078, %v3074
    %v3119 = vpack.c.b16 %v3079, %v3075
    %v3120 = vpack.c.b16 %v3080, %v3076
    %v3121 = vpack.c.b16 %v3081, %v3077
    %v3122 = vpack.c.b16 %v3086, %v3082
    %v3123 = vpack.c.b16 %v3087, %v3083
    %v3124 = vpack.c.b16 %v3088, %v3084
    %v3125 = vpack.c.b16 %v3089, %v3085
    %v3126 = vpack.c.b16 %v3094, %v3090
    %v3127 = vpack.c.b16 %v3095, %v3091
    %v3128 = vpack.c.b16 %v3096, %v3092
    %v3129 = vpack.c.b16 %v3097, %v3093
    %3162 = vmatpush.bf16.msra.mxu0 %v3126
    %3163 = vmatpush.bf16.msra.mxu0 %v3122
    %3164 = vmatpush.bf16.msra.mxu0 %v3118
    %3165 = vmatpush.bf16.msra.mxu0 %v3114
    %3166 = vmatpush.bf16.msra.mxu0 %v3110
    %3167 = vmatpush.bf16.msra.mxu0 %v3106
    %3168 = vmatpush.bf16.msra.mxu0 %v3102
    %3169 = vmatpush.bf16.msra.mxu0 %v3098
    %3170 = vmatmul.bf16.gmra.mxu0 %v2969
    %v3171 = vpop.f32.mrf.mxu0
    %v3172 = vadd.f32 0.0, %v3171
    %v3173 = vpop.f32.mrf.mxu0
    %3174 = vdwg.mxu0
    %3175 = vmatpush.bf16.msra.mxu0 %v3127
    %3176 = vmatpush.bf16.msra.mxu0 %v3123
    %3177 = vmatpush.bf16.msra.mxu0 %v3119
    %3178 = vmatpush.bf16.msra.mxu0 %v3115
    %3179 = vmatpush.bf16.msra.mxu0 %v3111
    %3180 = vmatpush.bf16.msra.mxu0 %v3107
    %3181 = vmatpush.bf16.msra.mxu0 %v3103
    %3182 = vmatpush.bf16.msra.mxu0 %v3099
    %3183 = vmatmul.bf16.gmra.mxu0 %v2969
    %v3184 = vpop.f32.mrf.mxu0
    %v3185 = vadd.f32 0.0, %v3184
    %v3186 = vpop.f32.mrf.mxu0
    %3187 = vdwg.mxu0
    %3188 = vmatpush.bf16.msra.mxu0 %v3128
    %3189 = vmatpush.bf16.msra.mxu0 %v3124
    %3190 = vmatpush.bf16.msra.mxu0 %v3120
    %3191 = vmatpush.bf16.msra.mxu0 %v3116
    %3192 = vmatpush.bf16.msra.mxu0 %v3112
    %3193 = vmatpush.bf16.msra.mxu0 %v3108
    %3194 = vmatpush.bf16.msra.mxu0 %v3104
    %3195 = vmatpush.bf16.msra.mxu0 %v3100
    %3196 = vmatmul.bf16.gmra.mxu0 %v2969
    %v3197 = vpop.f32.mrf.mxu0
    %v3198 = vadd.f32 0.0, %v3197
    %v3199 = vpop.f32.mrf.mxu0
    %3200 = vdwg.mxu0
    %3201 = vmatpush.bf16.msra.mxu0 %v3129
    %3202 = vmatpush.bf16.msra.mxu0 %v3125
    %3203 = vmatpush.bf16.msra.mxu0 %v3121
    %3204 = vmatpush.bf16.msra.mxu0 %v3117
    %3205 = vmatpush.bf16.msra.mxu0 %v3113
    %3206 = vmatpush.bf16.msra.mxu0 %v3109
    %3207 = vmatpush.bf16.msra.mxu0 %v3105
    %3208 = vmatpush.bf16.msra.mxu0 %v3101
    %3209 = vmatmul.bf16.gmra.mxu0 %v2969
    %v3210 = vpop.f32.mrf.mxu0
    %v3211 = vadd.f32 0.0, %v3210
    %v3212 = vpop.f32.mrf.mxu0
    %3213 = vdwg.mxu0
    %v3214 = vadd.f32 %v2964, %v3172
    %v3215 = vadd.f32 %v2965, %v3185
    %v3216 = vadd.f32 %v2966, %v3198
    %v3217 = vadd.f32 %v2967, %v3211
    %v3218 = vld [vmem:[#allocation3] sm:$0xff]
    %v3219 = vxor.u32 %v3214, 2147483648
    %v3220 = vmul.f32 %v3219, 1.442695
    %v3221 = vpow.pop %v3220
    %v3222 = vadd.f32 %v3221, 1.0
    %v3223 = vrcp.pop %v3222
    %v3224 = vmul.f32 %v3222, %v3223
    %v3225 = vsub.f32 1.0, %v3224
    %v3226 = vmul.f32 %v3223, %v3225
    %v3227 = vadd.f32 %v3223, %v3226
    %vm3228 = vweird.f32 %v3222
    %vm3229 = vweird.f32 %v3223
    %vm3230 = vmor %vm3228, %vm3229
    %v3231 = vsel %vm3230, %v3223, %v3227
    %v3232 = vand.u32 2147483647, %v3222
    %vm3233 = vcmp.eq.f32.partialorder %v3232, 8.507059e+37
    %v3234 = vand.u32 %v3222, 2147483648
    %v3235 = vor.u32 1.1754944e-38, %v3234
    %v3236 = vsel %vm3233, %v3235, %v3231
    %v3237 = vmul.f32 1.0, %v3236
    %v3238 = vxor.u32 %v3215, 2147483648
    %v3239 = vmul.f32 %v3238, 1.442695
    %v3240 = vpow.pop %v3239
    %v3241 = vadd.f32 %v3240, 1.0
    %v3242 = vrcp.pop %v3241
    %v3243 = vmul.f32 %v3241, %v3242
    %v3244 = vsub.f32 1.0, %v3243
    %v3245 = vmul.f32 %v3242, %v3244
    %v3246 = vadd.f32 %v3242, %v3245
    %vm3247 = vweird.f32 %v3241
    %vm3248 = vweird.f32 %v3242
    %vm3249 = vmor %vm3247, %vm3248
    %v3250 = vsel %vm3249, %v3242, %v3246
    %v3251 = vand.u32 2147483647, %v3241
    %vm3252 = vcmp.eq.f32.partialorder %v3251, 8.507059e+37
    %v3253 = vand.u32 %v3241, 2147483648
    %v3254 = vor.u32 1.1754944e-38, %v3253
    %v3255 = vsel %vm3252, %v3254, %v3250
    %v3256 = vmul.f32 1.0, %v3255
    %v3257 = vtanh.pop %v3216
    %v3258 = vxor.u32 %v3217, 2147483648
    %v3259 = vmul.f32 %v3258, 1.442695
    %v3260 = vpow.pop %v3259
    %v3261 = vadd.f32 %v3260, 1.0
    %v3262 = vrcp.pop %v3261
    %v3263 = vmul.f32 %v3261, %v3262
    %v3264 = vsub.f32 1.0, %v3263
    %v3265 = vmul.f32 %v3262, %v3264
    %v3266 = vadd.f32 %v3262, %v3265
    %vm3267 = vweird.f32 %v3261
    %vm3268 = vweird.f32 %v3262
    %vm3269 = vmor %vm3267, %vm3268
    %v3270 = vsel %vm3269, %v3262, %v3266
    %v3271 = vand.u32 2147483647, %v3261
    %vm3272 = vcmp.eq.f32.partialorder %v3271, 8.507059e+37
    %v3273 = vand.u32 %v3261, 2147483648
    %v3274 = vor.u32 1.1754944e-38, %v3273
    %v3275 = vsel %vm3272, %v3274, %v3270
    %v3276 = vmul.f32 1.0, %v3275
    %v3277 = vmul.f32 %v3256, %v3218
    %v3278 = vmul.f32 %v3237, %v3257
    %v3279 = vadd.f32 %v3277, %v3278
    %v3280 = vtanh.pop %v3279
    %v3281 = vmul.f32 %v3276, %v3280
    %3282 = vst [vmem:[#allocation2] sm:$0xff] %v3281
    %3283 = vst [vmem:[#allocation3] sm:$0xff] %v3279
    %v3284 = vld [vmem:[%s367] sm:$0xff]
    %v3285 = vpack.c.bf16 %v3281, %v3281
    %v3286 = vpack.c.bf16 %v3284, %v3284
    %v3287 = vld [vmem:[#allocation4] sm:$0xff]
    %v3288 = vld [vmem:[#allocation4 + $0x8] sm:$0xff]
    %v3289 = vld [vmem:[#allocation4 + $0x10] sm:$0xff]
    %v3290 = vld [vmem:[#allocation4 + $0x18] sm:$0xff]
    %v3291 = vld [vmem:[#allocation4 + $0x20] sm:$0xff]
    %v3292 = vld [vmem:[#allocation4 + $0x28] sm:$0xff]
    %v3293 = vld [vmem:[#allocation4 + $0x30] sm:$0xff]
    %v3294 = vld [vmem:[#allocation4 + $0x38] sm:$0xff]
    %v3295 = vld [vmem:[#allocation4 + $0x40] sm:$0xff]
    %v3296 = vld [vmem:[#allocation4 + $0x48] sm:$0xff]
    %v3297 = vld [vmem:[#allocation4 + $0x50] sm:$0xff]
    %v3298 = vld [vmem:[#allocation4 + $0x58] sm:$0xff]
    %v3299 = vld [vmem:[#allocation4 + $0x60] sm:$0xff]
    %v3300 = vld [vmem:[#allocation4 + $0x68] sm:$0xff]
    %v3301 = vld [vmem:[#allocation4 + $0x70] sm:$0xff]
    %v3302 = vld [vmem:[#allocation4 + $0x78] sm:$0xff]
    %v3303 = vld [vmem:[#allocation4 + $0x80] sm:$0xff]
    %v3304 = vld [vmem:[#allocation4 + $0x88] sm:$0xff]
    %v3305 = vld [vmem:[#allocation4 + $0x90] sm:$0xff]
    %v3306 = vld [vmem:[#allocation4 + $0x98] sm:$0xff]
    %v3307 = vld [vmem:[#allocation4 + $0xa0] sm:$0xff]
    %v3308 = vld [vmem:[#allocation4 + $0xa8] sm:$0xff]
    %v3309 = vld [vmem:[#allocation4 + $0xb0] sm:$0xff]
    %v3310 = vld [vmem:[#allocation4 + $0xb8] sm:$0xff]
    %v3311 = vld [vmem:[#allocation4 + $0xc0] sm:$0xff]
    %v3312 = vld [vmem:[#allocation4 + $0xc8] sm:$0xff]
    %v3313 = vld [vmem:[#allocation4 + $0xd0] sm:$0xff]
    %v3314 = vld [vmem:[#allocation4 + $0xd8] sm:$0xff]
    %v3315 = vld [vmem:[#allocation4 + $0xe0] sm:$0xff]
    %v3316 = vld [vmem:[#allocation4 + $0xe8] sm:$0xff]
    %v3317 = vld [vmem:[#allocation4 + $0xf0] sm:$0xff]
    %v3318 = vld [vmem:[#allocation4 + $0xf8] sm:$0xff]
    %v3319 = vld [vmem:[#allocation4 + $0x100] sm:$0xff]
    %v3320 = vld [vmem:[#allocation4 + $0x108] sm:$0xff]
    %v3321 = vld [vmem:[#allocation4 + $0x110] sm:$0xff]
    %v3322 = vld [vmem:[#allocation4 + $0x118] sm:$0xff]
    %v3323 = vld [vmem:[#allocation4 + $0x120] sm:$0xff]
    %v3324 = vld [vmem:[#allocation4 + $0x128] sm:$0xff]
    %v3325 = vld [vmem:[#allocation4 + $0x130] sm:$0xff]
    %v3326 = vld [vmem:[#allocation4 + $0x138] sm:$0xff]
    %v3327 = vld [vmem:[#allocation4 + $0x140] sm:$0xff]
    %v3328 = vld [vmem:[#allocation4 + $0x148] sm:$0xff]
    %v3329 = vld [vmem:[#allocation4 + $0x150] sm:$0xff]
    %v3330 = vld [vmem:[#allocation4 + $0x158] sm:$0xff]
    %v3331 = vld [vmem:[#allocation4 + $0x160] sm:$0xff]
    %v3332 = vld [vmem:[#allocation4 + $0x168] sm:$0xff]
    %v3333 = vld [vmem:[#allocation4 + $0x170] sm:$0xff]
    %v3334 = vld [vmem:[#allocation4 + $0x178] sm:$0xff]
    %v3335 = vld [vmem:[#allocation4 + $0x180] sm:$0xff]
    %v3336 = vld [vmem:[#allocation4 + $0x188] sm:$0xff]
    %v3337 = vld [vmem:[#allocation4 + $0x190] sm:$0xff]
    %v3338 = vld [vmem:[#allocation4 + $0x198] sm:$0xff]
    %v3339 = vld [vmem:[#allocation4 + $0x1a0] sm:$0xff]
    %v3340 = vld [vmem:[#allocation4 + $0x1a8] sm:$0xff]
    %v3341 = vld [vmem:[#allocation4 + $0x1b0] sm:$0xff]
    %v3342 = vld [vmem:[#allocation4 + $0x1b8] sm:$0xff]
    %v3343 = vld [vmem:[#allocation4 + $0x1c0] sm:$0xff]
    %v3344 = vld [vmem:[#allocation4 + $0x1c8] sm:$0xff]
    %v3345 = vld [vmem:[#allocation4 + $0x1d0] sm:$0xff]
    %v3346 = vld [vmem:[#allocation4 + $0x1d8] sm:$0xff]
    %v3347 = vld [vmem:[#allocation4 + $0x1e0] sm:$0xff]
    %v3348 = vld [vmem:[#allocation4 + $0x1e8] sm:$0xff]
    %v3349 = vld [vmem:[#allocation4 + $0x1f0] sm:$0xff]
    %v3350 = vld [vmem:[#allocation4 + $0x1f8] sm:$0xff]
    %v3351 = vld [vmem:[%s3] sm:$0xf]
    %v3353 = vperm.slane %v3351, 0
    %v3354 = vperm.slane %v3351, 1
    %v3355 = vperm.slane %v3351, 2
    %v3356 = vperm.slane %v3351, 3
    %v3425 = vunpack.c.l.b16 %v3287
    %v3426 = vunpack.c.h.b16 %v3287
    %v3427 = vunpack.c.l.b16 %v3288
    %v3428 = vunpack.c.h.b16 %v3288
    %v3429 = vunpack.c.l.b16 %v3289
    %v3430 = vunpack.c.h.b16 %v3289
    %v3431 = vunpack.c.l.b16 %v3290
    %v3432 = vunpack.c.h.b16 %v3290
    %v3433 = vunpack.c.l.b16 %v3291
    %v3434 = vunpack.c.h.b16 %v3291
    %v3435 = vunpack.c.l.b16 %v3292
    %v3436 = vunpack.c.h.b16 %v3292
    %v3437 = vunpack.c.l.b16 %v3293
    %v3438 = vunpack.c.h.b16 %v3293
    %v3439 = vunpack.c.l.b16 %v3294
    %v3440 = vunpack.c.h.b16 %v3294
    %v3441 = vunpack.c.l.b16 %v3295
    %v3442 = vunpack.c.h.b16 %v3295
    %v3443 = vunpack.c.l.b16 %v3296
    %v3444 = vunpack.c.h.b16 %v3296
    %v3445 = vunpack.c.l.b16 %v3297
    %v3446 = vunpack.c.h.b16 %v3297
    %v3447 = vunpack.c.l.b16 %v3298
    %v3448 = vunpack.c.h.b16 %v3298
    %v3449 = vunpack.c.l.b16 %v3299
    %v3450 = vunpack.c.h.b16 %v3299
    %v3451 = vunpack.c.l.b16 %v3300
    %v3452 = vunpack.c.h.b16 %v3300
    %v3453 = vunpack.c.l.b16 %v3301
    %v3454 = vunpack.c.h.b16 %v3301
    %v3455 = vunpack.c.l.b16 %v3302
    %v3456 = vunpack.c.h.b16 %v3302
    %v3457 = vunpack.c.l.b16 %v3303
    %v3458 = vunpack.c.h.b16 %v3303
    %v3459 = vunpack.c.l.b16 %v3304
    %v3460 = vunpack.c.h.b16 %v3304
    %v3461 = vunpack.c.l.b16 %v3305
    %v3462 = vunpack.c.h.b16 %v3305
    %v3463 = vunpack.c.l.b16 %v3306
    %v3464 = vunpack.c.h.b16 %v3306
    %v3465 = vunpack.c.l.b16 %v3307
    %v3466 = vunpack.c.h.b16 %v3307
    %v3467 = vunpack.c.l.b16 %v3308
    %v3468 = vunpack.c.h.b16 %v3308
    %v3469 = vunpack.c.l.b16 %v3309
    %v3470 = vunpack.c.h.b16 %v3309
    %v3471 = vunpack.c.l.b16 %v3310
    %v3472 = vunpack.c.h.b16 %v3310
    %v3473 = vunpack.c.l.b16 %v3311
    %v3474 = vunpack.c.h.b16 %v3311
    %v3475 = vunpack.c.l.b16 %v3312
    %v3476 = vunpack.c.h.b16 %v3312
    %v3477 = vunpack.c.l.b16 %v3313
    %v3478 = vunpack.c.h.b16 %v3313
    %v3479 = vunpack.c.l.b16 %v3314
    %v3480 = vunpack.c.h.b16 %v3314
    %v3481 = vunpack.c.l.b16 %v3315
    %v3482 = vunpack.c.h.b16 %v3315
    %v3483 = vunpack.c.l.b16 %v3316
    %v3484 = vunpack.c.h.b16 %v3316
    %v3485 = vunpack.c.l.b16 %v3317
    %v3486 = vunpack.c.h.b16 %v3317
    %v3487 = vunpack.c.l.b16 %v3318
    %v3488 = vunpack.c.h.b16 %v3318
    %v3489 = vunpack.c.l.b16 %v3319
    %v3490 = vunpack.c.h.b16 %v3319
    %v3491 = vunpack.c.l.b16 %v3320
    %v3492 = vunpack.c.h.b16 %v3320
    %v3493 = vunpack.c.l.b16 %v3321
    %v3494 = vunpack.c.h.b16 %v3321
    %v3495 = vunpack.c.l.b16 %v3322
    %v3496 = vunpack.c.h.b16 %v3322
    %v3497 = vunpack.c.l.b16 %v3323
    %v3498 = vunpack.c.h.b16 %v3323
    %v3499 = vunpack.c.l.b16 %v3324
    %v3500 = vunpack.c.h.b16 %v3324
    %v3501 = vunpack.c.l.b16 %v3325
    %v3502 = vunpack.c.h.b16 %v3325
    %v3503 = vunpack.c.l.b16 %v3326
    %v3504 = vunpack.c.h.b16 %v3326
    %v3505 = vunpack.c.l.b16 %v3327
    %v3506 = vunpack.c.h.b16 %v3327
    %v3507 = vunpack.c.l.b16 %v3328
    %v3508 = vunpack.c.h.b16 %v3328
    %v3509 = vunpack.c.l.b16 %v3329
    %v3510 = vunpack.c.h.b16 %v3329
    %v3511 = vunpack.c.l.b16 %v3330
    %v3512 = vunpack.c.h.b16 %v3330
    %v3513 = vunpack.c.l.b16 %v3331
    %v3514 = vunpack.c.h.b16 %v3331
    %v3515 = vunpack.c.l.b16 %v3332
    %v3516 = vunpack.c.h.b16 %v3332
    %v3517 = vunpack.c.l.b16 %v3333
    %v3518 = vunpack.c.h.b16 %v3333
    %v3519 = vunpack.c.l.b16 %v3334
    %v3520 = vunpack.c.h.b16 %v3334
    %v3521 = vunpack.c.l.b16 %v3335
    %v3522 = vunpack.c.h.b16 %v3335
    %v3523 = vunpack.c.l.b16 %v3336
    %v3524 = vunpack.c.h.b16 %v3336
    %v3525 = vunpack.c.l.b16 %v3337
    %v3526 = vunpack.c.h.b16 %v3337
    %v3527 = vunpack.c.l.b16 %v3338
    %v3528 = vunpack.c.h.b16 %v3338
    %v3529 = vunpack.c.l.b16 %v3339
    %v3530 = vunpack.c.h.b16 %v3339
    %v3531 = vunpack.c.l.b16 %v3340
    %v3532 = vunpack.c.h.b16 %v3340
    %v3533 = vunpack.c.l.b16 %v3341
    %v3534 = vunpack.c.h.b16 %v3341
    %v3535 = vunpack.c.l.b16 %v3342
    %v3536 = vunpack.c.h.b16 %v3342
    %v3537 = vunpack.c.l.b16 %v3343
    %v3538 = vunpack.c.h.b16 %v3343
    %v3539 = vunpack.c.l.b16 %v3344
    %v3540 = vunpack.c.h.b16 %v3344
    %v3541 = vunpack.c.l.b16 %v3345
    %v3542 = vunpack.c.h.b16 %v3345
    %v3543 = vunpack.c.l.b16 %v3346
    %v3544 = vunpack.c.h.b16 %v3346
    %v3545 = vunpack.c.l.b16 %v3347
    %v3546 = vunpack.c.h.b16 %v3347
    %v3547 = vunpack.c.l.b16 %v3348
    %v3548 = vunpack.c.h.b16 %v3348
    %v3549 = vunpack.c.l.b16 %v3349
    %v3550 = vunpack.c.h.b16 %v3349
    %v3551 = vunpack.c.l.b16 %v3350
    %v3552 = vunpack.c.h.b16 %v3350
    %v3553 = vpack.c.b16 %v3429, %v3425
    %v3554 = vpack.c.b16 %v3430, %v3426
    %v3555 = vpack.c.b16 %v3431, %v3427
    %v3556 = vpack.c.b16 %v3432, %v3428
    %v3557 = vpack.c.b16 %v3437, %v3433
    %v3558 = vpack.c.b16 %v3438, %v3434
    %v3559 = vpack.c.b16 %v3439, %v3435
    %v3560 = vpack.c.b16 %v3440, %v3436
    %v3561 = vpack.c.b16 %v3445, %v3441
    %v3562 = vpack.c.b16 %v3446, %v3442
    %v3563 = vpack.c.b16 %v3447, %v3443
    %v3564 = vpack.c.b16 %v3448, %v3444
    %v3565 = vpack.c.b16 %v3453, %v3449
    %v3566 = vpack.c.b16 %v3454, %v3450
    %v3567 = vpack.c.b16 %v3455, %v3451
    %v3568 = vpack.c.b16 %v3456, %v3452
    %v3569 = vpack.c.b16 %v3461, %v3457
    %v3570 = vpack.c.b16 %v3462, %v3458
    %v3571 = vpack.c.b16 %v3463, %v3459
    %v3572 = vpack.c.b16 %v3464, %v3460
    %v3573 = vpack.c.b16 %v3469, %v3465
    %v3574 = vpack.c.b16 %v3470, %v3466
    %v3575 = vpack.c.b16 %v3471, %v3467
    %v3576 = vpack.c.b16 %v3472, %v3468
    %v3577 = vpack.c.b16 %v3477, %v3473
    %v3578 = vpack.c.b16 %v3478, %v3474
    %v3579 = vpack.c.b16 %v3479, %v3475
    %v3580 = vpack.c.b16 %v3480, %v3476
    %v3581 = vpack.c.b16 %v3485, %v3481
    %v3582 = vpack.c.b16 %v3486, %v3482
    %v3583 = vpack.c.b16 %v3487, %v3483
    %v3584 = vpack.c.b16 %v3488, %v3484
    %v3585 = vpack.c.b16 %v3493, %v3489
    %v3586 = vpack.c.b16 %v3494, %v3490
    %v3587 = vpack.c.b16 %v3495, %v3491
    %v3588 = vpack.c.b16 %v3496, %v3492
    %v3589 = vpack.c.b16 %v3501, %v3497
    %v3590 = vpack.c.b16 %v3502, %v3498
    %v3591 = vpack.c.b16 %v3503, %v3499
    %v3592 = vpack.c.b16 %v3504, %v3500
    %v3593 = vpack.c.b16 %v3509, %v3505
    %v3594 = vpack.c.b16 %v3510, %v3506
    %v3595 = vpack.c.b16 %v3511, %v3507
    %v3596 = vpack.c.b16 %v3512, %v3508
    %v3597 = vpack.c.b16 %v3517, %v3513
    %v3598 = vpack.c.b16 %v3518, %v3514
    %v3599 = vpack.c.b16 %v3519, %v3515
    %v3600 = vpack.c.b16 %v3520, %v3516
    %v3601 = vpack.c.b16 %v3525, %v3521
    %v3602 = vpack.c.b16 %v3526, %v3522
    %v3603 = vpack.c.b16 %v3527, %v3523
    %v3604 = vpack.c.b16 %v3528, %v3524
    %v3605 = vpack.c.b16 %v3533, %v3529
    %v3606 = vpack.c.b16 %v3534, %v3530
    %v3607 = vpack.c.b16 %v3535, %v3531
    %v3608 = vpack.c.b16 %v3536, %v3532
    %v3609 = vpack.c.b16 %v3541, %v3537
    %v3610 = vpack.c.b16 %v3542, %v3538
    %v3611 = vpack.c.b16 %v3543, %v3539
    %v3612 = vpack.c.b16 %v3544, %v3540
    %v3613 = vpack.c.b16 %v3549, %v3545
    %v3614 = vpack.c.b16 %v3550, %v3546
    %v3615 = vpack.c.b16 %v3551, %v3547
    %v3616 = vpack.c.b16 %v3552, %v3548
    %3681 = vmatpush.bf16.msra.mxu0 %v3581
    %3682 = vmatpush.bf16.msra.mxu0 %v3577
    %3683 = vmatpush.bf16.msra.mxu0 %v3573
    %3684 = vmatpush.bf16.msra.mxu0 %v3569
    %3685 = vmatpush.bf16.msra.mxu0 %v3565
    %3686 = vmatpush.bf16.msra.mxu0 %v3561
    %3687 = vmatpush.bf16.msra.mxu0 %v3557
    %3688 = vmatpush.bf16.msra.mxu0 %v3553
    %3689 = vmatmul.bf16.gmra.mxu0 %v3285
    %v3690 = vpop.f32.mrf.mxu0
    %v3691 = vadd.f32 %v3353, %v3690
    %v3692 = vpop.f32.mrf.mxu0
    %3693 = vdwg.mxu0
    %3694 = vmatpush.bf16.msra.mxu0 %v3613
    %3695 = vmatpush.bf16.msra.mxu0 %v3609
    %3696 = vmatpush.bf16.msra.mxu0 %v3605
    %3697 = vmatpush.bf16.msra.mxu0 %v3601
    %3698 = vmatpush.bf16.msra.mxu0 %v3597
    %3699 = vmatpush.bf16.msra.mxu0 %v3593
    %3700 = vmatpush.bf16.msra.mxu0 %v3589
    %3701 = vmatpush.bf16.msra.mxu0 %v3585
    %3702 = vmatmul.bf16.gmra.mxu0 %v3286
    %v3703 = vpop.f32.mrf.mxu0
    %v3704 = vadd.f32 %v3691, %v3703
    %v3705 = vpop.f32.mrf.mxu0
    %3706 = vdwg.mxu0
    %3707 = vmatpush.bf16.msra.mxu0 %v3582
    %3708 = vmatpush.bf16.msra.mxu0 %v3578
    %3709 = vmatpush.bf16.msra.mxu0 %v3574
    %3710 = vmatpush.bf16.msra.mxu0 %v3570
    %3711 = vmatpush.bf16.msra.mxu0 %v3566
    %3712 = vmatpush.bf16.msra.mxu0 %v3562
    %3713 = vmatpush.bf16.msra.mxu0 %v3558
    %3714 = vmatpush.bf16.msra.mxu0 %v3554
    %3715 = vmatmul.bf16.gmra.mxu0 %v3285
    %v3716 = vpop.f32.mrf.mxu0
    %v3717 = vadd.f32 %v3354, %v3716
    %v3718 = vpop.f32.mrf.mxu0
    %3719 = vdwg.mxu0
    %3720 = vmatpush.bf16.msra.mxu0 %v3614
    %3721 = vmatpush.bf16.msra.mxu0 %v3610
    %3722 = vmatpush.bf16.msra.mxu0 %v3606
    %3723 = vmatpush.bf16.msra.mxu0 %v3602
    %3724 = vmatpush.bf16.msra.mxu0 %v3598
    %3725 = vmatpush.bf16.msra.mxu0 %v3594
    %3726 = vmatpush.bf16.msra.mxu0 %v3590
    %3727 = vmatpush.bf16.msra.mxu0 %v3586
    %3728 = vmatmul.bf16.gmra.mxu0 %v3286
    %v3729 = vpop.f32.mrf.mxu0
    %v3730 = vadd.f32 %v3717, %v3729
    %v3731 = vpop.f32.mrf.mxu0
    %3732 = vdwg.mxu0
    %3733 = vmatpush.bf16.msra.mxu0 %v3583
    %3734 = vmatpush.bf16.msra.mxu0 %v3579
    %3735 = vmatpush.bf16.msra.mxu0 %v3575
    %3736 = vmatpush.bf16.msra.mxu0 %v3571
    %3737 = vmatpush.bf16.msra.mxu0 %v3567
    %3738 = vmatpush.bf16.msra.mxu0 %v3563
    %3739 = vmatpush.bf16.msra.mxu0 %v3559
    %3740 = vmatpush.bf16.msra.mxu0 %v3555
    %3741 = vmatmul.bf16.gmra.mxu0 %v3285
    %v3742 = vpop.f32.mrf.mxu0
    %v3743 = vadd.f32 %v3355, %v3742
    %v3744 = vpop.f32.mrf.mxu0
    %3745 = vdwg.mxu0
    %3746 = vmatpush.bf16.msra.mxu0 %v3615
    %3747 = vmatpush.bf16.msra.mxu0 %v3611
    %3748 = vmatpush.bf16.msra.mxu0 %v3607
    %3749 = vmatpush.bf16.msra.mxu0 %v3603
    %3750 = vmatpush.bf16.msra.mxu0 %v3599
    %3751 = vmatpush.bf16.msra.mxu0 %v3595
    %3752 = vmatpush.bf16.msra.mxu0 %v3591
    %3753 = vmatpush.bf16.msra.mxu0 %v3587
    %3754 = vmatmul.bf16.gmra.mxu0 %v3286
    %v3755 = vpop.f32.mrf.mxu0
    %v3756 = vadd.f32 %v3743, %v3755
    %v3757 = vpop.f32.mrf.mxu0
    %3758 = vdwg.mxu0
    %3759 = vmatpush.bf16.msra.mxu0 %v3584
    %3760 = vmatpush.bf16.msra.mxu0 %v3580
    %3761 = vmatpush.bf16.msra.mxu0 %v3576
    %3762 = vmatpush.bf16.msra.mxu0 %v3572
    %3763 = vmatpush.bf16.msra.mxu0 %v3568
    %3764 = vmatpush.bf16.msra.mxu0 %v3564
    %3765 = vmatpush.bf16.msra.mxu0 %v3560
    %3766 = vmatpush.bf16.msra.mxu0 %v3556
    %3767 = vmatmul.bf16.gmra.mxu0 %v3285
    %v3768 = vpop.f32.mrf.mxu0
    %v3769 = vadd.f32 %v3356, %v3768
    %v3770 = vpop.f32.mrf.mxu0
    %3771 = vdwg.mxu0
    %3772 = vmatpush.bf16.msra.mxu0 %v3616
    %3773 = vmatpush.bf16.msra.mxu0 %v3612
    %3774 = vmatpush.bf16.msra.mxu0 %v3608
    %3775 = vmatpush.bf16.msra.mxu0 %v3604
    %3776 = vmatpush.bf16.msra.mxu0 %v3600
    %3777 = vmatpush.bf16.msra.mxu0 %v3596
    %3778 = vmatpush.bf16.msra.mxu0 %v3592
    %3779 = vmatpush.bf16.msra.mxu0 %v3588
    %3780 = vmatmul.bf16.gmra.mxu0 %v3286
    %v3781 = vpop.f32.mrf.mxu0
    %v3782 = vadd.f32 %v3769, %v3781
    %v3783 = vpop.f32.mrf.mxu0
    %3784 = vdwg.mxu0
    %v3785 = vld [vmem:[%s869] sm:$0xff]
    %v3786 = vxor.u32 %v3704, 2147483648
    %v3787 = vmul.f32 %v3786, 1.442695
    %v3788 = vpow.pop %v3787
    %v3789 = vadd.f32 %v3788, 1.0
    %v3790 = vrcp.pop %v3789
    %v3791 = vmul.f32 %v3789, %v3790
    %v3792 = vsub.f32 1.0, %v3791
    %v3793 = vmul.f32 %v3790, %v3792
    %v3794 = vadd.f32 %v3790, %v3793
    %vm3795 = vweird.f32 %v3789
    %vm3796 = vweird.f32 %v3790
    %vm3797 = vmor %vm3795, %vm3796
    %v3798 = vsel %vm3797, %v3790, %v3794
    %v3799 = vand.u32 2147483647, %v3789
    %vm3800 = vcmp.eq.f32.partialorder %v3799, 8.507059e+37
    %v3801 = vand.u32 %v3789, 2147483648
    %v3802 = vor.u32 1.1754944e-38, %v3801
    %v3803 = vsel %vm3800, %v3802, %v3798
    %v3804 = vmul.f32 1.0, %v3803
    %v3805 = vxor.u32 %v3730, 2147483648
    %v3806 = vmul.f32 %v3805, 1.442695
    %v3807 = vpow.pop %v3806
    %v3808 = vadd.f32 %v3807, 1.0
    %v3809 = vrcp.pop %v3808
    %v3810 = vmul.f32 %v3808, %v3809
    %v3811 = vsub.f32 1.0, %v3810
    %v3812 = vmul.f32 %v3809, %v3811
    %v3813 = vadd.f32 %v3809, %v3812
    %vm3814 = vweird.f32 %v3808
    %vm3815 = vweird.f32 %v3809
    %vm3816 = vmor %vm3814, %vm3815
    %v3817 = vsel %vm3816, %v3809, %v3813
    %v3818 = vand.u32 2147483647, %v3808
    %vm3819 = vcmp.eq.f32.partialorder %v3818, 8.507059e+37
    %v3820 = vand.u32 %v3808, 2147483648
    %v3821 = vor.u32 1.1754944e-38, %v3820
    %v3822 = vsel %vm3819, %v3821, %v3817
    %v3823 = vmul.f32 1.0, %v3822
    %v3824 = vtanh.pop %v3756
    %v3825 = vxor.u32 %v3782, 2147483648
    %v3826 = vmul.f32 %v3825, 1.442695
    %v3827 = vpow.pop %v3826
    %v3828 = vadd.f32 %v3827, 1.0
    %v3829 = vrcp.pop %v3828
    %v3830 = vmul.f32 %v3828, %v3829
    %v3831 = vsub.f32 1.0, %v3830
    %v3832 = vmul.f32 %v3829, %v3831
    %v3833 = vadd.f32 %v3829, %v3832
    %vm3834 = vweird.f32 %v3828
    %vm3835 = vweird.f32 %v3829
    %vm3836 = vmor %vm3834, %vm3835
    %v3837 = vsel %vm3836, %v3829, %v3833
    %v3838 = vand.u32 2147483647, %v3828
    %vm3839 = vcmp.eq.f32.partialorder %v3838, 8.507059e+37
    %v3840 = vand.u32 %v3828, 2147483648
    %v3841 = vor.u32 1.1754944e-38, %v3840
    %v3842 = vsel %vm3839, %v3841, %v3837
    %v3843 = vmul.f32 1.0, %v3842
    %v3844 = vmul.f32 %v3823, %v3785
    %v3845 = vmul.f32 %v3804, %v3824
    %v3846 = vadd.f32 %v3844, %v3845
    %v3847 = vtanh.pop %v3846
    %v3848 = vmul.f32 %v3843, %v3847
    %3849 = vst [vmem:[%s367] sm:$0xff] %v3848
    %3850 = vst [vmem:[%s869] sm:$0xff] %v3846
    %v3851 = vpack.c.bf16 %v3848, %v3848
    %v3852 = vld [vmem:[%s4] sm:$0xf]
    %v3853 = vld [vmem:[%s4 + $0x4] sm:$0xf]
    %v3854 = vld [vmem:[%s4 + $0x8] sm:$0xf]
    %v3855 = vld [vmem:[%s4 + $0xc] sm:$0xf]
    %v3856 = vld [vmem:[%s4 + $0x10] sm:$0xf]
    %v3857 = vld [vmem:[%s4 + $0x14] sm:$0xf]
    %v3858 = vld [vmem:[%s4 + $0x18] sm:$0xf]
    %v3859 = vld [vmem:[%s4 + $0x1c] sm:$0xf]
    %v3860 = vld [vmem:[%s4 + $0x20] sm:$0xf]
    %v3861 = vld [vmem:[%s4 + $0x24] sm:$0xf]
    %v3862 = vld [vmem:[%s4 + $0x28] sm:$0xf]
    %v3863 = vld [vmem:[%s4 + $0x2c] sm:$0xf]
    %v3864 = vld [vmem:[%s4 + $0x30] sm:$0xf]
    %v3865 = vld [vmem:[%s4 + $0x34] sm:$0xf]
    %v3866 = vld [vmem:[%s4 + $0x38] sm:$0xf]
    %v3867 = vld [vmem:[%s4 + $0x3c] sm:$0xf]
    %v3868 = vld [vmem:[%s5] sm:$0x1]
    %v3870 = vperm.slane %v3868, 0
    %v3888 = vunpack.c.l.b16 %v3852
    %v3889 = vunpack.c.l.b16 %v3853
    %v3890 = vunpack.c.l.b16 %v3854
    %v3891 = vunpack.c.l.b16 %v3855
    %v3892 = vunpack.c.l.b16 %v3856
    %v3893 = vunpack.c.l.b16 %v3857
    %v3894 = vunpack.c.l.b16 %v3858
    %v3895 = vunpack.c.l.b16 %v3859
    %v3896 = vunpack.c.l.b16 %v3860
    %v3897 = vunpack.c.l.b16 %v3861
    %v3898 = vunpack.c.l.b16 %v3862
    %v3899 = vunpack.c.l.b16 %v3863
    %v3900 = vunpack.c.l.b16 %v3864
    %v3901 = vunpack.c.l.b16 %v3865
    %v3902 = vunpack.c.l.b16 %v3866
    %v3903 = vunpack.c.l.b16 %v3867
    %v3904 = vpack.c.b16 %v3889, %v3888
    %v3905 = vpack.c.b16 %v3891, %v3890
    %v3906 = vpack.c.b16 %v3893, %v3892
    %v3907 = vpack.c.b16 %v3895, %v3894
    %v3908 = vpack.c.b16 %v3897, %v3896
    %v3909 = vpack.c.b16 %v3899, %v3898
    %v3910 = vpack.c.b16 %v3901, %v3900
    %v3911 = vpack.c.b16 %v3903, %v3902
    %3920 = vmatpush.bf16.msra.mxu0 %v3911
    %3921 = vmatpush.bf16.msra.mxu0 %v3910
    %3922 = vmatpush.bf16.msra.mxu0 %v3909
    %3923 = vmatpush.bf16.msra.mxu0 %v3908
    %3924 = vmatpush.bf16.msra.mxu0 %v3907
    %3925 = vmatpush.bf16.msra.mxu0 %v3906
    %3926 = vmatpush.bf16.msra.mxu0 %v3905
    %3927 = vmatpush.bf16.msra.mxu0 %v3904
    %3928 = vmatmul.bf16.gmra.mxu0 %v3851
    %v3929 = vpop.f32.mrf.mxu0
    %v3930 = vadd.f32 %v3870, %v3929
    %v3931 = vpop.f32.mrf.mxu0
    %3932 = vdwg.mxu0
    %s3933 = scalar_lea.vmem %s6, 24
    %3934 = vst [vmem:[%s3933] sm:$0xff] %v3930
    %s3935 = scalar_lea.vmem %s0, 128
    %v3936 = vld [vmem:[%s3935] sm:$0xff]
    %v3937 = vld [vmem:[%s3935 + $0x8] sm:$0xff]
    %v3938 = vld [vmem:[%s3935 + $0x10] sm:$0xff]
    %v3939 = vld [vmem:[%s3935 + $0x18] sm:$0xff]
    %v3940 = vld [vmem:[#allocation2] sm:$0xff]
    %v3941 = vpack.c.bf16 %v3940, %v3940
    %v3942 = vld [vmem:[%s1] sm:$0xff]
    %v3943 = vld [vmem:[%s1 + $0x8] sm:$0xff]
    %v3944 = vld [vmem:[%s1 + $0x10] sm:$0xff]
    %v3945 = vld [vmem:[%s1 + $0x18] sm:$0xff]
    %v3946 = vld [vmem:[%s1 + $0x20] sm:$0xff]
    %v3947 = vld [vmem:[%s1 + $0x28] sm:$0xff]
    %v3948 = vld [vmem:[%s1 + $0x30] sm:$0xff]
    %v3949 = vld [vmem:[%s1 + $0x38] sm:$0xff]
    %v3950 = vld [vmem:[%s1 + $0x40] sm:$0xff]
    %v3951 = vld [vmem:[%s1 + $0x48] sm:$0xff]
    %v3952 = vld [vmem:[%s1 + $0x50] sm:$0xff]
    %v3953 = vld [vmem:[%s1 + $0x58] sm:$0xff]
    %v3954 = vld [vmem:[%s1 + $0x60] sm:$0xff]
    %v3955 = vld [vmem:[%s1 + $0x68] sm:$0xff]
    %v3956 = vld [vmem:[%s1 + $0x70] sm:$0xff]
    %v3957 = vld [vmem:[%s1 + $0x78] sm:$0xff]
    %v3958 = vld [vmem:[%s1 + $0x80] sm:$0xff]
    %v3959 = vld [vmem:[%s1 + $0x88] sm:$0xff]
    %v3960 = vld [vmem:[%s1 + $0x90] sm:$0xff]
    %v3961 = vld [vmem:[%s1 + $0x98] sm:$0xff]
    %v3962 = vld [vmem:[%s1 + $0xa0] sm:$0xff]
    %v3963 = vld [vmem:[%s1 + $0xa8] sm:$0xff]
    %v3964 = vld [vmem:[%s1 + $0xb0] sm:$0xff]
    %v3965 = vld [vmem:[%s1 + $0xb8] sm:$0xff]
    %v3966 = vld [vmem:[%s1 + $0xc0] sm:$0xff]
    %v3967 = vld [vmem:[%s1 + $0xc8] sm:$0xff]
    %v3968 = vld [vmem:[%s1 + $0xd0] sm:$0xff]
    %v3969 = vld [vmem:[%s1 + $0xd8] sm:$0xff]
    %v3970 = vld [vmem:[%s1 + $0xe0] sm:$0xff]
    %v3971 = vld [vmem:[%s1 + $0xe8] sm:$0xff]
    %v3972 = vld [vmem:[%s1 + $0xf0] sm:$0xff]
    %v3973 = vld [vmem:[%s1 + $0xf8] sm:$0xff]
    %v4006 = vunpack.c.l.b16 %v3942
    %v4007 = vunpack.c.h.b16 %v3942
    %v4008 = vunpack.c.l.b16 %v3943
    %v4009 = vunpack.c.h.b16 %v3943
    %v4010 = vunpack.c.l.b16 %v3944
    %v4011 = vunpack.c.h.b16 %v3944
    %v4012 = vunpack.c.l.b16 %v3945
    %v4013 = vunpack.c.h.b16 %v3945
    %v4014 = vunpack.c.l.b16 %v3946
    %v4015 = vunpack.c.h.b16 %v3946
    %v4016 = vunpack.c.l.b16 %v3947
    %v4017 = vunpack.c.h.b16 %v3947
    %v4018 = vunpack.c.l.b16 %v3948
    %v4019 = vunpack.c.h.b16 %v3948
    %v4020 = vunpack.c.l.b16 %v3949
    %v4021 = vunpack.c.h.b16 %v3949
    %v4022 = vunpack.c.l.b16 %v3950
    %v4023 = vunpack.c.h.b16 %v3950
    %v4024 = vunpack.c.l.b16 %v3951
    %v4025 = vunpack.c.h.b16 %v3951
    %v4026 = vunpack.c.l.b16 %v3952
    %v4027 = vunpack.c.h.b16 %v3952
    %v4028 = vunpack.c.l.b16 %v3953
    %v4029 = vunpack.c.h.b16 %v3953
    %v4030 = vunpack.c.l.b16 %v3954
    %v4031 = vunpack.c.h.b16 %v3954
    %v4032 = vunpack.c.l.b16 %v3955
    %v4033 = vunpack.c.h.b16 %v3955
    %v4034 = vunpack.c.l.b16 %v3956
    %v4035 = vunpack.c.h.b16 %v3956
    %v4036 = vunpack.c.l.b16 %v3957
    %v4037 = vunpack.c.h.b16 %v3957
    %v4038 = vunpack.c.l.b16 %v3958
    %v4039 = vunpack.c.h.b16 %v3958
    %v4040 = vunpack.c.l.b16 %v3959
    %v4041 = vunpack.c.h.b16 %v3959
    %v4042 = vunpack.c.l.b16 %v3960
    %v4043 = vunpack.c.h.b16 %v3960
    %v4044 = vunpack.c.l.b16 %v3961
    %v4045 = vunpack.c.h.b16 %v3961
    %v4046 = vunpack.c.l.b16 %v3962
    %v4047 = vunpack.c.h.b16 %v3962
    %v4048 = vunpack.c.l.b16 %v3963
    %v4049 = vunpack.c.h.b16 %v3963
    %v4050 = vunpack.c.l.b16 %v3964
    %v4051 = vunpack.c.h.b16 %v3964
    %v4052 = vunpack.c.l.b16 %v3965
    %v4053 = vunpack.c.h.b16 %v3965
    %v4054 = vunpack.c.l.b16 %v3966
    %v4055 = vunpack.c.h.b16 %v3966
    %v4056 = vunpack.c.l.b16 %v3967
    %v4057 = vunpack.c.h.b16 %v3967
    %v4058 = vunpack.c.l.b16 %v3968
    %v4059 = vunpack.c.h.b16 %v3968
    %v4060 = vunpack.c.l.b16 %v3969
    %v4061 = vunpack.c.h.b16 %v3969
    %v4062 = vunpack.c.l.b16 %v3970
    %v4063 = vunpack.c.h.b16 %v3970
    %v4064 = vunpack.c.l.b16 %v3971
    %v4065 = vunpack.c.h.b16 %v3971
    %v4066 = vunpack.c.l.b16 %v3972
    %v4067 = vunpack.c.h.b16 %v3972
    %v4068 = vunpack.c.l.b16 %v3973
    %v4069 = vunpack.c.h.b16 %v3973
    %v4070 = vpack.c.b16 %v4010, %v4006
    %v4071 = vpack.c.b16 %v4011, %v4007
    %v4072 = vpack.c.b16 %v4012, %v4008
    %v4073 = vpack.c.b16 %v4013, %v4009
    %v4074 = vpack.c.b16 %v4018, %v4014
    %v4075 = vpack.c.b16 %v4019, %v4015
    %v4076 = vpack.c.b16 %v4020, %v4016
    %v4077 = vpack.c.b16 %v4021, %v4017
    %v4078 = vpack.c.b16 %v4026, %v4022
    %v4079 = vpack.c.b16 %v4027, %v4023
    %v4080 = vpack.c.b16 %v4028, %v4024
    %v4081 = vpack.c.b16 %v4029, %v4025
    %v4082 = vpack.c.b16 %v4034, %v4030
    %v4083 = vpack.c.b16 %v4035, %v4031
    %v4084 = vpack.c.b16 %v4036, %v4032
    %v4085 = vpack.c.b16 %v4037, %v4033
    %v4086 = vpack.c.b16 %v4042, %v4038
    %v4087 = vpack.c.b16 %v4043, %v4039
    %v4088 = vpack.c.b16 %v4044, %v4040
    %v4089 = vpack.c.b16 %v4045, %v4041
    %v4090 = vpack.c.b16 %v4050, %v4046
    %v4091 = vpack.c.b16 %v4051, %v4047
    %v4092 = vpack.c.b16 %v4052, %v4048
    %v4093 = vpack.c.b16 %v4053, %v4049
    %v4094 = vpack.c.b16 %v4058, %v4054
    %v4095 = vpack.c.b16 %v4059, %v4055
    %v4096 = vpack.c.b16 %v4060, %v4056
    %v4097 = vpack.c.b16 %v4061, %v4057
    %v4098 = vpack.c.b16 %v4066, %v4062
    %v4099 = vpack.c.b16 %v4067, %v4063
    %v4100 = vpack.c.b16 %v4068, %v4064
    %v4101 = vpack.c.b16 %v4069, %v4065
    %4134 = vmatpush.bf16.msra.mxu0 %v4098
    %4135 = vmatpush.bf16.msra.mxu0 %v4094
    %4136 = vmatpush.bf16.msra.mxu0 %v4090
    %4137 = vmatpush.bf16.msra.mxu0 %v4086
    %4138 = vmatpush.bf16.msra.mxu0 %v4082
    %4139 = vmatpush.bf16.msra.mxu0 %v4078
    %4140 = vmatpush.bf16.msra.mxu0 %v4074
    %4141 = vmatpush.bf16.msra.mxu0 %v4070
    %4142 = vmatmul.bf16.gmra.mxu0 %v3941
    %v4143 = vpop.f32.mrf.mxu0
    %v4144 = vadd.f32 0.0, %v4143
    %v4145 = vpop.f32.mrf.mxu0
    %4146 = vdwg.mxu0
    %4147 = vmatpush.bf16.msra.mxu0 %v4099
    %4148 = vmatpush.bf16.msra.mxu0 %v4095
    %4149 = vmatpush.bf16.msra.mxu0 %v4091
    %4150 = vmatpush.bf16.msra.mxu0 %v4087
    %4151 = vmatpush.bf16.msra.mxu0 %v4083
    %4152 = vmatpush.bf16.msra.mxu0 %v4079
    %4153 = vmatpush.bf16.msra.mxu0 %v4075
    %4154 = vmatpush.bf16.msra.mxu0 %v4071
    %4155 = vmatmul.bf16.gmra.mxu0 %v3941
    %v4156 = vpop.f32.mrf.mxu0
    %v4157 = vadd.f32 0.0, %v4156
    %v4158 = vpop.f32.mrf.mxu0
    %4159 = vdwg.mxu0
    %4160 = vmatpush.bf16.msra.mxu0 %v4100
    %4161 = vmatpush.bf16.msra.mxu0 %v4096
    %4162 = vmatpush.bf16.msra.mxu0 %v4092
    %4163 = vmatpush.bf16.msra.mxu0 %v4088
    %4164 = vmatpush.bf16.msra.mxu0 %v4084
    %4165 = vmatpush.bf16.msra.mxu0 %v4080
    %4166 = vmatpush.bf16.msra.mxu0 %v4076
    %4167 = vmatpush.bf16.msra.mxu0 %v4072
    %4168 = vmatmul.bf16.gmra.mxu0 %v3941
    %v4169 = vpop.f32.mrf.mxu0
    %v4170 = vadd.f32 0.0, %v4169
    %v4171 = vpop.f32.mrf.mxu0
    %4172 = vdwg.mxu0
    %4173 = vmatpush.bf16.msra.mxu0 %v4101
    %4174 = vmatpush.bf16.msra.mxu0 %v4097
    %4175 = vmatpush.bf16.msra.mxu0 %v4093
    %4176 = vmatpush.bf16.msra.mxu0 %v4089
    %4177 = vmatpush.bf16.msra.mxu0 %v4085
    %4178 = vmatpush.bf16.msra.mxu0 %v4081
    %4179 = vmatpush.bf16.msra.mxu0 %v4077
    %4180 = vmatpush.bf16.msra.mxu0 %v4073
    %4181 = vmatmul.bf16.gmra.mxu0 %v3941
    %v4182 = vpop.f32.mrf.mxu0
    %v4183 = vadd.f32 0.0, %v4182
    %v4184 = vpop.f32.mrf.mxu0
    %4185 = vdwg.mxu0
    %v4186 = vadd.f32 %v3936, %v4144
    %v4187 = vadd.f32 %v3937, %v4157
    %v4188 = vadd.f32 %v3938, %v4170
    %v4189 = vadd.f32 %v3939, %v4183
    %v4190 = vld [vmem:[#allocation3] sm:$0xff]
    %v4191 = vxor.u32 %v4186, 2147483648
    %v4192 = vmul.f32 %v4191, 1.442695
    %v4193 = vpow.pop %v4192
    %v4194 = vadd.f32 %v4193, 1.0
    %v4195 = vrcp.pop %v4194
    %v4196 = vmul.f32 %v4194, %v4195
    %v4197 = vsub.f32 1.0, %v4196
    %v4198 = vmul.f32 %v4195, %v4197
    %v4199 = vadd.f32 %v4195, %v4198
    %vm4200 = vweird.f32 %v4194
    %vm4201 = vweird.f32 %v4195
    %vm4202 = vmor %vm4200, %vm4201
    %v4203 = vsel %vm4202, %v4195, %v4199
    %v4204 = vand.u32 2147483647, %v4194
    %vm4205 = vcmp.eq.f32.partialorder %v4204, 8.507059e+37
    %v4206 = vand.u32 %v4194, 2147483648
    %v4207 = vor.u32 1.1754944e-38, %v4206
    %v4208 = vsel %vm4205, %v4207, %v4203
    %v4209 = vmul.f32 1.0, %v4208
    %v4210 = vxor.u32 %v4187, 2147483648
    %v4211 = vmul.f32 %v4210, 1.442695
    %v4212 = vpow.pop %v4211
    %v4213 = vadd.f32 %v4212, 1.0
    %v4214 = vrcp.pop %v4213
    %v4215 = vmul.f32 %v4213, %v4214
    %v4216 = vsub.f32 1.0, %v4215
    %v4217 = vmul.f32 %v4214, %v4216
    %v4218 = vadd.f32 %v4214, %v4217
    %vm4219 = vweird.f32 %v4213
    %vm4220 = vweird.f32 %v4214
    %vm4221 = vmor %vm4219, %vm4220
    %v4222 = vsel %vm4221, %v4214, %v4218
    %v4223 = vand.u32 2147483647, %v4213
    %vm4224 = vcmp.eq.f32.partialorder %v4223, 8.507059e+37
    %v4225 = vand.u32 %v4213, 2147483648
    %v4226 = vor.u32 1.1754944e-38, %v4225
    %v4227 = vsel %vm4224, %v4226, %v4222
    %v4228 = vmul.f32 1.0, %v4227
    %v4229 = vtanh.pop %v4188
    %v4230 = vxor.u32 %v4189, 2147483648
    %v4231 = vmul.f32 %v4230, 1.442695
    %v4232 = vpow.pop %v4231
    %v4233 = vadd.f32 %v4232, 1.0
    %v4234 = vrcp.pop %v4233
    %v4235 = vmul.f32 %v4233, %v4234
    %v4236 = vsub.f32 1.0, %v4235
    %v4237 = vmul.f32 %v4234, %v4236
    %v4238 = vadd.f32 %v4234, %v4237
    %vm4239 = vweird.f32 %v4233
    %vm4240 = vweird.f32 %v4234
    %vm4241 = vmor %vm4239, %vm4240
    %v4242 = vsel %vm4241, %v4234, %v4238
    %v4243 = vand.u32 2147483647, %v4233
    %vm4244 = vcmp.eq.f32.partialorder %v4243, 8.507059e+37
    %v4245 = vand.u32 %v4233, 2147483648
    %v4246 = vor.u32 1.1754944e-38, %v4245
    %v4247 = vsel %vm4244, %v4246, %v4242
    %v4248 = vmul.f32 1.0, %v4247
    %v4249 = vmul.f32 %v4228, %v4190
    %v4250 = vmul.f32 %v4209, %v4229
    %v4251 = vadd.f32 %v4249, %v4250
    %v4252 = vtanh.pop %v4251
    %v4253 = vmul.f32 %v4248, %v4252
    %4254 = vst [vmem:[#allocation2] sm:$0xff] %v4253
    %4255 = vst [vmem:[#allocation3] sm:$0xff] %v4251
    %v4256 = vld [vmem:[%s367] sm:$0xff]
    %v4257 = vpack.c.bf16 %v4253, %v4253
    %v4258 = vpack.c.bf16 %v4256, %v4256
    %v4259 = vld [vmem:[#allocation4] sm:$0xff]
    %v4260 = vld [vmem:[#allocation4 + $0x8] sm:$0xff]
    %v4261 = vld [vmem:[#allocation4 + $0x10] sm:$0xff]
    %v4262 = vld [vmem:[#allocation4 + $0x18] sm:$0xff]
    %v4263 = vld [vmem:[#allocation4 + $0x20] sm:$0xff]
    %v4264 = vld [vmem:[#allocation4 + $0x28] sm:$0xff]
    %v4265 = vld [vmem:[#allocation4 + $0x30] sm:$0xff]
    %v4266 = vld [vmem:[#allocation4 + $0x38] sm:$0xff]
    %v4267 = vld [vmem:[#allocation4 + $0x40] sm:$0xff]
    %v4268 = vld [vmem:[#allocation4 + $0x48] sm:$0xff]
    %v4269 = vld [vmem:[#allocation4 + $0x50] sm:$0xff]
    %v4270 = vld [vmem:[#allocation4 + $0x58] sm:$0xff]
    %v4271 = vld [vmem:[#allocation4 + $0x60] sm:$0xff]
    %v4272 = vld [vmem:[#allocation4 + $0x68] sm:$0xff]
    %v4273 = vld [vmem:[#allocation4 + $0x70] sm:$0xff]
    %v4274 = vld [vmem:[#allocation4 + $0x78] sm:$0xff]
    %v4275 = vld [vmem:[#allocation4 + $0x80] sm:$0xff]
    %v4276 = vld [vmem:[#allocation4 + $0x88] sm:$0xff]
    %v4277 = vld [vmem:[#allocation4 + $0x90] sm:$0xff]
    %v4278 = vld [vmem:[#allocation4 + $0x98] sm:$0xff]
    %v4279 = vld [vmem:[#allocation4 + $0xa0] sm:$0xff]
    %v4280 = vld [vmem:[#allocation4 + $0xa8] sm:$0xff]
    %v4281 = vld [vmem:[#allocation4 + $0xb0] sm:$0xff]
    %v4282 = vld [vmem:[#allocation4 + $0xb8] sm:$0xff]
    %v4283 = vld [vmem:[#allocation4 + $0xc0] sm:$0xff]
    %v4284 = vld [vmem:[#allocation4 + $0xc8] sm:$0xff]
    %v4285 = vld [vmem:[#allocation4 + $0xd0] sm:$0xff]
    %v4286 = vld [vmem:[#allocation4 + $0xd8] sm:$0xff]
    %v4287 = vld [vmem:[#allocation4 + $0xe0] sm:$0xff]
    %v4288 = vld [vmem:[#allocation4 + $0xe8] sm:$0xff]
    %v4289 = vld [vmem:[#allocation4 + $0xf0] sm:$0xff]
    %v4290 = vld [vmem:[#allocation4 + $0xf8] sm:$0xff]
    %v4291 = vld [vmem:[#allocation4 + $0x100] sm:$0xff]
    %v4292 = vld [vmem:[#allocation4 + $0x108] sm:$0xff]
    %v4293 = vld [vmem:[#allocation4 + $0x110] sm:$0xff]
    %v4294 = vld [vmem:[#allocation4 + $0x118] sm:$0xff]
    %v4295 = vld [vmem:[#allocation4 + $0x120] sm:$0xff]
    %v4296 = vld [vmem:[#allocation4 + $0x128] sm:$0xff]
    %v4297 = vld [vmem:[#allocation4 + $0x130] sm:$0xff]
    %v4298 = vld [vmem:[#allocation4 + $0x138] sm:$0xff]
    %v4299 = vld [vmem:[#allocation4 + $0x140] sm:$0xff]
    %v4300 = vld [vmem:[#allocation4 + $0x148] sm:$0xff]
    %v4301 = vld [vmem:[#allocation4 + $0x150] sm:$0xff]
    %v4302 = vld [vmem:[#allocation4 + $0x158] sm:$0xff]
    %v4303 = vld [vmem:[#allocation4 + $0x160] sm:$0xff]
    %v4304 = vld [vmem:[#allocation4 + $0x168] sm:$0xff]
    %v4305 = vld [vmem:[#allocation4 + $0x170] sm:$0xff]
    %v4306 = vld [vmem:[#allocation4 + $0x178] sm:$0xff]
    %v4307 = vld [vmem:[#allocation4 + $0x180] sm:$0xff]
    %v4308 = vld [vmem:[#allocation4 + $0x188] sm:$0xff]
    %v4309 = vld [vmem:[#allocation4 + $0x190] sm:$0xff]
    %v4310 = vld [vmem:[#allocation4 + $0x198] sm:$0xff]
    %v4311 = vld [vmem:[#allocation4 + $0x1a0] sm:$0xff]
    %v4312 = vld [vmem:[#allocation4 + $0x1a8] sm:$0xff]
    %v4313 = vld [vmem:[#allocation4 + $0x1b0] sm:$0xff]
    %v4314 = vld [vmem:[#allocation4 + $0x1b8] sm:$0xff]
    %v4315 = vld [vmem:[#allocation4 + $0x1c0] sm:$0xff]
    %v4316 = vld [vmem:[#allocation4 + $0x1c8] sm:$0xff]
    %v4317 = vld [vmem:[#allocation4 + $0x1d0] sm:$0xff]
    %v4318 = vld [vmem:[#allocation4 + $0x1d8] sm:$0xff]
    %v4319 = vld [vmem:[#allocation4 + $0x1e0] sm:$0xff]
    %v4320 = vld [vmem:[#allocation4 + $0x1e8] sm:$0xff]
    %v4321 = vld [vmem:[#allocation4 + $0x1f0] sm:$0xff]
    %v4322 = vld [vmem:[#allocation4 + $0x1f8] sm:$0xff]
    %v4323 = vld [vmem:[%s3] sm:$0xf]
    %v4325 = vperm.slane %v4323, 0
    %v4326 = vperm.slane %v4323, 1
    %v4327 = vperm.slane %v4323, 2
    %v4328 = vperm.slane %v4323, 3
    %v4397 = vunpack.c.l.b16 %v4259
    %v4398 = vunpack.c.h.b16 %v4259
    %v4399 = vunpack.c.l.b16 %v4260
    %v4400 = vunpack.c.h.b16 %v4260
    %v4401 = vunpack.c.l.b16 %v4261
    %v4402 = vunpack.c.h.b16 %v4261
    %v4403 = vunpack.c.l.b16 %v4262
    %v4404 = vunpack.c.h.b16 %v4262
    %v4405 = vunpack.c.l.b16 %v4263
    %v4406 = vunpack.c.h.b16 %v4263
    %v4407 = vunpack.c.l.b16 %v4264
    %v4408 = vunpack.c.h.b16 %v4264
    %v4409 = vunpack.c.l.b16 %v4265
    %v4410 = vunpack.c.h.b16 %v4265
    %v4411 = vunpack.c.l.b16 %v4266
    %v4412 = vunpack.c.h.b16 %v4266
    %v4413 = vunpack.c.l.b16 %v4267
    %v4414 = vunpack.c.h.b16 %v4267
    %v4415 = vunpack.c.l.b16 %v4268
    %v4416 = vunpack.c.h.b16 %v4268
    %v4417 = vunpack.c.l.b16 %v4269
    %v4418 = vunpack.c.h.b16 %v4269
    %v4419 = vunpack.c.l.b16 %v4270
    %v4420 = vunpack.c.h.b16 %v4270
    %v4421 = vunpack.c.l.b16 %v4271
    %v4422 = vunpack.c.h.b16 %v4271
    %v4423 = vunpack.c.l.b16 %v4272
    %v4424 = vunpack.c.h.b16 %v4272
    %v4425 = vunpack.c.l.b16 %v4273
    %v4426 = vunpack.c.h.b16 %v4273
    %v4427 = vunpack.c.l.b16 %v4274
    %v4428 = vunpack.c.h.b16 %v4274
    %v4429 = vunpack.c.l.b16 %v4275
    %v4430 = vunpack.c.h.b16 %v4275
    %v4431 = vunpack.c.l.b16 %v4276
    %v4432 = vunpack.c.h.b16 %v4276
    %v4433 = vunpack.c.l.b16 %v4277
    %v4434 = vunpack.c.h.b16 %v4277
    %v4435 = vunpack.c.l.b16 %v4278
    %v4436 = vunpack.c.h.b16 %v4278
    %v4437 = vunpack.c.l.b16 %v4279
    %v4438 = vunpack.c.h.b16 %v4279
    %v4439 = vunpack.c.l.b16 %v4280
    %v4440 = vunpack.c.h.b16 %v4280
    %v4441 = vunpack.c.l.b16 %v4281
    %v4442 = vunpack.c.h.b16 %v4281
    %v4443 = vunpack.c.l.b16 %v4282
    %v4444 = vunpack.c.h.b16 %v4282
    %v4445 = vunpack.c.l.b16 %v4283
    %v4446 = vunpack.c.h.b16 %v4283
    %v4447 = vunpack.c.l.b16 %v4284
    %v4448 = vunpack.c.h.b16 %v4284
    %v4449 = vunpack.c.l.b16 %v4285
    %v4450 = vunpack.c.h.b16 %v4285
    %v4451 = vunpack.c.l.b16 %v4286
    %v4452 = vunpack.c.h.b16 %v4286
    %v4453 = vunpack.c.l.b16 %v4287
    %v4454 = vunpack.c.h.b16 %v4287
    %v4455 = vunpack.c.l.b16 %v4288
    %v4456 = vunpack.c.h.b16 %v4288
    %v4457 = vunpack.c.l.b16 %v4289
    %v4458 = vunpack.c.h.b16 %v4289
    %v4459 = vunpack.c.l.b16 %v4290
    %v4460 = vunpack.c.h.b16 %v4290
    %v4461 = vunpack.c.l.b16 %v4291
    %v4462 = vunpack.c.h.b16 %v4291
    %v4463 = vunpack.c.l.b16 %v4292
    %v4464 = vunpack.c.h.b16 %v4292
    %v4465 = vunpack.c.l.b16 %v4293
    %v4466 = vunpack.c.h.b16 %v4293
    %v4467 = vunpack.c.l.b16 %v4294
    %v4468 = vunpack.c.h.b16 %v4294
    %v4469 = vunpack.c.l.b16 %v4295
    %v4470 = vunpack.c.h.b16 %v4295
    %v4471 = vunpack.c.l.b16 %v4296
    %v4472 = vunpack.c.h.b16 %v4296
    %v4473 = vunpack.c.l.b16 %v4297
    %v4474 = vunpack.c.h.b16 %v4297
    %v4475 = vunpack.c.l.b16 %v4298
    %v4476 = vunpack.c.h.b16 %v4298
    %v4477 = vunpack.c.l.b16 %v4299
    %v4478 = vunpack.c.h.b16 %v4299
    %v4479 = vunpack.c.l.b16 %v4300
    %v4480 = vunpack.c.h.b16 %v4300
    %v4481 = vunpack.c.l.b16 %v4301
    %v4482 = vunpack.c.h.b16 %v4301
    %v4483 = vunpack.c.l.b16 %v4302
    %v4484 = vunpack.c.h.b16 %v4302
    %v4485 = vunpack.c.l.b16 %v4303
    %v4486 = vunpack.c.h.b16 %v4303
    %v4487 = vunpack.c.l.b16 %v4304
    %v4488 = vunpack.c.h.b16 %v4304
    %v4489 = vunpack.c.l.b16 %v4305
    %v4490 = vunpack.c.h.b16 %v4305
    %v4491 = vunpack.c.l.b16 %v4306
    %v4492 = vunpack.c.h.b16 %v4306
    %v4493 = vunpack.c.l.b16 %v4307
    %v4494 = vunpack.c.h.b16 %v4307
    %v4495 = vunpack.c.l.b16 %v4308
    %v4496 = vunpack.c.h.b16 %v4308
    %v4497 = vunpack.c.l.b16 %v4309
    %v4498 = vunpack.c.h.b16 %v4309
    %v4499 = vunpack.c.l.b16 %v4310
    %v4500 = vunpack.c.h.b16 %v4310
    %v4501 = vunpack.c.l.b16 %v4311
    %v4502 = vunpack.c.h.b16 %v4311
    %v4503 = vunpack.c.l.b16 %v4312
    %v4504 = vunpack.c.h.b16 %v4312
    %v4505 = vunpack.c.l.b16 %v4313
    %v4506 = vunpack.c.h.b16 %v4313
    %v4507 = vunpack.c.l.b16 %v4314
    %v4508 = vunpack.c.h.b16 %v4314
    %v4509 = vunpack.c.l.b16 %v4315
    %v4510 = vunpack.c.h.b16 %v4315
    %v4511 = vunpack.c.l.b16 %v4316
    %v4512 = vunpack.c.h.b16 %v4316
    %v4513 = vunpack.c.l.b16 %v4317
    %v4514 = vunpack.c.h.b16 %v4317
    %v4515 = vunpack.c.l.b16 %v4318
    %v4516 = vunpack.c.h.b16 %v4318
    %v4517 = vunpack.c.l.b16 %v4319
    %v4518 = vunpack.c.h.b16 %v4319
    %v4519 = vunpack.c.l.b16 %v4320
    %v4520 = vunpack.c.h.b16 %v4320
    %v4521 = vunpack.c.l.b16 %v4321
    %v4522 = vunpack.c.h.b16 %v4321
    %v4523 = vunpack.c.l.b16 %v4322
    %v4524 = vunpack.c.h.b16 %v4322
    %v4525 = vpack.c.b16 %v4401, %v4397
    %v4526 = vpack.c.b16 %v4402, %v4398
    %v4527 = vpack.c.b16 %v4403, %v4399
    %v4528 = vpack.c.b16 %v4404, %v4400
    %v4529 = vpack.c.b16 %v4409, %v4405
    %v4530 = vpack.c.b16 %v4410, %v4406
    %v4531 = vpack.c.b16 %v4411, %v4407
    %v4532 = vpack.c.b16 %v4412, %v4408
    %v4533 = vpack.c.b16 %v4417, %v4413
    %v4534 = vpack.c.b16 %v4418, %v4414
    %v4535 = vpack.c.b16 %v4419, %v4415
    %v4536 = vpack.c.b16 %v4420, %v4416
    %v4537 = vpack.c.b16 %v4425, %v4421
    %v4538 = vpack.c.b16 %v4426, %v4422
    %v4539 = vpack.c.b16 %v4427, %v4423
    %v4540 = vpack.c.b16 %v4428, %v4424
    %v4541 = vpack.c.b16 %v4433, %v4429
    %v4542 = vpack.c.b16 %v4434, %v4430
    %v4543 = vpack.c.b16 %v4435, %v4431
    %v4544 = vpack.c.b16 %v4436, %v4432
    %v4545 = vpack.c.b16 %v4441, %v4437
    %v4546 = vpack.c.b16 %v4442, %v4438
    %v4547 = vpack.c.b16 %v4443, %v4439
    %v4548 = vpack.c.b16 %v4444, %v4440
    %v4549 = vpack.c.b16 %v4449, %v4445
    %v4550 = vpack.c.b16 %v4450, %v4446
    %v4551 = vpack.c.b16 %v4451, %v4447
    %v4552 = vpack.c.b16 %v4452, %v4448
    %v4553 = vpack.c.b16 %v4457, %v4453
    %v4554 = vpack.c.b16 %v4458, %v4454
    %v4555 = vpack.c.b16 %v4459, %v4455
    %v4556 = vpack.c.b16 %v4460, %v4456
    %v4557 = vpack.c.b16 %v4465, %v4461
    %v4558 = vpack.c.b16 %v4466, %v4462
    %v4559 = vpack.c.b16 %v4467, %v4463
    %v4560 = vpack.c.b16 %v4468, %v4464
    %v4561 = vpack.c.b16 %v4473, %v4469
    %v4562 = vpack.c.b16 %v4474, %v4470
    %v4563 = vpack.c.b16 %v4475, %v4471
    %v4564 = vpack.c.b16 %v4476, %v4472
    %v4565 = vpack.c.b16 %v4481, %v4477
    %v4566 = vpack.c.b16 %v4482, %v4478
    %v4567 = vpack.c.b16 %v4483, %v4479
    %v4568 = vpack.c.b16 %v4484, %v4480
    %v4569 = vpack.c.b16 %v4489, %v4485
    %v4570 = vpack.c.b16 %v4490, %v4486
    %v4571 = vpack.c.b16 %v4491, %v4487
    %v4572 = vpack.c.b16 %v4492, %v4488
    %v4573 = vpack.c.b16 %v4497, %v4493
    %v4574 = vpack.c.b16 %v4498, %v4494
    %v4575 = vpack.c.b16 %v4499, %v4495
    %v4576 = vpack.c.b16 %v4500, %v4496
    %v4577 = vpack.c.b16 %v4505, %v4501
    %v4578 = vpack.c.b16 %v4506, %v4502
    %v4579 = vpack.c.b16 %v4507, %v4503
    %v4580 = vpack.c.b16 %v4508, %v4504
    %v4581 = vpack.c.b16 %v4513, %v4509
    %v4582 = vpack.c.b16 %v4514, %v4510
    %v4583 = vpack.c.b16 %v4515, %v4511
    %v4584 = vpack.c.b16 %v4516, %v4512
    %v4585 = vpack.c.b16 %v4521, %v4517
    %v4586 = vpack.c.b16 %v4522, %v4518
    %v4587 = vpack.c.b16 %v4523, %v4519
    %v4588 = vpack.c.b16 %v4524, %v4520
    %4653 = vmatpush.bf16.msra.mxu0 %v4553
    %4654 = vmatpush.bf16.msra.mxu0 %v4549
    %4655 = vmatpush.bf16.msra.mxu0 %v4545
    %4656 = vmatpush.bf16.msra.mxu0 %v4541
    %4657 = vmatpush.bf16.msra.mxu0 %v4537
    %4658 = vmatpush.bf16.msra.mxu0 %v4533
    %4659 = vmatpush.bf16.msra.mxu0 %v4529
    %4660 = vmatpush.bf16.msra.mxu0 %v4525
    %4661 = vmatmul.bf16.gmra.mxu0 %v4257
    %v4662 = vpop.f32.mrf.mxu0
    %v4663 = vadd.f32 %v4325, %v4662
    %v4664 = vpop.f32.mrf.mxu0
    %4665 = vdwg.mxu0
    %4666 = vmatpush.bf16.msra.mxu0 %v4585
    %4667 = vmatpush.bf16.msra.mxu0 %v4581
    %4668 = vmatpush.bf16.msra.mxu0 %v4577
    %4669 = vmatpush.bf16.msra.mxu0 %v4573
    %4670 = vmatpush.bf16.msra.mxu0 %v4569
    %4671 = vmatpush.bf16.msra.mxu0 %v4565
    %4672 = vmatpush.bf16.msra.mxu0 %v4561
    %4673 = vmatpush.bf16.msra.mxu0 %v4557
    %4674 = vmatmul.bf16.gmra.mxu0 %v4258
    %v4675 = vpop.f32.mrf.mxu0
    %v4676 = vadd.f32 %v4663, %v4675
    %v4677 = vpop.f32.mrf.mxu0
    %4678 = vdwg.mxu0
    %4679 = vmatpush.bf16.msra.mxu0 %v4554
    %4680 = vmatpush.bf16.msra.mxu0 %v4550
    %4681 = vmatpush.bf16.msra.mxu0 %v4546
    %4682 = vmatpush.bf16.msra.mxu0 %v4542
    %4683 = vmatpush.bf16.msra.mxu0 %v4538
    %4684 = vmatpush.bf16.msra.mxu0 %v4534
    %4685 = vmatpush.bf16.msra.mxu0 %v4530
    %4686 = vmatpush.bf16.msra.mxu0 %v4526
    %4687 = vmatmul.bf16.gmra.mxu0 %v4257
    %v4688 = vpop.f32.mrf.mxu0
    %v4689 = vadd.f32 %v4326, %v4688
    %v4690 = vpop.f32.mrf.mxu0
    %4691 = vdwg.mxu0
    %4692 = vmatpush.bf16.msra.mxu0 %v4586
    %4693 = vmatpush.bf16.msra.mxu0 %v4582
    %4694 = vmatpush.bf16.msra.mxu0 %v4578
    %4695 = vmatpush.bf16.msra.mxu0 %v4574
    %4696 = vmatpush.bf16.msra.mxu0 %v4570
    %4697 = vmatpush.bf16.msra.mxu0 %v4566
    %4698 = vmatpush.bf16.msra.mxu0 %v4562
    %4699 = vmatpush.bf16.msra.mxu0 %v4558
    %4700 = vmatmul.bf16.gmra.mxu0 %v4258
    %v4701 = vpop.f32.mrf.mxu0
    %v4702 = vadd.f32 %v4689, %v4701
    %v4703 = vpop.f32.mrf.mxu0
    %4704 = vdwg.mxu0
    %4705 = vmatpush.bf16.msra.mxu0 %v4555
    %4706 = vmatpush.bf16.msra.mxu0 %v4551
    %4707 = vmatpush.bf16.msra.mxu0 %v4547
    %4708 = vmatpush.bf16.msra.mxu0 %v4543
    %4709 = vmatpush.bf16.msra.mxu0 %v4539
    %4710 = vmatpush.bf16.msra.mxu0 %v4535
    %4711 = vmatpush.bf16.msra.mxu0 %v4531
    %4712 = vmatpush.bf16.msra.mxu0 %v4527
    %4713 = vmatmul.bf16.gmra.mxu0 %v4257
    %v4714 = vpop.f32.mrf.mxu0
    %v4715 = vadd.f32 %v4327, %v4714
    %v4716 = vpop.f32.mrf.mxu0
    %4717 = vdwg.mxu0
    %4718 = vmatpush.bf16.msra.mxu0 %v4587
    %4719 = vmatpush.bf16.msra.mxu0 %v4583
    %4720 = vmatpush.bf16.msra.mxu0 %v4579
    %4721 = vmatpush.bf16.msra.mxu0 %v4575
    %4722 = vmatpush.bf16.msra.mxu0 %v4571
    %4723 = vmatpush.bf16.msra.mxu0 %v4567
    %4724 = vmatpush.bf16.msra.mxu0 %v4563
    %4725 = vmatpush.bf16.msra.mxu0 %v4559
    %4726 = vmatmul.bf16.gmra.mxu0 %v4258
    %v4727 = vpop.f32.mrf.mxu0
    %v4728 = vadd.f32 %v4715, %v4727
    %v4729 = vpop.f32.mrf.mxu0
    %4730 = vdwg.mxu0
    %4731 = vmatpush.bf16.msra.mxu0 %v4556
    %4732 = vmatpush.bf16.msra.mxu0 %v4552
    %4733 = vmatpush.bf16.msra.mxu0 %v4548
    %4734 = vmatpush.bf16.msra.mxu0 %v4544
    %4735 = vmatpush.bf16.msra.mxu0 %v4540
    %4736 = vmatpush.bf16.msra.mxu0 %v4536
    %4737 = vmatpush.bf16.msra.mxu0 %v4532
    %4738 = vmatpush.bf16.msra.mxu0 %v4528
    %4739 = vmatmul.bf16.gmra.mxu0 %v4257
    %v4740 = vpop.f32.mrf.mxu0
    %v4741 = vadd.f32 %v4328, %v4740
    %v4742 = vpop.f32.mrf.mxu0
    %4743 = vdwg.mxu0
    %4744 = vmatpush.bf16.msra.mxu0 %v4588
    %4745 = vmatpush.bf16.msra.mxu0 %v4584
    %4746 = vmatpush.bf16.msra.mxu0 %v4580
    %4747 = vmatpush.bf16.msra.mxu0 %v4576
    %4748 = vmatpush.bf16.msra.mxu0 %v4572
    %4749 = vmatpush.bf16.msra.mxu0 %v4568
    %4750 = vmatpush.bf16.msra.mxu0 %v4564
    %4751 = vmatpush.bf16.msra.mxu0 %v4560
    %4752 = vmatmul.bf16.gmra.mxu0 %v4258
    %v4753 = vpop.f32.mrf.mxu0
    %v4754 = vadd.f32 %v4741, %v4753
    %v4755 = vpop.f32.mrf.mxu0
    %4756 = vdwg.mxu0
    %v4757 = vld [vmem:[%s869] sm:$0xff]
    %v4758 = vxor.u32 %v4676, 2147483648
    %v4759 = vmul.f32 %v4758, 1.442695
    %v4760 = vpow.pop %v4759
    %v4761 = vadd.f32 %v4760, 1.0
    %v4762 = vrcp.pop %v4761
    %v4763 = vmul.f32 %v4761, %v4762
    %v4764 = vsub.f32 1.0, %v4763
    %v4765 = vmul.f32 %v4762, %v4764
    %v4766 = vadd.f32 %v4762, %v4765
    %vm4767 = vweird.f32 %v4761
    %vm4768 = vweird.f32 %v4762
    %vm4769 = vmor %vm4767, %vm4768
    %v4770 = vsel %vm4769, %v4762, %v4766
    %v4771 = vand.u32 2147483647, %v4761
    %vm4772 = vcmp.eq.f32.partialorder %v4771, 8.507059e+37
    %v4773 = vand.u32 %v4761, 2147483648
    %v4774 = vor.u32 1.1754944e-38, %v4773
    %v4775 = vsel %vm4772, %v4774, %v4770
    %v4776 = vmul.f32 1.0, %v4775
    %v4777 = vxor.u32 %v4702, 2147483648
    %v4778 = vmul.f32 %v4777, 1.442695
    %v4779 = vpow.pop %v4778
    %v4780 = vadd.f32 %v4779, 1.0
    %v4781 = vrcp.pop %v4780
    %v4782 = vmul.f32 %v4780, %v4781
    %v4783 = vsub.f32 1.0, %v4782
    %v4784 = vmul.f32 %v4781, %v4783
    %v4785 = vadd.f32 %v4781, %v4784
    %vm4786 = vweird.f32 %v4780
    %vm4787 = vweird.f32 %v4781
    %vm4788 = vmor %vm4786, %vm4787
    %v4789 = vsel %vm4788, %v4781, %v4785
    %v4790 = vand.u32 2147483647, %v4780
    %vm4791 = vcmp.eq.f32.partialorder %v4790, 8.507059e+37
    %v4792 = vand.u32 %v4780, 2147483648
    %v4793 = vor.u32 1.1754944e-38, %v4792
    %v4794 = vsel %vm4791, %v4793, %v4789
    %v4795 = vmul.f32 1.0, %v4794
    %v4796 = vtanh.pop %v4728
    %v4797 = vxor.u32 %v4754, 2147483648
    %v4798 = vmul.f32 %v4797, 1.442695
    %v4799 = vpow.pop %v4798
    %v4800 = vadd.f32 %v4799, 1.0
    %v4801 = vrcp.pop %v4800
    %v4802 = vmul.f32 %v4800, %v4801
    %v4803 = vsub.f32 1.0, %v4802
    %v4804 = vmul.f32 %v4801, %v4803
    %v4805 = vadd.f32 %v4801, %v4804
    %vm4806 = vweird.f32 %v4800
    %vm4807 = vweird.f32 %v4801
    %vm4808 = vmor %vm4806, %vm4807
    %v4809 = vsel %vm4808, %v4801, %v4805
    %v4810 = vand.u32 2147483647, %v4800
    %vm4811 = vcmp.eq.f32.partialorder %v4810, 8.507059e+37
    %v4812 = vand.u32 %v4800, 2147483648
    %v4813 = vor.u32 1.1754944e-38, %v4812
    %v4814 = vsel %vm4811, %v4813, %v4809
    %v4815 = vmul.f32 1.0, %v4814
    %v4816 = vmul.f32 %v4795, %v4757
    %v4817 = vmul.f32 %v4776, %v4796
    %v4818 = vadd.f32 %v4816, %v4817
    %v4819 = vtanh.pop %v4818
    %v4820 = vmul.f32 %v4815, %v4819
    %4821 = vst [vmem:[%s367] sm:$0xff] %v4820
    %4822 = vst [vmem:[%s869] sm:$0xff] %v4818
    %v4823 = vpack.c.bf16 %v4820, %v4820
    %v4824 = vld [vmem:[%s4] sm:$0xf]
    %v4825 = vld [vmem:[%s4 + $0x4] sm:$0xf]
    %v4826 = vld [vmem:[%s4 + $0x8] sm:$0xf]
    %v4827 = vld [vmem:[%s4 + $0xc] sm:$0xf]
    %v4828 = vld [vmem:[%s4 + $0x10] sm:$0xf]
    %v4829 = vld [vmem:[%s4 + $0x14] sm:$0xf]
    %v4830 = vld [vmem:[%s4 + $0x18] sm:$0xf]
    %v4831 = vld [vmem:[%s4 + $0x1c] sm:$0xf]
    %v4832 = vld [vmem:[%s4 + $0x20] sm:$0xf]
    %v4833 = vld [vmem:[%s4 + $0x24] sm:$0xf]
    %v4834 = vld [vmem:[%s4 + $0x28] sm:$0xf]
    %v4835 = vld [vmem:[%s4 + $0x2c] sm:$0xf]
    %v4836 = vld [vmem:[%s4 + $0x30] sm:$0xf]
    %v4837 = vld [vmem:[%s4 + $0x34] sm:$0xf]
    %v4838 = vld [vmem:[%s4 + $0x38] sm:$0xf]
    %v4839 = vld [vmem:[%s4 + $0x3c] sm:$0xf]
    %v4840 = vld [vmem:[%s5] sm:$0x1]
    %v4842 = vperm.slane %v4840, 0
    %v4860 = vunpack.c.l.b16 %v4824
    %v4861 = vunpack.c.l.b16 %v4825
    %v4862 = vunpack.c.l.b16 %v4826
    %v4863 = vunpack.c.l.b16 %v4827
    %v4864 = vunpack.c.l.b16 %v4828
    %v4865 = vunpack.c.l.b16 %v4829
    %v4866 = vunpack.c.l.b16 %v4830
    %v4867 = vunpack.c.l.b16 %v4831
    %v4868 = vunpack.c.l.b16 %v4832
    %v4869 = vunpack.c.l.b16 %v4833
    %v4870 = vunpack.c.l.b16 %v4834
    %v4871 = vunpack.c.l.b16 %v4835
    %v4872 = vunpack.c.l.b16 %v4836
    %v4873 = vunpack.c.l.b16 %v4837
    %v4874 = vunpack.c.l.b16 %v4838
    %v4875 = vunpack.c.l.b16 %v4839
    %v4876 = vpack.c.b16 %v4861, %v4860
    %v4877 = vpack.c.b16 %v4863, %v4862
    %v4878 = vpack.c.b16 %v4865, %v4864
    %v4879 = vpack.c.b16 %v4867, %v4866
    %v4880 = vpack.c.b16 %v4869, %v4868
    %v4881 = vpack.c.b16 %v4871, %v4870
    %v4882 = vpack.c.b16 %v4873, %v4872
    %v4883 = vpack.c.b16 %v4875, %v4874
    %4892 = vmatpush.bf16.msra.mxu0 %v4883
    %4893 = vmatpush.bf16.msra.mxu0 %v4882
    %4894 = vmatpush.bf16.msra.mxu0 %v4881
    %4895 = vmatpush.bf16.msra.mxu0 %v4880
    %4896 = vmatpush.bf16.msra.mxu0 %v4879
    %4897 = vmatpush.bf16.msra.mxu0 %v4878
    %4898 = vmatpush.bf16.msra.mxu0 %v4877
    %4899 = vmatpush.bf16.msra.mxu0 %v4876
    %4900 = vmatmul.bf16.gmra.mxu0 %v4823
    %v4901 = vpop.f32.mrf.mxu0
    %v4902 = vadd.f32 %v4842, %v4901
    %v4903 = vpop.f32.mrf.mxu0
    %4904 = vdwg.mxu0
    %s4905 = scalar_lea.vmem %s6, 32
    %4906 = vst [vmem:[%s4905] sm:$0xff] %v4902
    %s4907 = scalar_lea.vmem %s0, 160
    %v4908 = vld [vmem:[%s4907] sm:$0xff]
    %v4909 = vld [vmem:[%s4907 + $0x8] sm:$0xff]
    %v4910 = vld [vmem:[%s4907 + $0x10] sm:$0xff]
    %v4911 = vld [vmem:[%s4907 + $0x18] sm:$0xff]
    %v4912 = vld [vmem:[#allocation2] sm:$0xff]
    %v4913 = vpack.c.bf16 %v4912, %v4912
    %v4914 = vld [vmem:[%s1] sm:$0xff]
    %v4915 = vld [vmem:[%s1 + $0x8] sm:$0xff]
    %v4916 = vld [vmem:[%s1 + $0x10] sm:$0xff]
    %v4917 = vld [vmem:[%s1 + $0x18] sm:$0xff]
    %v4918 = vld [vmem:[%s1 + $0x20] sm:$0xff]
    %v4919 = vld [vmem:[%s1 + $0x28] sm:$0xff]
    %v4920 = vld [vmem:[%s1 + $0x30] sm:$0xff]
    %v4921 = vld [vmem:[%s1 + $0x38] sm:$0xff]
    %v4922 = vld [vmem:[%s1 + $0x40] sm:$0xff]
    %v4923 = vld [vmem:[%s1 + $0x48] sm:$0xff]
    %v4924 = vld [vmem:[%s1 + $0x50] sm:$0xff]
    %v4925 = vld [vmem:[%s1 + $0x58] sm:$0xff]
    %v4926 = vld [vmem:[%s1 + $0x60] sm:$0xff]
    %v4927 = vld [vmem:[%s1 + $0x68] sm:$0xff]
    %v4928 = vld [vmem:[%s1 + $0x70] sm:$0xff]
    %v4929 = vld [vmem:[%s1 + $0x78] sm:$0xff]
    %v4930 = vld [vmem:[%s1 + $0x80] sm:$0xff]
    %v4931 = vld [vmem:[%s1 + $0x88] sm:$0xff]
    %v4932 = vld [vmem:[%s1 + $0x90] sm:$0xff]
    %v4933 = vld [vmem:[%s1 + $0x98] sm:$0xff]
    %v4934 = vld [vmem:[%s1 + $0xa0] sm:$0xff]
    %v4935 = vld [vmem:[%s1 + $0xa8] sm:$0xff]
    %v4936 = vld [vmem:[%s1 + $0xb0] sm:$0xff]
    %v4937 = vld [vmem:[%s1 + $0xb8] sm:$0xff]
    %v4938 = vld [vmem:[%s1 + $0xc0] sm:$0xff]
    %v4939 = vld [vmem:[%s1 + $0xc8] sm:$0xff]
    %v4940 = vld [vmem:[%s1 + $0xd0] sm:$0xff]
    %v4941 = vld [vmem:[%s1 + $0xd8] sm:$0xff]
    %v4942 = vld [vmem:[%s1 + $0xe0] sm:$0xff]
    %v4943 = vld [vmem:[%s1 + $0xe8] sm:$0xff]
    %v4944 = vld [vmem:[%s1 + $0xf0] sm:$0xff]
    %v4945 = vld [vmem:[%s1 + $0xf8] sm:$0xff]
    %v4978 = vunpack.c.l.b16 %v4914
    %v4979 = vunpack.c.h.b16 %v4914
    %v4980 = vunpack.c.l.b16 %v4915
    %v4981 = vunpack.c.h.b16 %v4915
    %v4982 = vunpack.c.l.b16 %v4916
    %v4983 = vunpack.c.h.b16 %v4916
    %v4984 = vunpack.c.l.b16 %v4917
    %v4985 = vunpack.c.h.b16 %v4917
    %v4986 = vunpack.c.l.b16 %v4918
    %v4987 = vunpack.c.h.b16 %v4918
    %v4988 = vunpack.c.l.b16 %v4919
    %v4989 = vunpack.c.h.b16 %v4919
    %v4990 = vunpack.c.l.b16 %v4920
    %v4991 = vunpack.c.h.b16 %v4920
    %v4992 = vunpack.c.l.b16 %v4921
    %v4993 = vunpack.c.h.b16 %v4921
    %v4994 = vunpack.c.l.b16 %v4922
    %v4995 = vunpack.c.h.b16 %v4922
    %v4996 = vunpack.c.l.b16 %v4923
    %v4997 = vunpack.c.h.b16 %v4923
    %v4998 = vunpack.c.l.b16 %v4924
    %v4999 = vunpack.c.h.b16 %v4924
    %v5000 = vunpack.c.l.b16 %v4925
    %v5001 = vunpack.c.h.b16 %v4925
    %v5002 = vunpack.c.l.b16 %v4926
    %v5003 = vunpack.c.h.b16 %v4926
    %v5004 = vunpack.c.l.b16 %v4927
    %v5005 = vunpack.c.h.b16 %v4927
    %v5006 = vunpack.c.l.b16 %v4928
    %v5007 = vunpack.c.h.b16 %v4928
    %v5008 = vunpack.c.l.b16 %v4929
    %v5009 = vunpack.c.h.b16 %v4929
    %v5010 = vunpack.c.l.b16 %v4930
    %v5011 = vunpack.c.h.b16 %v4930
    %v5012 = vunpack.c.l.b16 %v4931
    %v5013 = vunpack.c.h.b16 %v4931
    %v5014 = vunpack.c.l.b16 %v4932
    %v5015 = vunpack.c.h.b16 %v4932
    %v5016 = vunpack.c.l.b16 %v4933
    %v5017 = vunpack.c.h.b16 %v4933
    %v5018 = vunpack.c.l.b16 %v4934
    %v5019 = vunpack.c.h.b16 %v4934
    %v5020 = vunpack.c.l.b16 %v4935
    %v5021 = vunpack.c.h.b16 %v4935
    %v5022 = vunpack.c.l.b16 %v4936
    %v5023 = vunpack.c.h.b16 %v4936
    %v5024 = vunpack.c.l.b16 %v4937
    %v5025 = vunpack.c.h.b16 %v4937
    %v5026 = vunpack.c.l.b16 %v4938
    %v5027 = vunpack.c.h.b16 %v4938
    %v5028 = vunpack.c.l.b16 %v4939
    %v5029 = vunpack.c.h.b16 %v4939
    %v5030 = vunpack.c.l.b16 %v4940
    %v5031 = vunpack.c.h.b16 %v4940
    %v5032 = vunpack.c.l.b16 %v4941
    %v5033 = vunpack.c.h.b16 %v4941
    %v5034 = vunpack.c.l.b16 %v4942
    %v5035 = vunpack.c.h.b16 %v4942
    %v5036 = vunpack.c.l.b16 %v4943
    %v5037 = vunpack.c.h.b16 %v4943
    %v5038 = vunpack.c.l.b16 %v4944
    %v5039 = vunpack.c.h.b16 %v4944
    %v5040 = vunpack.c.l.b16 %v4945
    %v5041 = vunpack.c.h.b16 %v4945
    %v5042 = vpack.c.b16 %v4982, %v4978
    %v5043 = vpack.c.b16 %v4983, %v4979
    %v5044 = vpack.c.b16 %v4984, %v4980
    %v5045 = vpack.c.b16 %v4985, %v4981
    %v5046 = vpack.c.b16 %v4990, %v4986
    %v5047 = vpack.c.b16 %v4991, %v4987
    %v5048 = vpack.c.b16 %v4992, %v4988
    %v5049 = vpack.c.b16 %v4993, %v4989
    %v5050 = vpack.c.b16 %v4998, %v4994
    %v5051 = vpack.c.b16 %v4999, %v4995
    %v5052 = vpack.c.b16 %v5000, %v4996
    %v5053 = vpack.c.b16 %v5001, %v4997
    %v5054 = vpack.c.b16 %v5006, %v5002
    %v5055 = vpack.c.b16 %v5007, %v5003
    %v5056 = vpack.c.b16 %v5008, %v5004
    %v5057 = vpack.c.b16 %v5009, %v5005
    %v5058 = vpack.c.b16 %v5014, %v5010
    %v5059 = vpack.c.b16 %v5015, %v5011
    %v5060 = vpack.c.b16 %v5016, %v5012
    %v5061 = vpack.c.b16 %v5017, %v5013
    %v5062 = vpack.c.b16 %v5022, %v5018
    %v5063 = vpack.c.b16 %v5023, %v5019
    %v5064 = vpack.c.b16 %v5024, %v5020
    %v5065 = vpack.c.b16 %v5025, %v5021
    %v5066 = vpack.c.b16 %v5030, %v5026
    %v5067 = vpack.c.b16 %v5031, %v5027
    %v5068 = vpack.c.b16 %v5032, %v5028
    %v5069 = vpack.c.b16 %v5033, %v5029
    %v5070 = vpack.c.b16 %v5038, %v5034
    %v5071 = vpack.c.b16 %v5039, %v5035
    %v5072 = vpack.c.b16 %v5040, %v5036
    %v5073 = vpack.c.b16 %v5041, %v5037
    %5106 = vmatpush.bf16.msra.mxu0 %v5070
    %5107 = vmatpush.bf16.msra.mxu0 %v5066
    %5108 = vmatpush.bf16.msra.mxu0 %v5062
    %5109 = vmatpush.bf16.msra.mxu0 %v5058
    %5110 = vmatpush.bf16.msra.mxu0 %v5054
    %5111 = vmatpush.bf16.msra.mxu0 %v5050
    %5112 = vmatpush.bf16.msra.mxu0 %v5046
    %5113 = vmatpush.bf16.msra.mxu0 %v5042
    %5114 = vmatmul.bf16.gmra.mxu0 %v4913
    %v5115 = vpop.f32.mrf.mxu0
    %v5116 = vadd.f32 0.0, %v5115
    %v5117 = vpop.f32.mrf.mxu0
    %5118 = vdwg.mxu0
    %5119 = vmatpush.bf16.msra.mxu0 %v5071
    %5120 = vmatpush.bf16.msra.mxu0 %v5067
    %5121 = vmatpush.bf16.msra.mxu0 %v5063
    %5122 = vmatpush.bf16.msra.mxu0 %v5059
    %5123 = vmatpush.bf16.msra.mxu0 %v5055
    %5124 = vmatpush.bf16.msra.mxu0 %v5051
    %5125 = vmatpush.bf16.msra.mxu0 %v5047
    %5126 = vmatpush.bf16.msra.mxu0 %v5043
    %5127 = vmatmul.bf16.gmra.mxu0 %v4913
    %v5128 = vpop.f32.mrf.mxu0
    %v5129 = vadd.f32 0.0, %v5128
    %v5130 = vpop.f32.mrf.mxu0
    %5131 = vdwg.mxu0
    %5132 = vmatpush.bf16.msra.mxu0 %v5072
    %5133 = vmatpush.bf16.msra.mxu0 %v5068
    %5134 = vmatpush.bf16.msra.mxu0 %v5064
    %5135 = vmatpush.bf16.msra.mxu0 %v5060
    %5136 = vmatpush.bf16.msra.mxu0 %v5056
    %5137 = vmatpush.bf16.msra.mxu0 %v5052
    %5138 = vmatpush.bf16.msra.mxu0 %v5048
    %5139 = vmatpush.bf16.msra.mxu0 %v5044
    %5140 = vmatmul.bf16.gmra.mxu0 %v4913
    %v5141 = vpop.f32.mrf.mxu0
    %v5142 = vadd.f32 0.0, %v5141
    %v5143 = vpop.f32.mrf.mxu0
    %5144 = vdwg.mxu0
    %5145 = vmatpush.bf16.msra.mxu0 %v5073
    %5146 = vmatpush.bf16.msra.mxu0 %v5069
    %5147 = vmatpush.bf16.msra.mxu0 %v5065
    %5148 = vmatpush.bf16.msra.mxu0 %v5061
    %5149 = vmatpush.bf16.msra.mxu0 %v5057
    %5150 = vmatpush.bf16.msra.mxu0 %v5053
    %5151 = vmatpush.bf16.msra.mxu0 %v5049
    %5152 = vmatpush.bf16.msra.mxu0 %v5045
    %5153 = vmatmul.bf16.gmra.mxu0 %v4913
    %v5154 = vpop.f32.mrf.mxu0
    %v5155 = vadd.f32 0.0, %v5154
    %v5156 = vpop.f32.mrf.mxu0
    %5157 = vdwg.mxu0
    %v5158 = vadd.f32 %v4908, %v5116
    %v5159 = vadd.f32 %v4909, %v5129
    %v5160 = vadd.f32 %v4910, %v5142
    %v5161 = vadd.f32 %v4911, %v5155
    %v5162 = vld [vmem:[#allocation3] sm:$0xff]
    %v5163 = vxor.u32 %v5158, 2147483648
    %v5164 = vmul.f32 %v5163, 1.442695
    %v5165 = vpow.pop %v5164
    %v5166 = vadd.f32 %v5165, 1.0
    %v5167 = vrcp.pop %v5166
    %v5168 = vmul.f32 %v5166, %v5167
    %v5169 = vsub.f32 1.0, %v5168
    %v5170 = vmul.f32 %v5167, %v5169
    %v5171 = vadd.f32 %v5167, %v5170
    %vm5172 = vweird.f32 %v5166
    %vm5173 = vweird.f32 %v5167
    %vm5174 = vmor %vm5172, %vm5173
    %v5175 = vsel %vm5174, %v5167, %v5171
    %v5176 = vand.u32 2147483647, %v5166
    %vm5177 = vcmp.eq.f32.partialorder %v5176, 8.507059e+37
    %v5178 = vand.u32 %v5166, 2147483648
    %v5179 = vor.u32 1.1754944e-38, %v5178
    %v5180 = vsel %vm5177, %v5179, %v5175
    %v5181 = vmul.f32 1.0, %v5180
    %v5182 = vxor.u32 %v5159, 2147483648
    %v5183 = vmul.f32 %v5182, 1.442695
    %v5184 = vpow.pop %v5183
    %v5185 = vadd.f32 %v5184, 1.0
    %v5186 = vrcp.pop %v5185
    %v5187 = vmul.f32 %v5185, %v5186
    %v5188 = vsub.f32 1.0, %v5187
    %v5189 = vmul.f32 %v5186, %v5188
    %v5190 = vadd.f32 %v5186, %v5189
    %vm5191 = vweird.f32 %v5185
    %vm5192 = vweird.f32 %v5186
    %vm5193 = vmor %vm5191, %vm5192
    %v5194 = vsel %vm5193, %v5186, %v5190
    %v5195 = vand.u32 2147483647, %v5185
    %vm5196 = vcmp.eq.f32.partialorder %v5195, 8.507059e+37
    %v5197 = vand.u32 %v5185, 2147483648
    %v5198 = vor.u32 1.1754944e-38, %v5197
    %v5199 = vsel %vm5196, %v5198, %v5194
    %v5200 = vmul.f32 1.0, %v5199
    %v5201 = vtanh.pop %v5160
    %v5202 = vxor.u32 %v5161, 2147483648
    %v5203 = vmul.f32 %v5202, 1.442695
    %v5204 = vpow.pop %v5203
    %v5205 = vadd.f32 %v5204, 1.0
    %v5206 = vrcp.pop %v5205
    %v5207 = vmul.f32 %v5205, %v5206
    %v5208 = vsub.f32 1.0, %v5207
    %v5209 = vmul.f32 %v5206, %v5208
    %v5210 = vadd.f32 %v5206, %v5209
    %vm5211 = vweird.f32 %v5205
    %vm5212 = vweird.f32 %v5206
    %vm5213 = vmor %vm5211, %vm5212
    %v5214 = vsel %vm5213, %v5206, %v5210
    %v5215 = vand.u32 2147483647, %v5205
    %vm5216 = vcmp.eq.f32.partialorder %v5215, 8.507059e+37
    %v5217 = vand.u32 %v5205, 2147483648
    %v5218 = vor.u32 1.1754944e-38, %v5217
    %v5219 = vsel %vm5216, %v5218, %v5214
    %v5220 = vmul.f32 1.0, %v5219
    %v5221 = vmul.f32 %v5200, %v5162
    %v5222 = vmul.f32 %v5181, %v5201
    %v5223 = vadd.f32 %v5221, %v5222
    %v5224 = vtanh.pop %v5223
    %v5225 = vmul.f32 %v5220, %v5224
    %5226 = vst [vmem:[#allocation2] sm:$0xff] %v5225
    %5227 = vst [vmem:[#allocation3] sm:$0xff] %v5223
    %v5228 = vld [vmem:[%s367] sm:$0xff]
    %v5229 = vpack.c.bf16 %v5225, %v5225
    %v5230 = vpack.c.bf16 %v5228, %v5228
    %v5231 = vld [vmem:[#allocation4] sm:$0xff]
    %v5232 = vld [vmem:[#allocation4 + $0x8] sm:$0xff]
    %v5233 = vld [vmem:[#allocation4 + $0x10] sm:$0xff]
    %v5234 = vld [vmem:[#allocation4 + $0x18] sm:$0xff]
    %v5235 = vld [vmem:[#allocation4 + $0x20] sm:$0xff]
    %v5236 = vld [vmem:[#allocation4 + $0x28] sm:$0xff]
    %v5237 = vld [vmem:[#allocation4 + $0x30] sm:$0xff]
    %v5238 = vld [vmem:[#allocation4 + $0x38] sm:$0xff]
    %v5239 = vld [vmem:[#allocation4 + $0x40] sm:$0xff]
    %v5240 = vld [vmem:[#allocation4 + $0x48] sm:$0xff]
    %v5241 = vld [vmem:[#allocation4 + $0x50] sm:$0xff]
    %v5242 = vld [vmem:[#allocation4 + $0x58] sm:$0xff]
    %v5243 = vld [vmem:[#allocation4 + $0x60] sm:$0xff]
    %v5244 = vld [vmem:[#allocation4 + $0x68] sm:$0xff]
    %v5245 = vld [vmem:[#allocation4 + $0x70] sm:$0xff]
    %v5246 = vld [vmem:[#allocation4 + $0x78] sm:$0xff]
    %v5247 = vld [vmem:[#allocation4 + $0x80] sm:$0xff]
    %v5248 = vld [vmem:[#allocation4 + $0x88] sm:$0xff]
    %v5249 = vld [vmem:[#allocation4 + $0x90] sm:$0xff]
    %v5250 = vld [vmem:[#allocation4 + $0x98] sm:$0xff]
    %v5251 = vld [vmem:[#allocation4 + $0xa0] sm:$0xff]
    %v5252 = vld [vmem:[#allocation4 + $0xa8] sm:$0xff]
    %v5253 = vld [vmem:[#allocation4 + $0xb0] sm:$0xff]
    %v5254 = vld [vmem:[#allocation4 + $0xb8] sm:$0xff]
    %v5255 = vld [vmem:[#allocation4 + $0xc0] sm:$0xff]
    %v5256 = vld [vmem:[#allocation4 + $0xc8] sm:$0xff]
    %v5257 = vld [vmem:[#allocation4 + $0xd0] sm:$0xff]
    %v5258 = vld [vmem:[#allocation4 + $0xd8] sm:$0xff]
    %v5259 = vld [vmem:[#allocation4 + $0xe0] sm:$0xff]
    %v5260 = vld [vmem:[#allocation4 + $0xe8] sm:$0xff]
    %v5261 = vld [vmem:[#allocation4 + $0xf0] sm:$0xff]
    %v5262 = vld [vmem:[#allocation4 + $0xf8] sm:$0xff]
    %v5263 = vld [vmem:[#allocation4 + $0x100] sm:$0xff]
    %v5264 = vld [vmem:[#allocation4 + $0x108] sm:$0xff]
    %v5265 = vld [vmem:[#allocation4 + $0x110] sm:$0xff]
    %v5266 = vld [vmem:[#allocation4 + $0x118] sm:$0xff]
    %v5267 = vld [vmem:[#allocation4 + $0x120] sm:$0xff]
    %v5268 = vld [vmem:[#allocation4 + $0x128] sm:$0xff]
    %v5269 = vld [vmem:[#allocation4 + $0x130] sm:$0xff]
    %v5270 = vld [vmem:[#allocation4 + $0x138] sm:$0xff]
    %v5271 = vld [vmem:[#allocation4 + $0x140] sm:$0xff]
    %v5272 = vld [vmem:[#allocation4 + $0x148] sm:$0xff]
    %v5273 = vld [vmem:[#allocation4 + $0x150] sm:$0xff]
    %v5274 = vld [vmem:[#allocation4 + $0x158] sm:$0xff]
    %v5275 = vld [vmem:[#allocation4 + $0x160] sm:$0xff]
    %v5276 = vld [vmem:[#allocation4 + $0x168] sm:$0xff]
    %v5277 = vld [vmem:[#allocation4 + $0x170] sm:$0xff]
    %v5278 = vld [vmem:[#allocation4 + $0x178] sm:$0xff]
    %v5279 = vld [vmem:[#allocation4 + $0x180] sm:$0xff]
    %v5280 = vld [vmem:[#allocation4 + $0x188] sm:$0xff]
    %v5281 = vld [vmem:[#allocation4 + $0x190] sm:$0xff]
    %v5282 = vld [vmem:[#allocation4 + $0x198] sm:$0xff]
    %v5283 = vld [vmem:[#allocation4 + $0x1a0] sm:$0xff]
    %v5284 = vld [vmem:[#allocation4 + $0x1a8] sm:$0xff]
    %v5285 = vld [vmem:[#allocation4 + $0x1b0] sm:$0xff]
    %v5286 = vld [vmem:[#allocation4 + $0x1b8] sm:$0xff]
    %v5287 = vld [vmem:[#allocation4 + $0x1c0] sm:$0xff]
    %v5288 = vld [vmem:[#allocation4 + $0x1c8] sm:$0xff]
    %v5289 = vld [vmem:[#allocation4 + $0x1d0] sm:$0xff]
    %v5290 = vld [vmem:[#allocation4 + $0x1d8] sm:$0xff]
    %v5291 = vld [vmem:[#allocation4 + $0x1e0] sm:$0xff]
    %v5292 = vld [vmem:[#allocation4 + $0x1e8] sm:$0xff]
    %v5293 = vld [vmem:[#allocation4 + $0x1f0] sm:$0xff]
    %v5294 = vld [vmem:[#allocation4 + $0x1f8] sm:$0xff]
    %v5295 = vld [vmem:[%s3] sm:$0xf]
    %v5297 = vperm.slane %v5295, 0
    %v5298 = vperm.slane %v5295, 1
    %v5299 = vperm.slane %v5295, 2
    %v5300 = vperm.slane %v5295, 3
    %v5369 = vunpack.c.l.b16 %v5231
    %v5370 = vunpack.c.h.b16 %v5231
    %v5371 = vunpack.c.l.b16 %v5232
    %v5372 = vunpack.c.h.b16 %v5232
    %v5373 = vunpack.c.l.b16 %v5233
    %v5374 = vunpack.c.h.b16 %v5233
    %v5375 = vunpack.c.l.b16 %v5234
    %v5376 = vunpack.c.h.b16 %v5234
    %v5377 = vunpack.c.l.b16 %v5235
    %v5378 = vunpack.c.h.b16 %v5235
    %v5379 = vunpack.c.l.b16 %v5236
    %v5380 = vunpack.c.h.b16 %v5236
    %v5381 = vunpack.c.l.b16 %v5237
    %v5382 = vunpack.c.h.b16 %v5237
    %v5383 = vunpack.c.l.b16 %v5238
    %v5384 = vunpack.c.h.b16 %v5238
    %v5385 = vunpack.c.l.b16 %v5239
    %v5386 = vunpack.c.h.b16 %v5239
    %v5387 = vunpack.c.l.b16 %v5240
    %v5388 = vunpack.c.h.b16 %v5240
    %v5389 = vunpack.c.l.b16 %v5241
    %v5390 = vunpack.c.h.b16 %v5241
    %v5391 = vunpack.c.l.b16 %v5242
    %v5392 = vunpack.c.h.b16 %v5242
    %v5393 = vunpack.c.l.b16 %v5243
    %v5394 = vunpack.c.h.b16 %v5243
    %v5395 = vunpack.c.l.b16 %v5244
    %v5396 = vunpack.c.h.b16 %v5244
    %v5397 = vunpack.c.l.b16 %v5245
    %v5398 = vunpack.c.h.b16 %v5245
    %v5399 = vunpack.c.l.b16 %v5246
    %v5400 = vunpack.c.h.b16 %v5246
    %v5401 = vunpack.c.l.b16 %v5247
    %v5402 = vunpack.c.h.b16 %v5247
    %v5403 = vunpack.c.l.b16 %v5248
    %v5404 = vunpack.c.h.b16 %v5248
    %v5405 = vunpack.c.l.b16 %v5249
    %v5406 = vunpack.c.h.b16 %v5249
    %v5407 = vunpack.c.l.b16 %v5250
    %v5408 = vunpack.c.h.b16 %v5250
    %v5409 = vunpack.c.l.b16 %v5251
    %v5410 = vunpack.c.h.b16 %v5251
    %v5411 = vunpack.c.l.b16 %v5252
    %v5412 = vunpack.c.h.b16 %v5252
    %v5413 = vunpack.c.l.b16 %v5253
    %v5414 = vunpack.c.h.b16 %v5253
    %v5415 = vunpack.c.l.b16 %v5254
    %v5416 = vunpack.c.h.b16 %v5254
    %v5417 = vunpack.c.l.b16 %v5255
    %v5418 = vunpack.c.h.b16 %v5255
    %v5419 = vunpack.c.l.b16 %v5256
    %v5420 = vunpack.c.h.b16 %v5256
    %v5421 = vunpack.c.l.b16 %v5257
    %v5422 = vunpack.c.h.b16 %v5257
    %v5423 = vunpack.c.l.b16 %v5258
    %v5424 = vunpack.c.h.b16 %v5258
    %v5425 = vunpack.c.l.b16 %v5259
    %v5426 = vunpack.c.h.b16 %v5259
    %v5427 = vunpack.c.l.b16 %v5260
    %v5428 = vunpack.c.h.b16 %v5260
    %v5429 = vunpack.c.l.b16 %v5261
    %v5430 = vunpack.c.h.b16 %v5261
    %v5431 = vunpack.c.l.b16 %v5262
    %v5432 = vunpack.c.h.b16 %v5262
    %v5433 = vunpack.c.l.b16 %v5263
    %v5434 = vunpack.c.h.b16 %v5263
    %v5435 = vunpack.c.l.b16 %v5264
    %v5436 = vunpack.c.h.b16 %v5264
    %v5437 = vunpack.c.l.b16 %v5265
    %v5438 = vunpack.c.h.b16 %v5265
    %v5439 = vunpack.c.l.b16 %v5266
    %v5440 = vunpack.c.h.b16 %v5266
    %v5441 = vunpack.c.l.b16 %v5267
    %v5442 = vunpack.c.h.b16 %v5267
    %v5443 = vunpack.c.l.b16 %v5268
    %v5444 = vunpack.c.h.b16 %v5268
    %v5445 = vunpack.c.l.b16 %v5269
    %v5446 = vunpack.c.h.b16 %v5269
    %v5447 = vunpack.c.l.b16 %v5270
    %v5448 = vunpack.c.h.b16 %v5270
    %v5449 = vunpack.c.l.b16 %v5271
    %v5450 = vunpack.c.h.b16 %v5271
    %v5451 = vunpack.c.l.b16 %v5272
    %v5452 = vunpack.c.h.b16 %v5272
    %v5453 = vunpack.c.l.b16 %v5273
    %v5454 = vunpack.c.h.b16 %v5273
    %v5455 = vunpack.c.l.b16 %v5274
    %v5456 = vunpack.c.h.b16 %v5274
    %v5457 = vunpack.c.l.b16 %v5275
    %v5458 = vunpack.c.h.b16 %v5275
    %v5459 = vunpack.c.l.b16 %v5276
    %v5460 = vunpack.c.h.b16 %v5276
    %v5461 = vunpack.c.l.b16 %v5277
    %v5462 = vunpack.c.h.b16 %v5277
    %v5463 = vunpack.c.l.b16 %v5278
    %v5464 = vunpack.c.h.b16 %v5278
    %v5465 = vunpack.c.l.b16 %v5279
    %v5466 = vunpack.c.h.b16 %v5279
    %v5467 = vunpack.c.l.b16 %v5280
    %v5468 = vunpack.c.h.b16 %v5280
    %v5469 = vunpack.c.l.b16 %v5281
    %v5470 = vunpack.c.h.b16 %v5281
    %v5471 = vunpack.c.l.b16 %v5282
    %v5472 = vunpack.c.h.b16 %v5282
    %v5473 = vunpack.c.l.b16 %v5283
    %v5474 = vunpack.c.h.b16 %v5283
    %v5475 = vunpack.c.l.b16 %v5284
    %v5476 = vunpack.c.h.b16 %v5284
    %v5477 = vunpack.c.l.b16 %v5285
    %v5478 = vunpack.c.h.b16 %v5285
    %v5479 = vunpack.c.l.b16 %v5286
    %v5480 = vunpack.c.h.b16 %v5286
    %v5481 = vunpack.c.l.b16 %v5287
    %v5482 = vunpack.c.h.b16 %v5287
    %v5483 = vunpack.c.l.b16 %v5288
    %v5484 = vunpack.c.h.b16 %v5288
    %v5485 = vunpack.c.l.b16 %v5289
    %v5486 = vunpack.c.h.b16 %v5289
    %v5487 = vunpack.c.l.b16 %v5290
    %v5488 = vunpack.c.h.b16 %v5290
    %v5489 = vunpack.c.l.b16 %v5291
    %v5490 = vunpack.c.h.b16 %v5291
    %v5491 = vunpack.c.l.b16 %v5292
    %v5492 = vunpack.c.h.b16 %v5292
    %v5493 = vunpack.c.l.b16 %v5293
    %v5494 = vunpack.c.h.b16 %v5293
    %v5495 = vunpack.c.l.b16 %v5294
    %v5496 = vunpack.c.h.b16 %v5294
    %v5497 = vpack.c.b16 %v5373, %v5369
    %v5498 = vpack.c.b16 %v5374, %v5370
    %v5499 = vpack.c.b16 %v5375, %v5371
    %v5500 = vpack.c.b16 %v5376, %v5372
    %v5501 = vpack.c.b16 %v5381, %v5377
    %v5502 = vpack.c.b16 %v5382, %v5378
    %v5503 = vpack.c.b16 %v5383, %v5379
    %v5504 = vpack.c.b16 %v5384, %v5380
    %v5505 = vpack.c.b16 %v5389, %v5385
    %v5506 = vpack.c.b16 %v5390, %v5386
    %v5507 = vpack.c.b16 %v5391, %v5387
    %v5508 = vpack.c.b16 %v5392, %v5388
    %v5509 = vpack.c.b16 %v5397, %v5393
    %v5510 = vpack.c.b16 %v5398, %v5394
    %v5511 = vpack.c.b16 %v5399, %v5395
    %v5512 = vpack.c.b16 %v5400, %v5396
    %v5513 = vpack.c.b16 %v5405, %v5401
    %v5514 = vpack.c.b16 %v5406, %v5402
    %v5515 = vpack.c.b16 %v5407, %v5403
    %v5516 = vpack.c.b16 %v5408, %v5404
    %v5517 = vpack.c.b16 %v5413, %v5409
    %v5518 = vpack.c.b16 %v5414, %v5410
    %v5519 = vpack.c.b16 %v5415, %v5411
    %v5520 = vpack.c.b16 %v5416, %v5412
    %v5521 = vpack.c.b16 %v5421, %v5417
    %v5522 = vpack.c.b16 %v5422, %v5418
    %v5523 = vpack.c.b16 %v5423, %v5419
    %v5524 = vpack.c.b16 %v5424, %v5420
    %v5525 = vpack.c.b16 %v5429, %v5425
    %v5526 = vpack.c.b16 %v5430, %v5426
    %v5527 = vpack.c.b16 %v5431, %v5427
    %v5528 = vpack.c.b16 %v5432, %v5428
    %v5529 = vpack.c.b16 %v5437, %v5433
    %v5530 = vpack.c.b16 %v5438, %v5434
    %v5531 = vpack.c.b16 %v5439, %v5435
    %v5532 = vpack.c.b16 %v5440, %v5436
    %v5533 = vpack.c.b16 %v5445, %v5441
    %v5534 = vpack.c.b16 %v5446, %v5442
    %v5535 = vpack.c.b16 %v5447, %v5443
    %v5536 = vpack.c.b16 %v5448, %v5444
    %v5537 = vpack.c.b16 %v5453, %v5449
    %v5538 = vpack.c.b16 %v5454, %v5450
    %v5539 = vpack.c.b16 %v5455, %v5451
    %v5540 = vpack.c.b16 %v5456, %v5452
    %v5541 = vpack.c.b16 %v5461, %v5457
    %v5542 = vpack.c.b16 %v5462, %v5458
    %v5543 = vpack.c.b16 %v5463, %v5459
    %v5544 = vpack.c.b16 %v5464, %v5460
    %v5545 = vpack.c.b16 %v5469, %v5465
    %v5546 = vpack.c.b16 %v5470, %v5466
    %v5547 = vpack.c.b16 %v5471, %v5467
    %v5548 = vpack.c.b16 %v5472, %v5468
    %v5549 = vpack.c.b16 %v5477, %v5473
    %v5550 = vpack.c.b16 %v5478, %v5474
    %v5551 = vpack.c.b16 %v5479, %v5475
    %v5552 = vpack.c.b16 %v5480, %v5476
    %v5553 = vpack.c.b16 %v5485, %v5481
    %v5554 = vpack.c.b16 %v5486, %v5482
    %v5555 = vpack.c.b16 %v5487, %v5483
    %v5556 = vpack.c.b16 %v5488, %v5484
    %v5557 = vpack.c.b16 %v5493, %v5489
    %v5558 = vpack.c.b16 %v5494, %v5490
    %v5559 = vpack.c.b16 %v5495, %v5491
    %v5560 = vpack.c.b16 %v5496, %v5492
    %5625 = vmatpush.bf16.msra.mxu0 %v5525
    %5626 = vmatpush.bf16.msra.mxu0 %v5521
    %5627 = vmatpush.bf16.msra.mxu0 %v5517
    %5628 = vmatpush.bf16.msra.mxu0 %v5513
    %5629 = vmatpush.bf16.msra.mxu0 %v5509
    %5630 = vmatpush.bf16.msra.mxu0 %v5505
    %5631 = vmatpush.bf16.msra.mxu0 %v5501
    %5632 = vmatpush.bf16.msra.mxu0 %v5497
    %5633 = vmatmul.bf16.gmra.mxu0 %v5229
    %v5634 = vpop.f32.mrf.mxu0
    %v5635 = vadd.f32 %v5297, %v5634
    %v5636 = vpop.f32.mrf.mxu0
    %5637 = vdwg.mxu0
    %5638 = vmatpush.bf16.msra.mxu0 %v5557
    %5639 = vmatpush.bf16.msra.mxu0 %v5553
    %5640 = vmatpush.bf16.msra.mxu0 %v5549
    %5641 = vmatpush.bf16.msra.mxu0 %v5545
    %5642 = vmatpush.bf16.msra.mxu0 %v5541
    %5643 = vmatpush.bf16.msra.mxu0 %v5537
    %5644 = vmatpush.bf16.msra.mxu0 %v5533
    %5645 = vmatpush.bf16.msra.mxu0 %v5529
    %5646 = vmatmul.bf16.gmra.mxu0 %v5230
    %v5647 = vpop.f32.mrf.mxu0
    %v5648 = vadd.f32 %v5635, %v5647
    %v5649 = vpop.f32.mrf.mxu0
    %5650 = vdwg.mxu0
    %5651 = vmatpush.bf16.msra.mxu0 %v5526
    %5652 = vmatpush.bf16.msra.mxu0 %v5522
    %5653 = vmatpush.bf16.msra.mxu0 %v5518
    %5654 = vmatpush.bf16.msra.mxu0 %v5514
    %5655 = vmatpush.bf16.msra.mxu0 %v5510
    %5656 = vmatpush.bf16.msra.mxu0 %v5506
    %5657 = vmatpush.bf16.msra.mxu0 %v5502
    %5658 = vmatpush.bf16.msra.mxu0 %v5498
    %5659 = vmatmul.bf16.gmra.mxu0 %v5229
    %v5660 = vpop.f32.mrf.mxu0
    %v5661 = vadd.f32 %v5298, %v5660
    %v5662 = vpop.f32.mrf.mxu0
    %5663 = vdwg.mxu0
    %5664 = vmatpush.bf16.msra.mxu0 %v5558
    %5665 = vmatpush.bf16.msra.mxu0 %v5554
    %5666 = vmatpush.bf16.msra.mxu0 %v5550
    %5667 = vmatpush.bf16.msra.mxu0 %v5546
    %5668 = vmatpush.bf16.msra.mxu0 %v5542
    %5669 = vmatpush.bf16.msra.mxu0 %v5538
    %5670 = vmatpush.bf16.msra.mxu0 %v5534
    %5671 = vmatpush.bf16.msra.mxu0 %v5530
    %5672 = vmatmul.bf16.gmra.mxu0 %v5230
    %v5673 = vpop.f32.mrf.mxu0
    %v5674 = vadd.f32 %v5661, %v5673
    %v5675 = vpop.f32.mrf.mxu0
    %5676 = vdwg.mxu0
    %5677 = vmatpush.bf16.msra.mxu0 %v5527
    %5678 = vmatpush.bf16.msra.mxu0 %v5523
    %5679 = vmatpush.bf16.msra.mxu0 %v5519
    %5680 = vmatpush.bf16.msra.mxu0 %v5515
    %5681 = vmatpush.bf16.msra.mxu0 %v5511
    %5682 = vmatpush.bf16.msra.mxu0 %v5507
    %5683 = vmatpush.bf16.msra.mxu0 %v5503
    %5684 = vmatpush.bf16.msra.mxu0 %v5499
    %5685 = vmatmul.bf16.gmra.mxu0 %v5229
    %v5686 = vpop.f32.mrf.mxu0
    %v5687 = vadd.f32 %v5299, %v5686
    %v5688 = vpop.f32.mrf.mxu0
    %5689 = vdwg.mxu0
    %5690 = vmatpush.bf16.msra.mxu0 %v5559
    %5691 = vmatpush.bf16.msra.mxu0 %v5555
    %5692 = vmatpush.bf16.msra.mxu0 %v5551
    %5693 = vmatpush.bf16.msra.mxu0 %v5547
    %5694 = vmatpush.bf16.msra.mxu0 %v5543
    %5695 = vmatpush.bf16.msra.mxu0 %v5539
    %5696 = vmatpush.bf16.msra.mxu0 %v5535
    %5697 = vmatpush.bf16.msra.mxu0 %v5531
    %5698 = vmatmul.bf16.gmra.mxu0 %v5230
    %v5699 = vpop.f32.mrf.mxu0
    %v5700 = vadd.f32 %v5687, %v5699
    %v5701 = vpop.f32.mrf.mxu0
    %5702 = vdwg.mxu0
    %5703 = vmatpush.bf16.msra.mxu0 %v5528
    %5704 = vmatpush.bf16.msra.mxu0 %v5524
    %5705 = vmatpush.bf16.msra.mxu0 %v5520
    %5706 = vmatpush.bf16.msra.mxu0 %v5516
    %5707 = vmatpush.bf16.msra.mxu0 %v5512
    %5708 = vmatpush.bf16.msra.mxu0 %v5508
    %5709 = vmatpush.bf16.msra.mxu0 %v5504
    %5710 = vmatpush.bf16.msra.mxu0 %v5500
    %5711 = vmatmul.bf16.gmra.mxu0 %v5229
    %v5712 = vpop.f32.mrf.mxu0
    %v5713 = vadd.f32 %v5300, %v5712
    %v5714 = vpop.f32.mrf.mxu0
    %5715 = vdwg.mxu0
    %5716 = vmatpush.bf16.msra.mxu0 %v5560
    %5717 = vmatpush.bf16.msra.mxu0 %v5556
    %5718 = vmatpush.bf16.msra.mxu0 %v5552
    %5719 = vmatpush.bf16.msra.mxu0 %v5548
    %5720 = vmatpush.bf16.msra.mxu0 %v5544
    %5721 = vmatpush.bf16.msra.mxu0 %v5540
    %5722 = vmatpush.bf16.msra.mxu0 %v5536
    %5723 = vmatpush.bf16.msra.mxu0 %v5532
    %5724 = vmatmul.bf16.gmra.mxu0 %v5230
    %v5725 = vpop.f32.mrf.mxu0
    %v5726 = vadd.f32 %v5713, %v5725
    %v5727 = vpop.f32.mrf.mxu0
    %5728 = vdwg.mxu0
    %v5729 = vld [vmem:[%s869] sm:$0xff]
    %v5730 = vxor.u32 %v5648, 2147483648
    %v5731 = vmul.f32 %v5730, 1.442695
    %v5732 = vpow.pop %v5731
    %v5733 = vadd.f32 %v5732, 1.0
    %v5734 = vrcp.pop %v5733
    %v5735 = vmul.f32 %v5733, %v5734
    %v5736 = vsub.f32 1.0, %v5735
    %v5737 = vmul.f32 %v5734, %v5736
    %v5738 = vadd.f32 %v5734, %v5737
    %vm5739 = vweird.f32 %v5733
    %vm5740 = vweird.f32 %v5734
    %vm5741 = vmor %vm5739, %vm5740
    %v5742 = vsel %vm5741, %v5734, %v5738
    %v5743 = vand.u32 2147483647, %v5733
    %vm5744 = vcmp.eq.f32.partialorder %v5743, 8.507059e+37
    %v5745 = vand.u32 %v5733, 2147483648
    %v5746 = vor.u32 1.1754944e-38, %v5745
    %v5747 = vsel %vm5744, %v5746, %v5742
    %v5748 = vmul.f32 1.0, %v5747
    %v5749 = vxor.u32 %v5674, 2147483648
    %v5750 = vmul.f32 %v5749, 1.442695
    %v5751 = vpow.pop %v5750
    %v5752 = vadd.f32 %v5751, 1.0
    %v5753 = vrcp.pop %v5752
    %v5754 = vmul.f32 %v5752, %v5753
    %v5755 = vsub.f32 1.0, %v5754
    %v5756 = vmul.f32 %v5753, %v5755
    %v5757 = vadd.f32 %v5753, %v5756
    %vm5758 = vweird.f32 %v5752
    %vm5759 = vweird.f32 %v5753
    %vm5760 = vmor %vm5758, %vm5759
    %v5761 = vsel %vm5760, %v5753, %v5757
    %v5762 = vand.u32 2147483647, %v5752
    %vm5763 = vcmp.eq.f32.partialorder %v5762, 8.507059e+37
    %v5764 = vand.u32 %v5752, 2147483648
    %v5765 = vor.u32 1.1754944e-38, %v5764
    %v5766 = vsel %vm5763, %v5765, %v5761
    %v5767 = vmul.f32 1.0, %v5766
    %v5768 = vtanh.pop %v5700
    %v5769 = vxor.u32 %v5726, 2147483648
    %v5770 = vmul.f32 %v5769, 1.442695
    %v5771 = vpow.pop %v5770
    %v5772 = vadd.f32 %v5771, 1.0
    %v5773 = vrcp.pop %v5772
    %v5774 = vmul.f32 %v5772, %v5773
    %v5775 = vsub.f32 1.0, %v5774
    %v5776 = vmul.f32 %v5773, %v5775
    %v5777 = vadd.f32 %v5773, %v5776
    %vm5778 = vweird.f32 %v5772
    %vm5779 = vweird.f32 %v5773
    %vm5780 = vmor %vm5778, %vm5779
    %v5781 = vsel %vm5780, %v5773, %v5777
    %v5782 = vand.u32 2147483647, %v5772
    %vm5783 = vcmp.eq.f32.partialorder %v5782, 8.507059e+37
    %v5784 = vand.u32 %v5772, 2147483648
    %v5785 = vor.u32 1.1754944e-38, %v5784
    %v5786 = vsel %vm5783, %v5785, %v5781
    %v5787 = vmul.f32 1.0, %v5786
    %v5788 = vmul.f32 %v5767, %v5729
    %v5789 = vmul.f32 %v5748, %v5768
    %v5790 = vadd.f32 %v5788, %v5789
    %v5791 = vtanh.pop %v5790
    %v5792 = vmul.f32 %v5787, %v5791
    %5793 = vst [vmem:[%s367] sm:$0xff] %v5792
    %5794 = vst [vmem:[%s869] sm:$0xff] %v5790
    %v5795 = vpack.c.bf16 %v5792, %v5792
    %v5796 = vld [vmem:[%s4] sm:$0xf]
    %v5797 = vld [vmem:[%s4 + $0x4] sm:$0xf]
    %v5798 = vld [vmem:[%s4 + $0x8] sm:$0xf]
    %v5799 = vld [vmem:[%s4 + $0xc] sm:$0xf]
    %v5800 = vld [vmem:[%s4 + $0x10] sm:$0xf]
    %v5801 = vld [vmem:[%s4 + $0x14] sm:$0xf]
    %v5802 = vld [vmem:[%s4 + $0x18] sm:$0xf]
    %v5803 = vld [vmem:[%s4 + $0x1c] sm:$0xf]
    %v5804 = vld [vmem:[%s4 + $0x20] sm:$0xf]
    %v5805 = vld [vmem:[%s4 + $0x24] sm:$0xf]
    %v5806 = vld [vmem:[%s4 + $0x28] sm:$0xf]
    %v5807 = vld [vmem:[%s4 + $0x2c] sm:$0xf]
    %v5808 = vld [vmem:[%s4 + $0x30] sm:$0xf]
    %v5809 = vld [vmem:[%s4 + $0x34] sm:$0xf]
    %v5810 = vld [vmem:[%s4 + $0x38] sm:$0xf]
    %v5811 = vld [vmem:[%s4 + $0x3c] sm:$0xf]
    %v5812 = vld [vmem:[%s5] sm:$0x1]
    %v5814 = vperm.slane %v5812, 0
    %v5832 = vunpack.c.l.b16 %v5796
    %v5833 = vunpack.c.l.b16 %v5797
    %v5834 = vunpack.c.l.b16 %v5798
    %v5835 = vunpack.c.l.b16 %v5799
    %v5836 = vunpack.c.l.b16 %v5800
    %v5837 = vunpack.c.l.b16 %v5801
    %v5838 = vunpack.c.l.b16 %v5802
    %v5839 = vunpack.c.l.b16 %v5803
    %v5840 = vunpack.c.l.b16 %v5804
    %v5841 = vunpack.c.l.b16 %v5805
    %v5842 = vunpack.c.l.b16 %v5806
    %v5843 = vunpack.c.l.b16 %v5807
    %v5844 = vunpack.c.l.b16 %v5808
    %v5845 = vunpack.c.l.b16 %v5809
    %v5846 = vunpack.c.l.b16 %v5810
    %v5847 = vunpack.c.l.b16 %v5811
    %v5848 = vpack.c.b16 %v5833, %v5832
    %v5849 = vpack.c.b16 %v5835, %v5834
    %v5850 = vpack.c.b16 %v5837, %v5836
    %v5851 = vpack.c.b16 %v5839, %v5838
    %v5852 = vpack.c.b16 %v5841, %v5840
    %v5853 = vpack.c.b16 %v5843, %v5842
    %v5854 = vpack.c.b16 %v5845, %v5844
    %v5855 = vpack.c.b16 %v5847, %v5846
    %5864 = vmatpush.bf16.msra.mxu0 %v5855
    %5865 = vmatpush.bf16.msra.mxu0 %v5854
    %5866 = vmatpush.bf16.msra.mxu0 %v5853
    %5867 = vmatpush.bf16.msra.mxu0 %v5852
    %5868 = vmatpush.bf16.msra.mxu0 %v5851
    %5869 = vmatpush.bf16.msra.mxu0 %v5850
    %5870 = vmatpush.bf16.msra.mxu0 %v5849
    %5871 = vmatpush.bf16.msra.mxu0 %v5848
    %5872 = vmatmul.bf16.gmra.mxu0 %v5795
    %v5873 = vpop.f32.mrf.mxu0
    %v5874 = vadd.f32 %v5814, %v5873
    %v5875 = vpop.f32.mrf.mxu0
    %5876 = vdwg.mxu0
    %s5877 = scalar_lea.vmem %s6, 40
    %5878 = vst [vmem:[%s5877] sm:$0xff] %v5874
    %s5879 = scalar_lea.vmem %s0, 192
    %v5880 = vld [vmem:[%s5879] sm:$0xff]
    %v5881 = vld [vmem:[%s5879 + $0x8] sm:$0xff]
    %v5882 = vld [vmem:[%s5879 + $0x10] sm:$0xff]
    %v5883 = vld [vmem:[%s5879 + $0x18] sm:$0xff]
    %v5884 = vld [vmem:[#allocation2] sm:$0xff]
    %v5885 = vpack.c.bf16 %v5884, %v5884
    %v5886 = vld [vmem:[%s1] sm:$0xff]
    %v5887 = vld [vmem:[%s1 + $0x8] sm:$0xff]
    %v5888 = vld [vmem:[%s1 + $0x10] sm:$0xff]
    %v5889 = vld [vmem:[%s1 + $0x18] sm:$0xff]
    %v5890 = vld [vmem:[%s1 + $0x20] sm:$0xff]
    %v5891 = vld [vmem:[%s1 + $0x28] sm:$0xff]
    %v5892 = vld [vmem:[%s1 + $0x30] sm:$0xff]
    %v5893 = vld [vmem:[%s1 + $0x38] sm:$0xff]
    %v5894 = vld [vmem:[%s1 + $0x40] sm:$0xff]
    %v5895 = vld [vmem:[%s1 + $0x48] sm:$0xff]
    %v5896 = vld [vmem:[%s1 + $0x50] sm:$0xff]
    %v5897 = vld [vmem:[%s1 + $0x58] sm:$0xff]
    %v5898 = vld [vmem:[%s1 + $0x60] sm:$0xff]
    %v5899 = vld [vmem:[%s1 + $0x68] sm:$0xff]
    %v5900 = vld [vmem:[%s1 + $0x70] sm:$0xff]
    %v5901 = vld [vmem:[%s1 + $0x78] sm:$0xff]
    %v5902 = vld [vmem:[%s1 + $0x80] sm:$0xff]
    %v5903 = vld [vmem:[%s1 + $0x88] sm:$0xff]
    %v5904 = vld [vmem:[%s1 + $0x90] sm:$0xff]
    %v5905 = vld [vmem:[%s1 + $0x98] sm:$0xff]
    %v5906 = vld [vmem:[%s1 + $0xa0] sm:$0xff]
    %v5907 = vld [vmem:[%s1 + $0xa8] sm:$0xff]
    %v5908 = vld [vmem:[%s1 + $0xb0] sm:$0xff]
    %v5909 = vld [vmem:[%s1 + $0xb8] sm:$0xff]
    %v5910 = vld [vmem:[%s1 + $0xc0] sm:$0xff]
    %v5911 = vld [vmem:[%s1 + $0xc8] sm:$0xff]
    %v5912 = vld [vmem:[%s1 + $0xd0] sm:$0xff]
    %v5913 = vld [vmem:[%s1 + $0xd8] sm:$0xff]
    %v5914 = vld [vmem:[%s1 + $0xe0] sm:$0xff]
    %v5915 = vld [vmem:[%s1 + $0xe8] sm:$0xff]
    %v5916 = vld [vmem:[%s1 + $0xf0] sm:$0xff]
    %v5917 = vld [vmem:[%s1 + $0xf8] sm:$0xff]
    %v5950 = vunpack.c.l.b16 %v5886
    %v5951 = vunpack.c.h.b16 %v5886
    %v5952 = vunpack.c.l.b16 %v5887
    %v5953 = vunpack.c.h.b16 %v5887
    %v5954 = vunpack.c.l.b16 %v5888
    %v5955 = vunpack.c.h.b16 %v5888
    %v5956 = vunpack.c.l.b16 %v5889
    %v5957 = vunpack.c.h.b16 %v5889
    %v5958 = vunpack.c.l.b16 %v5890
    %v5959 = vunpack.c.h.b16 %v5890
    %v5960 = vunpack.c.l.b16 %v5891
    %v5961 = vunpack.c.h.b16 %v5891
    %v5962 = vunpack.c.l.b16 %v5892
    %v5963 = vunpack.c.h.b16 %v5892
    %v5964 = vunpack.c.l.b16 %v5893
    %v5965 = vunpack.c.h.b16 %v5893
    %v5966 = vunpack.c.l.b16 %v5894
    %v5967 = vunpack.c.h.b16 %v5894
    %v5968 = vunpack.c.l.b16 %v5895
    %v5969 = vunpack.c.h.b16 %v5895
    %v5970 = vunpack.c.l.b16 %v5896
    %v5971 = vunpack.c.h.b16 %v5896
    %v5972 = vunpack.c.l.b16 %v5897
    %v5973 = vunpack.c.h.b16 %v5897
    %v5974 = vunpack.c.l.b16 %v5898
    %v5975 = vunpack.c.h.b16 %v5898
    %v5976 = vunpack.c.l.b16 %v5899
    %v5977 = vunpack.c.h.b16 %v5899
    %v5978 = vunpack.c.l.b16 %v5900
    %v5979 = vunpack.c.h.b16 %v5900
    %v5980 = vunpack.c.l.b16 %v5901
    %v5981 = vunpack.c.h.b16 %v5901
    %v5982 = vunpack.c.l.b16 %v5902
    %v5983 = vunpack.c.h.b16 %v5902
    %v5984 = vunpack.c.l.b16 %v5903
    %v5985 = vunpack.c.h.b16 %v5903
    %v5986 = vunpack.c.l.b16 %v5904
    %v5987 = vunpack.c.h.b16 %v5904
    %v5988 = vunpack.c.l.b16 %v5905
    %v5989 = vunpack.c.h.b16 %v5905
    %v5990 = vunpack.c.l.b16 %v5906
    %v5991 = vunpack.c.h.b16 %v5906
    %v5992 = vunpack.c.l.b16 %v5907
    %v5993 = vunpack.c.h.b16 %v5907
    %v5994 = vunpack.c.l.b16 %v5908
    %v5995 = vunpack.c.h.b16 %v5908
    %v5996 = vunpack.c.l.b16 %v5909
    %v5997 = vunpack.c.h.b16 %v5909
    %v5998 = vunpack.c.l.b16 %v5910
    %v5999 = vunpack.c.h.b16 %v5910
    %v6000 = vunpack.c.l.b16 %v5911
    %v6001 = vunpack.c.h.b16 %v5911
    %v6002 = vunpack.c.l.b16 %v5912
    %v6003 = vunpack.c.h.b16 %v5912
    %v6004 = vunpack.c.l.b16 %v5913
    %v6005 = vunpack.c.h.b16 %v5913
    %v6006 = vunpack.c.l.b16 %v5914
    %v6007 = vunpack.c.h.b16 %v5914
    %v6008 = vunpack.c.l.b16 %v5915
    %v6009 = vunpack.c.h.b16 %v5915
    %v6010 = vunpack.c.l.b16 %v5916
    %v6011 = vunpack.c.h.b16 %v5916
    %v6012 = vunpack.c.l.b16 %v5917
    %v6013 = vunpack.c.h.b16 %v5917
    %v6014 = vpack.c.b16 %v5954, %v5950
    %v6015 = vpack.c.b16 %v5955, %v5951
    %v6016 = vpack.c.b16 %v5956, %v5952
    %v6017 = vpack.c.b16 %v5957, %v5953
    %v6018 = vpack.c.b16 %v5962, %v5958
    %v6019 = vpack.c.b16 %v5963, %v5959
    %v6020 = vpack.c.b16 %v5964, %v5960
    %v6021 = vpack.c.b16 %v5965, %v5961
    %v6022 = vpack.c.b16 %v5970, %v5966
    %v6023 = vpack.c.b16 %v5971, %v5967
    %v6024 = vpack.c.b16 %v5972, %v5968
    %v6025 = vpack.c.b16 %v5973, %v5969
    %v6026 = vpack.c.b16 %v5978, %v5974
    %v6027 = vpack.c.b16 %v5979, %v5975
    %v6028 = vpack.c.b16 %v5980, %v5976
    %v6029 = vpack.c.b16 %v5981, %v5977
    %v6030 = vpack.c.b16 %v5986, %v5982
    %v6031 = vpack.c.b16 %v5987, %v5983
    %v6032 = vpack.c.b16 %v5988, %v5984
    %v6033 = vpack.c.b16 %v5989, %v5985
    %v6034 = vpack.c.b16 %v5994, %v5990
    %v6035 = vpack.c.b16 %v5995, %v5991
    %v6036 = vpack.c.b16 %v5996, %v5992
    %v6037 = vpack.c.b16 %v5997, %v5993
    %v6038 = vpack.c.b16 %v6002, %v5998
    %v6039 = vpack.c.b16 %v6003, %v5999
    %v6040 = vpack.c.b16 %v6004, %v6000
    %v6041 = vpack.c.b16 %v6005, %v6001
    %v6042 = vpack.c.b16 %v6010, %v6006
    %v6043 = vpack.c.b16 %v6011, %v6007
    %v6044 = vpack.c.b16 %v6012, %v6008
    %v6045 = vpack.c.b16 %v6013, %v6009
    %6078 = vmatpush.bf16.msra.mxu0 %v6042
    %6079 = vmatpush.bf16.msra.mxu0 %v6038
    %6080 = vmatpush.bf16.msra.mxu0 %v6034
    %6081 = vmatpush.bf16.msra.mxu0 %v6030
    %6082 = vmatpush.bf16.msra.mxu0 %v6026
    %6083 = vmatpush.bf16.msra.mxu0 %v6022
    %6084 = vmatpush.bf16.msra.mxu0 %v6018
    %6085 = vmatpush.bf16.msra.mxu0 %v6014
    %6086 = vmatmul.bf16.gmra.mxu0 %v5885
    %v6087 = vpop.f32.mrf.mxu0
    %v6088 = vadd.f32 0.0, %v6087
    %v6089 = vpop.f32.mrf.mxu0
    %6090 = vdwg.mxu0
    %6091 = vmatpush.bf16.msra.mxu0 %v6043
    %6092 = vmatpush.bf16.msra.mxu0 %v6039
    %6093 = vmatpush.bf16.msra.mxu0 %v6035
    %6094 = vmatpush.bf16.msra.mxu0 %v6031
    %6095 = vmatpush.bf16.msra.mxu0 %v6027
    %6096 = vmatpush.bf16.msra.mxu0 %v6023
    %6097 = vmatpush.bf16.msra.mxu0 %v6019
    %6098 = vmatpush.bf16.msra.mxu0 %v6015
    %6099 = vmatmul.bf16.gmra.mxu0 %v5885
    %v6100 = vpop.f32.mrf.mxu0
    %v6101 = vadd.f32 0.0, %v6100
    %v6102 = vpop.f32.mrf.mxu0
    %6103 = vdwg.mxu0
    %6104 = vmatpush.bf16.msra.mxu0 %v6044
    %6105 = vmatpush.bf16.msra.mxu0 %v6040
    %6106 = vmatpush.bf16.msra.mxu0 %v6036
    %6107 = vmatpush.bf16.msra.mxu0 %v6032
    %6108 = vmatpush.bf16.msra.mxu0 %v6028
    %6109 = vmatpush.bf16.msra.mxu0 %v6024
    %6110 = vmatpush.bf16.msra.mxu0 %v6020
    %6111 = vmatpush.bf16.msra.mxu0 %v6016
    %6112 = vmatmul.bf16.gmra.mxu0 %v5885
    %v6113 = vpop.f32.mrf.mxu0
    %v6114 = vadd.f32 0.0, %v6113
    %v6115 = vpop.f32.mrf.mxu0
    %6116 = vdwg.mxu0
    %6117 = vmatpush.bf16.msra.mxu0 %v6045
    %6118 = vmatpush.bf16.msra.mxu0 %v6041
    %6119 = vmatpush.bf16.msra.mxu0 %v6037
    %6120 = vmatpush.bf16.msra.mxu0 %v6033
    %6121 = vmatpush.bf16.msra.mxu0 %v6029
    %6122 = vmatpush.bf16.msra.mxu0 %v6025
    %6123 = vmatpush.bf16.msra.mxu0 %v6021
    %6124 = vmatpush.bf16.msra.mxu0 %v6017
    %6125 = vmatmul.bf16.gmra.mxu0 %v5885
    %v6126 = vpop.f32.mrf.mxu0
    %v6127 = vadd.f32 0.0, %v6126
    %v6128 = vpop.f32.mrf.mxu0
    %6129 = vdwg.mxu0
    %v6130 = vadd.f32 %v5880, %v6088
    %v6131 = vadd.f32 %v5881, %v6101
    %v6132 = vadd.f32 %v5882, %v6114
    %v6133 = vadd.f32 %v5883, %v6127
    %v6134 = vld [vmem:[#allocation3] sm:$0xff]
    %v6135 = vxor.u32 %v6130, 2147483648
    %v6136 = vmul.f32 %v6135, 1.442695
    %v6137 = vpow.pop %v6136
    %v6138 = vadd.f32 %v6137, 1.0
    %v6139 = vrcp.pop %v6138
    %v6140 = vmul.f32 %v6138, %v6139
    %v6141 = vsub.f32 1.0, %v6140
    %v6142 = vmul.f32 %v6139, %v6141
    %v6143 = vadd.f32 %v6139, %v6142
    %vm6144 = vweird.f32 %v6138
    %vm6145 = vweird.f32 %v6139
    %vm6146 = vmor %vm6144, %vm6145
    %v6147 = vsel %vm6146, %v6139, %v6143
    %v6148 = vand.u32 2147483647, %v6138
    %vm6149 = vcmp.eq.f32.partialorder %v6148, 8.507059e+37
    %v6150 = vand.u32 %v6138, 2147483648
    %v6151 = vor.u32 1.1754944e-38, %v6150
    %v6152 = vsel %vm6149, %v6151, %v6147
    %v6153 = vmul.f32 1.0, %v6152
    %v6154 = vxor.u32 %v6131, 2147483648
    %v6155 = vmul.f32 %v6154, 1.442695
    %v6156 = vpow.pop %v6155
    %v6157 = vadd.f32 %v6156, 1.0
    %v6158 = vrcp.pop %v6157
    %v6159 = vmul.f32 %v6157, %v6158
    %v6160 = vsub.f32 1.0, %v6159
    %v6161 = vmul.f32 %v6158, %v6160
    %v6162 = vadd.f32 %v6158, %v6161
    %vm6163 = vweird.f32 %v6157
    %vm6164 = vweird.f32 %v6158
    %vm6165 = vmor %vm6163, %vm6164
    %v6166 = vsel %vm6165, %v6158, %v6162
    %v6167 = vand.u32 2147483647, %v6157
    %vm6168 = vcmp.eq.f32.partialorder %v6167, 8.507059e+37
    %v6169 = vand.u32 %v6157, 2147483648
    %v6170 = vor.u32 1.1754944e-38, %v6169
    %v6171 = vsel %vm6168, %v6170, %v6166
    %v6172 = vmul.f32 1.0, %v6171
    %v6173 = vtanh.pop %v6132
    %v6174 = vxor.u32 %v6133, 2147483648
    %v6175 = vmul.f32 %v6174, 1.442695
    %v6176 = vpow.pop %v6175
    %v6177 = vadd.f32 %v6176, 1.0
    %v6178 = vrcp.pop %v6177
    %v6179 = vmul.f32 %v6177, %v6178
    %v6180 = vsub.f32 1.0, %v6179
    %v6181 = vmul.f32 %v6178, %v6180
    %v6182 = vadd.f32 %v6178, %v6181
    %vm6183 = vweird.f32 %v6177
    %vm6184 = vweird.f32 %v6178
    %vm6185 = vmor %vm6183, %vm6184
    %v6186 = vsel %vm6185, %v6178, %v6182
    %v6187 = vand.u32 2147483647, %v6177
    %vm6188 = vcmp.eq.f32.partialorder %v6187, 8.507059e+37
    %v6189 = vand.u32 %v6177, 2147483648
    %v6190 = vor.u32 1.1754944e-38, %v6189
    %v6191 = vsel %vm6188, %v6190, %v6186
    %v6192 = vmul.f32 1.0, %v6191
    %v6193 = vmul.f32 %v6172, %v6134
    %v6194 = vmul.f32 %v6153, %v6173
    %v6195 = vadd.f32 %v6193, %v6194
    %v6196 = vtanh.pop %v6195
    %v6197 = vmul.f32 %v6192, %v6196
    %6198 = vst [vmem:[#allocation2] sm:$0xff] %v6197
    %6199 = vst [vmem:[#allocation3] sm:$0xff] %v6195
    %v6200 = vld [vmem:[%s367] sm:$0xff]
    %v6201 = vpack.c.bf16 %v6197, %v6197
    %v6202 = vpack.c.bf16 %v6200, %v6200
    %v6203 = vld [vmem:[#allocation4] sm:$0xff]
    %v6204 = vld [vmem:[#allocation4 + $0x8] sm:$0xff]
    %v6205 = vld [vmem:[#allocation4 + $0x10] sm:$0xff]
    %v6206 = vld [vmem:[#allocation4 + $0x18] sm:$0xff]
    %v6207 = vld [vmem:[#allocation4 + $0x20] sm:$0xff]
    %v6208 = vld [vmem:[#allocation4 + $0x28] sm:$0xff]
    %v6209 = vld [vmem:[#allocation4 + $0x30] sm:$0xff]
    %v6210 = vld [vmem:[#allocation4 + $0x38] sm:$0xff]
    %v6211 = vld [vmem:[#allocation4 + $0x40] sm:$0xff]
    %v6212 = vld [vmem:[#allocation4 + $0x48] sm:$0xff]
    %v6213 = vld [vmem:[#allocation4 + $0x50] sm:$0xff]
    %v6214 = vld [vmem:[#allocation4 + $0x58] sm:$0xff]
    %v6215 = vld [vmem:[#allocation4 + $0x60] sm:$0xff]
    %v6216 = vld [vmem:[#allocation4 + $0x68] sm:$0xff]
    %v6217 = vld [vmem:[#allocation4 + $0x70] sm:$0xff]
    %v6218 = vld [vmem:[#allocation4 + $0x78] sm:$0xff]
    %v6219 = vld [vmem:[#allocation4 + $0x80] sm:$0xff]
    %v6220 = vld [vmem:[#allocation4 + $0x88] sm:$0xff]
    %v6221 = vld [vmem:[#allocation4 + $0x90] sm:$0xff]
    %v6222 = vld [vmem:[#allocation4 + $0x98] sm:$0xff]
    %v6223 = vld [vmem:[#allocation4 + $0xa0] sm:$0xff]
    %v6224 = vld [vmem:[#allocation4 + $0xa8] sm:$0xff]
    %v6225 = vld [vmem:[#allocation4 + $0xb0] sm:$0xff]
    %v6226 = vld [vmem:[#allocation4 + $0xb8] sm:$0xff]
    %v6227 = vld [vmem:[#allocation4 + $0xc0] sm:$0xff]
    %v6228 = vld [vmem:[#allocation4 + $0xc8] sm:$0xff]
    %v6229 = vld [vmem:[#allocation4 + $0xd0] sm:$0xff]
    %v6230 = vld [vmem:[#allocation4 + $0xd8] sm:$0xff]
    %v6231 = vld [vmem:[#allocation4 + $0xe0] sm:$0xff]
    %v6232 = vld [vmem:[#allocation4 + $0xe8] sm:$0xff]
    %v6233 = vld [vmem:[#allocation4 + $0xf0] sm:$0xff]
    %v6234 = vld [vmem:[#allocation4 + $0xf8] sm:$0xff]
    %v6235 = vld [vmem:[#allocation4 + $0x100] sm:$0xff]
    %v6236 = vld [vmem:[#allocation4 + $0x108] sm:$0xff]
    %v6237 = vld [vmem:[#allocation4 + $0x110] sm:$0xff]
    %v6238 = vld [vmem:[#allocation4 + $0x118] sm:$0xff]
    %v6239 = vld [vmem:[#allocation4 + $0x120] sm:$0xff]
    %v6240 = vld [vmem:[#allocation4 + $0x128] sm:$0xff]
    %v6241 = vld [vmem:[#allocation4 + $0x130] sm:$0xff]
    %v6242 = vld [vmem:[#allocation4 + $0x138] sm:$0xff]
    %v6243 = vld [vmem:[#allocation4 + $0x140] sm:$0xff]
    %v6244 = vld [vmem:[#allocation4 + $0x148] sm:$0xff]
    %v6245 = vld [vmem:[#allocation4 + $0x150] sm:$0xff]
    %v6246 = vld [vmem:[#allocation4 + $0x158] sm:$0xff]
    %v6247 = vld [vmem:[#allocation4 + $0x160] sm:$0xff]
    %v6248 = vld [vmem:[#allocation4 + $0x168] sm:$0xff]
    %v6249 = vld [vmem:[#allocation4 + $0x170] sm:$0xff]
    %v6250 = vld [vmem:[#allocation4 + $0x178] sm:$0xff]
    %v6251 = vld [vmem:[#allocation4 + $0x180] sm:$0xff]
    %v6252 = vld [vmem:[#allocation4 + $0x188] sm:$0xff]
    %v6253 = vld [vmem:[#allocation4 + $0x190] sm:$0xff]
    %v6254 = vld [vmem:[#allocation4 + $0x198] sm:$0xff]
    %v6255 = vld [vmem:[#allocation4 + $0x1a0] sm:$0xff]
    %v6256 = vld [vmem:[#allocation4 + $0x1a8] sm:$0xff]
    %v6257 = vld [vmem:[#allocation4 + $0x1b0] sm:$0xff]
    %v6258 = vld [vmem:[#allocation4 + $0x1b8] sm:$0xff]
    %v6259 = vld [vmem:[#allocation4 + $0x1c0] sm:$0xff]
    %v6260 = vld [vmem:[#allocation4 + $0x1c8] sm:$0xff]
    %v6261 = vld [vmem:[#allocation4 + $0x1d0] sm:$0xff]
    %v6262 = vld [vmem:[#allocation4 + $0x1d8] sm:$0xff]
    %v6263 = vld [vmem:[#allocation4 + $0x1e0] sm:$0xff]
    %v6264 = vld [vmem:[#allocation4 + $0x1e8] sm:$0xff]
    %v6265 = vld [vmem:[#allocation4 + $0x1f0] sm:$0xff]
    %v6266 = vld [vmem:[#allocation4 + $0x1f8] sm:$0xff]
    %v6267 = vld [vmem:[%s3] sm:$0xf]
    %v6269 = vperm.slane %v6267, 0
    %v6270 = vperm.slane %v6267, 1
    %v6271 = vperm.slane %v6267, 2
    %v6272 = vperm.slane %v6267, 3
    %v6341 = vunpack.c.l.b16 %v6203
    %v6342 = vunpack.c.h.b16 %v6203
    %v6343 = vunpack.c.l.b16 %v6204
    %v6344 = vunpack.c.h.b16 %v6204
    %v6345 = vunpack.c.l.b16 %v6205
    %v6346 = vunpack.c.h.b16 %v6205
    %v6347 = vunpack.c.l.b16 %v6206
    %v6348 = vunpack.c.h.b16 %v6206
    %v6349 = vunpack.c.l.b16 %v6207
    %v6350 = vunpack.c.h.b16 %v6207
    %v6351 = vunpack.c.l.b16 %v6208
    %v6352 = vunpack.c.h.b16 %v6208
    %v6353 = vunpack.c.l.b16 %v6209
    %v6354 = vunpack.c.h.b16 %v6209
    %v6355 = vunpack.c.l.b16 %v6210
    %v6356 = vunpack.c.h.b16 %v6210
    %v6357 = vunpack.c.l.b16 %v6211
    %v6358 = vunpack.c.h.b16 %v6211
    %v6359 = vunpack.c.l.b16 %v6212
    %v6360 = vunpack.c.h.b16 %v6212
    %v6361 = vunpack.c.l.b16 %v6213
    %v6362 = vunpack.c.h.b16 %v6213
    %v6363 = vunpack.c.l.b16 %v6214
    %v6364 = vunpack.c.h.b16 %v6214
    %v6365 = vunpack.c.l.b16 %v6215
    %v6366 = vunpack.c.h.b16 %v6215
    %v6367 = vunpack.c.l.b16 %v6216
    %v6368 = vunpack.c.h.b16 %v6216
    %v6369 = vunpack.c.l.b16 %v6217
    %v6370 = vunpack.c.h.b16 %v6217
    %v6371 = vunpack.c.l.b16 %v6218
    %v6372 = vunpack.c.h.b16 %v6218
    %v6373 = vunpack.c.l.b16 %v6219
    %v6374 = vunpack.c.h.b16 %v6219
    %v6375 = vunpack.c.l.b16 %v6220
    %v6376 = vunpack.c.h.b16 %v6220
    %v6377 = vunpack.c.l.b16 %v6221
    %v6378 = vunpack.c.h.b16 %v6221
    %v6379 = vunpack.c.l.b16 %v6222
    %v6380 = vunpack.c.h.b16 %v6222
    %v6381 = vunpack.c.l.b16 %v6223
    %v6382 = vunpack.c.h.b16 %v6223
    %v6383 = vunpack.c.l.b16 %v6224
    %v6384 = vunpack.c.h.b16 %v6224
    %v6385 = vunpack.c.l.b16 %v6225
    %v6386 = vunpack.c.h.b16 %v6225
    %v6387 = vunpack.c.l.b16 %v6226
    %v6388 = vunpack.c.h.b16 %v6226
    %v6389 = vunpack.c.l.b16 %v6227
    %v6390 = vunpack.c.h.b16 %v6227
    %v6391 = vunpack.c.l.b16 %v6228
    %v6392 = vunpack.c.h.b16 %v6228
    %v6393 = vunpack.c.l.b16 %v6229
    %v6394 = vunpack.c.h.b16 %v6229
    %v6395 = vunpack.c.l.b16 %v6230
    %v6396 = vunpack.c.h.b16 %v6230
    %v6397 = vunpack.c.l.b16 %v6231
    %v6398 = vunpack.c.h.b16 %v6231
    %v6399 = vunpack.c.l.b16 %v6232
    %v6400 = vunpack.c.h.b16 %v6232
    %v6401 = vunpack.c.l.b16 %v6233
    %v6402 = vunpack.c.h.b16 %v6233
    %v6403 = vunpack.c.l.b16 %v6234
    %v6404 = vunpack.c.h.b16 %v6234
    %v6405 = vunpack.c.l.b16 %v6235
    %v6406 = vunpack.c.h.b16 %v6235
    %v6407 = vunpack.c.l.b16 %v6236
    %v6408 = vunpack.c.h.b16 %v6236
    %v6409 = vunpack.c.l.b16 %v6237
    %v6410 = vunpack.c.h.b16 %v6237
    %v6411 = vunpack.c.l.b16 %v6238
    %v6412 = vunpack.c.h.b16 %v6238
    %v6413 = vunpack.c.l.b16 %v6239
    %v6414 = vunpack.c.h.b16 %v6239
    %v6415 = vunpack.c.l.b16 %v6240
    %v6416 = vunpack.c.h.b16 %v6240
    %v6417 = vunpack.c.l.b16 %v6241
    %v6418 = vunpack.c.h.b16 %v6241
    %v6419 = vunpack.c.l.b16 %v6242
    %v6420 = vunpack.c.h.b16 %v6242
    %v6421 = vunpack.c.l.b16 %v6243
    %v6422 = vunpack.c.h.b16 %v6243
    %v6423 = vunpack.c.l.b16 %v6244
    %v6424 = vunpack.c.h.b16 %v6244
    %v6425 = vunpack.c.l.b16 %v6245
    %v6426 = vunpack.c.h.b16 %v6245
    %v6427 = vunpack.c.l.b16 %v6246
    %v6428 = vunpack.c.h.b16 %v6246
    %v6429 = vunpack.c.l.b16 %v6247
    %v6430 = vunpack.c.h.b16 %v6247
    %v6431 = vunpack.c.l.b16 %v6248
    %v6432 = vunpack.c.h.b16 %v6248
    %v6433 = vunpack.c.l.b16 %v6249
    %v6434 = vunpack.c.h.b16 %v6249
    %v6435 = vunpack.c.l.b16 %v6250
    %v6436 = vunpack.c.h.b16 %v6250
    %v6437 = vunpack.c.l.b16 %v6251
    %v6438 = vunpack.c.h.b16 %v6251
    %v6439 = vunpack.c.l.b16 %v6252
    %v6440 = vunpack.c.h.b16 %v6252
    %v6441 = vunpack.c.l.b16 %v6253
    %v6442 = vunpack.c.h.b16 %v6253
    %v6443 = vunpack.c.l.b16 %v6254
    %v6444 = vunpack.c.h.b16 %v6254
    %v6445 = vunpack.c.l.b16 %v6255
    %v6446 = vunpack.c.h.b16 %v6255
    %v6447 = vunpack.c.l.b16 %v6256
    %v6448 = vunpack.c.h.b16 %v6256
    %v6449 = vunpack.c.l.b16 %v6257
    %v6450 = vunpack.c.h.b16 %v6257
    %v6451 = vunpack.c.l.b16 %v6258
    %v6452 = vunpack.c.h.b16 %v6258
    %v6453 = vunpack.c.l.b16 %v6259
    %v6454 = vunpack.c.h.b16 %v6259
    %v6455 = vunpack.c.l.b16 %v6260
    %v6456 = vunpack.c.h.b16 %v6260
    %v6457 = vunpack.c.l.b16 %v6261
    %v6458 = vunpack.c.h.b16 %v6261
    %v6459 = vunpack.c.l.b16 %v6262
    %v6460 = vunpack.c.h.b16 %v6262
    %v6461 = vunpack.c.l.b16 %v6263
    %v6462 = vunpack.c.h.b16 %v6263
    %v6463 = vunpack.c.l.b16 %v6264
    %v6464 = vunpack.c.h.b16 %v6264
    %v6465 = vunpack.c.l.b16 %v6265
    %v6466 = vunpack.c.h.b16 %v6265
    %v6467 = vunpack.c.l.b16 %v6266
    %v6468 = vunpack.c.h.b16 %v6266
    %v6469 = vpack.c.b16 %v6345, %v6341
    %v6470 = vpack.c.b16 %v6346, %v6342
    %v6471 = vpack.c.b16 %v6347, %v6343
    %v6472 = vpack.c.b16 %v6348, %v6344
    %v6473 = vpack.c.b16 %v6353, %v6349
    %v6474 = vpack.c.b16 %v6354, %v6350
    %v6475 = vpack.c.b16 %v6355, %v6351
    %v6476 = vpack.c.b16 %v6356, %v6352
    %v6477 = vpack.c.b16 %v6361, %v6357
    %v6478 = vpack.c.b16 %v6362, %v6358
    %v6479 = vpack.c.b16 %v6363, %v6359
    %v6480 = vpack.c.b16 %v6364, %v6360
    %v6481 = vpack.c.b16 %v6369, %v6365
    %v6482 = vpack.c.b16 %v6370, %v6366
    %v6483 = vpack.c.b16 %v6371, %v6367
    %v6484 = vpack.c.b16 %v6372, %v6368
    %v6485 = vpack.c.b16 %v6377, %v6373
    %v6486 = vpack.c.b16 %v6378, %v6374
    %v6487 = vpack.c.b16 %v6379, %v6375
    %v6488 = vpack.c.b16 %v6380, %v6376
    %v6489 = vpack.c.b16 %v6385, %v6381
    %v6490 = vpack.c.b16 %v6386, %v6382
    %v6491 = vpack.c.b16 %v6387, %v6383
    %v6492 = vpack.c.b16 %v6388, %v6384
    %v6493 = vpack.c.b16 %v6393, %v6389
    %v6494 = vpack.c.b16 %v6394, %v6390
    %v6495 = vpack.c.b16 %v6395, %v6391
    %v6496 = vpack.c.b16 %v6396, %v6392
    %v6497 = vpack.c.b16 %v6401, %v6397
    %v6498 = vpack.c.b16 %v6402, %v6398
    %v6499 = vpack.c.b16 %v6403, %v6399
    %v6500 = vpack.c.b16 %v6404, %v6400
    %v6501 = vpack.c.b16 %v6409, %v6405
    %v6502 = vpack.c.b16 %v6410, %v6406
    %v6503 = vpack.c.b16 %v6411, %v6407
    %v6504 = vpack.c.b16 %v6412, %v6408
    %v6505 = vpack.c.b16 %v6417, %v6413
    %v6506 = vpack.c.b16 %v6418, %v6414
    %v6507 = vpack.c.b16 %v6419, %v6415
    %v6508 = vpack.c.b16 %v6420, %v6416
    %v6509 = vpack.c.b16 %v6425, %v6421
    %v6510 = vpack.c.b16 %v6426, %v6422
    %v6511 = vpack.c.b16 %v6427, %v6423
    %v6512 = vpack.c.b16 %v6428, %v6424
    %v6513 = vpack.c.b16 %v6433, %v6429
    %v6514 = vpack.c.b16 %v6434, %v6430
    %v6515 = vpack.c.b16 %v6435, %v6431
    %v6516 = vpack.c.b16 %v6436, %v6432
    %v6517 = vpack.c.b16 %v6441, %v6437
    %v6518 = vpack.c.b16 %v6442, %v6438
    %v6519 = vpack.c.b16 %v6443, %v6439
    %v6520 = vpack.c.b16 %v6444, %v6440
    %v6521 = vpack.c.b16 %v6449, %v6445
    %v6522 = vpack.c.b16 %v6450, %v6446
    %v6523 = vpack.c.b16 %v6451, %v6447
    %v6524 = vpack.c.b16 %v6452, %v6448
    %v6525 = vpack.c.b16 %v6457, %v6453
    %v6526 = vpack.c.b16 %v6458, %v6454
    %v6527 = vpack.c.b16 %v6459, %v6455
    %v6528 = vpack.c.b16 %v6460, %v6456
    %v6529 = vpack.c.b16 %v6465, %v6461
    %v6530 = vpack.c.b16 %v6466, %v6462
    %v6531 = vpack.c.b16 %v6467, %v6463
    %v6532 = vpack.c.b16 %v6468, %v6464
    %6597 = vmatpush.bf16.msra.mxu0 %v6497
    %6598 = vmatpush.bf16.msra.mxu0 %v6493
    %6599 = vmatpush.bf16.msra.mxu0 %v6489
    %6600 = vmatpush.bf16.msra.mxu0 %v6485
    %6601 = vmatpush.bf16.msra.mxu0 %v6481
    %6602 = vmatpush.bf16.msra.mxu0 %v6477
    %6603 = vmatpush.bf16.msra.mxu0 %v6473
    %6604 = vmatpush.bf16.msra.mxu0 %v6469
    %6605 = vmatmul.bf16.gmra.mxu0 %v6201
    %v6606 = vpop.f32.mrf.mxu0
    %v6607 = vadd.f32 %v6269, %v6606
    %v6608 = vpop.f32.mrf.mxu0
    %6609 = vdwg.mxu0
    %6610 = vmatpush.bf16.msra.mxu0 %v6529
    %6611 = vmatpush.bf16.msra.mxu0 %v6525
    %6612 = vmatpush.bf16.msra.mxu0 %v6521
    %6613 = vmatpush.bf16.msra.mxu0 %v6517
    %6614 = vmatpush.bf16.msra.mxu0 %v6513
    %6615 = vmatpush.bf16.msra.mxu0 %v6509
    %6616 = vmatpush.bf16.msra.mxu0 %v6505
    %6617 = vmatpush.bf16.msra.mxu0 %v6501
    %6618 = vmatmul.bf16.gmra.mxu0 %v6202
    %v6619 = vpop.f32.mrf.mxu0
    %v6620 = vadd.f32 %v6607, %v6619
    %v6621 = vpop.f32.mrf.mxu0
    %6622 = vdwg.mxu0
    %6623 = vmatpush.bf16.msra.mxu0 %v6498
    %6624 = vmatpush.bf16.msra.mxu0 %v6494
    %6625 = vmatpush.bf16.msra.mxu0 %v6490
    %6626 = vmatpush.bf16.msra.mxu0 %v6486
    %6627 = vmatpush.bf16.msra.mxu0 %v6482
    %6628 = vmatpush.bf16.msra.mxu0 %v6478
    %6629 = vmatpush.bf16.msra.mxu0 %v6474
    %6630 = vmatpush.bf16.msra.mxu0 %v6470
    %6631 = vmatmul.bf16.gmra.mxu0 %v6201
    %v6632 = vpop.f32.mrf.mxu0
    %v6633 = vadd.f32 %v6270, %v6632
    %v6634 = vpop.f32.mrf.mxu0
    %6635 = vdwg.mxu0
    %6636 = vmatpush.bf16.msra.mxu0 %v6530
    %6637 = vmatpush.bf16.msra.mxu0 %v6526
    %6638 = vmatpush.bf16.msra.mxu0 %v6522
    %6639 = vmatpush.bf16.msra.mxu0 %v6518
    %6640 = vmatpush.bf16.msra.mxu0 %v6514
    %6641 = vmatpush.bf16.msra.mxu0 %v6510
    %6642 = vmatpush.bf16.msra.mxu0 %v6506
    %6643 = vmatpush.bf16.msra.mxu0 %v6502
    %6644 = vmatmul.bf16.gmra.mxu0 %v6202
    %v6645 = vpop.f32.mrf.mxu0
    %v6646 = vadd.f32 %v6633, %v6645
    %v6647 = vpop.f32.mrf.mxu0
    %6648 = vdwg.mxu0
    %6649 = vmatpush.bf16.msra.mxu0 %v6499
    %6650 = vmatpush.bf16.msra.mxu0 %v6495
    %6651 = vmatpush.bf16.msra.mxu0 %v6491
    %6652 = vmatpush.bf16.msra.mxu0 %v6487
    %6653 = vmatpush.bf16.msra.mxu0 %v6483
    %6654 = vmatpush.bf16.msra.mxu0 %v6479
    %6655 = vmatpush.bf16.msra.mxu0 %v6475
    %6656 = vmatpush.bf16.msra.mxu0 %v6471
    %6657 = vmatmul.bf16.gmra.mxu0 %v6201
    %v6658 = vpop.f32.mrf.mxu0
    %v6659 = vadd.f32 %v6271, %v6658
    %v6660 = vpop.f32.mrf.mxu0
    %6661 = vdwg.mxu0
    %6662 = vmatpush.bf16.msra.mxu0 %v6531
    %6663 = vmatpush.bf16.msra.mxu0 %v6527
    %6664 = vmatpush.bf16.msra.mxu0 %v6523
    %6665 = vmatpush.bf16.msra.mxu0 %v6519
    %6666 = vmatpush.bf16.msra.mxu0 %v6515
    %6667 = vmatpush.bf16.msra.mxu0 %v6511
    %6668 = vmatpush.bf16.msra.mxu0 %v6507
    %6669 = vmatpush.bf16.msra.mxu0 %v6503
    %6670 = vmatmul.bf16.gmra.mxu0 %v6202
    %v6671 = vpop.f32.mrf.mxu0
    %v6672 = vadd.f32 %v6659, %v6671
    %v6673 = vpop.f32.mrf.mxu0
    %6674 = vdwg.mxu0
    %6675 = vmatpush.bf16.msra.mxu0 %v6500
    %6676 = vmatpush.bf16.msra.mxu0 %v6496
    %6677 = vmatpush.bf16.msra.mxu0 %v6492
    %6678 = vmatpush.bf16.msra.mxu0 %v6488
    %6679 = vmatpush.bf16.msra.mxu0 %v6484
    %6680 = vmatpush.bf16.msra.mxu0 %v6480
    %6681 = vmatpush.bf16.msra.mxu0 %v6476
    %6682 = vmatpush.bf16.msra.mxu0 %v6472
    %6683 = vmatmul.bf16.gmra.mxu0 %v6201
    %v6684 = vpop.f32.mrf.mxu0
    %v6685 = vadd.f32 %v6272, %v6684
    %v6686 = vpop.f32.mrf.mxu0
    %6687 = vdwg.mxu0
    %6688 = vmatpush.bf16.msra.mxu0 %v6532
    %6689 = vmatpush.bf16.msra.mxu0 %v6528
    %6690 = vmatpush.bf16.msra.mxu0 %v6524
    %6691 = vmatpush.bf16.msra.mxu0 %v6520
    %6692 = vmatpush.bf16.msra.mxu0 %v6516
    %6693 = vmatpush.bf16.msra.mxu0 %v6512
    %6694 = vmatpush.bf16.msra.mxu0 %v6508
    %6695 = vmatpush.bf16.msra.mxu0 %v6504
    %6696 = vmatmul.bf16.gmra.mxu0 %v6202
    %v6697 = vpop.f32.mrf.mxu0
    %v6698 = vadd.f32 %v6685, %v6697
    %v6699 = vpop.f32.mrf.mxu0
    %6700 = vdwg.mxu0
    %v6701 = vld [vmem:[%s869] sm:$0xff]
    %v6702 = vxor.u32 %v6620, 2147483648
    %v6703 = vmul.f32 %v6702, 1.442695
    %v6704 = vpow.pop %v6703
    %v6705 = vadd.f32 %v6704, 1.0
    %v6706 = vrcp.pop %v6705
    %v6707 = vmul.f32 %v6705, %v6706
    %v6708 = vsub.f32 1.0, %v6707
    %v6709 = vmul.f32 %v6706, %v6708
    %v6710 = vadd.f32 %v6706, %v6709
    %vm6711 = vweird.f32 %v6705
    %vm6712 = vweird.f32 %v6706
    %vm6713 = vmor %vm6711, %vm6712
    %v6714 = vsel %vm6713, %v6706, %v6710
    %v6715 = vand.u32 2147483647, %v6705
    %vm6716 = vcmp.eq.f32.partialorder %v6715, 8.507059e+37
    %v6717 = vand.u32 %v6705, 2147483648
    %v6718 = vor.u32 1.1754944e-38, %v6717
    %v6719 = vsel %vm6716, %v6718, %v6714
    %v6720 = vmul.f32 1.0, %v6719
    %v6721 = vxor.u32 %v6646, 2147483648
    %v6722 = vmul.f32 %v6721, 1.442695
    %v6723 = vpow.pop %v6722
    %v6724 = vadd.f32 %v6723, 1.0
    %v6725 = vrcp.pop %v6724
    %v6726 = vmul.f32 %v6724, %v6725
    %v6727 = vsub.f32 1.0, %v6726
    %v6728 = vmul.f32 %v6725, %v6727
    %v6729 = vadd.f32 %v6725, %v6728
    %vm6730 = vweird.f32 %v6724
    %vm6731 = vweird.f32 %v6725
    %vm6732 = vmor %vm6730, %vm6731
    %v6733 = vsel %vm6732, %v6725, %v6729
    %v6734 = vand.u32 2147483647, %v6724
    %vm6735 = vcmp.eq.f32.partialorder %v6734, 8.507059e+37
    %v6736 = vand.u32 %v6724, 2147483648
    %v6737 = vor.u32 1.1754944e-38, %v6736
    %v6738 = vsel %vm6735, %v6737, %v6733
    %v6739 = vmul.f32 1.0, %v6738
    %v6740 = vtanh.pop %v6672
    %v6741 = vxor.u32 %v6698, 2147483648
    %v6742 = vmul.f32 %v6741, 1.442695
    %v6743 = vpow.pop %v6742
    %v6744 = vadd.f32 %v6743, 1.0
    %v6745 = vrcp.pop %v6744
    %v6746 = vmul.f32 %v6744, %v6745
    %v6747 = vsub.f32 1.0, %v6746
    %v6748 = vmul.f32 %v6745, %v6747
    %v6749 = vadd.f32 %v6745, %v6748
    %vm6750 = vweird.f32 %v6744
    %vm6751 = vweird.f32 %v6745
    %vm6752 = vmor %vm6750, %vm6751
    %v6753 = vsel %vm6752, %v6745, %v6749
    %v6754 = vand.u32 2147483647, %v6744
    %vm6755 = vcmp.eq.f32.partialorder %v6754, 8.507059e+37
    %v6756 = vand.u32 %v6744, 2147483648
    %v6757 = vor.u32 1.1754944e-38, %v6756
    %v6758 = vsel %vm6755, %v6757, %v6753
    %v6759 = vmul.f32 1.0, %v6758
    %v6760 = vmul.f32 %v6739, %v6701
    %v6761 = vmul.f32 %v6720, %v6740
    %v6762 = vadd.f32 %v6760, %v6761
    %v6763 = vtanh.pop %v6762
    %v6764 = vmul.f32 %v6759, %v6763
    %6765 = vst [vmem:[%s367] sm:$0xff] %v6764
    %6766 = vst [vmem:[%s869] sm:$0xff] %v6762
    %v6767 = vpack.c.bf16 %v6764, %v6764
    %v6768 = vld [vmem:[%s4] sm:$0xf]
    %v6769 = vld [vmem:[%s4 + $0x4] sm:$0xf]
    %v6770 = vld [vmem:[%s4 + $0x8] sm:$0xf]
    %v6771 = vld [vmem:[%s4 + $0xc] sm:$0xf]
    %v6772 = vld [vmem:[%s4 + $0x10] sm:$0xf]
    %v6773 = vld [vmem:[%s4 + $0x14] sm:$0xf]
    %v6774 = vld [vmem:[%s4 + $0x18] sm:$0xf]
    %v6775 = vld [vmem:[%s4 + $0x1c] sm:$0xf]
    %v6776 = vld [vmem:[%s4 + $0x20] sm:$0xf]
    %v6777 = vld [vmem:[%s4 + $0x24] sm:$0xf]
    %v6778 = vld [vmem:[%s4 + $0x28] sm:$0xf]
    %v6779 = vld [vmem:[%s4 + $0x2c] sm:$0xf]
    %v6780 = vld [vmem:[%s4 + $0x30] sm:$0xf]
    %v6781 = vld [vmem:[%s4 + $0x34] sm:$0xf]
    %v6782 = vld [vmem:[%s4 + $0x38] sm:$0xf]
    %v6783 = vld [vmem:[%s4 + $0x3c] sm:$0xf]
    %v6784 = vld [vmem:[%s5] sm:$0x1]
    %v6786 = vperm.slane %v6784, 0
    %v6804 = vunpack.c.l.b16 %v6768
    %v6805 = vunpack.c.l.b16 %v6769
    %v6806 = vunpack.c.l.b16 %v6770
    %v6807 = vunpack.c.l.b16 %v6771
    %v6808 = vunpack.c.l.b16 %v6772
    %v6809 = vunpack.c.l.b16 %v6773
    %v6810 = vunpack.c.l.b16 %v6774
    %v6811 = vunpack.c.l.b16 %v6775
    %v6812 = vunpack.c.l.b16 %v6776
    %v6813 = vunpack.c.l.b16 %v6777
    %v6814 = vunpack.c.l.b16 %v6778
    %v6815 = vunpack.c.l.b16 %v6779
    %v6816 = vunpack.c.l.b16 %v6780
    %v6817 = vunpack.c.l.b16 %v6781
    %v6818 = vunpack.c.l.b16 %v6782
    %v6819 = vunpack.c.l.b16 %v6783
    %v6820 = vpack.c.b16 %v6805, %v6804
    %v6821 = vpack.c.b16 %v6807, %v6806
    %v6822 = vpack.c.b16 %v6809, %v6808
    %v6823 = vpack.c.b16 %v6811, %v6810
    %v6824 = vpack.c.b16 %v6813, %v6812
    %v6825 = vpack.c.b16 %v6815, %v6814
    %v6826 = vpack.c.b16 %v6817, %v6816
    %v6827 = vpack.c.b16 %v6819, %v6818
    %6836 = vmatpush.bf16.msra.mxu0 %v6827
    %6837 = vmatpush.bf16.msra.mxu0 %v6826
    %6838 = vmatpush.bf16.msra.mxu0 %v6825
    %6839 = vmatpush.bf16.msra.mxu0 %v6824
    %6840 = vmatpush.bf16.msra.mxu0 %v6823
    %6841 = vmatpush.bf16.msra.mxu0 %v6822
    %6842 = vmatpush.bf16.msra.mxu0 %v6821
    %6843 = vmatpush.bf16.msra.mxu0 %v6820
    %6844 = vmatmul.bf16.gmra.mxu0 %v6767
    %v6845 = vpop.f32.mrf.mxu0
    %v6846 = vadd.f32 %v6786, %v6845
    %v6847 = vpop.f32.mrf.mxu0
    %6848 = vdwg.mxu0
    %s6849 = scalar_lea.vmem %s6, 48
    %6850 = vst [vmem:[%s6849] sm:$0xff] %v6846
    %s6851 = scalar_lea.vmem %s0, 224
    %v6852 = vld [vmem:[%s6851] sm:$0xff]
    %v6853 = vld [vmem:[%s6851 + $0x8] sm:$0xff]
    %v6854 = vld [vmem:[%s6851 + $0x10] sm:$0xff]
    %v6855 = vld [vmem:[%s6851 + $0x18] sm:$0xff]
    %v6856 = vld [vmem:[#allocation2] sm:$0xff]
    %v6857 = vpack.c.bf16 %v6856, %v6856
    %v6858 = vld [vmem:[%s1] sm:$0xff]
    %v6859 = vld [vmem:[%s1 + $0x8] sm:$0xff]
    %v6860 = vld [vmem:[%s1 + $0x10] sm:$0xff]
    %v6861 = vld [vmem:[%s1 + $0x18] sm:$0xff]
    %v6862 = vld [vmem:[%s1 + $0x20] sm:$0xff]
    %v6863 = vld [vmem:[%s1 + $0x28] sm:$0xff]
    %v6864 = vld [vmem:[%s1 + $0x30] sm:$0xff]
    %v6865 = vld [vmem:[%s1 + $0x38] sm:$0xff]
    %v6866 = vld [vmem:[%s1 + $0x40] sm:$0xff]
    %v6867 = vld [vmem:[%s1 + $0x48] sm:$0xff]
    %v6868 = vld [vmem:[%s1 + $0x50] sm:$0xff]
    %v6869 = vld [vmem:[%s1 + $0x58] sm:$0xff]
    %v6870 = vld [vmem:[%s1 + $0x60] sm:$0xff]
    %v6871 = vld [vmem:[%s1 + $0x68] sm:$0xff]
    %v6872 = vld [vmem:[%s1 + $0x70] sm:$0xff]
    %v6873 = vld [vmem:[%s1 + $0x78] sm:$0xff]
    %v6874 = vld [vmem:[%s1 + $0x80] sm:$0xff]
    %v6875 = vld [vmem:[%s1 + $0x88] sm:$0xff]
    %v6876 = vld [vmem:[%s1 + $0x90] sm:$0xff]
    %v6877 = vld [vmem:[%s1 + $0x98] sm:$0xff]
    %v6878 = vld [vmem:[%s1 + $0xa0] sm:$0xff]
    %v6879 = vld [vmem:[%s1 + $0xa8] sm:$0xff]
    %v6880 = vld [vmem:[%s1 + $0xb0] sm:$0xff]
    %v6881 = vld [vmem:[%s1 + $0xb8] sm:$0xff]
    %v6882 = vld [vmem:[%s1 + $0xc0] sm:$0xff]
    %v6883 = vld [vmem:[%s1 + $0xc8] sm:$0xff]
    %v6884 = vld [vmem:[%s1 + $0xd0] sm:$0xff]
    %v6885 = vld [vmem:[%s1 + $0xd8] sm:$0xff]
    %v6886 = vld [vmem:[%s1 + $0xe0] sm:$0xff]
    %v6887 = vld [vmem:[%s1 + $0xe8] sm:$0xff]
    %v6888 = vld [vmem:[%s1 + $0xf0] sm:$0xff]
    %v6889 = vld [vmem:[%s1 + $0xf8] sm:$0xff]
    %v6922 = vunpack.c.l.b16 %v6858
    %v6923 = vunpack.c.h.b16 %v6858
    %v6924 = vunpack.c.l.b16 %v6859
    %v6925 = vunpack.c.h.b16 %v6859
    %v6926 = vunpack.c.l.b16 %v6860
    %v6927 = vunpack.c.h.b16 %v6860
    %v6928 = vunpack.c.l.b16 %v6861
    %v6929 = vunpack.c.h.b16 %v6861
    %v6930 = vunpack.c.l.b16 %v6862
    %v6931 = vunpack.c.h.b16 %v6862
    %v6932 = vunpack.c.l.b16 %v6863
    %v6933 = vunpack.c.h.b16 %v6863
    %v6934 = vunpack.c.l.b16 %v6864
    %v6935 = vunpack.c.h.b16 %v6864
    %v6936 = vunpack.c.l.b16 %v6865
    %v6937 = vunpack.c.h.b16 %v6865
    %v6938 = vunpack.c.l.b16 %v6866
    %v6939 = vunpack.c.h.b16 %v6866
    %v6940 = vunpack.c.l.b16 %v6867
    %v6941 = vunpack.c.h.b16 %v6867
    %v6942 = vunpack.c.l.b16 %v6868
    %v6943 = vunpack.c.h.b16 %v6868
    %v6944 = vunpack.c.l.b16 %v6869
    %v6945 = vunpack.c.h.b16 %v6869
    %v6946 = vunpack.c.l.b16 %v6870
    %v6947 = vunpack.c.h.b16 %v6870
    %v6948 = vunpack.c.l.b16 %v6871
    %v6949 = vunpack.c.h.b16 %v6871
    %v6950 = vunpack.c.l.b16 %v6872
    %v6951 = vunpack.c.h.b16 %v6872
    %v6952 = vunpack.c.l.b16 %v6873
    %v6953 = vunpack.c.h.b16 %v6873
    %v6954 = vunpack.c.l.b16 %v6874
    %v6955 = vunpack.c.h.b16 %v6874
    %v6956 = vunpack.c.l.b16 %v6875
    %v6957 = vunpack.c.h.b16 %v6875
    %v6958 = vunpack.c.l.b16 %v6876
    %v6959 = vunpack.c.h.b16 %v6876
    %v6960 = vunpack.c.l.b16 %v6877
    %v6961 = vunpack.c.h.b16 %v6877
    %v6962 = vunpack.c.l.b16 %v6878
    %v6963 = vunpack.c.h.b16 %v6878
    %v6964 = vunpack.c.l.b16 %v6879
    %v6965 = vunpack.c.h.b16 %v6879
    %v6966 = vunpack.c.l.b16 %v6880
    %v6967 = vunpack.c.h.b16 %v6880
    %v6968 = vunpack.c.l.b16 %v6881
    %v6969 = vunpack.c.h.b16 %v6881
    %v6970 = vunpack.c.l.b16 %v6882
    %v6971 = vunpack.c.h.b16 %v6882
    %v6972 = vunpack.c.l.b16 %v6883
    %v6973 = vunpack.c.h.b16 %v6883
    %v6974 = vunpack.c.l.b16 %v6884
    %v6975 = vunpack.c.h.b16 %v6884
    %v6976 = vunpack.c.l.b16 %v6885
    %v6977 = vunpack.c.h.b16 %v6885
    %v6978 = vunpack.c.l.b16 %v6886
    %v6979 = vunpack.c.h.b16 %v6886
    %v6980 = vunpack.c.l.b16 %v6887
    %v6981 = vunpack.c.h.b16 %v6887
    %v6982 = vunpack.c.l.b16 %v6888
    %v6983 = vunpack.c.h.b16 %v6888
    %v6984 = vunpack.c.l.b16 %v6889
    %v6985 = vunpack.c.h.b16 %v6889
    %v6986 = vpack.c.b16 %v6926, %v6922
    %v6987 = vpack.c.b16 %v6927, %v6923
    %v6988 = vpack.c.b16 %v6928, %v6924
    %v6989 = vpack.c.b16 %v6929, %v6925
    %v6990 = vpack.c.b16 %v6934, %v6930
    %v6991 = vpack.c.b16 %v6935, %v6931
    %v6992 = vpack.c.b16 %v6936, %v6932
    %v6993 = vpack.c.b16 %v6937, %v6933
    %v6994 = vpack.c.b16 %v6942, %v6938
    %v6995 = vpack.c.b16 %v6943, %v6939
    %v6996 = vpack.c.b16 %v6944, %v6940
    %v6997 = vpack.c.b16 %v6945, %v6941
    %v6998 = vpack.c.b16 %v6950, %v6946
    %v6999 = vpack.c.b16 %v6951, %v6947
    %v7000 = vpack.c.b16 %v6952, %v6948
    %v7001 = vpack.c.b16 %v6953, %v6949
    %v7002 = vpack.c.b16 %v6958, %v6954
    %v7003 = vpack.c.b16 %v6959, %v6955
    %v7004 = vpack.c.b16 %v6960, %v6956
    %v7005 = vpack.c.b16 %v6961, %v6957
    %v7006 = vpack.c.b16 %v6966, %v6962
    %v7007 = vpack.c.b16 %v6967, %v6963
    %v7008 = vpack.c.b16 %v6968, %v6964
    %v7009 = vpack.c.b16 %v6969, %v6965
    %v7010 = vpack.c.b16 %v6974, %v6970
    %v7011 = vpack.c.b16 %v6975, %v6971
    %v7012 = vpack.c.b16 %v6976, %v6972
    %v7013 = vpack.c.b16 %v6977, %v6973
    %v7014 = vpack.c.b16 %v6982, %v6978
    %v7015 = vpack.c.b16 %v6983, %v6979
    %v7016 = vpack.c.b16 %v6984, %v6980
    %v7017 = vpack.c.b16 %v6985, %v6981
    %7050 = vmatpush.bf16.msra.mxu0 %v7014
    %7051 = vmatpush.bf16.msra.mxu0 %v7010
    %7052 = vmatpush.bf16.msra.mxu0 %v7006
    %7053 = vmatpush.bf16.msra.mxu0 %v7002
    %7054 = vmatpush.bf16.msra.mxu0 %v6998
    %7055 = vmatpush.bf16.msra.mxu0 %v6994
    %7056 = vmatpush.bf16.msra.mxu0 %v6990
    %7057 = vmatpush.bf16.msra.mxu0 %v6986
    %7058 = vmatmul.bf16.gmra.mxu0 %v6857
    %v7059 = vpop.f32.mrf.mxu0
    %v7060 = vadd.f32 0.0, %v7059
    %v7061 = vpop.f32.mrf.mxu0
    %7062 = vdwg.mxu0
    %7063 = vmatpush.bf16.msra.mxu0 %v7015
    %7064 = vmatpush.bf16.msra.mxu0 %v7011
    %7065 = vmatpush.bf16.msra.mxu0 %v7007
    %7066 = vmatpush.bf16.msra.mxu0 %v7003
    %7067 = vmatpush.bf16.msra.mxu0 %v6999
    %7068 = vmatpush.bf16.msra.mxu0 %v6995
    %7069 = vmatpush.bf16.msra.mxu0 %v6991
    %7070 = vmatpush.bf16.msra.mxu0 %v6987
    %7071 = vmatmul.bf16.gmra.mxu0 %v6857
    %v7072 = vpop.f32.mrf.mxu0
    %v7073 = vadd.f32 0.0, %v7072
    %v7074 = vpop.f32.mrf.mxu0
    %7075 = vdwg.mxu0
    %7076 = vmatpush.bf16.msra.mxu0 %v7016
    %7077 = vmatpush.bf16.msra.mxu0 %v7012
    %7078 = vmatpush.bf16.msra.mxu0 %v7008
    %7079 = vmatpush.bf16.msra.mxu0 %v7004
    %7080 = vmatpush.bf16.msra.mxu0 %v7000
    %7081 = vmatpush.bf16.msra.mxu0 %v6996
    %7082 = vmatpush.bf16.msra.mxu0 %v6992
    %7083 = vmatpush.bf16.msra.mxu0 %v6988
    %7084 = vmatmul.bf16.gmra.mxu0 %v6857
    %v7085 = vpop.f32.mrf.mxu0
    %v7086 = vadd.f32 0.0, %v7085
    %v7087 = vpop.f32.mrf.mxu0
    %7088 = vdwg.mxu0
    %7089 = vmatpush.bf16.msra.mxu0 %v7017
    %7090 = vmatpush.bf16.msra.mxu0 %v7013
    %7091 = vmatpush.bf16.msra.mxu0 %v7009
    %7092 = vmatpush.bf16.msra.mxu0 %v7005
    %7093 = vmatpush.bf16.msra.mxu0 %v7001
    %7094 = vmatpush.bf16.msra.mxu0 %v6997
    %7095 = vmatpush.bf16.msra.mxu0 %v6993
    %7096 = vmatpush.bf16.msra.mxu0 %v6989
    %7097 = vmatmul.bf16.gmra.mxu0 %v6857
    %v7098 = vpop.f32.mrf.mxu0
    %v7099 = vadd.f32 0.0, %v7098
    %v7100 = vpop.f32.mrf.mxu0
    %7101 = vdwg.mxu0
    %v7102 = vadd.f32 %v6852, %v7060
    %v7103 = vadd.f32 %v6853, %v7073
    %v7104 = vadd.f32 %v6854, %v7086
    %v7105 = vadd.f32 %v6855, %v7099
    %v7106 = vld [vmem:[#allocation3] sm:$0xff]
    %v7107 = vxor.u32 %v7102, 2147483648
    %v7108 = vmul.f32 %v7107, 1.442695
    %v7109 = vpow.pop %v7108
    %v7110 = vadd.f32 %v7109, 1.0
    %v7111 = vrcp.pop %v7110
    %v7112 = vmul.f32 %v7110, %v7111
    %v7113 = vsub.f32 1.0, %v7112
    %v7114 = vmul.f32 %v7111, %v7113
    %v7115 = vadd.f32 %v7111, %v7114
    %vm7116 = vweird.f32 %v7110
    %vm7117 = vweird.f32 %v7111
    %vm7118 = vmor %vm7116, %vm7117
    %v7119 = vsel %vm7118, %v7111, %v7115
    %v7120 = vand.u32 2147483647, %v7110
    %vm7121 = vcmp.eq.f32.partialorder %v7120, 8.507059e+37
    %v7122 = vand.u32 %v7110, 2147483648
    %v7123 = vor.u32 1.1754944e-38, %v7122
    %v7124 = vsel %vm7121, %v7123, %v7119
    %v7125 = vmul.f32 1.0, %v7124
    %v7126 = vxor.u32 %v7103, 2147483648
    %v7127 = vmul.f32 %v7126, 1.442695
    %v7128 = vpow.pop %v7127
    %v7129 = vadd.f32 %v7128, 1.0
    %v7130 = vrcp.pop %v7129
    %v7131 = vmul.f32 %v7129, %v7130
    %v7132 = vsub.f32 1.0, %v7131
    %v7133 = vmul.f32 %v7130, %v7132
    %v7134 = vadd.f32 %v7130, %v7133
    %vm7135 = vweird.f32 %v7129
    %vm7136 = vweird.f32 %v7130
    %vm7137 = vmor %vm7135, %vm7136
    %v7138 = vsel %vm7137, %v7130, %v7134
    %v7139 = vand.u32 2147483647, %v7129
    %vm7140 = vcmp.eq.f32.partialorder %v7139, 8.507059e+37
    %v7141 = vand.u32 %v7129, 2147483648
    %v7142 = vor.u32 1.1754944e-38, %v7141
    %v7143 = vsel %vm7140, %v7142, %v7138
    %v7144 = vmul.f32 1.0, %v7143
    %v7145 = vtanh.pop %v7104
    %v7146 = vxor.u32 %v7105, 2147483648
    %v7147 = vmul.f32 %v7146, 1.442695
    %v7148 = vpow.pop %v7147
    %v7149 = vadd.f32 %v7148, 1.0
    %v7150 = vrcp.pop %v7149
    %v7151 = vmul.f32 %v7149, %v7150
    %v7152 = vsub.f32 1.0, %v7151
    %v7153 = vmul.f32 %v7150, %v7152
    %v7154 = vadd.f32 %v7150, %v7153
    %vm7155 = vweird.f32 %v7149
    %vm7156 = vweird.f32 %v7150
    %vm7157 = vmor %vm7155, %vm7156
    %v7158 = vsel %vm7157, %v7150, %v7154
    %v7159 = vand.u32 2147483647, %v7149
    %vm7160 = vcmp.eq.f32.partialorder %v7159, 8.507059e+37
    %v7161 = vand.u32 %v7149, 2147483648
    %v7162 = vor.u32 1.1754944e-38, %v7161
    %v7163 = vsel %vm7160, %v7162, %v7158
    %v7164 = vmul.f32 1.0, %v7163
    %v7165 = vmul.f32 %v7144, %v7106
    %v7166 = vmul.f32 %v7125, %v7145
    %v7167 = vadd.f32 %v7165, %v7166
    %v7168 = vtanh.pop %v7167
    %v7169 = vmul.f32 %v7164, %v7168
    %7170 = vst [vmem:[#allocation2] sm:$0xff] %v7169
    %7171 = vst [vmem:[#allocation3] sm:$0xff] %v7167
    %v7172 = vld [vmem:[%s367] sm:$0xff]
    %v7173 = vpack.c.bf16 %v7169, %v7169
    %v7174 = vpack.c.bf16 %v7172, %v7172
    %v7175 = vld [vmem:[#allocation4] sm:$0xff]
    %v7176 = vld [vmem:[#allocation4 + $0x8] sm:$0xff]
    %v7177 = vld [vmem:[#allocation4 + $0x10] sm:$0xff]
    %v7178 = vld [vmem:[#allocation4 + $0x18] sm:$0xff]
    %v7179 = vld [vmem:[#allocation4 + $0x20] sm:$0xff]
    %v7180 = vld [vmem:[#allocation4 + $0x28] sm:$0xff]
    %v7181 = vld [vmem:[#allocation4 + $0x30] sm:$0xff]
    %v7182 = vld [vmem:[#allocation4 + $0x38] sm:$0xff]
    %v7183 = vld [vmem:[#allocation4 + $0x40] sm:$0xff]
    %v7184 = vld [vmem:[#allocation4 + $0x48] sm:$0xff]
    %v7185 = vld [vmem:[#allocation4 + $0x50] sm:$0xff]
    %v7186 = vld [vmem:[#allocation4 + $0x58] sm:$0xff]
    %v7187 = vld [vmem:[#allocation4 + $0x60] sm:$0xff]
    %v7188 = vld [vmem:[#allocation4 + $0x68] sm:$0xff]
    %v7189 = vld [vmem:[#allocation4 + $0x70] sm:$0xff]
    %v7190 = vld [vmem:[#allocation4 + $0x78] sm:$0xff]
    %v7191 = vld [vmem:[#allocation4 + $0x80] sm:$0xff]
    %v7192 = vld [vmem:[#allocation4 + $0x88] sm:$0xff]
    %v7193 = vld [vmem:[#allocation4 + $0x90] sm:$0xff]
    %v7194 = vld [vmem:[#allocation4 + $0x98] sm:$0xff]
    %v7195 = vld [vmem:[#allocation4 + $0xa0] sm:$0xff]
    %v7196 = vld [vmem:[#allocation4 + $0xa8] sm:$0xff]
    %v7197 = vld [vmem:[#allocation4 + $0xb0] sm:$0xff]
    %v7198 = vld [vmem:[#allocation4 + $0xb8] sm:$0xff]
    %v7199 = vld [vmem:[#allocation4 + $0xc0] sm:$0xff]
    %v7200 = vld [vmem:[#allocation4 + $0xc8] sm:$0xff]
    %v7201 = vld [vmem:[#allocation4 + $0xd0] sm:$0xff]
    %v7202 = vld [vmem:[#allocation4 + $0xd8] sm:$0xff]
    %v7203 = vld [vmem:[#allocation4 + $0xe0] sm:$0xff]
    %v7204 = vld [vmem:[#allocation4 + $0xe8] sm:$0xff]
    %v7205 = vld [vmem:[#allocation4 + $0xf0] sm:$0xff]
    %v7206 = vld [vmem:[#allocation4 + $0xf8] sm:$0xff]
    %v7207 = vld [vmem:[#allocation4 + $0x100] sm:$0xff]
    %v7208 = vld [vmem:[#allocation4 + $0x108] sm:$0xff]
    %v7209 = vld [vmem:[#allocation4 + $0x110] sm:$0xff]
    %v7210 = vld [vmem:[#allocation4 + $0x118] sm:$0xff]
    %v7211 = vld [vmem:[#allocation4 + $0x120] sm:$0xff]
    %v7212 = vld [vmem:[#allocation4 + $0x128] sm:$0xff]
    %v7213 = vld [vmem:[#allocation4 + $0x130] sm:$0xff]
    %v7214 = vld [vmem:[#allocation4 + $0x138] sm:$0xff]
    %v7215 = vld [vmem:[#allocation4 + $0x140] sm:$0xff]
    %v7216 = vld [vmem:[#allocation4 + $0x148] sm:$0xff]
    %v7217 = vld [vmem:[#allocation4 + $0x150] sm:$0xff]
    %v7218 = vld [vmem:[#allocation4 + $0x158] sm:$0xff]
    %v7219 = vld [vmem:[#allocation4 + $0x160] sm:$0xff]
    %v7220 = vld [vmem:[#allocation4 + $0x168] sm:$0xff]
    %v7221 = vld [vmem:[#allocation4 + $0x170] sm:$0xff]
    %v7222 = vld [vmem:[#allocation4 + $0x178] sm:$0xff]
    %v7223 = vld [vmem:[#allocation4 + $0x180] sm:$0xff]
    %v7224 = vld [vmem:[#allocation4 + $0x188] sm:$0xff]
    %v7225 = vld [vmem:[#allocation4 + $0x190] sm:$0xff]
    %v7226 = vld [vmem:[#allocation4 + $0x198] sm:$0xff]
    %v7227 = vld [vmem:[#allocation4 + $0x1a0] sm:$0xff]
    %v7228 = vld [vmem:[#allocation4 + $0x1a8] sm:$0xff]
    %v7229 = vld [vmem:[#allocation4 + $0x1b0] sm:$0xff]
    %v7230 = vld [vmem:[#allocation4 + $0x1b8] sm:$0xff]
    %v7231 = vld [vmem:[#allocation4 + $0x1c0] sm:$0xff]
    %v7232 = vld [vmem:[#allocation4 + $0x1c8] sm:$0xff]
    %v7233 = vld [vmem:[#allocation4 + $0x1d0] sm:$0xff]
    %v7234 = vld [vmem:[#allocation4 + $0x1d8] sm:$0xff]
    %v7235 = vld [vmem:[#allocation4 + $0x1e0] sm:$0xff]
    %v7236 = vld [vmem:[#allocation4 + $0x1e8] sm:$0xff]
    %v7237 = vld [vmem:[#allocation4 + $0x1f0] sm:$0xff]
    %v7238 = vld [vmem:[#allocation4 + $0x1f8] sm:$0xff]
    %v7239 = vld [vmem:[%s3] sm:$0xf]
    %v7241 = vperm.slane %v7239, 0
    %v7242 = vperm.slane %v7239, 1
    %v7243 = vperm.slane %v7239, 2
    %v7244 = vperm.slane %v7239, 3
    %v7313 = vunpack.c.l.b16 %v7175
    %v7314 = vunpack.c.h.b16 %v7175
    %v7315 = vunpack.c.l.b16 %v7176
    %v7316 = vunpack.c.h.b16 %v7176
    %v7317 = vunpack.c.l.b16 %v7177
    %v7318 = vunpack.c.h.b16 %v7177
    %v7319 = vunpack.c.l.b16 %v7178
    %v7320 = vunpack.c.h.b16 %v7178
    %v7321 = vunpack.c.l.b16 %v7179
    %v7322 = vunpack.c.h.b16 %v7179
    %v7323 = vunpack.c.l.b16 %v7180
    %v7324 = vunpack.c.h.b16 %v7180
    %v7325 = vunpack.c.l.b16 %v7181
    %v7326 = vunpack.c.h.b16 %v7181
    %v7327 = vunpack.c.l.b16 %v7182
    %v7328 = vunpack.c.h.b16 %v7182
    %v7329 = vunpack.c.l.b16 %v7183
    %v7330 = vunpack.c.h.b16 %v7183
    %v7331 = vunpack.c.l.b16 %v7184
    %v7332 = vunpack.c.h.b16 %v7184
    %v7333 = vunpack.c.l.b16 %v7185
    %v7334 = vunpack.c.h.b16 %v7185
    %v7335 = vunpack.c.l.b16 %v7186
    %v7336 = vunpack.c.h.b16 %v7186
    %v7337 = vunpack.c.l.b16 %v7187
    %v7338 = vunpack.c.h.b16 %v7187
    %v7339 = vunpack.c.l.b16 %v7188
    %v7340 = vunpack.c.h.b16 %v7188
    %v7341 = vunpack.c.l.b16 %v7189
    %v7342 = vunpack.c.h.b16 %v7189
    %v7343 = vunpack.c.l.b16 %v7190
    %v7344 = vunpack.c.h.b16 %v7190
    %v7345 = vunpack.c.l.b16 %v7191
    %v7346 = vunpack.c.h.b16 %v7191
    %v7347 = vunpack.c.l.b16 %v7192
    %v7348 = vunpack.c.h.b16 %v7192
    %v7349 = vunpack.c.l.b16 %v7193
    %v7350 = vunpack.c.h.b16 %v7193
    %v7351 = vunpack.c.l.b16 %v7194
    %v7352 = vunpack.c.h.b16 %v7194
    %v7353 = vunpack.c.l.b16 %v7195
    %v7354 = vunpack.c.h.b16 %v7195
    %v7355 = vunpack.c.l.b16 %v7196
    %v7356 = vunpack.c.h.b16 %v7196
    %v7357 = vunpack.c.l.b16 %v7197
    %v7358 = vunpack.c.h.b16 %v7197
    %v7359 = vunpack.c.l.b16 %v7198
    %v7360 = vunpack.c.h.b16 %v7198
    %v7361 = vunpack.c.l.b16 %v7199
    %v7362 = vunpack.c.h.b16 %v7199
    %v7363 = vunpack.c.l.b16 %v7200
    %v7364 = vunpack.c.h.b16 %v7200
    %v7365 = vunpack.c.l.b16 %v7201
    %v7366 = vunpack.c.h.b16 %v7201
    %v7367 = vunpack.c.l.b16 %v7202
    %v7368 = vunpack.c.h.b16 %v7202
    %v7369 = vunpack.c.l.b16 %v7203
    %v7370 = vunpack.c.h.b16 %v7203
    %v7371 = vunpack.c.l.b16 %v7204
    %v7372 = vunpack.c.h.b16 %v7204
    %v7373 = vunpack.c.l.b16 %v7205
    %v7374 = vunpack.c.h.b16 %v7205
    %v7375 = vunpack.c.l.b16 %v7206
    %v7376 = vunpack.c.h.b16 %v7206
    %v7377 = vunpack.c.l.b16 %v7207
    %v7378 = vunpack.c.h.b16 %v7207
    %v7379 = vunpack.c.l.b16 %v7208
    %v7380 = vunpack.c.h.b16 %v7208
    %v7381 = vunpack.c.l.b16 %v7209
    %v7382 = vunpack.c.h.b16 %v7209
    %v7383 = vunpack.c.l.b16 %v7210
    %v7384 = vunpack.c.h.b16 %v7210
    %v7385 = vunpack.c.l.b16 %v7211
    %v7386 = vunpack.c.h.b16 %v7211
    %v7387 = vunpack.c.l.b16 %v7212
    %v7388 = vunpack.c.h.b16 %v7212
    %v7389 = vunpack.c.l.b16 %v7213
    %v7390 = vunpack.c.h.b16 %v7213
    %v7391 = vunpack.c.l.b16 %v7214
    %v7392 = vunpack.c.h.b16 %v7214
    %v7393 = vunpack.c.l.b16 %v7215
    %v7394 = vunpack.c.h.b16 %v7215
    %v7395 = vunpack.c.l.b16 %v7216
    %v7396 = vunpack.c.h.b16 %v7216
    %v7397 = vunpack.c.l.b16 %v7217
    %v7398 = vunpack.c.h.b16 %v7217
    %v7399 = vunpack.c.l.b16 %v7218
    %v7400 = vunpack.c.h.b16 %v7218
    %v7401 = vunpack.c.l.b16 %v7219
    %v7402 = vunpack.c.h.b16 %v7219
    %v7403 = vunpack.c.l.b16 %v7220
    %v7404 = vunpack.c.h.b16 %v7220
    %v7405 = vunpack.c.l.b16 %v7221
    %v7406 = vunpack.c.h.b16 %v7221
    %v7407 = vunpack.c.l.b16 %v7222
    %v7408 = vunpack.c.h.b16 %v7222
    %v7409 = vunpack.c.l.b16 %v7223
    %v7410 = vunpack.c.h.b16 %v7223
    %v7411 = vunpack.c.l.b16 %v7224
    %v7412 = vunpack.c.h.b16 %v7224
    %v7413 = vunpack.c.l.b16 %v7225
    %v7414 = vunpack.c.h.b16 %v7225
    %v7415 = vunpack.c.l.b16 %v7226
    %v7416 = vunpack.c.h.b16 %v7226
    %v7417 = vunpack.c.l.b16 %v7227
    %v7418 = vunpack.c.h.b16 %v7227
    %v7419 = vunpack.c.l.b16 %v7228
    %v7420 = vunpack.c.h.b16 %v7228
    %v7421 = vunpack.c.l.b16 %v7229
    %v7422 = vunpack.c.h.b16 %v7229
    %v7423 = vunpack.c.l.b16 %v7230
    %v7424 = vunpack.c.h.b16 %v7230
    %v7425 = vunpack.c.l.b16 %v7231
    %v7426 = vunpack.c.h.b16 %v7231
    %v7427 = vunpack.c.l.b16 %v7232
    %v7428 = vunpack.c.h.b16 %v7232
    %v7429 = vunpack.c.l.b16 %v7233
    %v7430 = vunpack.c.h.b16 %v7233
    %v7431 = vunpack.c.l.b16 %v7234
    %v7432 = vunpack.c.h.b16 %v7234
    %v7433 = vunpack.c.l.b16 %v7235
    %v7434 = vunpack.c.h.b16 %v7235
    %v7435 = vunpack.c.l.b16 %v7236
    %v7436 = vunpack.c.h.b16 %v7236
    %v7437 = vunpack.c.l.b16 %v7237
    %v7438 = vunpack.c.h.b16 %v7237
    %v7439 = vunpack.c.l.b16 %v7238
    %v7440 = vunpack.c.h.b16 %v7238
    %v7441 = vpack.c.b16 %v7317, %v7313
    %v7442 = vpack.c.b16 %v7318, %v7314
    %v7443 = vpack.c.b16 %v7319, %v7315
    %v7444 = vpack.c.b16 %v7320, %v7316
    %v7445 = vpack.c.b16 %v7325, %v7321
    %v7446 = vpack.c.b16 %v7326, %v7322
    %v7447 = vpack.c.b16 %v7327, %v7323
    %v7448 = vpack.c.b16 %v7328, %v7324
    %v7449 = vpack.c.b16 %v7333, %v7329
    %v7450 = vpack.c.b16 %v7334, %v7330
    %v7451 = vpack.c.b16 %v7335, %v7331
    %v7452 = vpack.c.b16 %v7336, %v7332
    %v7453 = vpack.c.b16 %v7341, %v7337
    %v7454 = vpack.c.b16 %v7342, %v7338
    %v7455 = vpack.c.b16 %v7343, %v7339
    %v7456 = vpack.c.b16 %v7344, %v7340
    %v7457 = vpack.c.b16 %v7349, %v7345
    %v7458 = vpack.c.b16 %v7350, %v7346
    %v7459 = vpack.c.b16 %v7351, %v7347
    %v7460 = vpack.c.b16 %v7352, %v7348
    %v7461 = vpack.c.b16 %v7357, %v7353
    %v7462 = vpack.c.b16 %v7358, %v7354
    %v7463 = vpack.c.b16 %v7359, %v7355
    %v7464 = vpack.c.b16 %v7360, %v7356
    %v7465 = vpack.c.b16 %v7365, %v7361
    %v7466 = vpack.c.b16 %v7366, %v7362
    %v7467 = vpack.c.b16 %v7367, %v7363
    %v7468 = vpack.c.b16 %v7368, %v7364
    %v7469 = vpack.c.b16 %v7373, %v7369
    %v7470 = vpack.c.b16 %v7374, %v7370
    %v7471 = vpack.c.b16 %v7375, %v7371
    %v7472 = vpack.c.b16 %v7376, %v7372
    %v7473 = vpack.c.b16 %v7381, %v7377
    %v7474 = vpack.c.b16 %v7382, %v7378
    %v7475 = vpack.c.b16 %v7383, %v7379
    %v7476 = vpack.c.b16 %v7384, %v7380
    %v7477 = vpack.c.b16 %v7389, %v7385
    %v7478 = vpack.c.b16 %v7390, %v7386
    %v7479 = vpack.c.b16 %v7391, %v7387
    %v7480 = vpack.c.b16 %v7392, %v7388
    %v7481 = vpack.c.b16 %v7397, %v7393
    %v7482 = vpack.c.b16 %v7398, %v7394
    %v7483 = vpack.c.b16 %v7399, %v7395
    %v7484 = vpack.c.b16 %v7400, %v7396
    %v7485 = vpack.c.b16 %v7405, %v7401
    %v7486 = vpack.c.b16 %v7406, %v7402
    %v7487 = vpack.c.b16 %v7407, %v7403
    %v7488 = vpack.c.b16 %v7408, %v7404
    %v7489 = vpack.c.b16 %v7413, %v7409
    %v7490 = vpack.c.b16 %v7414, %v7410
    %v7491 = vpack.c.b16 %v7415, %v7411
    %v7492 = vpack.c.b16 %v7416, %v7412
    %v7493 = vpack.c.b16 %v7421, %v7417
    %v7494 = vpack.c.b16 %v7422, %v7418
    %v7495 = vpack.c.b16 %v7423, %v7419
    %v7496 = vpack.c.b16 %v7424, %v7420
    %v7497 = vpack.c.b16 %v7429, %v7425
    %v7498 = vpack.c.b16 %v7430, %v7426
    %v7499 = vpack.c.b16 %v7431, %v7427
    %v7500 = vpack.c.b16 %v7432, %v7428
    %v7501 = vpack.c.b16 %v7437, %v7433
    %v7502 = vpack.c.b16 %v7438, %v7434
    %v7503 = vpack.c.b16 %v7439, %v7435
    %v7504 = vpack.c.b16 %v7440, %v7436
    %7569 = vmatpush.bf16.msra.mxu0 %v7469
    %7570 = vmatpush.bf16.msra.mxu0 %v7465
    %7571 = vmatpush.bf16.msra.mxu0 %v7461
    %7572 = vmatpush.bf16.msra.mxu0 %v7457
    %7573 = vmatpush.bf16.msra.mxu0 %v7453
    %7574 = vmatpush.bf16.msra.mxu0 %v7449
    %7575 = vmatpush.bf16.msra.mxu0 %v7445
    %7576 = vmatpush.bf16.msra.mxu0 %v7441
    %7577 = vmatmul.bf16.gmra.mxu0 %v7173
    %v7578 = vpop.f32.mrf.mxu0
    %v7579 = vadd.f32 %v7241, %v7578
    %v7580 = vpop.f32.mrf.mxu0
    %7581 = vdwg.mxu0
    %7582 = vmatpush.bf16.msra.mxu0 %v7501
    %7583 = vmatpush.bf16.msra.mxu0 %v7497
    %7584 = vmatpush.bf16.msra.mxu0 %v7493
    %7585 = vmatpush.bf16.msra.mxu0 %v7489
    %7586 = vmatpush.bf16.msra.mxu0 %v7485
    %7587 = vmatpush.bf16.msra.mxu0 %v7481
    %7588 = vmatpush.bf16.msra.mxu0 %v7477
    %7589 = vmatpush.bf16.msra.mxu0 %v7473
    %7590 = vmatmul.bf16.gmra.mxu0 %v7174
    %v7591 = vpop.f32.mrf.mxu0
    %v7592 = vadd.f32 %v7579, %v7591
    %v7593 = vpop.f32.mrf.mxu0
    %7594 = vdwg.mxu0
    %7595 = vmatpush.bf16.msra.mxu0 %v7470
    %7596 = vmatpush.bf16.msra.mxu0 %v7466
    %7597 = vmatpush.bf16.msra.mxu0 %v7462
    %7598 = vmatpush.bf16.msra.mxu0 %v7458
    %7599 = vmatpush.bf16.msra.mxu0 %v7454
    %7600 = vmatpush.bf16.msra.mxu0 %v7450
    %7601 = vmatpush.bf16.msra.mxu0 %v7446
    %7602 = vmatpush.bf16.msra.mxu0 %v7442
    %7603 = vmatmul.bf16.gmra.mxu0 %v7173
    %v7604 = vpop.f32.mrf.mxu0
    %v7605 = vadd.f32 %v7242, %v7604
    %v7606 = vpop.f32.mrf.mxu0
    %7607 = vdwg.mxu0
    %7608 = vmatpush.bf16.msra.mxu0 %v7502
    %7609 = vmatpush.bf16.msra.mxu0 %v7498
    %7610 = vmatpush.bf16.msra.mxu0 %v7494
    %7611 = vmatpush.bf16.msra.mxu0 %v7490
    %7612 = vmatpush.bf16.msra.mxu0 %v7486
    %7613 = vmatpush.bf16.msra.mxu0 %v7482
    %7614 = vmatpush.bf16.msra.mxu0 %v7478
    %7615 = vmatpush.bf16.msra.mxu0 %v7474
    %7616 = vmatmul.bf16.gmra.mxu0 %v7174
    %v7617 = vpop.f32.mrf.mxu0
    %v7618 = vadd.f32 %v7605, %v7617
    %v7619 = vpop.f32.mrf.mxu0
    %7620 = vdwg.mxu0
    %7621 = vmatpush.bf16.msra.mxu0 %v7471
    %7622 = vmatpush.bf16.msra.mxu0 %v7467
    %7623 = vmatpush.bf16.msra.mxu0 %v7463
    %7624 = vmatpush.bf16.msra.mxu0 %v7459
    %7625 = vmatpush.bf16.msra.mxu0 %v7455
    %7626 = vmatpush.bf16.msra.mxu0 %v7451
    %7627 = vmatpush.bf16.msra.mxu0 %v7447
    %7628 = vmatpush.bf16.msra.mxu0 %v7443
    %7629 = vmatmul.bf16.gmra.mxu0 %v7173
    %v7630 = vpop.f32.mrf.mxu0
    %v7631 = vadd.f32 %v7243, %v7630
    %v7632 = vpop.f32.mrf.mxu0
    %7633 = vdwg.mxu0
    %7634 = vmatpush.bf16.msra.mxu0 %v7503
    %7635 = vmatpush.bf16.msra.mxu0 %v7499
    %7636 = vmatpush.bf16.msra.mxu0 %v7495
    %7637 = vmatpush.bf16.msra.mxu0 %v7491
    %7638 = vmatpush.bf16.msra.mxu0 %v7487
    %7639 = vmatpush.bf16.msra.mxu0 %v7483
    %7640 = vmatpush.bf16.msra.mxu0 %v7479
    %7641 = vmatpush.bf16.msra.mxu0 %v7475
    %7642 = vmatmul.bf16.gmra.mxu0 %v7174
    %v7643 = vpop.f32.mrf.mxu0
    %v7644 = vadd.f32 %v7631, %v7643
    %v7645 = vpop.f32.mrf.mxu0
    %7646 = vdwg.mxu0
    %7647 = vmatpush.bf16.msra.mxu0 %v7472
    %7648 = vmatpush.bf16.msra.mxu0 %v7468
    %7649 = vmatpush.bf16.msra.mxu0 %v7464
    %7650 = vmatpush.bf16.msra.mxu0 %v7460
    %7651 = vmatpush.bf16.msra.mxu0 %v7456
    %7652 = vmatpush.bf16.msra.mxu0 %v7452
    %7653 = vmatpush.bf16.msra.mxu0 %v7448
    %7654 = vmatpush.bf16.msra.mxu0 %v7444
    %7655 = vmatmul.bf16.gmra.mxu0 %v7173
    %v7656 = vpop.f32.mrf.mxu0
    %v7657 = vadd.f32 %v7244, %v7656
    %v7658 = vpop.f32.mrf.mxu0
    %7659 = vdwg.mxu0
    %7660 = vmatpush.bf16.msra.mxu0 %v7504
    %7661 = vmatpush.bf16.msra.mxu0 %v7500
    %7662 = vmatpush.bf16.msra.mxu0 %v7496
    %7663 = vmatpush.bf16.msra.mxu0 %v7492
    %7664 = vmatpush.bf16.msra.mxu0 %v7488
    %7665 = vmatpush.bf16.msra.mxu0 %v7484
    %7666 = vmatpush.bf16.msra.mxu0 %v7480
    %7667 = vmatpush.bf16.msra.mxu0 %v7476
    %7668 = vmatmul.bf16.gmra.mxu0 %v7174
    %v7669 = vpop.f32.mrf.mxu0
    %v7670 = vadd.f32 %v7657, %v7669
    %v7671 = vpop.f32.mrf.mxu0
    %7672 = vdwg.mxu0
    %v7673 = vld [vmem:[%s869] sm:$0xff]
    %v7674 = vxor.u32 %v7592, 2147483648
    %v7675 = vmul.f32 %v7674, 1.442695
    %v7676 = vpow.pop %v7675
    %v7677 = vadd.f32 %v7676, 1.0
    %v7678 = vrcp.pop %v7677
    %v7679 = vmul.f32 %v7677, %v7678
    %v7680 = vsub.f32 1.0, %v7679
    %v7681 = vmul.f32 %v7678, %v7680
    %v7682 = vadd.f32 %v7678, %v7681
    %vm7683 = vweird.f32 %v7677
    %vm7684 = vweird.f32 %v7678
    %vm7685 = vmor %vm7683, %vm7684
    %v7686 = vsel %vm7685, %v7678, %v7682
    %v7687 = vand.u32 2147483647, %v7677
    %vm7688 = vcmp.eq.f32.partialorder %v7687, 8.507059e+37
    %v7689 = vand.u32 %v7677, 2147483648
    %v7690 = vor.u32 1.1754944e-38, %v7689
    %v7691 = vsel %vm7688, %v7690, %v7686
    %v7692 = vmul.f32 1.0, %v7691
    %v7693 = vxor.u32 %v7618, 2147483648
    %v7694 = vmul.f32 %v7693, 1.442695
    %v7695 = vpow.pop %v7694
    %v7696 = vadd.f32 %v7695, 1.0
    %v7697 = vrcp.pop %v7696
    %v7698 = vmul.f32 %v7696, %v7697
    %v7699 = vsub.f32 1.0, %v7698
    %v7700 = vmul.f32 %v7697, %v7699
    %v7701 = vadd.f32 %v7697, %v7700
    %vm7702 = vweird.f32 %v7696
    %vm7703 = vweird.f32 %v7697
    %vm7704 = vmor %vm7702, %vm7703
    %v7705 = vsel %vm7704, %v7697, %v7701
    %v7706 = vand.u32 2147483647, %v7696
    %vm7707 = vcmp.eq.f32.partialorder %v7706, 8.507059e+37
    %v7708 = vand.u32 %v7696, 2147483648
    %v7709 = vor.u32 1.1754944e-38, %v7708
    %v7710 = vsel %vm7707, %v7709, %v7705
    %v7711 = vmul.f32 1.0, %v7710
    %v7712 = vtanh.pop %v7644
    %v7713 = vxor.u32 %v7670, 2147483648
    %v7714 = vmul.f32 %v7713, 1.442695
    %v7715 = vpow.pop %v7714
    %v7716 = vadd.f32 %v7715, 1.0
    %v7717 = vrcp.pop %v7716
    %v7718 = vmul.f32 %v7716, %v7717
    %v7719 = vsub.f32 1.0, %v7718
    %v7720 = vmul.f32 %v7717, %v7719
    %v7721 = vadd.f32 %v7717, %v7720
    %vm7722 = vweird.f32 %v7716
    %vm7723 = vweird.f32 %v7717
    %vm7724 = vmor %vm7722, %vm7723
    %v7725 = vsel %vm7724, %v7717, %v7721
    %v7726 = vand.u32 2147483647, %v7716
    %vm7727 = vcmp.eq.f32.partialorder %v7726, 8.507059e+37
    %v7728 = vand.u32 %v7716, 2147483648
    %v7729 = vor.u32 1.1754944e-38, %v7728
    %v7730 = vsel %vm7727, %v7729, %v7725
    %v7731 = vmul.f32 1.0, %v7730
    %v7732 = vmul.f32 %v7711, %v7673
    %v7733 = vmul.f32 %v7692, %v7712
    %v7734 = vadd.f32 %v7732, %v7733
    %v7735 = vtanh.pop %v7734
    %v7736 = vmul.f32 %v7731, %v7735
    %7737 = vst [vmem:[%s367] sm:$0xff] %v7736
    %7738 = vst [vmem:[%s869] sm:$0xff] %v7734
    %v7739 = vpack.c.bf16 %v7736, %v7736
    %v7740 = vld [vmem:[%s4] sm:$0xf]
    %v7741 = vld [vmem:[%s4 + $0x4] sm:$0xf]
    %v7742 = vld [vmem:[%s4 + $0x8] sm:$0xf]
    %v7743 = vld [vmem:[%s4 + $0xc] sm:$0xf]
    %v7744 = vld [vmem:[%s4 + $0x10] sm:$0xf]
    %v7745 = vld [vmem:[%s4 + $0x14] sm:$0xf]
    %v7746 = vld [vmem:[%s4 + $0x18] sm:$0xf]
    %v7747 = vld [vmem:[%s4 + $0x1c] sm:$0xf]
    %v7748 = vld [vmem:[%s4 + $0x20] sm:$0xf]
    %v7749 = vld [vmem:[%s4 + $0x24] sm:$0xf]
    %v7750 = vld [vmem:[%s4 + $0x28] sm:$0xf]
    %v7751 = vld [vmem:[%s4 + $0x2c] sm:$0xf]
    %v7752 = vld [vmem:[%s4 + $0x30] sm:$0xf]
    %v7753 = vld [vmem:[%s4 + $0x34] sm:$0xf]
    %v7754 = vld [vmem:[%s4 + $0x38] sm:$0xf]
    %v7755 = vld [vmem:[%s4 + $0x3c] sm:$0xf]
    %v7756 = vld [vmem:[%s5] sm:$0x1]
    %v7758 = vperm.slane %v7756, 0
    %v7776 = vunpack.c.l.b16 %v7740
    %v7777 = vunpack.c.l.b16 %v7741
    %v7778 = vunpack.c.l.b16 %v7742
    %v7779 = vunpack.c.l.b16 %v7743
    %v7780 = vunpack.c.l.b16 %v7744
    %v7781 = vunpack.c.l.b16 %v7745
    %v7782 = vunpack.c.l.b16 %v7746
    %v7783 = vunpack.c.l.b16 %v7747
    %v7784 = vunpack.c.l.b16 %v7748
    %v7785 = vunpack.c.l.b16 %v7749
    %v7786 = vunpack.c.l.b16 %v7750
    %v7787 = vunpack.c.l.b16 %v7751
    %v7788 = vunpack.c.l.b16 %v7752
    %v7789 = vunpack.c.l.b16 %v7753
    %v7790 = vunpack.c.l.b16 %v7754
    %v7791 = vunpack.c.l.b16 %v7755
    %v7792 = vpack.c.b16 %v7777, %v7776
    %v7793 = vpack.c.b16 %v7779, %v7778
    %v7794 = vpack.c.b16 %v7781, %v7780
    %v7795 = vpack.c.b16 %v7783, %v7782
    %v7796 = vpack.c.b16 %v7785, %v7784
    %v7797 = vpack.c.b16 %v7787, %v7786
    %v7798 = vpack.c.b16 %v7789, %v7788
    %v7799 = vpack.c.b16 %v7791, %v7790
    %7808 = vmatpush.bf16.msra.mxu0 %v7799
    %7809 = vmatpush.bf16.msra.mxu0 %v7798
    %7810 = vmatpush.bf16.msra.mxu0 %v7797
    %7811 = vmatpush.bf16.msra.mxu0 %v7796
    %7812 = vmatpush.bf16.msra.mxu0 %v7795
    %7813 = vmatpush.bf16.msra.mxu0 %v7794
    %7814 = vmatpush.bf16.msra.mxu0 %v7793
    %7815 = vmatpush.bf16.msra.mxu0 %v7792
    %7816 = vmatmul.bf16.gmra.mxu0 %v7739
    %v7817 = vpop.f32.mrf.mxu0
    %v7818 = vadd.f32 %v7758, %v7817
    %v7819 = vpop.f32.mrf.mxu0
    %7820 = vdwg.mxu0
    %s7821 = scalar_lea.vmem %s6, 56
    %7822 = vst [vmem:[%s7821] sm:$0xff] %v7818
    // Predicated region
    $region34: #{forward.3} parent=1 // pred_check
      _
    $region35: #{forward.3} parent=1 // pred_check_branch
      %7824 = sbr.rel (0) target = $region37
    $region36: #{forward.3} parent=1 // pred_region
      _
    $region37: #{forward.3} parent=1 // pred_fallthru
      _
    // Predicated region
    $region38: #{forward.3} parent=1 // pred_check
      _
    $region39: #{forward.3} parent=1 // pred_check_branch
      %7826 = sbr.rel (0) target = $region41
    $region40: #{forward.3} parent=1 // pred_region
      _
    $region41: #{forward.3} parent=1 // pred_fallthru
      _
    %7827 = vsyncpa [#allocation5], 1

</llo_original>
